<compile_context>
chip_gen: v5e
topology: v5e:2x2
jax: 0.10.0
libtpu: 0.0.40
codegen_flags: <defaults>
</compile_context>

<pallas_src>
import functools

import jax
import jax.numpy as jnp
from jax import lax
from jax.experimental import pallas as pl
from jax.experimental.pallas import tpu as pltpu

IGNORE_INDEX = -100
NEG = -1.0e30


# ------------------------------ fused Pallas kernel -------------------------------

def _fused_ctc_decoder_kernel(x_ref, valid_ref, cos_ref, sin_ref,
                              inw_ref, inb_ref,
                              wqkv_ref, wo_ref, wgu_ref, wd_ref,
                              outw_ref, outb_ref,
                              o_ref,
                              h_scratch,
                              *, n_heads, head_dim, eps):
    f32, bf16 = jnp.float32, jnp.bfloat16
    l = pl.program_id(1)
    n_l = pl.num_programs(1)

    Bt, T, Hin = x_ref.shape
    D = wo_ref.shape[0]                       # (D, D) per-layer block (leading L squeezed)
    I = wd_ref.shape[0]                       # (I, D)
    M = Bt * T
    half = head_dim // 2

    # ---- first layer step: input projection into the resident activation scratch ----
    @pl.when(l == 0)
    def _():
        x2d = x_ref[...].reshape(M, Hin)
        h_scratch[...] = (jnp.dot(x2d.astype(bf16), inw_ref[...],
                                  preferred_element_type=f32) + inb_ref[...])

    h = h_scratch[...]                        # (M, D) f32, carried across layer steps

    def rms(v):                               # RMSNorm; gains folded into wqkv / wgu
        return v * lax.rsqrt(jnp.mean(v * v, axis=-1, keepdims=True) + eps)

    cos = cos_ref[...]                        # (T, head_dim // 2) f32
    sin = sin_ref[...]

    def rope(vh):                             # Llama rotate-half RoPE on one (T, hd) head
        v1 = vh[:, :half]
        v2 = vh[:, half:]
        return jnp.concatenate([v1 * cos - v2 * sin, v2 * cos + v1 * sin], axis=-1)

    # ---- self attention (QKV in ONE fused matmul, per-head sliced attention) ----
    xb = rms(h).astype(bf16)
    qkv = jnp.dot(xb, wqkv_ref[...], preferred_element_type=f32)    # (M, 3D)

    # Causal mask shared by every sample / head.
    row = lax.broadcasted_iota(jnp.int32, (T, T), 0)
    col = lax.broadcasted_iota(jnp.int32, (T, T), 1)
    causal = col <= row

    # TODO(synk): for large T switch to key-tiled (flash-style) online softmax; the
    # dense (T, T) bias/score path is fine at T <= a few hundred.
    per_sample = []
    for b in range(Bt):                       # static, small
        r0 = b * T
        qb = qkv[r0:r0 + T, :D]               # 1/sqrt(head_dim) already folded into wq
        kb = qkv[r0:r0 + T, D:2 * D]
        vb = qkv[r0:r0 + T, 2 * D:]
        # causal + key-padding folded into ONE additive bias (single NEG, never stacked)
        bias = jnp.where(causal & (valid_ref[b] > 0.5), 0.0, NEG)   # (T, T)

        heads = []
        for hh in range(n_heads):             # contraction over head_dim, not D
            c0 = hh * head_dim
            qh = rope(qb[:, c0:c0 + head_dim]).astype(bf16)         # (T, hd)
            kh = rope(kb[:, c0:c0 + head_dim]).astype(bf16)
            vh = vb[:, c0:c0 + head_dim].astype(bf16)
            s = lax.dot_general(qh, kh, (((1,), (1,)), ((), ())),
                                preferred_element_type=f32) + bias  # (T, T)
            mx = jnp.max(s, axis=-1, keepdims=True)
            p = jnp.exp(s - mx)
            p = p * pl.reciprocal(jnp.sum(p, axis=-1, keepdims=True), approx=True)
            heads.append(jnp.dot(p.astype(bf16), vh, preferred_element_type=f32))
        per_sample.append(jnp.concatenate(heads, axis=-1))          # (T, D)
    attn = jnp.concatenate(per_sample, axis=0)                      # (M, D)
    h = h + jnp.dot(attn.astype(bf16), wo_ref[...], preferred_element_type=f32)

    # ---- MLP (SwiGLU), gate + up fused into one matmul ----
    hb = rms(h).astype(bf16)
    gu = jnp.dot(hb, wgu_ref[...], preferred_element_type=f32)      # (M, 2I)
    g = gu[:, :I]
    u = gu[:, I:]
    h = h + jnp.dot((g * jax.nn.sigmoid(g) * u).astype(bf16), wd_ref[...],
                    preferred_element_type=f32)

    h_scratch[...] = h

    # ---- last layer step: output projection fused with log_softmax ----
    @pl.when(l == n_l - 1)
    def _():
        logits = (jnp.dot(h.astype(bf16), outw_ref[...], preferred_element_type=f32)
                  + outb_ref[...])
        mx = jnp.max(logits, axis=-1, keepdims=True)
        lse = jnp.log(jnp.sum(jnp.exp(logits - mx), axis=-1, keepdims=True)) + mx
        o_ref[...] = (logits - lse).reshape(o_ref.shape)


def fused_decoder_pallas(x, valid, cos, sin, pk, *, n_heads, head_dim,
                         eps=1e-6, batch_block=None):
    B, T, Hin = x.shape
    L, D, _ = pk["wqkv"].shape
    I = pk["wd"].shape[1]
    C = pk["out_w"].shape[1]
    half = head_dim // 2

    Bt = B if batch_block is None else batch_block   # rows per grid step = Bt * T
    assert B % Bt == 0
    nb = B // Bt

    kern = functools.partial(_fused_ctc_decoder_kernel, n_heads=n_heads,
                             head_dim=head_dim, eps=eps)

    def rep(shape):                           # block whose index never changes: the
        return pl.BlockSpec(shape, lambda b, l: (0,) * len(shape))   # pipeline re-uses it

    return pl.pallas_call(
        kern,
        out_shape=jax.ShapeDtypeStruct((B, T, C), jnp.float32),
        grid=(nb, L),
        in_specs=[
            pl.BlockSpec((Bt, T, Hin), lambda b, l: (b, 0, 0)),     # upsampled reps
            pl.BlockSpec((Bt, 1, T), lambda b, l: (b, 0, 0)),       # key validity (1/0)
            rep((T, half)), rep((T, half)),                         # RoPE cos / sin
            rep((Hin, D)), rep((1, D)),                             # input proj
            pl.BlockSpec((None, D, 3 * D), lambda b, l: (l, 0, 0)),  # fused wq|wk|wv
            pl.BlockSpec((None, D, D), lambda b, l: (l, 0, 0)),      # wo
            pl.BlockSpec((None, D, 2 * I), lambda b, l: (l, 0, 0)),  # fused wg|wu
            pl.BlockSpec((None, I, D), lambda b, l: (l, 0, 0)),      # wd
            rep((D, C)), rep((1, C)),                               # output proj
        ],
        out_specs=pl.BlockSpec((Bt, T, C), lambda b, l: (b, 0, 0)),
        scratch_shapes=[pltpu.VMEM((Bt * T, D), jnp.float32)],      # resident activations
        compiler_params=pltpu.CompilerParams(
            dimension_semantics=("parallel", "arbitrary"),          # batch x layers
            vmem_limit_bytes=48 * 1024 * 1024),                     # headroom on v7x 64MiB
    )(x, valid, cos, sin,
      pk["in_w"], pk["in_b"],
      pk["wqkv"], pk["wo"], pk["wgu"], pk["wd"],
      pk["out_w"], pk["out_b"])


# ------------------------------- host-side glue ------------------------------------

def rope_tables(T, head_dim, base=10000.0):
    half = head_dim // 2
    inv_freq = 1.0 / (base ** (jnp.arange(0, head_dim, 2, dtype=jnp.float32) / head_dim))
    pos = jnp.arange(T, dtype=jnp.float32)
    freqs = pos[:, None] * inv_freq[None, :]                 # (T, head_dim // 2)
    return jnp.cos(freqs), jnp.sin(freqs)


def pack_params(params, n_heads):
    """Fuse per-layer weights: wqkv = ln1 ⊙ [wq/sqrt(hd) | wk | wv], wgu = ln2 ⊙ [wg | wu].
    Folding the RMSNorm gains into weight rows and the 1/sqrt(hd) score scale into wq
    is exact (RoPE is linear).  Matmul weights are cast to bf16 for the MXU."""
    D = params["in_w"].shape[1]
    hd = D // n_heads
    scale = 1.0 / float(hd) ** 0.5
    bf16 = jnp.bfloat16

    wqkv, wo, wgu, wd = [], [], [], []
    for lp in params["layers"]:
        qkv = jnp.concatenate([lp["wq"] * scale, lp["wk"], lp["wv"]], axis=1)  # (D, 3D)
        wqkv.append(lp["ln1"][0][:, None] * qkv)
        wo.append(lp["wo"])
        gu = jnp.concatenate([lp["wg"], lp["wu"]], axis=1)                     # (D, 2I)
        wgu.append(lp["ln2"][0][:, None] * gu)
        wd.append(lp["wd"])

    return {
        "in_w": params["in_w"].astype(bf16), "in_b": params["in_b"],
        "out_w": params["out_w"].astype(bf16), "out_b": params["out_b"],
        "wqkv": jnp.stack(wqkv).astype(bf16),
        "wo": jnp.stack(wo).astype(bf16),
        "wgu": jnp.stack(wgu).astype(bf16),
        "wd": jnp.stack(wd).astype(bf16),
    }


def upsample(tgt_reps, labels, tgt_units, up_factor, T):
    """Static-shape equivalent of SpeechGeneratorCTC.upsample (+ label selection)."""
    B, S, H = tgt_reps.shape
    sel_mask = labels != IGNORE_INDEX
    src_lens = sel_mask.astype(jnp.int32).sum(-1)
    # compact selected rows to the front (== per-sample tgt_rep[label != IGNORE] + pad)
    order = jnp.argsort(~sel_mask, axis=-1, stable=True)
    reps = jnp.take_along_axis(tgt_reps, order[..., None], axis=1)
    tgt_lens = (tgt_units != IGNORE_INDEX).astype(jnp.int32).sum(-1)
    up_lens = jnp.maximum(src_lens * up_factor, tgt_lens)
    t_idx = jnp.arange(T)[None, :]
    padding_mask = t_idx >= up_lens[:, None]
    safe_src = jnp.maximum(src_lens, 1)                       # guard all-IGNORE samples
    ratio = jnp.maximum(up_lens.astype(jnp.float32) / safe_src.astype(jnp.float32), 1e-6)
    mapped_f = jnp.where(padding_mask, 0.0, t_idx.astype(jnp.float32) / ratio[:, None])
    mapped = jnp.clip(mapped_f.astype(jnp.int32), 0, S - 1)
    copied = jnp.take_along_axis(reps, mapped[..., None], axis=1)
    copied = jnp.where(padding_mask[..., None], 0.0, copied)
    return copied, ~padding_mask


def ctc_loss_sum(lprobs, input_lengths, targets, target_lengths, blank):
    # TODO(synk): CTC forward DP is an inherently sequential recursion over time;
    # kept as a plain-JAX lax.scan rather than a Pallas kernel.
    B, T, C = lprobs.shape
    U = targets.shape[1]
    L = 2 * U + 1
    tgt = jnp.where(targets == IGNORE_INDEX, 0, targets).astype(jnp.int32)
    s = jnp.arange(L)
    sym_idx = jnp.clip((s - 1) // 2, 0, U - 1)
    ext_sym = jnp.take_along_axis(tgt, jnp.broadcast_to(sym_idx[None, :], (B, L)), axis=1)
    ext = jnp.where((s % 2 == 0)[None, :], blank, ext_sym)             # (B, L)
    lp_ext = jnp.take_along_axis(
        lprobs, jnp.broadcast_to(ext[:, None, :], (B, T, L)), axis=2)  # (B, T, L)

    ext_m2 = jnp.concatenate([jnp.full((B, 2), -1, jnp.int32), ext[:, :-2]], axis=1)
    allow_skip = (s % 2 == 1)[None, :] & (s >= 2)[None, :] & (ext != ext_m2)

    alpha0 = jnp.full((B, L), NEG, jnp.float32)
    alpha0 = alpha0.at[:, 0].set(lp_ext[:, 0, 0])
    alpha0 = alpha0.at[:, 1].set(jnp.where(target_lengths >= 1, lp_ext[:, 0, 1], NEG))

    lp_seq = jnp.swapaxes(lp_ext, 0, 1)[1:]                            # (T-1, B, L)
    ts = jnp.arange(1, T)

    def step(alpha, xs):
        t, lp_t = xs
        a1 = alpha
        a2 = jnp.concatenate([jnp.full((B, 1), NEG, jnp.float32), alpha[:, :-1]], axis=1)
        a3 = jnp.concatenate([jnp.full((B, 2), NEG, jnp.float32), alpha[:, :-2]], axis=1)
        a3 = jnp.where(allow_skip, a3, NEG)
        m = jnp.maximum(jnp.maximum(a1, a2), a3)
        new = m + jnp.log(jnp.exp(a1 - m) + jnp.exp(a2 - m) + jnp.exp(a3 - m)) + lp_t
        alpha = jnp.where((t < input_lengths)[:, None], new, alpha)
        return alpha, None

    alpha, _ = lax.scan(step, alpha0, (ts, lp_seq))

    idx_last = (2 * target_lengths)[:, None]
    a_last = jnp.take_along_axis(alpha, idx_last, axis=1)[:, 0]
    idx_prev = jnp.clip(2 * target_lengths - 1, 0, L - 1)[:, None]
    a_prev = jnp.where(target_lengths >= 1,
                       jnp.take_along_axis(alpha, idx_prev, axis=1)[:, 0], NEG)
    m = jnp.maximum(a_last, a_prev)
    per = -(m + jnp.log(jnp.exp(a_last - m) + jnp.exp(a_prev - m)))
    per = jnp.where(jnp.isfinite(per) & (per < 1e29), per, 0.0)        # zero_infinity
    return per.sum()


def init_params(key, hidden_size, n_layers, n_dims, n_heads, n_inter, vocab):
    def nrm(k, shape, scale=0.02):
        return scale * jax.random.normal(k, shape, jnp.float32)
    keys = jax.random.split(key, 2 + n_layers)
    params = {
        "in_w": nrm(keys[0], (hidden_size, n_dims)),
        "in_b": jnp.zeros((1, n_dims), jnp.float32),
        "out_w": nrm(keys[1], (n_dims, vocab + 1)),
        "out_b": jnp.zeros((1, vocab + 1), jnp.float32),
        "layers": [],
    }
    for l in range(n_layers):
        lk = jax.random.split(keys[2 + l], 7)
        params["layers"].append({
            "ln1": jnp.ones((1, n_dims), jnp.float32),
            "ln2": jnp.ones((1, n_dims), jnp.float32),
            "wq": nrm(lk[0], (n_dims, n_dims)),
            "wk": nrm(lk[1], (n_dims, n_dims)),
            "wv": nrm(lk[2], (n_dims, n_dims)),
            "wo": nrm(lk[3], (n_dims, n_dims)),
            "wg": nrm(lk[4], (n_dims, n_inter)),
            "wu": nrm(lk[5], (n_dims, n_inter)),
            "wd": nrm(lk[6], (n_inter, n_dims)),
        })
    return params


def speech_generator_ctc_forward(packed, tgt_reps, labels, tgt_units, *,
                                 upsample_factor, n_heads, unit_vocab_size):
    B, S, _ = tgt_reps.shape
    U = tgt_units.shape[1]
    T = max(S * upsample_factor, U)                   # static upper bound on up_lens
    T_pad = ((T + 127) // 128) * 128                  # lane-dense time axis
    copied, attn_valid = upsample(tgt_reps, labels, tgt_units, upsample_factor, T_pad)
    valid_f = attn_valid.astype(jnp.float32)[:, None, :]        # (B, 1, T_pad)

    D = packed["in_w"].shape[1]
    head_dim = D // n_heads
    cos, sin = rope_tables(T_pad, head_dim)

    lprobs = fused_decoder_pallas(copied, valid_f, cos, sin, packed,
                                  n_heads=n_heads, head_dim=head_dim)

    ctc_lens = attn_valid.astype(jnp.int32).sum(-1)
    ctc_tgt_lens = (tgt_units != IGNORE_INDEX).astype(jnp.int32).sum(-1)
    loss = ctc_loss_sum(lprobs, ctc_lens, tgt_units, ctc_tgt_lens, blank=unit_vocab_size)
    return loss / ctc_tgt_lens.sum()


# ------------------------------------ main ------------------------------------------

if __name__ == "__main__":
    # config mirroring SpeechGeneratorCTC.__init__ with ctc_decoder_config="(2,128,2,256)"
    hidden_size = 32                     # LLM hidden size
    n_layers, n_dims, n_heads, n_inter_dims = 2, 128, 2, 256
    upsample_factor = 4
    unit_vocab_size = 127                # output dim = unit_vocab_size + 1 = 128 (blank last)
    B, S, U = 2, 8, 8

    key = jax.random.PRNGKey(0)
    kp, kx, ku = jax.random.split(key, 3)
    params = init_params(kp, hidden_size, n_layers, n_dims, n_heads,
                         n_inter_dims, unit_vocab_size)
    packed = pack_params(params, n_heads)

    tgt_reps = jax.random.normal(kx, (B, S, hidden_size), jnp.float32)
    labels = jnp.array([[1, 2, 3, 4, 5, 6, IGNORE_INDEX, IGNORE_INDEX],
                        [1, 2, 3, 4, 5, 6, 7, 8]], jnp.int32)
    units = jax.random.randint(ku, (B, U), 0, unit_vocab_size, jnp.int32)
    unit_valid = jnp.array([[True] * 5 + [False] * 3,
                            [True] * 7 + [False] * 1])
    tgt_units = jnp.where(unit_valid, units, IGNORE_INDEX)

    fwd = jax.jit(functools.partial(speech_generator_ctc_forward,
                                    upsample_factor=upsample_factor,
                                    n_heads=n_heads,
                                    unit_vocab_size=unit_vocab_size))
    loss = jax.block_until_ready(fwd(packed, tgt_reps, labels, tgt_units))
    assert jnp.isfinite(loss), loss
    print("KERNEL_OK")
</pallas_src>

<mosaic_0001>
module attributes {stable_mosaic.version = 11 : i64} {
  func.func @_fused_ctc_decoder_kernel(%arg0: i32, %arg1: i32, %arg2: memref<2x128x32xf32, #tpu.memory_space<vmem>>, %arg3: memref<2x1x128xf32, #tpu.memory_space<vmem>>, %arg4: memref<128x32xf32, #tpu.memory_space<vmem>>, %arg5: memref<128x32xf32, #tpu.memory_space<vmem>>, %arg6: memref<32x128xbf16, #tpu.memory_space<vmem>>, %arg7: memref<1x128xf32, #tpu.memory_space<vmem>>, %arg8: memref<1x128x384xbf16, #tpu.memory_space<vmem>>, %arg9: memref<1x128x128xbf16, #tpu.memory_space<vmem>>, %arg10: memref<1x128x512xbf16, #tpu.memory_space<vmem>>, %arg11: memref<1x256x128xbf16, #tpu.memory_space<vmem>>, %arg12: memref<128x128xbf16, #tpu.memory_space<vmem>>, %arg13: memref<1x128xf32, #tpu.memory_space<vmem>>, %arg14: memref<2x128x128xf32, #tpu.memory_space<vmem>>, %arg15: memref<256x128xf32, #tpu.memory_space<vmem>>) attributes {dimension_semantics = [#tpu.dimension_semantics<parallel>, #tpu.dimension_semantics<arbitrary>], iteration_bounds = array<i64: 1, 2>, scalar_prefetch = 0 : i64, scratch_operands = 1 : i64, tpu.core_type = #tpu.core_type<tc>, window_params = [{transform_indices = @transform_0, window_bounds = array<i64: 2, 128, 32>}, {transform_indices = @transform_1, window_bounds = array<i64: 2, 1, 128>}, {pipeline_mode = #tpu.pipeline_mode<synchronous>, transform_indices = @transform_2, window_bounds = array<i64: 128, 32>}, {pipeline_mode = #tpu.pipeline_mode<synchronous>, transform_indices = @transform_3, window_bounds = array<i64: 128, 32>}, {pipeline_mode = #tpu.pipeline_mode<synchronous>, transform_indices = @transform_4, window_bounds = array<i64: 32, 128>}, {pipeline_mode = #tpu.pipeline_mode<synchronous>, transform_indices = @transform_5, window_bounds = array<i64: 1, 128>}, {transform_indices = @transform_6, window_bounds = array<i64: 1, 128, 384>}, {transform_indices = @transform_7, window_bounds = array<i64: 1, 128, 128>}, {transform_indices = @transform_8, window_bounds = array<i64: 1, 128, 512>}, {transform_indices = @transform_9, window_bounds = array<i64: 1, 256, 128>}, {pipeline_mode = #tpu.pipeline_mode<synchronous>, transform_indices = @transform_10, window_bounds = array<i64: 128, 128>}, {pipeline_mode = #tpu.pipeline_mode<synchronous>, transform_indices = @transform_11, window_bounds = array<i64: 1, 128>}, {transform_indices = @transform_12, window_bounds = array<i64: 2, 128, 128>}]} {
    %c0_i32 = arith.constant 0 : i32
    %0 = arith.cmpi eq, %arg1, %c0_i32 : i32
    %1 = arith.extui %0 : i1 to i32
    %c0_i32_0 = arith.constant 0 : i32
    %2 = arith.cmpi ne, %1, %c0_i32_0 : i32
    scf.if %2 {
      %c0_58 = arith.constant 0 : index
      %c0_59 = arith.constant 0 : index
      %c0_60 = arith.constant 0 : index
      %239 = vector.load %arg2[%c0_58, %c0_59, %c0_60] : memref<2x128x32xf32, #tpu.memory_space<vmem>>, vector<2x128x32xf32>
      %240 = vector.shape_cast %239 : vector<2x128x32xf32> to vector<256x32xf32>
      %241 = arith.truncf %240 : vector<256x32xf32> to vector<256x32xbf16>
      %c0_61 = arith.constant 0 : index
      %c0_62 = arith.constant 0 : index
      %242 = vector.load %arg6[%c0_61, %c0_62] : memref<32x128xbf16, #tpu.memory_space<vmem>>, vector<32x128xbf16>
      %cst_63 = arith.constant dense<0.000000e+00> : vector<256x128xf32>
      %243 = tpu.matmul %241, %242, %cst_63 {dimension_numbers = #tpu.dot_dimension_numbers<[1], [0], [0], [1], [0, 0, 1, 1], [], []>} : vector<256x32xbf16>, vector<32x128xbf16>, vector<256x128xf32> -> vector<256x128xf32>
      %c0_64 = arith.constant 0 : index
      %c0_65 = arith.constant 0 : index
      %244 = vector.load %arg7[%c0_64, %c0_65] : memref<1x128xf32, #tpu.memory_space<vmem>>, vector<1x128xf32>
      %245 = vector.broadcast %244 : vector<1x128xf32> to vector<256x128xf32>
      %246 = arith.addf %243, %245 : vector<256x128xf32>
      %c0_66 = arith.constant 0 : index
      %c0_67 = arith.constant 0 : index
      %247 = vector.load %arg15[%c0_66, %c0_67] : memref<256x128xf32, #tpu.memory_space<vmem>>, vector<256x128xf32>
      tpu.vector_store %arg15[%c0_66, %c0_67], %246 {strides = array<i32>} : memref<256x128xf32, #tpu.memory_space<vmem>>, vector<256x128xf32>,
    } else {
    }
    %c0 = arith.constant 0 : index
    %c0_1 = arith.constant 0 : index
    %3 = vector.load %arg15[%c0, %c0_1] : memref<256x128xf32, #tpu.memory_space<vmem>>, vector<256x128xf32>
    %c0_2 = arith.constant 0 : index
    %c0_3 = arith.constant 0 : index
    %4 = vector.load %arg4[%c0_2, %c0_3] : memref<128x32xf32, #tpu.memory_space<vmem>>, vector<128x32xf32>
    %c0_4 = arith.constant 0 : index
    %c0_5 = arith.constant 0 : index
    %5 = vector.load %arg5[%c0_4, %c0_5] : memref<128x32xf32, #tpu.memory_space<vmem>>, vector<128x32xf32>
    %6 = arith.mulf %3, %3 : vector<256x128xf32>
    %cst = arith.constant dense<0.000000e+00> : vector<256xf32>
    %7 = vector.multi_reduction <add>, %6, %cst [1] : vector<256x128xf32> to vector<256xf32>
    %8 = vector.shape_cast %7 : vector<256xf32> to vector<256x1xf32>
    %cst_6 = arith.constant 1.280000e+02 : f32
    %9 = vector.broadcast %cst_6 : f32 to vector<256x1xf32>
    %10 = arith.divf %8, %9 : vector<256x1xf32>
    %cst_7 = arith.constant 9.99999997E-7 : f32
    %11 = vector.broadcast %cst_7 : f32 to vector<256x1xf32>
    %12 = arith.addf %10, %11 : vector<256x1xf32>
    %13 = math.rsqrt %12 : vector<256x1xf32>
    %14 = vector.broadcast %13 : vector<256x1xf32> to vector<256x128xf32>
    %15 = arith.mulf %3, %14 : vector<256x128xf32>
    %16 = arith.truncf %15 : vector<256x128xf32> to vector<256x128xbf16>
    %c0_8 = arith.constant 0 : index
    %c0_9 = arith.constant 0 : index
    %c0_10 = arith.constant 0 : index
    %17 = vector.load %arg8[%c0_8, %c0_9, %c0_10] : memref<1x128x384xbf16, #tpu.memory_space<vmem>>, vector<1x128x384xbf16>
    %18 = vector.shape_cast %17 : vector<1x128x384xbf16> to vector<128x384xbf16>
    %cst_11 = arith.constant dense<0.000000e+00> : vector<256x384xf32>
    %19 = tpu.matmul %16, %18, %cst_11 {dimension_numbers = #tpu.dot_dimension_numbers<[1], [0], [0], [1], [0, 0, 1, 1], [], []>} : vector<256x128xbf16>, vector<128x384xbf16>, vector<256x384xf32> -> vector<256x384xf32>
    %20 = tpu.iota {dimensions = array<i32: 0>} : vector<128x128xi32>
    %21 = tpu.iota {dimensions = array<i32: 1>} : vector<128x128xi32>
    %22 = arith.cmpi sle, %21, %20 : vector<128x128xi32>
    %23 = vector.extract_strided_slice %19 {offsets = [0, 0], sizes = [128, 128], strides = [1, 1]} : vector<256x384xf32> to vector<128x128xf32>
    %24 = vector.extract_strided_slice %19 {offsets = [0, 128], sizes = [128, 128], strides = [1, 1]} : vector<256x384xf32> to vector<128x128xf32>
    %25 = vector.extract_strided_slice %19 {offsets = [0, 256], sizes = [128, 128], strides = [1, 1]} : vector<256x384xf32> to vector<128x128xf32>
    %c0_12 = arith.constant 0 : index
    %c0_13 = arith.constant 0 : index
    %c0_14 = arith.constant 0 : index
    %26 = vector.load %arg3[%c0_12, %c0_13, %c0_14] : memref<2x1x128xf32, #tpu.memory_space<vmem>>, vector<1x1x128xf32>
    %27 = vector.shape_cast %26 : vector<1x1x128xf32> to vector<1x128xf32>
    %cst_15 = arith.constant 5.000000e-01 : f32
    %28 = vector.broadcast %cst_15 : f32 to vector<1x128xf32>
    %29 = arith.cmpf ogt, %27, %28 : vector<1x128xf32>
    %30 = vector.broadcast %29 : vector<1x128xi1> to vector<128x128xi1>
    %31 = arith.andi %22, %30 : vector<128x128xi1>
    %cst_16 = arith.constant 0.000000e+00 : f32
    %cst_17 = arith.constant -1.000000e+30 : f32
    %32 = vector.broadcast %cst_16 : f32 to vector<128x128xf32>
    %33 = vector.broadcast %cst_17 : f32 to vector<128x128xf32>
    %34 = arith.select %31, %32, %33 : vector<128x128xi1>, vector<128x128xf32>
    %35 = vector.extract_strided_slice %23 {offsets = [0, 0], sizes = [128, 64], strides = [1, 1]} : vector<128x128xf32> to vector<128x64xf32>
    %36 = vector.extract_strided_slice %35 {offsets = [0, 0], sizes = [128, 32], strides = [1, 1]} : vector<128x64xf32> to vector<128x32xf32>
    %37 = vector.extract_strided_slice %35 {offsets = [0, 32], sizes = [128, 32], strides = [1, 1]} : vector<128x64xf32> to vector<128x32xf32>
    %38 = arith.mulf %36, %4 : vector<128x32xf32>
    %39 = arith.mulf %37, %5 : vector<128x32xf32>
    %40 = arith.subf %38, %39 : vector<128x32xf32>
    %41 = arith.mulf %37, %4 : vector<128x32xf32>
    %42 = arith.mulf %36, %5 : vector<128x32xf32>
    %43 = arith.addf %41, %42 : vector<128x32xf32>
    %44 = tpu.concatenate %40, %43 in 1 : vector<128x32xf32>, vector<128x32xf32> -> vector<128x64xf32>
    %45 = arith.truncf %44 : vector<128x64xf32> to vector<128x64xbf16>
    %46 = vector.extract_strided_slice %24 {offsets = [0, 0], sizes = [128, 64], strides = [1, 1]} : vector<128x128xf32> to vector<128x64xf32>
    %47 = vector.extract_strided_slice %46 {offsets = [0, 0], sizes = [128, 32], strides = [1, 1]} : vector<128x64xf32> to vector<128x32xf32>
    %48 = vector.extract_strided_slice %46 {offsets = [0, 32], sizes = [128, 32], strides = [1, 1]} : vector<128x64xf32> to vector<128x32xf32>
    %49 = arith.mulf %47, %4 : vector<128x32xf32>
    %50 = arith.mulf %48, %5 : vector<128x32xf32>
    %51 = arith.subf %49, %50 : vector<128x32xf32>
    %52 = arith.mulf %48, %4 : vector<128x32xf32>
    %53 = arith.mulf %47, %5 : vector<128x32xf32>
    %54 = arith.addf %52, %53 : vector<128x32xf32>
    %55 = tpu.concatenate %51, %54 in 1 : vector<128x32xf32>, vector<128x32xf32> -> vector<128x64xf32>
    %56 = arith.truncf %55 : vector<128x64xf32> to vector<128x64xbf16>
    %57 = vector.extract_strided_slice %25 {offsets = [0, 0], sizes = [128, 64], strides = [1, 1]} : vector<128x128xf32> to vector<128x64xf32>
    %58 = arith.truncf %57 : vector<128x64xf32> to vector<128x64xbf16>
    %cst_18 = arith.constant dense<0.000000e+00> : vector<128x128xf32>
    %59 = tpu.matmul %45, %56, %cst_18 {dimension_numbers = #tpu.dot_dimension_numbers<[1], [1], [0], [0], [0, 0, 1, 0], [], []>} : vector<128x64xbf16>, vector<128x64xbf16>, vector<128x128xf32> -> vector<128x128xf32>
    %60 = arith.addf %59, %34 : vector<128x128xf32>
    %cst_19 = arith.constant dense<0xFF800000> : vector<128xf32>
    %61 = vector.multi_reduction <maximumf>, %60, %cst_19 [1] : vector<128x128xf32> to vector<128xf32>
    %62 = vector.shape_cast %61 : vector<128xf32> to vector<128x1xf32>
    %63 = vector.broadcast %62 : vector<128x1xf32> to vector<128x128xf32>
    %64 = arith.subf %60, %63 : vector<128x128xf32>
    %65 = math.exp %64 : vector<128x128xf32>
    %cst_20 = arith.constant dense<0.000000e+00> : vector<128xf32>
    %66 = vector.multi_reduction <add>, %65, %cst_20 [1] : vector<128x128xf32> to vector<128xf32>
    %67 = vector.shape_cast %66 : vector<128xf32> to vector<128x1xf32>
    %68 = tpu.reciprocal %67 {approx = true} : vector<128x1xf32> -> vector<128x1xf32>
    %69 = vector.broadcast %68 : vector<128x1xf32> to vector<128x128xf32>
    %70 = arith.mulf %65, %69 : vector<128x128xf32>
    %71 = arith.truncf %70 : vector<128x128xf32> to vector<128x128xbf16>
    %cst_21 = arith.constant dense<0.000000e+00> : vector<128x64xf32>
    %72 = tpu.matmul %71, %58, %cst_21 {dimension_numbers = #tpu.dot_dimension_numbers<[1], [0], [0], [1], [0, 0, 1, 1], [], []>} : vector<128x128xbf16>, vector<128x64xbf16>, vector<128x64xf32> -> vector<128x64xf32>
    %73 = vector.extract_strided_slice %23 {offsets = [0, 64], sizes = [128, 64], strides = [1, 1]} : vector<128x128xf32> to vector<128x64xf32>
    %74 = vector.extract_strided_slice %73 {offsets = [0, 0], sizes = [128, 32], strides = [1, 1]} : vector<128x64xf32> to vector<128x32xf32>
    %75 = vector.extract_strided_slice %73 {offsets = [0, 32], sizes = [128, 32], strides = [1, 1]} : vector<128x64xf32> to vector<128x32xf32>
    %76 = arith.mulf %74, %4 : vector<128x32xf32>
    %77 = arith.mulf %75, %5 : vector<128x32xf32>
    %78 = arith.subf %76, %77 : vector<128x32xf32>
    %79 = arith.mulf %75, %4 : vector<128x32xf32>
    %80 = arith.mulf %74, %5 : vector<128x32xf32>
    %81 = arith.addf %79, %80 : vector<128x32xf32>
    %82 = tpu.concatenate %78, %81 in 1 : vector<128x32xf32>, vector<128x32xf32> -> vector<128x64xf32>
    %83 = arith.truncf %82 : vector<128x64xf32> to vector<128x64xbf16>
    %84 = vector.extract_strided_slice %24 {offsets = [0, 64], sizes = [128, 64], strides = [1, 1]} : vector<128x128xf32> to vector<128x64xf32>
    %85 = vector.extract_strided_slice %84 {offsets = [0, 0], sizes = [128, 32], strides = [1, 1]} : vector<128x64xf32> to vector<128x32xf32>
    %86 = vector.extract_strided_slice %84 {offsets = [0, 32], sizes = [128, 32], strides = [1, 1]} : vector<128x64xf32> to vector<128x32xf32>
    %87 = arith.mulf %85, %4 : vector<128x32xf32>
    %88 = arith.mulf %86, %5 : vector<128x32xf32>
    %89 = arith.subf %87, %88 : vector<128x32xf32>
    %90 = arith.mulf %86, %4 : vector<128x32xf32>
    %91 = arith.mulf %85, %5 : vector<128x32xf32>
    %92 = arith.addf %90, %91 : vector<128x32xf32>
    %93 = tpu.concatenate %89, %92 in 1 : vector<128x32xf32>, vector<128x32xf32> -> vector<128x64xf32>
    %94 = arith.truncf %93 : vector<128x64xf32> to vector<128x64xbf16>
    %95 = vector.extract_strided_slice %25 {offsets = [0, 64], sizes = [128, 64], strides = [1, 1]} : vector<128x128xf32> to vector<128x64xf32>
    %96 = arith.truncf %95 : vector<128x64xf32> to vector<128x64xbf16>
    %cst_22 = arith.constant dense<0.000000e+00> : vector<128x128xf32>
    %97 = tpu.matmul %83, %94, %cst_22 {dimension_numbers = #tpu.dot_dimension_numbers<[1], [1], [0], [0], [0, 0, 1, 0], [], []>} : vector<128x64xbf16>, vector<128x64xbf16>, vector<128x128xf32> -> vector<128x128xf32>
    %98 = arith.addf %97, %34 : vector<128x128xf32>
    %cst_23 = arith.constant dense<0xFF800000> : vector<128xf32>
    %99 = vector.multi_reduction <maximumf>, %98, %cst_23 [1] : vector<128x128xf32> to vector<128xf32>
    %100 = vector.shape_cast %99 : vector<128xf32> to vector<128x1xf32>
    %101 = vector.broadcast %100 : vector<128x1xf32> to vector<128x128xf32>
    %102 = arith.subf %98, %101 : vector<128x128xf32>
    %103 = math.exp %102 : vector<128x128xf32>
    %cst_24 = arith.constant dense<0.000000e+00> : vector<128xf32>
    %104 = vector.multi_reduction <add>, %103, %cst_24 [1] : vector<128x128xf32> to vector<128xf32>
    %105 = vector.shape_cast %104 : vector<128xf32> to vector<128x1xf32>
    %106 = tpu.reciprocal %105 {approx = true} : vector<128x1xf32> -> vector<128x1xf32>
    %107 = vector.broadcast %106 : vector<128x1xf32> to vector<128x128xf32>
    %108 = arith.mulf %103, %107 : vector<128x128xf32>
    %109 = arith.truncf %108 : vector<128x128xf32> to vector<128x128xbf16>
    %cst_25 = arith.constant dense<0.000000e+00> : vector<128x64xf32>
    %110 = tpu.matmul %109, %96, %cst_25 {dimension_numbers = #tpu.dot_dimension_numbers<[1], [0], [0], [1], [0, 0, 1, 1], [], []>} : vector<128x128xbf16>, vector<128x64xbf16>, vector<128x64xf32> -> vector<128x64xf32>
    %111 = tpu.concatenate %72, %110 in 1 : vector<128x64xf32>, vector<128x64xf32> -> vector<128x128xf32>
    %112 = vector.extract_strided_slice %19 {offsets = [128, 0], sizes = [128, 128], strides = [1, 1]} : vector<256x384xf32> to vector<128x128xf32>
    %113 = vector.extract_strided_slice %19 {offsets = [128, 128], sizes = [128, 128], strides = [1, 1]} : vector<256x384xf32> to vector<128x128xf32>
    %114 = vector.extract_strided_slice %19 {offsets = [128, 256], sizes = [128, 128], strides = [1, 1]} : vector<256x384xf32> to vector<128x128xf32>
    %c1 = arith.constant 1 : index
    %c0_26 = arith.constant 0 : index
    %c0_27 = arith.constant 0 : index
    %115 = vector.load %arg3[%c1, %c0_26, %c0_27] : memref<2x1x128xf32, #tpu.memory_space<vmem>>, vector<1x1x128xf32>
    %116 = vector.shape_cast %115 : vector<1x1x128xf32> to vector<1x128xf32>
    %cst_28 = arith.constant 5.000000e-01 : f32
    %117 = vector.broadcast %cst_28 : f32 to vector<1x128xf32>
    %118 = arith.cmpf ogt, %116, %117 : vector<1x128xf32>
    %119 = vector.broadcast %118 : vector<1x128xi1> to vector<128x128xi1>
    %120 = arith.andi %22, %119 : vector<128x128xi1>
    %cst_29 = arith.constant 0.000000e+00 : f32
    %cst_30 = arith.constant -1.000000e+30 : f32
    %121 = vector.broadcast %cst_29 : f32 to vector<128x128xf32>
    %122 = vector.broadcast %cst_30 : f32 to vector<128x128xf32>
    %123 = arith.select %120, %121, %122 : vector<128x128xi1>, vector<128x128xf32>
    %124 = vector.extract_strided_slice %112 {offsets = [0, 0], sizes = [128, 64], strides = [1, 1]} : vector<128x128xf32> to vector<128x64xf32>
    %125 = vector.extract_strided_slice %124 {offsets = [0, 0], sizes = [128, 32], strides = [1, 1]} : vector<128x64xf32> to vector<128x32xf32>
    %126 = vector.extract_strided_slice %124 {offsets = [0, 32], sizes = [128, 32], strides = [1, 1]} : vector<128x64xf32> to vector<128x32xf32>
    %127 = arith.mulf %125, %4 : vector<128x32xf32>
    %128 = arith.mulf %126, %5 : vector<128x32xf32>
    %129 = arith.subf %127, %128 : vector<128x32xf32>
    %130 = arith.mulf %126, %4 : vector<128x32xf32>
    %131 = arith.mulf %125, %5 : vector<128x32xf32>
    %132 = arith.addf %130, %131 : vector<128x32xf32>
    %133 = tpu.concatenate %129, %132 in 1 : vector<128x32xf32>, vector<128x32xf32> -> vector<128x64xf32>
    %134 = arith.truncf %133 : vector<128x64xf32> to vector<128x64xbf16>
    %135 = vector.extract_strided_slice %113 {offsets = [0, 0], sizes = [128, 64], strides = [1, 1]} : vector<128x128xf32> to vector<128x64xf32>
    %136 = vector.extract_strided_slice %135 {offsets = [0, 0], sizes = [128, 32], strides = [1, 1]} : vector<128x64xf32> to vector<128x32xf32>
    %137 = vector.extract_strided_slice %135 {offsets = [0, 32], sizes = [128, 32], strides = [1, 1]} : vector<128x64xf32> to vector<128x32xf32>
    %138 = arith.mulf %136, %4 : vector<128x32xf32>
    %139 = arith.mulf %137, %5 : vector<128x32xf32>
    %140 = arith.subf %138, %139 : vector<128x32xf32>
    %141 = arith.mulf %137, %4 : vector<128x32xf32>
    %142 = arith.mulf %136, %5 : vector<128x32xf32>
    %143 = arith.addf %141, %142 : vector<128x32xf32>
    %144 = tpu.concatenate %140, %143 in 1 : vector<128x32xf32>, vector<128x32xf32> -> vector<128x64xf32>
    %145 = arith.truncf %144 : vector<128x64xf32> to vector<128x64xbf16>
    %146 = vector.extract_strided_slice %114 {offsets = [0, 0], sizes = [128, 64], strides = [1, 1]} : vector<128x128xf32> to vector<128x64xf32>
    %147 = arith.truncf %146 : vector<128x64xf32> to vector<128x64xbf16>
    %cst_31 = arith.constant dense<0.000000e+00> : vector<128x128xf32>
    %148 = tpu.matmul %134, %145, %cst_31 {dimension_numbers = #tpu.dot_dimension_numbers<[1], [1], [0], [0], [0, 0, 1, 0], [], []>} : vector<128x64xbf16>, vector<128x64xbf16>, vector<128x128xf32> -> vector<128x128xf32>
    %149 = arith.addf %148, %123 : vector<128x128xf32>
    %cst_32 = arith.constant dense<0xFF800000> : vector<128xf32>
    %150 = vector.multi_reduction <maximumf>, %149, %cst_32 [1] : vector<128x128xf32> to vector<128xf32>
    %151 = vector.shape_cast %150 : vector<128xf32> to vector<128x1xf32>
    %152 = vector.broadcast %151 : vector<128x1xf32> to vector<128x128xf32>
    %153 = arith.subf %149, %152 : vector<128x128xf32>
    %154 = math.exp %153 : vector<128x128xf32>
    %cst_33 = arith.constant dense<0.000000e+00> : vector<128xf32>
    %155 = vector.multi_reduction <add>, %154, %cst_33 [1] : vector<128x128xf32> to vector<128xf32>
    %156 = vector.shape_cast %155 : vector<128xf32> to vector<128x1xf32>
    %157 = tpu.reciprocal %156 {approx = true} : vector<128x1xf32> -> vector<128x1xf32>
    %158 = vector.broadcast %157 : vector<128x1xf32> to vector<128x128xf32>
    %159 = arith.mulf %154, %158 : vector<128x128xf32>
    %160 = arith.truncf %159 : vector<128x128xf32> to vector<128x128xbf16>
    %cst_34 = arith.constant dense<0.000000e+00> : vector<128x64xf32>
    %161 = tpu.matmul %160, %147, %cst_34 {dimension_numbers = #tpu.dot_dimension_numbers<[1], [0], [0], [1], [0, 0, 1, 1], [], []>} : vector<128x128xbf16>, vector<128x64xbf16>, vector<128x64xf32> -> vector<128x64xf32>
    %162 = vector.extract_strided_slice %112 {offsets = [0, 64], sizes = [128, 64], strides = [1, 1]} : vector<128x128xf32> to vector<128x64xf32>
    %163 = vector.extract_strided_slice %162 {offsets = [0, 0], sizes = [128, 32], strides = [1, 1]} : vector<128x64xf32> to vector<128x32xf32>
    %164 = vector.extract_strided_slice %162 {offsets = [0, 32], sizes = [128, 32], strides = [1, 1]} : vector<128x64xf32> to vector<128x32xf32>
    %165 = arith.mulf %163, %4 : vector<128x32xf32>
    %166 = arith.mulf %164, %5 : vector<128x32xf32>
    %167 = arith.subf %165, %166 : vector<128x32xf32>
    %168 = arith.mulf %164, %4 : vector<128x32xf32>
    %169 = arith.mulf %163, %5 : vector<128x32xf32>
    %170 = arith.addf %168, %169 : vector<128x32xf32>
    %171 = tpu.concatenate %167, %170 in 1 : vector<128x32xf32>, vector<128x32xf32> -> vector<128x64xf32>
    %172 = arith.truncf %171 : vector<128x64xf32> to vector<128x64xbf16>
    %173 = vector.extract_strided_slice %113 {offsets = [0, 64], sizes = [128, 64], strides = [1, 1]} : vector<128x128xf32> to vector<128x64xf32>
    %174 = vector.extract_strided_slice %173 {offsets = [0, 0], sizes = [128, 32], strides = [1, 1]} : vector<128x64xf32> to vector<128x32xf32>
    %175 = vector.extract_strided_slice %173 {offsets = [0, 32], sizes = [128, 32], strides = [1, 1]} : vector<128x64xf32> to vector<128x32xf32>
    %176 = arith.mulf %174, %4 : vector<128x32xf32>
    %177 = arith.mulf %175, %5 : vector<128x32xf32>
    %178 = arith.subf %176, %177 : vector<128x32xf32>
    %179 = arith.mulf %175, %4 : vector<128x32xf32>
    %180 = arith.mulf %174, %5 : vector<128x32xf32>
    %181 = arith.addf %179, %180 : vector<128x32xf32>
    %182 = tpu.concatenate %178, %181 in 1 : vector<128x32xf32>, vector<128x32xf32> -> vector<128x64xf32>
    %183 = arith.truncf %182 : vector<128x64xf32> to vector<128x64xbf16>
    %184 = vector.extract_strided_slice %114 {offsets = [0, 64], sizes = [128, 64], strides = [1, 1]} : vector<128x128xf32> to vector<128x64xf32>
    %185 = arith.truncf %184 : vector<128x64xf32> to vector<128x64xbf16>
    %cst_35 = arith.constant dense<0.000000e+00> : vector<128x128xf32>
    %186 = tpu.matmul %172, %183, %cst_35 {dimension_numbers = #tpu.dot_dimension_numbers<[1], [1], [0], [0], [0, 0, 1, 0], [], []>} : vector<128x64xbf16>, vector<128x64xbf16>, vector<128x128xf32> -> vector<128x128xf32>
    %187 = arith.addf %186, %123 : vector<128x128xf32>
    %cst_36 = arith.constant dense<0xFF800000> : vector<128xf32>
    %188 = vector.multi_reduction <maximumf>, %187, %cst_36 [1] : vector<128x128xf32> to vector<128xf32>
    %189 = vector.shape_cast %188 : vector<128xf32> to vector<128x1xf32>
    %190 = vector.broadcast %189 : vector<128x1xf32> to vector<128x128xf32>
    %191 = arith.subf %187, %190 : vector<128x128xf32>
    %192 = math.exp %191 : vector<128x128xf32>
    %cst_37 = arith.constant dense<0.000000e+00> : vector<128xf32>
    %193 = vector.multi_reduction <add>, %192, %cst_37 [1] : vector<128x128xf32> to vector<128xf32>
    %194 = vector.shape_cast %193 : vector<128xf32> to vector<128x1xf32>
    %195 = tpu.reciprocal %194 {approx = true} : vector<128x1xf32> -> vector<128x1xf32>
    %196 = vector.broadcast %195 : vector<128x1xf32> to vector<128x128xf32>
    %197 = arith.mulf %192, %196 : vector<128x128xf32>
    %198 = arith.truncf %197 : vector<128x128xf32> to vector<128x128xbf16>
    %cst_38 = arith.constant dense<0.000000e+00> : vector<128x64xf32>
    %199 = tpu.matmul %198, %185, %cst_38 {dimension_numbers = #tpu.dot_dimension_numbers<[1], [0], [0], [1], [0, 0, 1, 1], [], []>} : vector<128x128xbf16>, vector<128x64xbf16>, vector<128x64xf32> -> vector<128x64xf32>
    %200 = tpu.concatenate %161, %199 in 1 : vector<128x64xf32>, vector<128x64xf32> -> vector<128x128xf32>
    %201 = tpu.concatenate %111, %200 in 0 : vector<128x128xf32>, vector<128x128xf32> -> vector<256x128xf32>
    %202 = arith.truncf %201 : vector<256x128xf32> to vector<256x128xbf16>
    %c0_39 = arith.constant 0 : index
    %c0_40 = arith.constant 0 : index
    %c0_41 = arith.constant 0 : index
    %203 = vector.load %arg9[%c0_39, %c0_40, %c0_41] : memref<1x128x128xbf16, #tpu.memory_space<vmem>>, vector<1x128x128xbf16>
    %204 = vector.shape_cast %203 : vector<1x128x128xbf16> to vector<128x128xbf16>
    %cst_42 = arith.constant dense<0.000000e+00> : vector<256x128xf32>
    %205 = tpu.matmul %202, %204, %cst_42 {dimension_numbers = #tpu.dot_dimension_numbers<[1], [0], [0], [1], [0, 0, 1, 1], [], []>} : vector<256x128xbf16>, vector<128x128xbf16>, vector<256x128xf32> -> vector<256x128xf32>
    %206 = arith.addf %3, %205 : vector<256x128xf32>
    %207 = arith.mulf %206, %206 : vector<256x128xf32>
    %cst_43 = arith.constant dense<0.000000e+00> : vector<256xf32>
    %208 = vector.multi_reduction <add>, %207, %cst_43 [1] : vector<256x128xf32> to vector<256xf32>
    %209 = vector.shape_cast %208 : vector<256xf32> to vector<256x1xf32>
    %cst_44 = arith.constant 1.280000e+02 : f32
    %210 = vector.broadcast %cst_44 : f32 to vector<256x1xf32>
    %211 = arith.divf %209, %210 : vector<256x1xf32>
    %cst_45 = arith.constant 9.99999997E-7 : f32
    %212 = vector.broadcast %cst_45 : f32 to vector<256x1xf32>
    %213 = arith.addf %211, %212 : vector<256x1xf32>
    %214 = math.rsqrt %213 : vector<256x1xf32>
    %215 = vector.broadcast %214 : vector<256x1xf32> to vector<256x128xf32>
    %216 = arith.mulf %206, %215 : vector<256x128xf32>
    %217 = arith.truncf %216 : vector<256x128xf32> to vector<256x128xbf16>
    %c0_46 = arith.constant 0 : index
    %c0_47 = arith.constant 0 : index
    %c0_48 = arith.constant 0 : index
    %218 = vector.load %arg10[%c0_46, %c0_47, %c0_48] : memref<1x128x512xbf16, #tpu.memory_space<vmem>>, vector<1x128x512xbf16>
    %219 = vector.shape_cast %218 : vector<1x128x512xbf16> to vector<128x512xbf16>
    %cst_49 = arith.constant dense<0.000000e+00> : vector<256x512xf32>
    %220 = tpu.matmul %217, %219, %cst_49 {dimension_numbers = #tpu.dot_dimension_numbers<[1], [0], [0], [1], [0, 0, 1, 1], [], []>} : vector<256x128xbf16>, vector<128x512xbf16>, vector<256x512xf32> -> vector<256x512xf32>
    %221 = vector.extract_strided_slice %220 {offsets = [0, 0], sizes = [256, 256], strides = [1, 1]} : vector<256x512xf32> to vector<256x256xf32>
    %222 = vector.extract_strided_slice %220 {offsets = [0, 256], sizes = [256, 256], strides = [1, 1]} : vector<256x512xf32> to vector<256x256xf32>
    %223 = arith.negf %221 : vector<256x256xf32>
    %224 = math.exp %223 : vector<256x256xf32>
    %cst_50 = arith.constant 1.000000e+00 : f32
    %225 = vector.broadcast %cst_50 : f32 to vector<256x256xf32>
    %226 = arith.addf %225, %224 : vector<256x256xf32>
    %227 = arith.divf %225, %226 : vector<256x256xf32>
    %228 = arith.mulf %221, %227 : vector<256x256xf32>
    %229 = arith.mulf %228, %222 : vector<256x256xf32>
    %230 = arith.truncf %229 : vector<256x256xf32> to vector<256x256xbf16>
    %c0_51 = arith.constant 0 : index
    %c0_52 = arith.constant 0 : index
    %c0_53 = arith.constant 0 : index
    %231 = vector.load %arg11[%c0_51, %c0_52, %c0_53] : memref<1x256x128xbf16, #tpu.memory_space<vmem>>, vector<1x256x128xbf16>
    %232 = vector.shape_cast %231 : vector<1x256x128xbf16> to vector<256x128xbf16>
    %cst_54 = arith.constant dense<0.000000e+00> : vector<256x128xf32>
    %233 = tpu.matmul %230, %232, %cst_54 {dimension_numbers = #tpu.dot_dimension_numbers<[1], [0], [0], [1], [0, 0, 1, 1], [], []>} : vector<256x256xbf16>, vector<256x128xbf16>, vector<256x128xf32> -> vector<256x128xf32>
    %234 = arith.addf %206, %233 : vector<256x128xf32>
    %c0_55 = arith.constant 0 : index
    %c0_56 = arith.constant 0 : index
    %235 = vector.load %arg15[%c0_55, %c0_56] : memref<256x128xf32, #tpu.memory_space<vmem>>, vector<256x128xf32>
    tpu.vector_store %arg15[%c0_55, %c0_56], %234 {strides = array<i32>} : memref<256x128xf32, #tpu.memory_space<vmem>>, vector<256x128xf32>,
    %c1_i32 = arith.constant 1 : i32
    %236 = arith.cmpi eq, %arg1, %c1_i32 : i32
    %237 = arith.extui %236 : i1 to i32
    %c0_i32_57 = arith.constant 0 : i32
    %238 = arith.cmpi ne, %237, %c0_i32_57 : i32
    scf.if %238 {
      %239 = arith.truncf %234 : vector<256x128xf32> to vector<256x128xbf16>
      %c0_58 = arith.constant 0 : index
      %c0_59 = arith.constant 0 : index
      %240 = vector.load %arg12[%c0_58, %c0_59] : memref<128x128xbf16, #tpu.memory_space<vmem>>, vector<128x128xbf16>
      %cst_60 = arith.constant dense<0.000000e+00> : vector<256x128xf32>
      %241 = tpu.matmul %239, %240, %cst_60 {dimension_numbers = #tpu.dot_dimension_numbers<[1], [0], [0], [1], [0, 0, 1, 1], [], []>} : vector<256x128xbf16>, vector<128x128xbf16>, vector<256x128xf32> -> vector<256x128xf32>
      %c0_61 = arith.constant 0 : index
      %c0_62 = arith.constant 0 : index
      %242 = vector.load %arg13[%c0_61, %c0_62] : memref<1x128xf32, #tpu.memory_space<vmem>>, vector<1x128xf32>
      %243 = vector.broadcast %242 : vector<1x128xf32> to vector<256x128xf32>
      %244 = arith.addf %241, %243 : vector<256x128xf32>
      %cst_63 = arith.constant dense<0xFF800000> : vector<256xf32>
      %245 = vector.multi_reduction <maximumf>, %244, %cst_63 [1] : vector<256x128xf32> to vector<256xf32>
      %246 = vector.shape_cast %245 : vector<256xf32> to vector<256x1xf32>
      %247 = vector.broadcast %246 : vector<256x1xf32> to vector<256x128xf32>
      %248 = arith.subf %244, %247 : vector<256x128xf32>
      %249 = math.exp %248 : vector<256x128xf32>
      %cst_64 = arith.constant dense<0.000000e+00> : vector<256xf32>
      %250 = vector.multi_reduction <add>, %249, %cst_64 [1] : vector<256x128xf32> to vector<256xf32>
      %251 = vector.shape_cast %250 : vector<256xf32> to vector<256x1xf32>
      %252 = math.log %251 : vector<256x1xf32>
      %253 = arith.addf %252, %246 : vector<256x1xf32>
      %254 = vector.broadcast %253 : vector<256x1xf32> to vector<256x128xf32>
      %255 = arith.subf %244, %254 : vector<256x128xf32>
      %256 = vector.shape_cast %255 : vector<256x128xf32> to vector<2x128x128xf32>
      %c0_65 = arith.constant 0 : index
      %c0_66 = arith.constant 0 : index
      %c0_67 = arith.constant 0 : index
      %257 = vector.load %arg14[%c0_65, %c0_66, %c0_67] : memref<2x128x128xf32, #tpu.memory_space<vmem>>, vector<2x128x128xf32>
      tpu.vector_store %arg14[%c0_65, %c0_66, %c0_67], %256 {strides = array<i32>} : memref<2x128x128xf32, #tpu.memory_space<vmem>>, vector<2x128x128xf32>,
    } else {
    }
    return
  }
  func.func @transform_0(%arg0: i32, %arg1: i32) -> (i32, i32, i32) {
    %c0_i32 = arith.constant 0 : i32
    %c0_i32_0 = arith.constant 0 : i32
    %c0_i32_1 = arith.constant 0 : i32
    return %arg0, %c0_i32, %c0_i32_0 : i32, i32, i32
  }
  func.func @transform_1(%arg0: i32, %arg1: i32) -> (i32, i32, i32) {
    %c0_i32 = arith.constant 0 : i32
    %c0_i32_0 = arith.constant 0 : i32
    %c0_i32_1 = arith.constant 0 : i32
    return %arg0, %c0_i32, %c0_i32_0 : i32, i32, i32
  }
  func.func @transform_2(%arg0: i32, %arg1: i32) -> (i32, i32) {
    %c0_i32 = arith.constant 0 : i32
    %c0_i32_0 = arith.constant 0 : i32
    %c0_i32_1 = arith.constant 0 : i32
    return %c0_i32, %c0_i32_0 : i32, i32
  }
  func.func @transform_3(%arg0: i32, %arg1: i32) -> (i32, i32) {
    %c0_i32 = arith.constant 0 : i32
    %c0_i32_0 = arith.constant 0 : i32
    %c0_i32_1 = arith.constant 0 : i32
    return %c0_i32, %c0_i32_0 : i32, i32
  }
  func.func @transform_4(%arg0: i32, %arg1: i32) -> (i32, i32) {
    %c0_i32 = arith.constant 0 : i32
    %c0_i32_0 = arith.constant 0 : i32
    %c0_i32_1 = arith.constant 0 : i32
    return %c0_i32, %c0_i32_0 : i32, i32
  }
  func.func @transform_5(%arg0: i32, %arg1: i32) -> (i32, i32) {
    %c0_i32 = arith.constant 0 : i32
    %c0_i32_0 = arith.constant 0 : i32
    %c0_i32_1 = arith.constant 0 : i32
    return %c0_i32, %c0_i32_0 : i32, i32
  }
  func.func @transform_6(%arg0: i32, %arg1: i32) -> (i32, i32, i32) {
    %c0_i32 = arith.constant 0 : i32
    %c0_i32_0 = arith.constant 0 : i32
    %c0_i32_1 = arith.constant 0 : i32
    return %arg1, %c0_i32, %c0_i32_0 : i32, i32, i32
  }
  func.func @transform_7(%arg0: i32, %arg1: i32) -> (i32, i32, i32) {
    %c0_i32 = arith.constant 0 : i32
    %c0_i32_0 = arith.constant 0 : i32
    %c0_i32_1 = arith.constant 0 : i32
    return %arg1, %c0_i32, %c0_i32_0 : i32, i32, i32
  }
  func.func @transform_8(%arg0: i32, %arg1: i32) -> (i32, i32, i32) {
    %c0_i32 = arith.constant 0 : i32
    %c0_i32_0 = arith.constant 0 : i32
    %c0_i32_1 = arith.constant 0 : i32
    return %arg1, %c0_i32, %c0_i32_0 : i32, i32, i32
  }
  func.func @transform_9(%arg0: i32, %arg1: i32) -> (i32, i32, i32) {
    %c0_i32 = arith.constant 0 : i32
    %c0_i32_0 = arith.constant 0 : i32
    %c0_i32_1 = arith.constant 0 : i32
    return %arg1, %c0_i32, %c0_i32_0 : i32, i32, i32
  }
  func.func @transform_10(%arg0: i32, %arg1: i32) -> (i32, i32) {
    %c0_i32 = arith.constant 0 : i32
    %c0_i32_0 = arith.constant 0 : i32
    %c0_i32_1 = arith.constant 0 : i32
    return %c0_i32, %c0_i32_0 : i32, i32
  }
  func.func @transform_11(%arg0: i32, %arg1: i32) -> (i32, i32) {
    %c0_i32 = arith.constant 0 : i32
    %c0_i32_0 = arith.constant 0 : i32
    %c0_i32_1 = arith.constant 0 : i32
    return %c0_i32, %c0_i32_0 : i32, i32
  }
  func.func @transform_12(%arg0: i32, %arg1: i32) -> (i32, i32, i32) {
    %c0_i32 = arith.constant 0 : i32
    %c0_i32_0 = arith.constant 0 : i32
    %c0_i32_1 = arith.constant 0 : i32
    return %arg0, %c0_i32, %c0_i32_0 : i32, i32, i32
  }
}

</mosaic_0001>

<llo_original>
// kernel: speech_generator_ctc_forward.1
$region0: #{speech_generator_ctc_forward.1}
  #allocation0 [shape = 'u32[]', space=smem, size = 0x4, offset = 0x4, fixed_abs, tag = 'smem constant byte address 0x4 - core index']
  #allocation1 [shape = 'u32[72,128]{1,0:T(1,128)}', space=vmem, size = 0x9000, scoped, tag = 'internal scratch']
  #allocation2 [shape = 'f32[256,128]{1,0:T(8,128)}', space=vmem, size = 0x20000, scoped, tag = 'scratch operand']
  %s0 = inlined_call_operand.vmem [shape: f32[2,128,32], index: 0, kind: input, shape index: {}]
  %s1 = inlined_call_operand.vmem [shape: f32[2,1,128], index: 1, kind: input, shape index: {}]
  %s2 = inlined_call_operand.vmem [shape: f32[128,32], index: 2, kind: input, shape index: {}]
  %s3 = inlined_call_operand.vmem [shape: f32[128,32], index: 3, kind: input, shape index: {}]
  %s4 = inlined_call_operand.vmem [shape: bf16[32,128], index: 4, kind: input, shape index: {}]
  %s5 = inlined_call_operand.vmem [shape: f32[1,128], index: 5, kind: input, shape index: {}]
  %s6 = inlined_call_operand.vmem [shape: bf16[2,128,384], index: 6, kind: input, shape index: {}]
  %s7 = inlined_call_operand.vmem [shape: bf16[2,128,128], index: 7, kind: input, shape index: {}]
  %s8 = inlined_call_operand.vmem [shape: bf16[2,128,512], index: 8, kind: input, shape index: {}]
  %s9 = inlined_call_operand.vmem [shape: bf16[2,256,128], index: 9, kind: input, shape index: {}]
  %s10 = inlined_call_operand.vmem [shape: bf16[128,128], index: 10, kind: input, shape index: {}]
  %s11 = inlined_call_operand.vmem [shape: f32[1,128], index: 11, kind: input, shape index: {}]
  %s12 = inlined_call_operand.vmem [shape: f32[2,128,128], index: 12, kind: output, shape index: {}]
  %s13 = sld [smem:[#allocation0]]
  $region89: #{speech_generator_ctc_forward.1} parent=0
    _
  %s15 = ssub.s32 1, %s13
  %s16 = scalar_select 0, %s15, %s13
  loop: start=0, step=1, limit=4
  $region2: #{speech_generator_ctc_forward.1} parent=0 // loop_pre_header
    _
  $region3: #{speech_generator_ctc_forward.1} parent=0 // loop_header
    %s18 = sphi 0, %s22
    %p19 = scmp.ge.s32.totalorder %s18, 4
    %s25 = sphi 0, %s37
    %s26 = sphi 0, %s33
    %s27 = sphi 0, %s25
    %s28 = sphi 0, %s26
    %s29 = sphi 0, %s27
    %s30 = sphi 0, %s28
    %s40 = sphi 0, %s42
    %s43 = sphi 0, %s40
    %s44 = sphi 0, %s43
    %s60 = sphi 0, %s44
    %s66 = sphi 0, %s68
    %s69 = sphi 0, %s66
    %s70 = sphi 0, %s69
    %s86 = sphi 0, %s70
    %s90 = sphi 0, %s90
    %s92 = sphi 0, %s90
    %s93 = sphi 0, %s92
    %s107 = sphi 0, %s93
    %s111 = sphi 0, %s111
    %s113 = sphi 0, %s111
    %s114 = sphi 0, %s113
    %s128 = sphi 0, %s114
    %s132 = sphi 0, %s132
    %s134 = sphi 0, %s132
    %s135 = sphi 0, %s134
    %s149 = sphi 0, %s135
    %s153 = sphi 0, %s153
    %s155 = sphi 0, %s153
    %s156 = sphi 0, %s155
    %s170 = sphi 0, %s156
    %s176 = sphi 0, %s178
    %s179 = sphi 0, %s176
    %s180 = sphi 0, %s179
    %s196 = sphi 0, %s180
    %s202 = sphi 0, %s204
    %s205 = sphi 0, %s202
    %s206 = sphi 0, %s205
    %s222 = sphi 0, %s206
    %s228 = sphi 0, %s230
    %s231 = sphi 0, %s228
    %s232 = sphi 0, %s231
    %s248 = sphi 0, %s232
    %s254 = sphi 0, %s256
    %s257 = sphi 0, %s254
    %s258 = sphi 0, %s257
    %s274 = sphi 0, %s258
    %s278 = sphi 0, %s278
    %s280 = sphi 0, %s278
    %s281 = sphi 0, %s280
    %s295 = sphi 0, %s281
    %s299 = sphi 0, %s299
    %s301 = sphi 0, %s299
    %s302 = sphi 0, %s301
    %s316 = sphi 0, %s302
    %s322 = sphi 0, %s324
    %s325 = sphi 0, %s322
    %s326 = sphi 0, %s325
    %s342 = sphi 0, %s326
  $region4: #{speech_generator_ctc_forward.1} parent=0 // loop_header_branch
    %21 = sbr.rel (%p19) target = $region8
  $region5: #{speech_generator_ctc_forward.1} parent=0 // loop_body
    %s23 = ssub.s32 %s18, 1
    %s24 = ssub.s32 %s18, 2
    %s31 = sadd.s32 1, %s26
    %p32 = scmp.ge.s32.totalorder %s31, 2
    %s33 = scalar_select %p32, 0, %s31
    %s34 = sadd.s32 1, %s25
    %s35 = scalar_select %p32, %s34, %s25
    %p36 = scmp.ge.s32.totalorder %s35, 1
    %s37 = scalar_select %p36, 0, %s35
    %s38 = ssub.s32 %s25, %s37
    %p39 = scmp.eq.s32.totalorder %s38, 0
    %s41 = sadd.s32 %s40, 1
    %s42 = scalar_select %p39, %s40, %s41
    %p45 = pneg %p39
    %p46 = scmp.eq.s32.totalorder %s18, 1
    %p47 = por %p45, %p46
    %p48 = scmp.ne.s32.totalorder %s40, %s43
    %p49 = scmp.eq.s32.totalorder %s18, 0
    %p50 = por %p48, %p49
    %p51 = scmp.ne.s32.totalorder %s40, %s43
    %p52 = scmp.eq.s32.totalorder %s23, 1
    %p53 = por %p51, %p52
    %p54 = scmp.ne.s32.totalorder %s43, %s44
    %p55 = scmp.eq.s32.totalorder %s23, 0
    %p56 = por %p54, %p55
    %p57 = scmp.ne.s32.totalorder %s43, %s44
    %p58 = scmp.eq.s32.totalorder %s24, 1
    %p59 = por %p57, %p58
    %p61 = scmp.ne.s32.totalorder %s44, %s60
    %p62 = scmp.eq.s32.totalorder %s24, 0
    %p63 = por %p61, %p62
    %s64 = ssub.s32 %s25, %s37
    %p65 = scmp.eq.s32.totalorder %s64, 0
    %s67 = sadd.s32 %s66, 1
    %s68 = scalar_select %p65, %s66, %s67
    %p71 = pneg %p65
    %p72 = scmp.eq.s32.totalorder %s18, 1
    %p73 = por %p71, %p72
    %p74 = scmp.ne.s32.totalorder %s66, %s69
    %p75 = scmp.eq.s32.totalorder %s18, 0
    %p76 = por %p74, %p75
    %p77 = scmp.ne.s32.totalorder %s66, %s69
    %p78 = scmp.eq.s32.totalorder %s23, 1
    %p79 = por %p77, %p78
    %p80 = scmp.ne.s32.totalorder %s69, %s70
    %p81 = scmp.eq.s32.totalorder %s23, 0
    %p82 = por %p80, %p81
    %p83 = scmp.ne.s32.totalorder %s69, %s70
    %p84 = scmp.eq.s32.totalorder %s24, 1
    %p85 = por %p83, %p84
    %p87 = scmp.ne.s32.totalorder %s70, %s86
    %p88 = scmp.eq.s32.totalorder %s24, 0
    %p89 = por %p87, %p88
    %s91 = sadd.s32 %s90, 1
    %p94 = scmp.eq.s32.totalorder %s18, 1
    %p95 = scmp.ne.s32.totalorder %s90, %s92
    %p96 = scmp.eq.s32.totalorder %s18, 0
    %p97 = por %p95, %p96
    %p98 = scmp.ne.s32.totalorder %s90, %s92
    %p99 = scmp.eq.s32.totalorder %s23, 1
    %p100 = por %p98, %p99
    %p101 = scmp.ne.s32.totalorder %s92, %s93
    %p102 = scmp.eq.s32.totalorder %s23, 0
    %p103 = por %p101, %p102
    %p104 = scmp.ne.s32.totalorder %s92, %s93
    %p105 = scmp.eq.s32.totalorder %s24, 1
    %p106 = por %p104, %p105
    %p108 = scmp.ne.s32.totalorder %s93, %s107
    %p109 = scmp.eq.s32.totalorder %s24, 0
    %p110 = por %p108, %p109
    %s112 = sadd.s32 %s111, 1
    %p115 = scmp.eq.s32.totalorder %s18, 1
    %p116 = scmp.ne.s32.totalorder %s111, %s113
    %p117 = scmp.eq.s32.totalorder %s18, 0
    %p118 = por %p116, %p117
    %p119 = scmp.ne.s32.totalorder %s111, %s113
    %p120 = scmp.eq.s32.totalorder %s23, 1
    %p121 = por %p119, %p120
    %p122 = scmp.ne.s32.totalorder %s113, %s114
    %p123 = scmp.eq.s32.totalorder %s23, 0
    %p124 = por %p122, %p123
    %p125 = scmp.ne.s32.totalorder %s113, %s114
    %p126 = scmp.eq.s32.totalorder %s24, 1
    %p127 = por %p125, %p126
    %p129 = scmp.ne.s32.totalorder %s114, %s128
    %p130 = scmp.eq.s32.totalorder %s24, 0
    %p131 = por %p129, %p130
    %s133 = sadd.s32 %s132, 1
    %p136 = scmp.eq.s32.totalorder %s18, 1
    %p137 = scmp.ne.s32.totalorder %s132, %s134
    %p138 = scmp.eq.s32.totalorder %s18, 0
    %p139 = por %p137, %p138
    %p140 = scmp.ne.s32.totalorder %s132, %s134
    %p141 = scmp.eq.s32.totalorder %s23, 1
    %p142 = por %p140, %p141
    %p143 = scmp.ne.s32.totalorder %s134, %s135
    %p144 = scmp.eq.s32.totalorder %s23, 0
    %p145 = por %p143, %p144
    %p146 = scmp.ne.s32.totalorder %s134, %s135
    %p147 = scmp.eq.s32.totalorder %s24, 1
    %p148 = por %p146, %p147
    %p150 = scmp.ne.s32.totalorder %s135, %s149
    %p151 = scmp.eq.s32.totalorder %s24, 0
    %p152 = por %p150, %p151
    %s154 = sadd.s32 %s153, 1
    %p157 = scmp.eq.s32.totalorder %s18, 1
    %p158 = scmp.ne.s32.totalorder %s153, %s155
    %p159 = scmp.eq.s32.totalorder %s18, 0
    %p160 = por %p158, %p159
    %p161 = scmp.ne.s32.totalorder %s153, %s155
    %p162 = scmp.eq.s32.totalorder %s23, 1
    %p163 = por %p161, %p162
    %p164 = scmp.ne.s32.totalorder %s155, %s156
    %p165 = scmp.eq.s32.totalorder %s23, 0
    %p166 = por %p164, %p165
    %p167 = scmp.ne.s32.totalorder %s155, %s156
    %p168 = scmp.eq.s32.totalorder %s24, 1
    %p169 = por %p167, %p168
    %p171 = scmp.ne.s32.totalorder %s156, %s170
    %p172 = scmp.eq.s32.totalorder %s24, 0
    %p173 = por %p171, %p172
    %s174 = ssub.s32 %s26, %s33
    %p175 = scmp.eq.s32.totalorder %s174, 0
    %s177 = sadd.s32 %s176, 1
    %s178 = scalar_select %p175, %s176, %s177
    %p181 = pneg %p175
    %p182 = scmp.eq.s32.totalorder %s18, 1
    %p183 = por %p181, %p182
    %p184 = scmp.ne.s32.totalorder %s176, %s179
    %p185 = scmp.eq.s32.totalorder %s18, 0
    %p186 = por %p184, %p185
    %p187 = scmp.ne.s32.totalorder %s176, %s179
    %p188 = scmp.eq.s32.totalorder %s23, 1
    %p189 = por %p187, %p188
    %p190 = scmp.ne.s32.totalorder %s179, %s180
    %p191 = scmp.eq.s32.totalorder %s23, 0
    %p192 = por %p190, %p191
    %p193 = scmp.ne.s32.totalorder %s179, %s180
    %p194 = scmp.eq.s32.totalorder %s24, 1
    %p195 = por %p193, %p194
    %p197 = scmp.ne.s32.totalorder %s180, %s196
    %p198 = scmp.eq.s32.totalorder %s24, 0
    %p199 = por %p197, %p198
    %s200 = ssub.s32 %s26, %s33
    %p201 = scmp.eq.s32.totalorder %s200, 0
    %s203 = sadd.s32 %s202, 1
    %s204 = scalar_select %p201, %s202, %s203
    %p207 = pneg %p201
    %p208 = scmp.eq.s32.totalorder %s18, 1
    %p209 = por %p207, %p208
    %p210 = scmp.ne.s32.totalorder %s202, %s205
    %p211 = scmp.eq.s32.totalorder %s18, 0
    %p212 = por %p210, %p211
    %p213 = scmp.ne.s32.totalorder %s202, %s205
    %p214 = scmp.eq.s32.totalorder %s23, 1
    %p215 = por %p213, %p214
    %p216 = scmp.ne.s32.totalorder %s205, %s206
    %p217 = scmp.eq.s32.totalorder %s23, 0
    %p218 = por %p216, %p217
    %p219 = scmp.ne.s32.totalorder %s205, %s206
    %p220 = scmp.eq.s32.totalorder %s24, 1
    %p221 = por %p219, %p220
    %p223 = scmp.ne.s32.totalorder %s206, %s222
    %p224 = scmp.eq.s32.totalorder %s24, 0
    %p225 = por %p223, %p224
    %s226 = ssub.s32 %s26, %s33
    %p227 = scmp.eq.s32.totalorder %s226, 0
    %s229 = sadd.s32 %s228, 1
    %s230 = scalar_select %p227, %s228, %s229
    %p233 = pneg %p227
    %p234 = scmp.eq.s32.totalorder %s18, 1
    %p235 = por %p233, %p234
    %p236 = scmp.ne.s32.totalorder %s228, %s231
    %p237 = scmp.eq.s32.totalorder %s18, 0
    %p238 = por %p236, %p237
    %p239 = scmp.ne.s32.totalorder %s228, %s231
    %p240 = scmp.eq.s32.totalorder %s23, 1
    %p241 = por %p239, %p240
    %p242 = scmp.ne.s32.totalorder %s231, %s232
    %p243 = scmp.eq.s32.totalorder %s23, 0
    %p244 = por %p242, %p243
    %p245 = scmp.ne.s32.totalorder %s231, %s232
    %p246 = scmp.eq.s32.totalorder %s24, 1
    %p247 = por %p245, %p246
    %p249 = scmp.ne.s32.totalorder %s232, %s248
    %p250 = scmp.eq.s32.totalorder %s24, 0
    %p251 = por %p249, %p250
    %s252 = ssub.s32 %s26, %s33
    %p253 = scmp.eq.s32.totalorder %s252, 0
    %s255 = sadd.s32 %s254, 1
    %s256 = scalar_select %p253, %s254, %s255
    %p259 = pneg %p253
    %p260 = scmp.eq.s32.totalorder %s18, 1
    %p261 = por %p259, %p260
    %p262 = scmp.ne.s32.totalorder %s254, %s257
    %p263 = scmp.eq.s32.totalorder %s18, 0
    %p264 = por %p262, %p263
    %p265 = scmp.ne.s32.totalorder %s254, %s257
    %p266 = scmp.eq.s32.totalorder %s23, 1
    %p267 = por %p265, %p266
    %p268 = scmp.ne.s32.totalorder %s257, %s258
    %p269 = scmp.eq.s32.totalorder %s23, 0
    %p270 = por %p268, %p269
    %p271 = scmp.ne.s32.totalorder %s257, %s258
    %p272 = scmp.eq.s32.totalorder %s24, 1
    %p273 = por %p271, %p272
    %p275 = scmp.ne.s32.totalorder %s258, %s274
    %p276 = scmp.eq.s32.totalorder %s24, 0
    %p277 = por %p275, %p276
    %s279 = sadd.s32 %s278, 1
    %p282 = scmp.eq.s32.totalorder %s18, 1
    %p283 = scmp.ne.s32.totalorder %s278, %s280
    %p284 = scmp.eq.s32.totalorder %s18, 0
    %p285 = por %p283, %p284
    %p286 = scmp.ne.s32.totalorder %s278, %s280
    %p287 = scmp.eq.s32.totalorder %s23, 1
    %p288 = por %p286, %p287
    %p289 = scmp.ne.s32.totalorder %s280, %s281
    %p290 = scmp.eq.s32.totalorder %s23, 0
    %p291 = por %p289, %p290
    %p292 = scmp.ne.s32.totalorder %s280, %s281
    %p293 = scmp.eq.s32.totalorder %s24, 1
    %p294 = por %p292, %p293
    %p296 = scmp.ne.s32.totalorder %s281, %s295
    %p297 = scmp.eq.s32.totalorder %s24, 0
    %p298 = por %p296, %p297
    %s300 = sadd.s32 %s299, 1
    %p303 = scmp.eq.s32.totalorder %s18, 1
    %p304 = scmp.ne.s32.totalorder %s299, %s301
    %p305 = scmp.eq.s32.totalorder %s18, 0
    %p306 = por %p304, %p305
    %p307 = scmp.ne.s32.totalorder %s299, %s301
    %p308 = scmp.eq.s32.totalorder %s23, 1
    %p309 = por %p307, %p308
    %p310 = scmp.ne.s32.totalorder %s301, %s302
    %p311 = scmp.eq.s32.totalorder %s23, 0
    %p312 = por %p310, %p311
    %p313 = scmp.ne.s32.totalorder %s301, %s302
    %p314 = scmp.eq.s32.totalorder %s24, 1
    %p315 = por %p313, %p314
    %p317 = scmp.ne.s32.totalorder %s302, %s316
    %p318 = scmp.eq.s32.totalorder %s24, 0
    %p319 = por %p317, %p318
    %s320 = ssub.s32 %s25, %s37
    %p321 = scmp.eq.s32.totalorder %s320, 0
    %s323 = sadd.s32 %s322, 1
    %s324 = scalar_select %p321, %s322, %s323
    %p327 = pneg %p321
    %p328 = scmp.eq.s32.totalorder %s18, 1
    %p329 = por %p327, %p328
    %p330 = scmp.ne.s32.totalorder %s322, %s325
    %p331 = scmp.eq.s32.totalorder %s18, 0
    %p332 = por %p330, %p331
    %p333 = scmp.ne.s32.totalorder %s322, %s325
    %p334 = scmp.eq.s32.totalorder %s23, 1
    %p335 = por %p333, %p334
    %p336 = scmp.ne.s32.totalorder %s325, %s326
    %p337 = scmp.eq.s32.totalorder %s23, 0
    %p338 = por %p336, %p337
    %p339 = scmp.ne.s32.totalorder %s325, %s326
    %p340 = scmp.eq.s32.totalorder %s24, 1
    %p341 = por %p339, %p340
    %p343 = scmp.ne.s32.totalorder %s326, %s342
    %p344 = scmp.eq.s32.totalorder %s24, 0
    %p345 = por %p343, %p344
    %p346 = scmp.le.s32.totalorder 1, %s18
    %p347 = scmp.lt.s32.totalorder %s18, 3
    %p348 = pnand %p346, %p347
    %p349 = pneg %p348
    // Predicated region
    $region9: #{speech_generator_ctc_forward.1} parent=5 // pred_check
      _
    $region10: #{speech_generator_ctc_forward.1} parent=5 // pred_check_branch
      %351 = sbr.rel (%p348) target = $region12
    $region11: #{speech_generator_ctc_forward.1} parent=5 // pred_region
      %s352 = ssub.s32 %s18, 1
      // Predicated region
      $region13: #{speech_generator_ctc_forward.1} parent=11 // pred_check
        %p353 = pneg %p56
      $region14: #{speech_generator_ctc_forward.1} parent=11 // pred_check_branch
        %355 = sbr.rel (%p353) target = $region16
      $region15: #{speech_generator_ctc_forward.1} parent=11 // pred_region
        %s356 = smul.u32 2, %s27
        %p357 = scmp.lt.s32.totalorder %s356, 1
        %s358 = scalar_select %p357, %s356, 1
        %s359 = smul.addr %s358, 16
        %s360 = smul.addr %s359, 8
        %s361 = scalar_lea.vmem %s0, %s360
        %s362 = smul.u32 2, %s27
      $region16: #{speech_generator_ctc_forward.1} parent=11 // pred_fallthru
        _
      // Predicated region
      $region17: #{speech_generator_ctc_forward.1} parent=11 // pred_check
        %p363 = pneg %p82
      $region18: #{speech_generator_ctc_forward.1} parent=11 // pred_check_branch
        %365 = sbr.rel (%p363) target = $region20
      $region19: #{speech_generator_ctc_forward.1} parent=11 // pred_region
        %s366 = smul.u32 2, %s27
        %p367 = scmp.lt.s32.totalorder %s366, 1
        %s368 = scalar_select %p367, %s366, 1
        %s369 = scalar_lea.vmem %s1, %s368
        %s370 = smul.u32 2, %s27
      $region20: #{speech_generator_ctc_forward.1} parent=11 // pred_fallthru
        _
      // Predicated region
      $region21: #{speech_generator_ctc_forward.1} parent=11 // pred_check
        %p371 = pneg %p103
      $region22: #{speech_generator_ctc_forward.1} parent=11 // pred_check_branch
        %373 = sbr.rel (%p371) target = $region24
      $region23: #{speech_generator_ctc_forward.1} parent=11 // pred_region
        _
      $region24: #{speech_generator_ctc_forward.1} parent=11 // pred_fallthru
        _
      // Predicated region
      $region25: #{speech_generator_ctc_forward.1} parent=11 // pred_check
        %p374 = pneg %p124
      $region26: #{speech_generator_ctc_forward.1} parent=11 // pred_check_branch
        %376 = sbr.rel (%p374) target = $region28
      $region27: #{speech_generator_ctc_forward.1} parent=11 // pred_region
        _
      $region28: #{speech_generator_ctc_forward.1} parent=11 // pred_fallthru
        _
      // Predicated region
      $region29: #{speech_generator_ctc_forward.1} parent=11 // pred_check
        %p377 = pneg %p145
      $region30: #{speech_generator_ctc_forward.1} parent=11 // pred_check_branch
        %379 = sbr.rel (%p377) target = $region32
      $region31: #{speech_generator_ctc_forward.1} parent=11 // pred_region
        _
      $region32: #{speech_generator_ctc_forward.1} parent=11 // pred_fallthru
        _
      // Predicated region
      $region33: #{speech_generator_ctc_forward.1} parent=11 // pred_check
        %p380 = pneg %p166
      $region34: #{speech_generator_ctc_forward.1} parent=11 // pred_check_branch
        %382 = sbr.rel (%p380) target = $region36
      $region35: #{speech_generator_ctc_forward.1} parent=11 // pred_region
        _
      $region36: #{speech_generator_ctc_forward.1} parent=11 // pred_fallthru
        _
      // Predicated region
      $region37: #{speech_generator_ctc_forward.1} parent=11 // pred_check
        %p383 = pneg %p291
      $region38: #{speech_generator_ctc_forward.1} parent=11 // pred_check_branch
        %385 = sbr.rel (%p383) target = $region40
      $region39: #{speech_generator_ctc_forward.1} parent=11 // pred_region
        _
      $region40: #{speech_generator_ctc_forward.1} parent=11 // pred_fallthru
        _
      // Predicated region
      $region41: #{speech_generator_ctc_forward.1} parent=11 // pred_check
        %p386 = pneg %p312
      $region42: #{speech_generator_ctc_forward.1} parent=11 // pred_check_branch
        %388 = sbr.rel (%p386) target = $region44
      $region43: #{speech_generator_ctc_forward.1} parent=11 // pred_region
        _
      $region44: #{speech_generator_ctc_forward.1} parent=11 // pred_fallthru
        _
    $region12: #{speech_generator_ctc_forward.1} parent=5 // pred_fallthru
      _
    %p389 = scmp.lt.s32.totalorder %s18, 2
    // Predicated region
    $region45: #{speech_generator_ctc_forward.1} parent=5 // pred_check
      %p390 = pneg %p389
    $region46: #{speech_generator_ctc_forward.1} parent=5 // pred_check_branch
      %392 = sbr.rel (%p390) target = $region48
    $region47: #{speech_generator_ctc_forward.1} parent=5 // pred_region
      // Predicated region
      $region49: #{speech_generator_ctc_forward.1} parent=47 // pred_check
        %p393 = pneg %p186
      $region50: #{speech_generator_ctc_forward.1} parent=47 // pred_check_branch
        %395 = sbr.rel (%p393) target = $region52
      $region51: #{speech_generator_ctc_forward.1} parent=47 // pred_region
        %p396 = scmp.lt.s32.totalorder %s26, 1
        %s397 = scalar_select %p396, %s26, 1
        %s398 = smul.addr %s397, 48
        %s399 = smul.addr %s398, 4
        %s400 = scalar_lea.vmem %s6, %s399
      $region52: #{speech_generator_ctc_forward.1} parent=47 // pred_fallthru
        _
      // Predicated region
      $region53: #{speech_generator_ctc_forward.1} parent=47 // pred_check
        %p401 = pneg %p212
      $region54: #{speech_generator_ctc_forward.1} parent=47 // pred_check_branch
        %403 = sbr.rel (%p401) target = $region56
      $region55: #{speech_generator_ctc_forward.1} parent=47 // pred_region
        %p404 = scmp.lt.s32.totalorder %s26, 1
        %s405 = scalar_select %p404, %s26, 1
        %s406 = smul.addr %s405, 16
        %s407 = smul.addr %s406, 4
        %s408 = scalar_lea.vmem %s7, %s407
      $region56: #{speech_generator_ctc_forward.1} parent=47 // pred_fallthru
        _
      // Predicated region
      $region57: #{speech_generator_ctc_forward.1} parent=47 // pred_check
        %p409 = pneg %p238
      $region58: #{speech_generator_ctc_forward.1} parent=47 // pred_check_branch
        %411 = sbr.rel (%p409) target = $region60
      $region59: #{speech_generator_ctc_forward.1} parent=47 // pred_region
        %p412 = scmp.lt.s32.totalorder %s26, 1
        %s413 = scalar_select %p412, %s26, 1
        %s414 = smul.addr %s413, 64
        %s415 = smul.addr %s414, 4
        %s416 = scalar_lea.vmem %s8, %s415
      $region60: #{speech_generator_ctc_forward.1} parent=47 // pred_fallthru
        _
      // Predicated region
      $region61: #{speech_generator_ctc_forward.1} parent=47 // pred_check
        %p417 = pneg %p264
      $region62: #{speech_generator_ctc_forward.1} parent=47 // pred_check_branch
        %419 = sbr.rel (%p417) target = $region64
      $region63: #{speech_generator_ctc_forward.1} parent=47 // pred_region
        %p420 = scmp.lt.s32.totalorder %s26, 1
        %s421 = scalar_select %p420, %s26, 1
        %s422 = smul.addr %s421, 32
        %s423 = smul.addr %s422, 4
        %s424 = scalar_lea.vmem %s9, %s423
      $region64: #{speech_generator_ctc_forward.1} parent=47 // pred_fallthru
        _
    $region48: #{speech_generator_ctc_forward.1} parent=5 // pred_fallthru
      _
    %p425 = scmp.le.s32.totalorder 1, %s18
    %p426 = scmp.lt.s32.totalorder %s18, 3
    %p427 = pnand %p425, %p426
    %p428 = pneg %p427
    // Predicated region
    $region65: #{speech_generator_ctc_forward.1} parent=5 // pred_check
      _
    $region66: #{speech_generator_ctc_forward.1} parent=5 // pred_check_branch
      %430 = sbr.rel (%p427) target = $region68
    $region67: #{speech_generator_ctc_forward.1} parent=5 // pred_region
      %s431 = ssub.s32 %s18, 1
      %s432 = smul.u32 2, %s27
      %p433 = scmp.lt.s32.totalorder %s432, 1
      %s434 = scalar_select %p433, %s432, 1
      %s435 = smul.addr %s434, 16
      %s436 = smul.addr %s435, 8
      %s437 = scalar_lea.vmem %s0, %s436
      %p438 = pneg %p56
      %p439 = pneg %p53
      %s440 = smul.u32 2, %s27
      %p441 = scmp.lt.s32.totalorder %s440, 1
      %s442 = scalar_select %p441, %s440, 1
      %s443 = scalar_lea.vmem %s1, %s442
      %p444 = pneg %p82
      %p445 = pneg %p79
      %p446 = pneg %p103
      %p447 = pneg %p100
      %p448 = pneg %p124
      %p449 = pneg %p121
      %p450 = pneg %p145
      %p451 = pneg %p142
      %p452 = pneg %p166
      %p453 = pneg %p163
      %p454 = scmp.lt.s32.totalorder %s28, 1
      %s455 = scalar_select %p454, %s28, 1
      %s456 = smul.addr %s455, 48
      %s457 = smul.addr %s456, 4
      %s458 = scalar_lea.vmem %s6, %s457
      %p459 = pneg %p192
      %p460 = pneg %p189
      %p461 = scmp.lt.s32.totalorder %s28, 1
      %s462 = scalar_select %p461, %s28, 1
      %s463 = smul.addr %s462, 16
      %s464 = smul.addr %s463, 4
      %s465 = scalar_lea.vmem %s7, %s464
      %p466 = pneg %p218
      %p467 = pneg %p215
      %p468 = scmp.lt.s32.totalorder %s28, 1
      %s469 = scalar_select %p468, %s28, 1
      %s470 = smul.addr %s469, 64
      %s471 = smul.addr %s470, 4
      %s472 = scalar_lea.vmem %s8, %s471
      %p473 = pneg %p244
      %p474 = pneg %p241
      %p475 = scmp.lt.s32.totalorder %s28, 1
      %s476 = scalar_select %p475, %s28, 1
      %s477 = smul.addr %s476, 32
      %s478 = smul.addr %s477, 4
      %s479 = scalar_lea.vmem %s9, %s478
      %p480 = pneg %p270
      %p481 = pneg %p267
      %p482 = pneg %p291
      %p483 = pneg %p288
      %p484 = pneg %p312
      %p485 = pneg %p309
      %p486 = pneg %p338
      %p487 = pneg %p335
      %s488 = smul.u32 2, %s27
      %p489 = scmp.lt.s32.totalorder %s488, 1
      %s490 = scalar_select %p489, %s488, 1
      %s491 = smul.addr %s490, 16
      %s492 = smul.addr %s491, 8
      %s493 = scalar_lea.vmem %s12, %s492
      %s494 = smul.u32 2, %s27
      %p495 = scmp.lt.s32.totalorder %s494, 1
      %s496 = scalar_select %p495, %s494, 1
      %s497 = smul.addr %s496, 16
      %s498 = smul.addr %s497, 8
      %s499 = scalar_lea.vmem %s0, %s498
      %s500 = smul.u32 2, %s27
      %s501 = smul.u32 2, %s27
      %p502 = scmp.lt.s32.totalorder %s501, 1
      %s503 = scalar_select %p502, %s501, 1
      %s504 = scalar_lea.vmem %s1, %s503
      %s505 = smul.u32 2, %s27
      %p506 = scmp.lt.s32.totalorder %s28, 1
      %s507 = scalar_select %p506, %s28, 1
      %s508 = smul.addr %s507, 48
      %s509 = smul.addr %s508, 4
      %s510 = scalar_lea.vmem %s6, %s509
      %p511 = scmp.lt.s32.totalorder %s28, 1
      %s512 = scalar_select %p511, %s28, 1
      %s513 = smul.addr %s512, 16
      %s514 = smul.addr %s513, 4
      %s515 = scalar_lea.vmem %s7, %s514
      %p516 = scmp.lt.s32.totalorder %s28, 1
      %s517 = scalar_select %p516, %s28, 1
      %s518 = smul.addr %s517, 64
      %s519 = smul.addr %s518, 4
      %s520 = scalar_lea.vmem %s8, %s519
      %p521 = scmp.lt.s32.totalorder %s28, 1
      %s522 = scalar_select %p521, %s28, 1
      %s523 = smul.addr %s522, 32
      %s524 = smul.addr %s523, 4
      %s525 = scalar_lea.vmem %s9, %s524
      %s526 = smul.u32 2, %s27
      %p527 = scmp.lt.s32.totalorder %s526, 1
      %s528 = scalar_select %p527, %s526, 1
      %s529 = smul.addr %s528, 16
      %s530 = smul.addr %s529, 8
      %s531 = scalar_lea.vmem %s12, %s530
      %s532 = smul.u32 2, %s27
      %p534 = scmp.eq.s32.totalorder %s28, 0
      // Predicated region
      $region69: #{speech_generator_ctc_forward.1} parent=67 // pred_check
        %p535 = pneg %p534
      $region70: #{speech_generator_ctc_forward.1} parent=67 // pred_check_branch
        %537 = sbr.rel (%p535) target = $region72
      $region71: #{speech_generator_ctc_forward.1} parent=67 // pred_region
        %v538 = vld [vmem:[%s499] sm:$0xff]
        %v539 = vld [vmem:[%s499 + $0x8] sm:$0xff]
        %v540 = vld [vmem:[%s499 + $0x10] sm:$0xff]
        %v541 = vld [vmem:[%s499 + $0x18] sm:$0xff]
        %v542 = vld [vmem:[%s499 + $0x20] sm:$0xff]
        %v543 = vld [vmem:[%s499 + $0x28] sm:$0xff]
        %v544 = vld [vmem:[%s499 + $0x30] sm:$0xff]
        %v545 = vld [vmem:[%s499 + $0x38] sm:$0xff]
        %v546 = vld [vmem:[%s499 + $0x40] sm:$0xff]
        %v547 = vld [vmem:[%s499 + $0x48] sm:$0xff]
        %v548 = vld [vmem:[%s499 + $0x50] sm:$0xff]
        %v549 = vld [vmem:[%s499 + $0x58] sm:$0xff]
        %v550 = vld [vmem:[%s499 + $0x60] sm:$0xff]
        %v551 = vld [vmem:[%s499 + $0x68] sm:$0xff]
        %v552 = vld [vmem:[%s499 + $0x70] sm:$0xff]
        %v553 = vld [vmem:[%s499 + $0x78] sm:$0xff]
        %v554 = vld [vmem:[%s499 + $0x80] sm:$0xff]
        %v555 = vld [vmem:[%s499 + $0x88] sm:$0xff]
        %v556 = vld [vmem:[%s499 + $0x90] sm:$0xff]
        %v557 = vld [vmem:[%s499 + $0x98] sm:$0xff]
        %v558 = vld [vmem:[%s499 + $0xa0] sm:$0xff]
        %v559 = vld [vmem:[%s499 + $0xa8] sm:$0xff]
        %v560 = vld [vmem:[%s499 + $0xb0] sm:$0xff]
        %v561 = vld [vmem:[%s499 + $0xb8] sm:$0xff]
        %v562 = vld [vmem:[%s499 + $0xc0] sm:$0xff]
        %v563 = vld [vmem:[%s499 + $0xc8] sm:$0xff]
        %v564 = vld [vmem:[%s499 + $0xd0] sm:$0xff]
        %v565 = vld [vmem:[%s499 + $0xd8] sm:$0xff]
        %v566 = vld [vmem:[%s499 + $0xe0] sm:$0xff]
        %v567 = vld [vmem:[%s499 + $0xe8] sm:$0xff]
        %v568 = vld [vmem:[%s499 + $0xf0] sm:$0xff]
        %v569 = vld [vmem:[%s499 + $0xf8] sm:$0xff]
        %v570 = vpack.c.bf16 %v539, %v538
        %v571 = vpack.c.bf16 %v541, %v540
        %v572 = vpack.c.bf16 %v543, %v542
        %v573 = vpack.c.bf16 %v545, %v544
        %v574 = vpack.c.bf16 %v547, %v546
        %v575 = vpack.c.bf16 %v549, %v548
        %v576 = vpack.c.bf16 %v551, %v550
        %v577 = vpack.c.bf16 %v553, %v552
        %v578 = vpack.c.bf16 %v555, %v554
        %v579 = vpack.c.bf16 %v557, %v556
        %v580 = vpack.c.bf16 %v559, %v558
        %v581 = vpack.c.bf16 %v561, %v560
        %v582 = vpack.c.bf16 %v563, %v562
        %v583 = vpack.c.bf16 %v565, %v564
        %v584 = vpack.c.bf16 %v567, %v566
        %v585 = vpack.c.bf16 %v569, %v568
        %v586 = vld [vmem:[%s4] sm:$0xf]
        %v587 = vld [vmem:[%s4 + $0x4] sm:$0xf]
        %v588 = vld [vmem:[%s4 + $0x8] sm:$0xf]
        %v589 = vld [vmem:[%s4 + $0xc] sm:$0xf]
        %v590 = vld [vmem:[%s5] sm:$0x1]
        %v592 = vperm.slane %v590, 0
        %v598 = vunpack.c.l.b16 %v586
        %v599 = vunpack.c.l.b16 %v587
        %v600 = vunpack.c.l.b16 %v588
        %v601 = vunpack.c.l.b16 %v589
        %v602 = vpack.c.b16 %v599, %v598
        %v603 = vpack.c.b16 %v601, %v600
        %vm606 = vcmask 261120
        %v608 = vsel %vm606, %v570, 0
        %v611 = vsel %vm606, %v571, 0
        %v614 = vsel %vm606, %v572, 0
        %v617 = vsel %vm606, %v573, 0
        %v620 = vsel %vm606, %v574, 0
        %v623 = vsel %vm606, %v575, 0
        %v626 = vsel %vm606, %v576, 0
        %v629 = vsel %vm606, %v577, 0
        %v632 = vsel %vm606, %v578, 0
        %v635 = vsel %vm606, %v579, 0
        %v638 = vsel %vm606, %v580, 0
        %v641 = vsel %vm606, %v581, 0
        %v644 = vsel %vm606, %v582, 0
        %v647 = vsel %vm606, %v583, 0
        %v650 = vsel %vm606, %v584, 0
        %v653 = vsel %vm606, %v585, 0
        %655 = vmatpush.bf16.msra.mxu0 0
        %656 = vmatpush.bf16.msra.mxu0 0
        %657 = vmatpush.bf16.msra.mxu0 0
        %658 = vmatpush.bf16.msra.mxu0 0
        %659 = vmatpush.bf16.msra.mxu0 0
        %660 = vmatpush.bf16.msra.mxu0 0
        %661 = vmatpush.bf16.msra.mxu0 %v603
        %662 = vmatpush.bf16.msra.mxu0 %v602
        %663 = vmatmul.bf16.gmra.mxu0 %v608
        %v664 = vpop.f32.mrf.mxu0
        %v665 = vadd.f32 %v592, %v664
        %v666 = vpop.f32.mrf.mxu0
        %v667 = vadd.f32 %v592, %v666
        %668 = vmatmul.bf16.gmra.mxu0 %v611
        %v669 = vpop.f32.mrf.mxu0
        %v670 = vadd.f32 %v592, %v669
        %v671 = vpop.f32.mrf.mxu0
        %v672 = vadd.f32 %v592, %v671
        %673 = vmatmul.bf16.gmra.mxu0 %v614
        %v674 = vpop.f32.mrf.mxu0
        %v675 = vadd.f32 %v592, %v674
        %v676 = vpop.f32.mrf.mxu0
        %v677 = vadd.f32 %v592, %v676
        %678 = vmatmul.bf16.gmra.mxu0 %v617
        %v679 = vpop.f32.mrf.mxu0
        %v680 = vadd.f32 %v592, %v679
        %v681 = vpop.f32.mrf.mxu0
        %v682 = vadd.f32 %v592, %v681
        %683 = vmatmul.bf16.gmra.mxu0 %v620
        %v684 = vpop.f32.mrf.mxu0
        %v685 = vadd.f32 %v592, %v684
        %v686 = vpop.f32.mrf.mxu0
        %v687 = vadd.f32 %v592, %v686
        %688 = vmatmul.bf16.gmra.mxu0 %v623
        %v689 = vpop.f32.mrf.mxu0
        %v690 = vadd.f32 %v592, %v689
        %v691 = vpop.f32.mrf.mxu0
        %v692 = vadd.f32 %v592, %v691
        %693 = vmatmul.bf16.gmra.mxu0 %v626
        %v694 = vpop.f32.mrf.mxu0
        %v695 = vadd.f32 %v592, %v694
        %v696 = vpop.f32.mrf.mxu0
        %v697 = vadd.f32 %v592, %v696
        %698 = vmatmul.bf16.gmra.mxu0 %v629
        %v699 = vpop.f32.mrf.mxu0
        %v700 = vadd.f32 %v592, %v699
        %v701 = vpop.f32.mrf.mxu0
        %v702 = vadd.f32 %v592, %v701
        %703 = vmatmul.bf16.gmra.mxu0 %v632
        %v704 = vpop.f32.mrf.mxu0
        %v705 = vadd.f32 %v592, %v704
        %v706 = vpop.f32.mrf.mxu0
        %v707 = vadd.f32 %v592, %v706
        %708 = vmatmul.bf16.gmra.mxu0 %v635
        %v709 = vpop.f32.mrf.mxu0
        %v710 = vadd.f32 %v592, %v709
        %v711 = vpop.f32.mrf.mxu0
        %v712 = vadd.f32 %v592, %v711
        %713 = vmatmul.bf16.gmra.mxu0 %v638
        %v714 = vpop.f32.mrf.mxu0
        %v715 = vadd.f32 %v592, %v714
        %v716 = vpop.f32.mrf.mxu0
        %v717 = vadd.f32 %v592, %v716
        %718 = vmatmul.bf16.gmra.mxu0 %v641
        %v719 = vpop.f32.mrf.mxu0
        %v720 = vadd.f32 %v592, %v719
        %v721 = vpop.f32.mrf.mxu0
        %v722 = vadd.f32 %v592, %v721
        %723 = vmatmul.bf16.gmra.mxu0 %v644
        %v724 = vpop.f32.mrf.mxu0
        %v725 = vadd.f32 %v592, %v724
        %v726 = vpop.f32.mrf.mxu0
        %v727 = vadd.f32 %v592, %v726
        %728 = vmatmul.bf16.gmra.mxu0 %v647
        %v729 = vpop.f32.mrf.mxu0
        %v730 = vadd.f32 %v592, %v729
        %v731 = vpop.f32.mrf.mxu0
        %v732 = vadd.f32 %v592, %v731
        %733 = vmatmul.bf16.gmra.mxu0 %v650
        %v734 = vpop.f32.mrf.mxu0
        %v735 = vadd.f32 %v592, %v734
        %v736 = vpop.f32.mrf.mxu0
        %v737 = vadd.f32 %v592, %v736
        %738 = vmatmul.bf16.gmra.mxu0 %v653
        %v739 = vpop.f32.mrf.mxu0
        %v740 = vadd.f32 %v592, %v739
        %v741 = vpop.f32.mrf.mxu0
        %v742 = vadd.f32 %v592, %v741
        %743 = vdwg.mxu0
        %744 = vst [vmem:[#allocation2] sm:$0xff] %v665
        %745 = vst [vmem:[#allocation2 + $0x8] sm:$0xff] %v667
        %746 = vst [vmem:[#allocation2 + $0x10] sm:$0xff] %v670
        %747 = vst [vmem:[#allocation2 + $0x18] sm:$0xff] %v672
        %748 = vst [vmem:[#allocation2 + $0x20] sm:$0xff] %v675
        %749 = vst [vmem:[#allocation2 + $0x28] sm:$0xff] %v677
        %750 = vst [vmem:[#allocation2 + $0x30] sm:$0xff] %v680
        %751 = vst [vmem:[#allocation2 + $0x38] sm:$0xff] %v682
        %752 = vst [vmem:[#allocation2 + $0x40] sm:$0xff] %v685
        %753 = vst [vmem:[#allocation2 + $0x48] sm:$0xff] %v687
        %754 = vst [vmem:[#allocation2 + $0x50] sm:$0xff] %v690
        %755 = vst [vmem:[#allocation2 + $0x58] sm:$0xff] %v692
        %756 = vst [vmem:[#allocation2 + $0x60] sm:$0xff] %v695
        %757 = vst [vmem:[#allocation2 + $0x68] sm:$0xff] %v697
        %758 = vst [vmem:[#allocation2 + $0x70] sm:$0xff] %v700
        %759 = vst [vmem:[#allocation2 + $0x78] sm:$0xff] %v702
        %760 = vst [vmem:[#allocation2 + $0x80] sm:$0xff] %v705
        %761 = vst [vmem:[#allocation2 + $0x88] sm:$0xff] %v707
        %762 = vst [vmem:[#allocation2 + $0x90] sm:$0xff] %v710
        %763 = vst [vmem:[#allocation2 + $0x98] sm:$0xff] %v712
        %764 = vst [vmem:[#allocation2 + $0xa0] sm:$0xff] %v715
        %765 = vst [vmem:[#allocation2 + $0xa8] sm:$0xff] %v717
        %766 = vst [vmem:[#allocation2 + $0xb0] sm:$0xff] %v720
        %767 = vst [vmem:[#allocation2 + $0xb8] sm:$0xff] %v722
        %768 = vst [vmem:[#allocation2 + $0xc0] sm:$0xff] %v725
        %769 = vst [vmem:[#allocation2 + $0xc8] sm:$0xff] %v727
        %770 = vst [vmem:[#allocation2 + $0xd0] sm:$0xff] %v730
        %771 = vst [vmem:[#allocation2 + $0xd8] sm:$0xff] %v732
        %772 = vst [vmem:[#allocation2 + $0xe0] sm:$0xff] %v735
        %773 = vst [vmem:[#allocation2 + $0xe8] sm:$0xff] %v737
        %774 = vst [vmem:[#allocation2 + $0xf0] sm:$0xff] %v740
        %775 = vst [vmem:[#allocation2 + $0xf8] sm:$0xff] %v742
      $region72: #{speech_generator_ctc_forward.1} parent=67 // pred_fallthru
        _
      %v776 = vld [vmem:[#allocation2] sm:$0xff]
      %v777 = vld [vmem:[#allocation2 + $0x8] sm:$0xff]
      %v778 = vld [vmem:[#allocation2 + $0x10] sm:$0xff]
      %v779 = vld [vmem:[#allocation2 + $0x18] sm:$0xff]
      %v780 = vld [vmem:[#allocation2 + $0x20] sm:$0xff]
      %v781 = vld [vmem:[#allocation2 + $0x28] sm:$0xff]
      %v782 = vld [vmem:[#allocation2 + $0x30] sm:$0xff]
      %v783 = vld [vmem:[#allocation2 + $0x38] sm:$0xff]
      %v784 = vld [vmem:[#allocation2 + $0x40] sm:$0xff]
      %v785 = vld [vmem:[#allocation2 + $0x48] sm:$0xff]
      %v786 = vld [vmem:[#allocation2 + $0x50] sm:$0xff]
      %v787 = vld [vmem:[#allocation2 + $0x58] sm:$0xff]
      %v788 = vld [vmem:[#allocation2 + $0x60] sm:$0xff]
      %v789 = vld [vmem:[#allocation2 + $0x68] sm:$0xff]
      %v790 = vld [vmem:[#allocation2 + $0x70] sm:$0xff]
      %v791 = vld [vmem:[#allocation2 + $0x78] sm:$0xff]
      %v792 = vld [vmem:[#allocation2 + $0x80] sm:$0xff]
      %v793 = vld [vmem:[#allocation2 + $0x88] sm:$0xff]
      %v794 = vld [vmem:[#allocation2 + $0x90] sm:$0xff]
      %v795 = vld [vmem:[#allocation2 + $0x98] sm:$0xff]
      %v796 = vld [vmem:[#allocation2 + $0xa0] sm:$0xff]
      %v797 = vld [vmem:[#allocation2 + $0xa8] sm:$0xff]
      %v798 = vld [vmem:[#allocation2 + $0xb0] sm:$0xff]
      %v799 = vld [vmem:[#allocation2 + $0xb8] sm:$0xff]
      %v800 = vld [vmem:[#allocation2 + $0xc0] sm:$0xff]
      %v801 = vld [vmem:[#allocation2 + $0xc8] sm:$0xff]
      %v802 = vld [vmem:[#allocation2 + $0xd0] sm:$0xff]
      %v803 = vld [vmem:[#allocation2 + $0xd8] sm:$0xff]
      %v804 = vld [vmem:[#allocation2 + $0xe0] sm:$0xff]
      %v805 = vld [vmem:[#allocation2 + $0xe8] sm:$0xff]
      %v806 = vld [vmem:[#allocation2 + $0xf0] sm:$0xff]
      %v807 = vld [vmem:[#allocation2 + $0xf8] sm:$0xff]
      %v808 = vld [vmem:[%s2] sm:$0xff]
      %v809 = vld [vmem:[%s2 + $0x8] sm:$0xff]
      %v810 = vld [vmem:[%s2 + $0x10] sm:$0xff]
      %v811 = vld [vmem:[%s2 + $0x18] sm:$0xff]
      %v812 = vld [vmem:[%s2 + $0x20] sm:$0xff]
      %v813 = vld [vmem:[%s2 + $0x28] sm:$0xff]
      %v814 = vld [vmem:[%s2 + $0x30] sm:$0xff]
      %v815 = vld [vmem:[%s2 + $0x38] sm:$0xff]
      %v816 = vld [vmem:[%s2 + $0x40] sm:$0xff]
      %v817 = vld [vmem:[%s2 + $0x48] sm:$0xff]
      %v818 = vld [vmem:[%s2 + $0x50] sm:$0xff]
      %v819 = vld [vmem:[%s2 + $0x58] sm:$0xff]
      %v820 = vld [vmem:[%s2 + $0x60] sm:$0xff]
      %v821 = vld [vmem:[%s2 + $0x68] sm:$0xff]
      %v822 = vld [vmem:[%s2 + $0x70] sm:$0xff]
      %v823 = vld [vmem:[%s2 + $0x78] sm:$0xff]
      %v824 = vld [vmem:[%s3] sm:$0xff]
      %v825 = vld [vmem:[%s3 + $0x8] sm:$0xff]
      %v826 = vld [vmem:[%s3 + $0x10] sm:$0xff]
      %v827 = vld [vmem:[%s3 + $0x18] sm:$0xff]
      %v828 = vld [vmem:[%s3 + $0x20] sm:$0xff]
      %v829 = vld [vmem:[%s3 + $0x28] sm:$0xff]
      %v830 = vld [vmem:[%s3 + $0x30] sm:$0xff]
      %v831 = vld [vmem:[%s3 + $0x38] sm:$0xff]
      %v832 = vld [vmem:[%s3 + $0x40] sm:$0xff]
      %v833 = vld [vmem:[%s3 + $0x48] sm:$0xff]
      %v834 = vld [vmem:[%s3 + $0x50] sm:$0xff]
      %v835 = vld [vmem:[%s3 + $0x58] sm:$0xff]
      %v836 = vld [vmem:[%s3 + $0x60] sm:$0xff]
      %v837 = vld [vmem:[%s3 + $0x68] sm:$0xff]
      %v838 = vld [vmem:[%s3 + $0x70] sm:$0xff]
      %v839 = vld [vmem:[%s3 + $0x78] sm:$0xff]
      %v840 = vmul.f32 %v776, %v776
      %v841 = vmul.f32 %v777, %v777
      %v842 = vmul.f32 %v778, %v778
      %v843 = vmul.f32 %v779, %v779
      %v844 = vmul.f32 %v780, %v780
      %v845 = vmul.f32 %v781, %v781
      %v846 = vmul.f32 %v782, %v782
      %v847 = vmul.f32 %v783, %v783
      %v848 = vmul.f32 %v784, %v784
      %v849 = vmul.f32 %v785, %v785
      %v850 = vmul.f32 %v786, %v786
      %v851 = vmul.f32 %v787, %v787
      %v852 = vmul.f32 %v788, %v788
      %v853 = vmul.f32 %v789, %v789
      %v854 = vmul.f32 %v790, %v790
      %v855 = vmul.f32 %v791, %v791
      %v856 = vmul.f32 %v792, %v792
      %v857 = vmul.f32 %v793, %v793
      %v858 = vmul.f32 %v794, %v794
      %v859 = vmul.f32 %v795, %v795
      %v860 = vmul.f32 %v796, %v796
      %v861 = vmul.f32 %v797, %v797
      %v862 = vmul.f32 %v798, %v798
      %v863 = vmul.f32 %v799, %v799
      %v864 = vmul.f32 %v800, %v800
      %v865 = vmul.f32 %v801, %v801
      %v866 = vmul.f32 %v802, %v802
      %v867 = vmul.f32 %v803, %v803
      %v868 = vmul.f32 %v804, %v804
      %v869 = vmul.f32 %v805, %v805
      %v870 = vmul.f32 %v806, %v806
      %v871 = vmul.f32 %v807, %v807
      %872 = vadd.xlane.f32.xlu0 %v840
      %v873 = vpop.xlane.xlu0 %872
      %874 = vadd.xlane.f32.xlu0 %v841
      %v875 = vpop.xlane.xlu0 %874
      %876 = vadd.xlane.f32.xlu0 %v842
      %v877 = vpop.xlane.xlu0 %876
      %878 = vadd.xlane.f32.xlu0 %v843
      %v879 = vpop.xlane.xlu0 %878
      %880 = vadd.xlane.f32.xlu0 %v844
      %v881 = vpop.xlane.xlu0 %880
      %882 = vadd.xlane.f32.xlu0 %v845
      %v883 = vpop.xlane.xlu0 %882
      %884 = vadd.xlane.f32.xlu0 %v846
      %v885 = vpop.xlane.xlu0 %884
      %886 = vadd.xlane.f32.xlu0 %v847
      %v887 = vpop.xlane.xlu0 %886
      %888 = vadd.xlane.f32.xlu0 %v848
      %v889 = vpop.xlane.xlu0 %888
      %890 = vadd.xlane.f32.xlu0 %v849
      %v891 = vpop.xlane.xlu0 %890
      %892 = vadd.xlane.f32.xlu0 %v850
      %v893 = vpop.xlane.xlu0 %892
      %894 = vadd.xlane.f32.xlu0 %v851
      %v895 = vpop.xlane.xlu0 %894
      %896 = vadd.xlane.f32.xlu0 %v852
      %v897 = vpop.xlane.xlu0 %896
      %898 = vadd.xlane.f32.xlu0 %v853
      %v899 = vpop.xlane.xlu0 %898
      %900 = vadd.xlane.f32.xlu0 %v854
      %v901 = vpop.xlane.xlu0 %900
      %902 = vadd.xlane.f32.xlu0 %v855
      %v903 = vpop.xlane.xlu0 %902
      %904 = vadd.xlane.f32.xlu0 %v856
      %v905 = vpop.xlane.xlu0 %904
      %906 = vadd.xlane.f32.xlu0 %v857
      %v907 = vpop.xlane.xlu0 %906
      %908 = vadd.xlane.f32.xlu0 %v858
      %v909 = vpop.xlane.xlu0 %908
      %910 = vadd.xlane.f32.xlu0 %v859
      %v911 = vpop.xlane.xlu0 %910
      %912 = vadd.xlane.f32.xlu0 %v860
      %v913 = vpop.xlane.xlu0 %912
      %914 = vadd.xlane.f32.xlu0 %v861
      %v915 = vpop.xlane.xlu0 %914
      %916 = vadd.xlane.f32.xlu0 %v862
      %v917 = vpop.xlane.xlu0 %916
      %918 = vadd.xlane.f32.xlu0 %v863
      %v919 = vpop.xlane.xlu0 %918
      %920 = vadd.xlane.f32.xlu0 %v864
      %v921 = vpop.xlane.xlu0 %920
      %922 = vadd.xlane.f32.xlu0 %v865
      %v923 = vpop.xlane.xlu0 %922
      %924 = vadd.xlane.f32.xlu0 %v866
      %v925 = vpop.xlane.xlu0 %924
      %926 = vadd.xlane.f32.xlu0 %v867
      %v927 = vpop.xlane.xlu0 %926
      %928 = vadd.xlane.f32.xlu0 %v868
      %v929 = vpop.xlane.xlu0 %928
      %930 = vadd.xlane.f32.xlu0 %v869
      %v931 = vpop.xlane.xlu0 %930
      %932 = vadd.xlane.f32.xlu0 %v870
      %v933 = vpop.xlane.xlu0 %932
      %934 = vadd.xlane.f32.xlu0 %v871
      %v935 = vpop.xlane.xlu0 %934
      %v936 = vrcp.pop 128.0
      %v937 = vmul.f32 128.0, %v936
      %v938 = vsub.f32 1.0, %v937
      %v939 = vmul.f32 %v936, %v938
      %v940 = vadd.f32 %v936, %v939
      %vm941 = vweird.f32 %v936
      %v942 = vsel %vm941, %v936, %v940
      %v943 = vmul.f32 %v873, %v942
      %v944 = vmul.f32 %v875, %v942
      %v945 = vmul.f32 %v877, %v942
      %v946 = vmul.f32 %v879, %v942
      %v947 = vmul.f32 %v881, %v942
      %v948 = vmul.f32 %v883, %v942
      %v949 = vmul.f32 %v885, %v942
      %v950 = vmul.f32 %v887, %v942
      %v951 = vmul.f32 %v889, %v942
      %v952 = vmul.f32 %v891, %v942
      %v953 = vmul.f32 %v893, %v942
      %v954 = vmul.f32 %v895, %v942
      %v955 = vmul.f32 %v897, %v942
      %v956 = vmul.f32 %v899, %v942
      %v957 = vmul.f32 %v901, %v942
      %v958 = vmul.f32 %v903, %v942
      %v959 = vmul.f32 %v905, %v942
      %v960 = vmul.f32 %v907, %v942
      %v961 = vmul.f32 %v909, %v942
      %v962 = vmul.f32 %v911, %v942
      %v963 = vmul.f32 %v913, %v942
      %v964 = vmul.f32 %v915, %v942
      %v965 = vmul.f32 %v917, %v942
      %v966 = vmul.f32 %v919, %v942
      %v967 = vmul.f32 %v921, %v942
      %v968 = vmul.f32 %v923, %v942
      %v969 = vmul.f32 %v925, %v942
      %v970 = vmul.f32 %v927, %v942
      %v971 = vmul.f32 %v929, %v942
      %v972 = vmul.f32 %v931, %v942
      %v973 = vmul.f32 %v933, %v942
      %v974 = vmul.f32 %v935, %v942
      %v975 = vadd.f32 %v943, 1e-06
      %v976 = vadd.f32 %v944, 1e-06
      %v977 = vadd.f32 %v945, 1e-06
      %v978 = vadd.f32 %v946, 1e-06
      %v979 = vadd.f32 %v947, 1e-06
      %v980 = vadd.f32 %v948, 1e-06
      %v981 = vadd.f32 %v949, 1e-06
      %v982 = vadd.f32 %v950, 1e-06
      %v983 = vadd.f32 %v951, 1e-06
      %v984 = vadd.f32 %v952, 1e-06
      %v985 = vadd.f32 %v953, 1e-06
      %v986 = vadd.f32 %v954, 1e-06
      %v987 = vadd.f32 %v955, 1e-06
      %v988 = vadd.f32 %v956, 1e-06
      %v989 = vadd.f32 %v957, 1e-06
      %v990 = vadd.f32 %v958, 1e-06
      %v991 = vadd.f32 %v959, 1e-06
      %v992 = vadd.f32 %v960, 1e-06
      %v993 = vadd.f32 %v961, 1e-06
      %v994 = vadd.f32 %v962, 1e-06
      %v995 = vadd.f32 %v963, 1e-06
      %v996 = vadd.f32 %v964, 1e-06
      %v997 = vadd.f32 %v965, 1e-06
      %v998 = vadd.f32 %v966, 1e-06
      %v999 = vadd.f32 %v967, 1e-06
      %v1000 = vadd.f32 %v968, 1e-06
      %v1001 = vadd.f32 %v969, 1e-06
      %v1002 = vadd.f32 %v970, 1e-06
      %v1003 = vadd.f32 %v971, 1e-06
      %v1004 = vadd.f32 %v972, 1e-06
      %v1005 = vadd.f32 %v973, 1e-06
      %v1006 = vadd.f32 %v974, 1e-06
      %v1007 = vrsqrt.pop %v975
      %v1008 = vmul.f32 %v1007, %v975
      %v1009 = vmul.f32 %v1008, %v1007
      %v1010 = vmul.f32 0.5, %v1009
      %v1011 = vsub.f32 1.5, %v1010
      %v1012 = vmul.f32 %v1007, %v1011
      %vm1013 = vweird.f32 %v975
      %vm1014 = vweird.f32 %v1007
      %vm1015 = vmor %vm1013, %vm1014
      %v1016 = vsel %vm1015, %v1007, %v1012
      %v1017 = vrsqrt.pop %v976
      %v1018 = vmul.f32 %v1017, %v976
      %v1019 = vmul.f32 %v1018, %v1017
      %v1020 = vmul.f32 0.5, %v1019
      %v1021 = vsub.f32 1.5, %v1020
      %v1022 = vmul.f32 %v1017, %v1021
      %vm1023 = vweird.f32 %v976
      %vm1024 = vweird.f32 %v1017
      %vm1025 = vmor %vm1023, %vm1024
      %v1026 = vsel %vm1025, %v1017, %v1022
      %v1027 = vrsqrt.pop %v977
      %v1028 = vmul.f32 %v1027, %v977
      %v1029 = vmul.f32 %v1028, %v1027
      %v1030 = vmul.f32 0.5, %v1029
      %v1031 = vsub.f32 1.5, %v1030
      %v1032 = vmul.f32 %v1027, %v1031
      %vm1033 = vweird.f32 %v977
      %vm1034 = vweird.f32 %v1027
      %vm1035 = vmor %vm1033, %vm1034
      %v1036 = vsel %vm1035, %v1027, %v1032
      %v1037 = vrsqrt.pop %v978
      %v1038 = vmul.f32 %v1037, %v978
      %v1039 = vmul.f32 %v1038, %v1037
      %v1040 = vmul.f32 0.5, %v1039
      %v1041 = vsub.f32 1.5, %v1040
      %v1042 = vmul.f32 %v1037, %v1041
      %vm1043 = vweird.f32 %v978
      %vm1044 = vweird.f32 %v1037
      %vm1045 = vmor %vm1043, %vm1044
      %v1046 = vsel %vm1045, %v1037, %v1042
      %v1047 = vrsqrt.pop %v979
      %v1048 = vmul.f32 %v1047, %v979
      %v1049 = vmul.f32 %v1048, %v1047
      %v1050 = vmul.f32 0.5, %v1049
      %v1051 = vsub.f32 1.5, %v1050
      %v1052 = vmul.f32 %v1047, %v1051
      %vm1053 = vweird.f32 %v979
      %vm1054 = vweird.f32 %v1047
      %vm1055 = vmor %vm1053, %vm1054
      %v1056 = vsel %vm1055, %v1047, %v1052
      %v1057 = vrsqrt.pop %v980
      %v1058 = vmul.f32 %v1057, %v980
      %v1059 = vmul.f32 %v1058, %v1057
      %v1060 = vmul.f32 0.5, %v1059
      %v1061 = vsub.f32 1.5, %v1060
      %v1062 = vmul.f32 %v1057, %v1061
      %vm1063 = vweird.f32 %v980
      %vm1064 = vweird.f32 %v1057
      %vm1065 = vmor %vm1063, %vm1064
      %v1066 = vsel %vm1065, %v1057, %v1062
      %v1067 = vrsqrt.pop %v981
      %v1068 = vmul.f32 %v1067, %v981
      %v1069 = vmul.f32 %v1068, %v1067
      %v1070 = vmul.f32 0.5, %v1069
      %v1071 = vsub.f32 1.5, %v1070
      %v1072 = vmul.f32 %v1067, %v1071
      %vm1073 = vweird.f32 %v981
      %vm1074 = vweird.f32 %v1067
      %vm1075 = vmor %vm1073, %vm1074
      %v1076 = vsel %vm1075, %v1067, %v1072
      %v1077 = vrsqrt.pop %v982
      %v1078 = vmul.f32 %v1077, %v982
      %v1079 = vmul.f32 %v1078, %v1077
      %v1080 = vmul.f32 0.5, %v1079
      %v1081 = vsub.f32 1.5, %v1080
      %v1082 = vmul.f32 %v1077, %v1081
      %vm1083 = vweird.f32 %v982
      %vm1084 = vweird.f32 %v1077
      %vm1085 = vmor %vm1083, %vm1084
      %v1086 = vsel %vm1085, %v1077, %v1082
      %v1087 = vrsqrt.pop %v983
      %v1088 = vmul.f32 %v1087, %v983
      %v1089 = vmul.f32 %v1088, %v1087
      %v1090 = vmul.f32 0.5, %v1089
      %v1091 = vsub.f32 1.5, %v1090
      %v1092 = vmul.f32 %v1087, %v1091
      %vm1093 = vweird.f32 %v983
      %vm1094 = vweird.f32 %v1087
      %vm1095 = vmor %vm1093, %vm1094
      %v1096 = vsel %vm1095, %v1087, %v1092
      %v1097 = vrsqrt.pop %v984
      %v1098 = vmul.f32 %v1097, %v984
      %v1099 = vmul.f32 %v1098, %v1097
      %v1100 = vmul.f32 0.5, %v1099
      %v1101 = vsub.f32 1.5, %v1100
      %v1102 = vmul.f32 %v1097, %v1101
      %vm1103 = vweird.f32 %v984
      %vm1104 = vweird.f32 %v1097
      %vm1105 = vmor %vm1103, %vm1104
      %v1106 = vsel %vm1105, %v1097, %v1102
      %v1107 = vrsqrt.pop %v985
      %v1108 = vmul.f32 %v1107, %v985
      %v1109 = vmul.f32 %v1108, %v1107
      %v1110 = vmul.f32 0.5, %v1109
      %v1111 = vsub.f32 1.5, %v1110
      %v1112 = vmul.f32 %v1107, %v1111
      %vm1113 = vweird.f32 %v985
      %vm1114 = vweird.f32 %v1107
      %vm1115 = vmor %vm1113, %vm1114
      %v1116 = vsel %vm1115, %v1107, %v1112
      %v1117 = vrsqrt.pop %v986
      %v1118 = vmul.f32 %v1117, %v986
      %v1119 = vmul.f32 %v1118, %v1117
      %v1120 = vmul.f32 0.5, %v1119
      %v1121 = vsub.f32 1.5, %v1120
      %v1122 = vmul.f32 %v1117, %v1121
      %vm1123 = vweird.f32 %v986
      %vm1124 = vweird.f32 %v1117
      %vm1125 = vmor %vm1123, %vm1124
      %v1126 = vsel %vm1125, %v1117, %v1122
      %v1127 = vrsqrt.pop %v987
      %v1128 = vmul.f32 %v1127, %v987
      %v1129 = vmul.f32 %v1128, %v1127
      %v1130 = vmul.f32 0.5, %v1129
      %v1131 = vsub.f32 1.5, %v1130
      %v1132 = vmul.f32 %v1127, %v1131
      %vm1133 = vweird.f32 %v987
      %vm1134 = vweird.f32 %v1127
      %vm1135 = vmor %vm1133, %vm1134
      %v1136 = vsel %vm1135, %v1127, %v1132
      %v1137 = vrsqrt.pop %v988
      %v1138 = vmul.f32 %v1137, %v988
      %v1139 = vmul.f32 %v1138, %v1137
      %v1140 = vmul.f32 0.5, %v1139
      %v1141 = vsub.f32 1.5, %v1140
      %v1142 = vmul.f32 %v1137, %v1141
      %vm1143 = vweird.f32 %v988
      %vm1144 = vweird.f32 %v1137
      %vm1145 = vmor %vm1143, %vm1144
      %v1146 = vsel %vm1145, %v1137, %v1142
      %v1147 = vrsqrt.pop %v989
      %v1148 = vmul.f32 %v1147, %v989
      %v1149 = vmul.f32 %v1148, %v1147
      %v1150 = vmul.f32 0.5, %v1149
      %v1151 = vsub.f32 1.5, %v1150
      %v1152 = vmul.f32 %v1147, %v1151
      %vm1153 = vweird.f32 %v989
      %vm1154 = vweird.f32 %v1147
      %vm1155 = vmor %vm1153, %vm1154
      %v1156 = vsel %vm1155, %v1147, %v1152
      %v1157 = vrsqrt.pop %v990
      %v1158 = vmul.f32 %v1157, %v990
      %v1159 = vmul.f32 %v1158, %v1157
      %v1160 = vmul.f32 0.5, %v1159
      %v1161 = vsub.f32 1.5, %v1160
      %v1162 = vmul.f32 %v1157, %v1161
      %vm1163 = vweird.f32 %v990
      %vm1164 = vweird.f32 %v1157
      %vm1165 = vmor %vm1163, %vm1164
      %v1166 = vsel %vm1165, %v1157, %v1162
      %v1167 = vrsqrt.pop %v991
      %v1168 = vmul.f32 %v1167, %v991
      %v1169 = vmul.f32 %v1168, %v1167
      %v1170 = vmul.f32 0.5, %v1169
      %v1171 = vsub.f32 1.5, %v1170
      %v1172 = vmul.f32 %v1167, %v1171
      %vm1173 = vweird.f32 %v991
      %vm1174 = vweird.f32 %v1167
      %vm1175 = vmor %vm1173, %vm1174
      %v1176 = vsel %vm1175, %v1167, %v1172
      %v1177 = vrsqrt.pop %v992
      %v1178 = vmul.f32 %v1177, %v992
      %v1179 = vmul.f32 %v1178, %v1177
      %v1180 = vmul.f32 0.5, %v1179
      %v1181 = vsub.f32 1.5, %v1180
      %v1182 = vmul.f32 %v1177, %v1181
      %vm1183 = vweird.f32 %v992
      %vm1184 = vweird.f32 %v1177
      %vm1185 = vmor %vm1183, %vm1184
      %v1186 = vsel %vm1185, %v1177, %v1182
      %v1187 = vrsqrt.pop %v993
      %v1188 = vmul.f32 %v1187, %v993
      %v1189 = vmul.f32 %v1188, %v1187
      %v1190 = vmul.f32 0.5, %v1189
      %v1191 = vsub.f32 1.5, %v1190
      %v1192 = vmul.f32 %v1187, %v1191
      %vm1193 = vweird.f32 %v993
      %vm1194 = vweird.f32 %v1187
      %vm1195 = vmor %vm1193, %vm1194
      %v1196 = vsel %vm1195, %v1187, %v1192
      %v1197 = vrsqrt.pop %v994
      %v1198 = vmul.f32 %v1197, %v994
      %v1199 = vmul.f32 %v1198, %v1197
      %v1200 = vmul.f32 0.5, %v1199
      %v1201 = vsub.f32 1.5, %v1200
      %v1202 = vmul.f32 %v1197, %v1201
      %vm1203 = vweird.f32 %v994
      %vm1204 = vweird.f32 %v1197
      %vm1205 = vmor %vm1203, %vm1204
      %v1206 = vsel %vm1205, %v1197, %v1202
      %v1207 = vrsqrt.pop %v995
      %v1208 = vmul.f32 %v1207, %v995
      %v1209 = vmul.f32 %v1208, %v1207
      %v1210 = vmul.f32 0.5, %v1209
      %v1211 = vsub.f32 1.5, %v1210
      %v1212 = vmul.f32 %v1207, %v1211
      %vm1213 = vweird.f32 %v995
      %vm1214 = vweird.f32 %v1207
      %vm1215 = vmor %vm1213, %vm1214
      %v1216 = vsel %vm1215, %v1207, %v1212
      %v1217 = vrsqrt.pop %v996
      %v1218 = vmul.f32 %v1217, %v996
      %v1219 = vmul.f32 %v1218, %v1217
      %v1220 = vmul.f32 0.5, %v1219
      %v1221 = vsub.f32 1.5, %v1220
      %v1222 = vmul.f32 %v1217, %v1221
      %vm1223 = vweird.f32 %v996
      %vm1224 = vweird.f32 %v1217
      %vm1225 = vmor %vm1223, %vm1224
      %v1226 = vsel %vm1225, %v1217, %v1222
      %v1227 = vrsqrt.pop %v997
      %v1228 = vmul.f32 %v1227, %v997
      %v1229 = vmul.f32 %v1228, %v1227
      %v1230 = vmul.f32 0.5, %v1229
      %v1231 = vsub.f32 1.5, %v1230
      %v1232 = vmul.f32 %v1227, %v1231
      %vm1233 = vweird.f32 %v997
      %vm1234 = vweird.f32 %v1227
      %vm1235 = vmor %vm1233, %vm1234
      %v1236 = vsel %vm1235, %v1227, %v1232
      %v1237 = vrsqrt.pop %v998
      %v1238 = vmul.f32 %v1237, %v998
      %v1239 = vmul.f32 %v1238, %v1237
      %v1240 = vmul.f32 0.5, %v1239
      %v1241 = vsub.f32 1.5, %v1240
      %v1242 = vmul.f32 %v1237, %v1241
      %vm1243 = vweird.f32 %v998
      %vm1244 = vweird.f32 %v1237
      %vm1245 = vmor %vm1243, %vm1244
      %v1246 = vsel %vm1245, %v1237, %v1242
      %v1247 = vrsqrt.pop %v999
      %v1248 = vmul.f32 %v1247, %v999
      %v1249 = vmul.f32 %v1248, %v1247
      %v1250 = vmul.f32 0.5, %v1249
      %v1251 = vsub.f32 1.5, %v1250
      %v1252 = vmul.f32 %v1247, %v1251
      %vm1253 = vweird.f32 %v999
      %vm1254 = vweird.f32 %v1247
      %vm1255 = vmor %vm1253, %vm1254
      %v1256 = vsel %vm1255, %v1247, %v1252
      %v1257 = vrsqrt.pop %v1000
      %v1258 = vmul.f32 %v1257, %v1000
      %v1259 = vmul.f32 %v1258, %v1257
      %v1260 = vmul.f32 0.5, %v1259
      %v1261 = vsub.f32 1.5, %v1260
      %v1262 = vmul.f32 %v1257, %v1261
      %vm1263 = vweird.f32 %v1000
      %vm1264 = vweird.f32 %v1257
      %vm1265 = vmor %vm1263, %vm1264
      %v1266 = vsel %vm1265, %v1257, %v1262
      %v1267 = vrsqrt.pop %v1001
      %v1268 = vmul.f32 %v1267, %v1001
      %v1269 = vmul.f32 %v1268, %v1267
      %v1270 = vmul.f32 0.5, %v1269
      %v1271 = vsub.f32 1.5, %v1270
      %v1272 = vmul.f32 %v1267, %v1271
      %vm1273 = vweird.f32 %v1001
      %vm1274 = vweird.f32 %v1267
      %vm1275 = vmor %vm1273, %vm1274
      %v1276 = vsel %vm1275, %v1267, %v1272
      %v1277 = vrsqrt.pop %v1002
      %v1278 = vmul.f32 %v1277, %v1002
      %v1279 = vmul.f32 %v1278, %v1277
      %v1280 = vmul.f32 0.5, %v1279
      %v1281 = vsub.f32 1.5, %v1280
      %v1282 = vmul.f32 %v1277, %v1281
      %vm1283 = vweird.f32 %v1002
      %vm1284 = vweird.f32 %v1277
      %vm1285 = vmor %vm1283, %vm1284
      %v1286 = vsel %vm1285, %v1277, %v1282
      %v1287 = vrsqrt.pop %v1003
      %v1288 = vmul.f32 %v1287, %v1003
      %v1289 = vmul.f32 %v1288, %v1287
      %v1290 = vmul.f32 0.5, %v1289
      %v1291 = vsub.f32 1.5, %v1290
      %v1292 = vmul.f32 %v1287, %v1291
      %vm1293 = vweird.f32 %v1003
      %vm1294 = vweird.f32 %v1287
      %vm1295 = vmor %vm1293, %vm1294
      %v1296 = vsel %vm1295, %v1287, %v1292
      %v1297 = vrsqrt.pop %v1004
      %v1298 = vmul.f32 %v1297, %v1004
      %v1299 = vmul.f32 %v1298, %v1297
      %v1300 = vmul.f32 0.5, %v1299
      %v1301 = vsub.f32 1.5, %v1300
      %v1302 = vmul.f32 %v1297, %v1301
      %vm1303 = vweird.f32 %v1004
      %vm1304 = vweird.f32 %v1297
      %vm1305 = vmor %vm1303, %vm1304
      %v1306 = vsel %vm1305, %v1297, %v1302
      %v1307 = vrsqrt.pop %v1005
      %v1308 = vmul.f32 %v1307, %v1005
      %v1309 = vmul.f32 %v1308, %v1307
      %v1310 = vmul.f32 0.5, %v1309
      %v1311 = vsub.f32 1.5, %v1310
      %v1312 = vmul.f32 %v1307, %v1311
      %vm1313 = vweird.f32 %v1005
      %vm1314 = vweird.f32 %v1307
      %vm1315 = vmor %vm1313, %vm1314
      %v1316 = vsel %vm1315, %v1307, %v1312
      %v1317 = vrsqrt.pop %v1006
      %v1318 = vmul.f32 %v1317, %v1006
      %v1319 = vmul.f32 %v1318, %v1317
      %v1320 = vmul.f32 0.5, %v1319
      %v1321 = vsub.f32 1.5, %v1320
      %v1322 = vmul.f32 %v1317, %v1321
      %vm1323 = vweird.f32 %v1006
      %vm1324 = vweird.f32 %v1317
      %vm1325 = vmor %vm1323, %vm1324
      %v1326 = vsel %vm1325, %v1317, %v1322
      %v1327 = vmul.f32 %v776, %v1016
      %v1328 = vmul.f32 %v777, %v1026
      %v1329 = vmul.f32 %v778, %v1036
      %v1330 = vmul.f32 %v779, %v1046
      %v1331 = vmul.f32 %v780, %v1056
      %v1332 = vmul.f32 %v781, %v1066
      %v1333 = vmul.f32 %v782, %v1076
      %v1334 = vmul.f32 %v783, %v1086
      %v1335 = vmul.f32 %v784, %v1096
      %v1336 = vmul.f32 %v785, %v1106
      %v1337 = vmul.f32 %v786, %v1116
      %v1338 = vmul.f32 %v787, %v1126
      %v1339 = vmul.f32 %v788, %v1136
      %v1340 = vmul.f32 %v789, %v1146
      %v1341 = vmul.f32 %v790, %v1156
      %v1342 = vmul.f32 %v791, %v1166
      %v1343 = vmul.f32 %v792, %v1176
      %v1344 = vmul.f32 %v793, %v1186
      %v1345 = vmul.f32 %v794, %v1196
      %v1346 = vmul.f32 %v795, %v1206
      %v1347 = vmul.f32 %v796, %v1216
      %v1348 = vmul.f32 %v797, %v1226
      %v1349 = vmul.f32 %v798, %v1236
      %v1350 = vmul.f32 %v799, %v1246
      %v1351 = vmul.f32 %v800, %v1256
      %v1352 = vmul.f32 %v801, %v1266
      %v1353 = vmul.f32 %v802, %v1276
      %v1354 = vmul.f32 %v803, %v1286
      %v1355 = vmul.f32 %v804, %v1296
      %v1356 = vmul.f32 %v805, %v1306
      %v1357 = vmul.f32 %v806, %v1316
      %v1358 = vmul.f32 %v807, %v1326
      %v1359 = vpack.c.bf16 %v1328, %v1327
      %v1360 = vpack.c.bf16 %v1330, %v1329
      %v1361 = vpack.c.bf16 %v1332, %v1331
      %v1362 = vpack.c.bf16 %v1334, %v1333
      %v1363 = vpack.c.bf16 %v1336, %v1335
      %v1364 = vpack.c.bf16 %v1338, %v1337
      %v1365 = vpack.c.bf16 %v1340, %v1339
      %v1366 = vpack.c.bf16 %v1342, %v1341
      %v1367 = vpack.c.bf16 %v1344, %v1343
      %v1368 = vpack.c.bf16 %v1346, %v1345
      %v1369 = vpack.c.bf16 %v1348, %v1347
      %v1370 = vpack.c.bf16 %v1350, %v1349
      %v1371 = vpack.c.bf16 %v1352, %v1351
      %v1372 = vpack.c.bf16 %v1354, %v1353
      %v1373 = vpack.c.bf16 %v1356, %v1355
      %v1374 = vpack.c.bf16 %v1358, %v1357
      %v1375 = vld [vmem:[%s510] sm:$0xff]
      %v1376 = vld [vmem:[%s510 + $0x8] sm:$0xf]
      %v1377 = vld [vmem:[%s510 + $0xc] sm:$0xff]
      %v1378 = vld [vmem:[%s510 + $0x14] sm:$0xf]
      %v1379 = vld [vmem:[%s510 + $0x18] sm:$0xff]
      %v1380 = vld [vmem:[%s510 + $0x20] sm:$0xf]
      %v1381 = vld [vmem:[%s510 + $0x24] sm:$0xff]
      %v1382 = vld [vmem:[%s510 + $0x2c] sm:$0xf]
      %v1383 = vld [vmem:[%s510 + $0x30] sm:$0xff]
      %v1384 = vld [vmem:[%s510 + $0x38] sm:$0xf]
      %v1385 = vld [vmem:[%s510 + $0x3c] sm:$0xff]
      %v1386 = vld [vmem:[%s510 + $0x44] sm:$0xf]
      %v1387 = vld [vmem:[%s510 + $0x48] sm:$0xff]
      %v1388 = vld [vmem:[%s510 + $0x50] sm:$0xf]
      %v1389 = vld [vmem:[%s510 + $0x54] sm:$0xff]
      %v1390 = vld [vmem:[%s510 + $0x5c] sm:$0xf]
      %v1391 = vld [vmem:[%s510 + $0x60] sm:$0xff]
      %v1392 = vld [vmem:[%s510 + $0x68] sm:$0xf]
      %v1393 = vld [vmem:[%s510 + $0x6c] sm:$0xff]
      %v1394 = vld [vmem:[%s510 + $0x74] sm:$0xf]
      %v1395 = vld [vmem:[%s510 + $0x78] sm:$0xff]
      %v1396 = vld [vmem:[%s510 + $0x80] sm:$0xf]
      %v1397 = vld [vmem:[%s510 + $0x84] sm:$0xff]
      %v1398 = vld [vmem:[%s510 + $0x8c] sm:$0xf]
      %v1399 = vld [vmem:[%s510 + $0x90] sm:$0xff]
      %v1400 = vld [vmem:[%s510 + $0x98] sm:$0xf]
      %v1401 = vld [vmem:[%s510 + $0x9c] sm:$0xff]
      %v1402 = vld [vmem:[%s510 + $0xa4] sm:$0xf]
      %v1403 = vld [vmem:[%s510 + $0xa8] sm:$0xff]
      %v1404 = vld [vmem:[%s510 + $0xb0] sm:$0xf]
      %v1405 = vld [vmem:[%s510 + $0xb4] sm:$0xff]
      %v1406 = vld [vmem:[%s510 + $0xbc] sm:$0xf]
      %v1439 = vunpack.c.l.b16 %v1375
      %v1440 = vunpack.c.h.b16 %v1375
      %v1441 = vunpack.c.l.b16 %v1376
      %v1442 = vunpack.c.l.b16 %v1377
      %v1443 = vunpack.c.h.b16 %v1377
      %v1444 = vunpack.c.l.b16 %v1378
      %v1445 = vunpack.c.l.b16 %v1379
      %v1446 = vunpack.c.h.b16 %v1379
      %v1447 = vunpack.c.l.b16 %v1380
      %v1448 = vunpack.c.l.b16 %v1381
      %v1449 = vunpack.c.h.b16 %v1381
      %v1450 = vunpack.c.l.b16 %v1382
      %v1451 = vunpack.c.l.b16 %v1383
      %v1452 = vunpack.c.h.b16 %v1383
      %v1453 = vunpack.c.l.b16 %v1384
      %v1454 = vunpack.c.l.b16 %v1385
      %v1455 = vunpack.c.h.b16 %v1385
      %v1456 = vunpack.c.l.b16 %v1386
      %v1457 = vunpack.c.l.b16 %v1387
      %v1458 = vunpack.c.h.b16 %v1387
      %v1459 = vunpack.c.l.b16 %v1388
      %v1460 = vunpack.c.l.b16 %v1389
      %v1461 = vunpack.c.h.b16 %v1389
      %v1462 = vunpack.c.l.b16 %v1390
      %v1463 = vunpack.c.l.b16 %v1391
      %v1464 = vunpack.c.h.b16 %v1391
      %v1465 = vunpack.c.l.b16 %v1392
      %v1466 = vunpack.c.l.b16 %v1393
      %v1467 = vunpack.c.h.b16 %v1393
      %v1468 = vunpack.c.l.b16 %v1394
      %v1469 = vunpack.c.l.b16 %v1395
      %v1470 = vunpack.c.h.b16 %v1395
      %v1471 = vunpack.c.l.b16 %v1396
      %v1472 = vunpack.c.l.b16 %v1397
      %v1473 = vunpack.c.h.b16 %v1397
      %v1474 = vunpack.c.l.b16 %v1398
      %v1475 = vunpack.c.l.b16 %v1399
      %v1476 = vunpack.c.h.b16 %v1399
      %v1477 = vunpack.c.l.b16 %v1400
      %v1478 = vunpack.c.l.b16 %v1401
      %v1479 = vunpack.c.h.b16 %v1401
      %v1480 = vunpack.c.l.b16 %v1402
      %v1481 = vunpack.c.l.b16 %v1403
      %v1482 = vunpack.c.h.b16 %v1403
      %v1483 = vunpack.c.l.b16 %v1404
      %v1484 = vunpack.c.l.b16 %v1405
      %v1485 = vunpack.c.h.b16 %v1405
      %v1486 = vunpack.c.l.b16 %v1406
      %v1487 = vpack.c.b16 %v1442, %v1439
      %v1488 = vpack.c.b16 %v1443, %v1440
      %v1489 = vpack.c.b16 %v1444, %v1441
      %v1490 = vpack.c.b16 %v1448, %v1445
      %v1491 = vpack.c.b16 %v1449, %v1446
      %v1492 = vpack.c.b16 %v1450, %v1447
      %v1493 = vpack.c.b16 %v1454, %v1451
      %v1494 = vpack.c.b16 %v1455, %v1452
      %v1495 = vpack.c.b16 %v1456, %v1453
      %v1496 = vpack.c.b16 %v1460, %v1457
      %v1497 = vpack.c.b16 %v1461, %v1458
      %v1498 = vpack.c.b16 %v1462, %v1459
      %v1499 = vpack.c.b16 %v1466, %v1463
      %v1500 = vpack.c.b16 %v1467, %v1464
      %v1501 = vpack.c.b16 %v1468, %v1465
      %v1502 = vpack.c.b16 %v1472, %v1469
      %v1503 = vpack.c.b16 %v1473, %v1470
      %v1504 = vpack.c.b16 %v1474, %v1471
      %v1505 = vpack.c.b16 %v1478, %v1475
      %v1506 = vpack.c.b16 %v1479, %v1476
      %v1507 = vpack.c.b16 %v1480, %v1477
      %v1508 = vpack.c.b16 %v1484, %v1481
      %v1509 = vpack.c.b16 %v1485, %v1482
      %v1510 = vpack.c.b16 %v1486, %v1483
      %1535 = vmatpush.bf16.msra.mxu0 %v1508
      %1536 = vmatpush.bf16.msra.mxu0 %v1505
      %1537 = vmatpush.bf16.msra.mxu0 %v1502
      %1538 = vmatpush.bf16.msra.mxu0 %v1499
      %1539 = vmatpush.bf16.msra.mxu0 %v1496
      %1540 = vmatpush.bf16.msra.mxu0 %v1493
      %1541 = vmatpush.bf16.msra.mxu0 %v1490
      %1542 = vmatpush.bf16.msra.mxu0 %v1487
      %1543 = vmatmul.bf16.gmra.mxu0 %v1359
      %v1544 = vpop.f32.mrf.mxu0
      %v1545 = vadd.f32 0.0, %v1544
      %v1546 = vpop.f32.mrf.mxu0
      %v1547 = vadd.f32 0.0, %v1546
      %1548 = vmatmul.bf16.gmra.mxu0 %v1360
      %v1549 = vpop.f32.mrf.mxu0
      %v1550 = vadd.f32 0.0, %v1549
      %v1551 = vpop.f32.mrf.mxu0
      %v1552 = vadd.f32 0.0, %v1551
      %1553 = vmatmul.bf16.gmra.mxu0 %v1361
      %v1554 = vpop.f32.mrf.mxu0
      %v1555 = vadd.f32 0.0, %v1554
      %v1556 = vpop.f32.mrf.mxu0
      %v1557 = vadd.f32 0.0, %v1556
      %1558 = vmatmul.bf16.gmra.mxu0 %v1362
      %v1559 = vpop.f32.mrf.mxu0
      %v1560 = vadd.f32 0.0, %v1559
      %v1561 = vpop.f32.mrf.mxu0
      %v1562 = vadd.f32 0.0, %v1561
      %1563 = vmatmul.bf16.gmra.mxu0 %v1363
      %v1564 = vpop.f32.mrf.mxu0
      %v1565 = vadd.f32 0.0, %v1564
      %v1566 = vpop.f32.mrf.mxu0
      %v1567 = vadd.f32 0.0, %v1566
      %1568 = vmatmul.bf16.gmra.mxu0 %v1364
      %v1569 = vpop.f32.mrf.mxu0
      %v1570 = vadd.f32 0.0, %v1569
      %v1571 = vpop.f32.mrf.mxu0
      %v1572 = vadd.f32 0.0, %v1571
      %1573 = vmatmul.bf16.gmra.mxu0 %v1365
      %v1574 = vpop.f32.mrf.mxu0
      %v1575 = vadd.f32 0.0, %v1574
      %v1576 = vpop.f32.mrf.mxu0
      %v1577 = vadd.f32 0.0, %v1576
      %1578 = vmatmul.bf16.gmra.mxu0 %v1366
      %v1579 = vpop.f32.mrf.mxu0
      %v1580 = vadd.f32 0.0, %v1579
      %v1581 = vpop.f32.mrf.mxu0
      %v1582 = vadd.f32 0.0, %v1581
      %1583 = vmatmul.bf16.gmra.mxu0 %v1367
      %v1584 = vpop.f32.mrf.mxu0
      %v1585 = vadd.f32 0.0, %v1584
      %v1586 = vpop.f32.mrf.mxu0
      %v1587 = vadd.f32 0.0, %v1586
      %1588 = vmatmul.bf16.gmra.mxu0 %v1368
      %v1589 = vpop.f32.mrf.mxu0
      %v1590 = vadd.f32 0.0, %v1589
      %v1591 = vpop.f32.mrf.mxu0
      %v1592 = vadd.f32 0.0, %v1591
      %1593 = vmatmul.bf16.gmra.mxu0 %v1369
      %v1594 = vpop.f32.mrf.mxu0
      %v1595 = vadd.f32 0.0, %v1594
      %v1596 = vpop.f32.mrf.mxu0
      %v1597 = vadd.f32 0.0, %v1596
      %1598 = vmatmul.bf16.gmra.mxu0 %v1370
      %v1599 = vpop.f32.mrf.mxu0
      %v1600 = vadd.f32 0.0, %v1599
      %v1601 = vpop.f32.mrf.mxu0
      %v1602 = vadd.f32 0.0, %v1601
      %1603 = vmatmul.bf16.gmra.mxu0 %v1371
      %v1604 = vpop.f32.mrf.mxu0
      %v1605 = vadd.f32 0.0, %v1604
      %v1606 = vpop.f32.mrf.mxu0
      %v1607 = vadd.f32 0.0, %v1606
      %1608 = vmatmul.bf16.gmra.mxu0 %v1372
      %v1609 = vpop.f32.mrf.mxu0
      %v1610 = vadd.f32 0.0, %v1609
      %v1611 = vpop.f32.mrf.mxu0
      %v1612 = vadd.f32 0.0, %v1611
      %1613 = vmatmul.bf16.gmra.mxu0 %v1373
      %v1614 = vpop.f32.mrf.mxu0
      %v1615 = vadd.f32 0.0, %v1614
      %v1616 = vpop.f32.mrf.mxu0
      %v1617 = vadd.f32 0.0, %v1616
      %1618 = vmatmul.bf16.gmra.mxu0 %v1374
      %v1619 = vpop.f32.mrf.mxu0
      %v1620 = vadd.f32 0.0, %v1619
      %v1621 = vpop.f32.mrf.mxu0
      %v1622 = vadd.f32 0.0, %v1621
      %1623 = vdwg.mxu0
      %1624 = vmatpush.bf16.msra.mxu0 %v1509
      %1625 = vmatpush.bf16.msra.mxu0 %v1506
      %1626 = vmatpush.bf16.msra.mxu0 %v1503
      %1627 = vmatpush.bf16.msra.mxu0 %v1500
      %1628 = vmatpush.bf16.msra.mxu0 %v1497
      %1629 = vmatpush.bf16.msra.mxu0 %v1494
      %1630 = vmatpush.bf16.msra.mxu0 %v1491
      %1631 = vmatpush.bf16.msra.mxu0 %v1488
      %1632 = vmatmul.bf16.gmra.mxu0 %v1359
      %v1633 = vpop.f32.mrf.mxu0
      %v1634 = vadd.f32 0.0, %v1633
      %v1635 = vpop.f32.mrf.mxu0
      %v1636 = vadd.f32 0.0, %v1635
      %1637 = vmatmul.bf16.gmra.mxu0 %v1360
      %v1638 = vpop.f32.mrf.mxu0
      %v1639 = vadd.f32 0.0, %v1638
      %v1640 = vpop.f32.mrf.mxu0
      %v1641 = vadd.f32 0.0, %v1640
      %1642 = vmatmul.bf16.gmra.mxu0 %v1361
      %v1643 = vpop.f32.mrf.mxu0
      %v1644 = vadd.f32 0.0, %v1643
      %v1645 = vpop.f32.mrf.mxu0
      %v1646 = vadd.f32 0.0, %v1645
      %1647 = vmatmul.bf16.gmra.mxu0 %v1362
      %v1648 = vpop.f32.mrf.mxu0
      %v1649 = vadd.f32 0.0, %v1648
      %v1650 = vpop.f32.mrf.mxu0
      %v1651 = vadd.f32 0.0, %v1650
      %1652 = vmatmul.bf16.gmra.mxu0 %v1363
      %v1653 = vpop.f32.mrf.mxu0
      %v1654 = vadd.f32 0.0, %v1653
      %v1655 = vpop.f32.mrf.mxu0
      %v1656 = vadd.f32 0.0, %v1655
      %1657 = vmatmul.bf16.gmra.mxu0 %v1364
      %v1658 = vpop.f32.mrf.mxu0
      %v1659 = vadd.f32 0.0, %v1658
      %v1660 = vpop.f32.mrf.mxu0
      %v1661 = vadd.f32 0.0, %v1660
      %1662 = vmatmul.bf16.gmra.mxu0 %v1365
      %v1663 = vpop.f32.mrf.mxu0
      %v1664 = vadd.f32 0.0, %v1663
      %v1665 = vpop.f32.mrf.mxu0
      %v1666 = vadd.f32 0.0, %v1665
      %1667 = vmatmul.bf16.gmra.mxu0 %v1366
      %v1668 = vpop.f32.mrf.mxu0
      %v1669 = vadd.f32 0.0, %v1668
      %v1670 = vpop.f32.mrf.mxu0
      %v1671 = vadd.f32 0.0, %v1670
      %1672 = vmatmul.bf16.gmra.mxu0 %v1367
      %v1673 = vpop.f32.mrf.mxu0
      %v1674 = vadd.f32 0.0, %v1673
      %v1675 = vpop.f32.mrf.mxu0
      %v1676 = vadd.f32 0.0, %v1675
      %1677 = vmatmul.bf16.gmra.mxu0 %v1368
      %v1678 = vpop.f32.mrf.mxu0
      %v1679 = vadd.f32 0.0, %v1678
      %v1680 = vpop.f32.mrf.mxu0
      %v1681 = vadd.f32 0.0, %v1680
      %1682 = vmatmul.bf16.gmra.mxu0 %v1369
      %v1683 = vpop.f32.mrf.mxu0
      %v1684 = vadd.f32 0.0, %v1683
      %v1685 = vpop.f32.mrf.mxu0
      %v1686 = vadd.f32 0.0, %v1685
      %1687 = vmatmul.bf16.gmra.mxu0 %v1370
      %v1688 = vpop.f32.mrf.mxu0
      %v1689 = vadd.f32 0.0, %v1688
      %v1690 = vpop.f32.mrf.mxu0
      %v1691 = vadd.f32 0.0, %v1690
      %1692 = vmatmul.bf16.gmra.mxu0 %v1371
      %v1693 = vpop.f32.mrf.mxu0
      %v1694 = vadd.f32 0.0, %v1693
      %v1695 = vpop.f32.mrf.mxu0
      %v1696 = vadd.f32 0.0, %v1695
      %1697 = vmatmul.bf16.gmra.mxu0 %v1372
      %v1698 = vpop.f32.mrf.mxu0
      %v1699 = vadd.f32 0.0, %v1698
      %v1700 = vpop.f32.mrf.mxu0
      %v1701 = vadd.f32 0.0, %v1700
      %1702 = vmatmul.bf16.gmra.mxu0 %v1373
      %v1703 = vpop.f32.mrf.mxu0
      %v1704 = vadd.f32 0.0, %v1703
      %v1705 = vpop.f32.mrf.mxu0
      %v1706 = vadd.f32 0.0, %v1705
      %1707 = vmatmul.bf16.gmra.mxu0 %v1374
      %v1708 = vpop.f32.mrf.mxu0
      %v1709 = vadd.f32 0.0, %v1708
      %v1710 = vpop.f32.mrf.mxu0
      %v1711 = vadd.f32 0.0, %v1710
      %1712 = vdwg.mxu0
      %1713 = vmatpush.bf16.msra.mxu0 %v1510
      %1714 = vmatpush.bf16.msra.mxu0 %v1507
      %1715 = vmatpush.bf16.msra.mxu0 %v1504
      %1716 = vmatpush.bf16.msra.mxu0 %v1501
      %1717 = vmatpush.bf16.msra.mxu0 %v1498
      %1718 = vmatpush.bf16.msra.mxu0 %v1495
      %1719 = vmatpush.bf16.msra.mxu0 %v1492
      %1720 = vmatpush.bf16.msra.mxu0 %v1489
      %1721 = vmatmul.bf16.gmra.mxu0 %v1359
      %v1722 = vpop.f32.mrf.mxu0
      %v1723 = vadd.f32 0.0, %v1722
      %v1724 = vpop.f32.mrf.mxu0
      %v1725 = vadd.f32 0.0, %v1724
      %1726 = vmatmul.bf16.gmra.mxu0 %v1360
      %v1727 = vpop.f32.mrf.mxu0
      %v1728 = vadd.f32 0.0, %v1727
      %v1729 = vpop.f32.mrf.mxu0
      %v1730 = vadd.f32 0.0, %v1729
      %1731 = vmatmul.bf16.gmra.mxu0 %v1361
      %v1732 = vpop.f32.mrf.mxu0
      %v1733 = vadd.f32 0.0, %v1732
      %v1734 = vpop.f32.mrf.mxu0
      %v1735 = vadd.f32 0.0, %v1734
      %1736 = vmatmul.bf16.gmra.mxu0 %v1362
      %v1737 = vpop.f32.mrf.mxu0
      %v1738 = vadd.f32 0.0, %v1737
      %v1739 = vpop.f32.mrf.mxu0
      %v1740 = vadd.f32 0.0, %v1739
      %1741 = vmatmul.bf16.gmra.mxu0 %v1363
      %v1742 = vpop.f32.mrf.mxu0
      %v1743 = vadd.f32 0.0, %v1742
      %v1744 = vpop.f32.mrf.mxu0
      %v1745 = vadd.f32 0.0, %v1744
      %1746 = vmatmul.bf16.gmra.mxu0 %v1364
      %v1747 = vpop.f32.mrf.mxu0
      %v1748 = vadd.f32 0.0, %v1747
      %v1749 = vpop.f32.mrf.mxu0
      %v1750 = vadd.f32 0.0, %v1749
      %1751 = vmatmul.bf16.gmra.mxu0 %v1365
      %v1752 = vpop.f32.mrf.mxu0
      %v1753 = vadd.f32 0.0, %v1752
      %v1754 = vpop.f32.mrf.mxu0
      %v1755 = vadd.f32 0.0, %v1754
      %1756 = vmatmul.bf16.gmra.mxu0 %v1366
      %v1757 = vpop.f32.mrf.mxu0
      %v1758 = vadd.f32 0.0, %v1757
      %v1759 = vpop.f32.mrf.mxu0
      %v1760 = vadd.f32 0.0, %v1759
      %1761 = vmatmul.bf16.gmra.mxu0 %v1367
      %v1762 = vpop.f32.mrf.mxu0
      %v1763 = vadd.f32 0.0, %v1762
      %v1764 = vpop.f32.mrf.mxu0
      %v1765 = vadd.f32 0.0, %v1764
      %1766 = vmatmul.bf16.gmra.mxu0 %v1368
      %v1767 = vpop.f32.mrf.mxu0
      %v1768 = vadd.f32 0.0, %v1767
      %v1769 = vpop.f32.mrf.mxu0
      %v1770 = vadd.f32 0.0, %v1769
      %1771 = vmatmul.bf16.gmra.mxu0 %v1369
      %v1772 = vpop.f32.mrf.mxu0
      %v1773 = vadd.f32 0.0, %v1772
      %v1774 = vpop.f32.mrf.mxu0
      %v1775 = vadd.f32 0.0, %v1774
      %1776 = vmatmul.bf16.gmra.mxu0 %v1370
      %v1777 = vpop.f32.mrf.mxu0
      %v1778 = vadd.f32 0.0, %v1777
      %v1779 = vpop.f32.mrf.mxu0
      %v1780 = vadd.f32 0.0, %v1779
      %1781 = vmatmul.bf16.gmra.mxu0 %v1371
      %v1782 = vpop.f32.mrf.mxu0
      %v1783 = vadd.f32 0.0, %v1782
      %v1784 = vpop.f32.mrf.mxu0
      %v1785 = vadd.f32 0.0, %v1784
      %1786 = vmatmul.bf16.gmra.mxu0 %v1372
      %v1787 = vpop.f32.mrf.mxu0
      %v1788 = vadd.f32 0.0, %v1787
      %v1789 = vpop.f32.mrf.mxu0
      %v1790 = vadd.f32 0.0, %v1789
      %1791 = vmatmul.bf16.gmra.mxu0 %v1373
      %v1792 = vpop.f32.mrf.mxu0
      %v1793 = vadd.f32 0.0, %v1792
      %v1794 = vpop.f32.mrf.mxu0
      %v1795 = vadd.f32 0.0, %v1794
      %1796 = vmatmul.bf16.gmra.mxu0 %v1374
      %v1797 = vpop.f32.mrf.mxu0
      %v1798 = vadd.f32 0.0, %v1797
      %v1799 = vpop.f32.mrf.mxu0
      %v1800 = vadd.f32 0.0, %v1799
      %1801 = vdwg.mxu0
      %v1802 = vlaneseq
      %v1803 = vshrl.u32 %v1802, 7
      %v1804 = vadd.s32 %v1803, 8
      %v1805 = vadd.s32 %v1803, 16
      %v1806 = vadd.s32 %v1803, 24
      %v1807 = vadd.s32 %v1803, 32
      %v1808 = vadd.s32 %v1803, 40
      %v1809 = vadd.s32 %v1803, 48
      %v1810 = vadd.s32 %v1803, 56
      %v1811 = vadd.s32 %v1803, 64
      %v1812 = vadd.s32 %v1803, 72
      %v1813 = vadd.s32 %v1803, 80
      %v1814 = vadd.s32 %v1803, 88
      %v1815 = vadd.s32 %v1803, 96
      %v1816 = vadd.s32 %v1803, 104
      %v1817 = vadd.s32 %v1803, 112
      %v1818 = vadd.s32 %v1803, 120
      %v1819 = vlaneseq
      %v1820 = vand.u32 %v1819, 127
      %vm1821 = vcmp.le.s32.totalorder %v1820, %v1803
      %vm1822 = vcmp.le.s32.totalorder %v1820, %v1804
      %vm1823 = vcmp.le.s32.totalorder %v1820, %v1805
      %vm1824 = vcmp.le.s32.totalorder %v1820, %v1806
      %vm1825 = vcmp.le.s32.totalorder %v1820, %v1807
      %vm1826 = vcmp.le.s32.totalorder %v1820, %v1808
      %vm1827 = vcmp.le.s32.totalorder %v1820, %v1809
      %vm1828 = vcmp.le.s32.totalorder %v1820, %v1810
      %vm1829 = vcmp.le.s32.totalorder %v1820, %v1811
      %vm1830 = vcmp.le.s32.totalorder %v1820, %v1812
      %vm1831 = vcmp.le.s32.totalorder %v1820, %v1813
      %vm1832 = vcmp.le.s32.totalorder %v1820, %v1814
      %vm1833 = vcmp.le.s32.totalorder %v1820, %v1815
      %vm1834 = vcmp.le.s32.totalorder %v1820, %v1816
      %vm1835 = vcmp.le.s32.totalorder %v1820, %v1817
      %vm1836 = vcmp.le.s32.totalorder %v1820, %v1818
      %v1837 = vld [vmem:[%s504] sm:$0x1]
      %vm1838 = vcmp.gt.f32.partialorder %v1837, 0.5
      %v1839 = vsel %vm1838, 1, 0
      %v1840 = vperm.slane %v1839, 0
      %vm1841 = vcmp.eq.s32.totalorder %v1840, 1
      %vm1842 = vmand %vm1821, %vm1841
      %vm1843 = vmand %vm1822, %vm1841
      %vm1844 = vmand %vm1823, %vm1841
      %vm1845 = vmand %vm1824, %vm1841
      %vm1846 = vmand %vm1825, %vm1841
      %vm1847 = vmand %vm1826, %vm1841
      %vm1848 = vmand %vm1827, %vm1841
      %vm1849 = vmand %vm1828, %vm1841
      %vm1850 = vmand %vm1829, %vm1841
      %vm1851 = vmand %vm1830, %vm1841
      %vm1852 = vmand %vm1831, %vm1841
      %vm1853 = vmand %vm1832, %vm1841
      %vm1854 = vmand %vm1833, %vm1841
      %vm1855 = vmand %vm1834, %vm1841
      %vm1856 = vmand %vm1835, %vm1841
      %vm1857 = vmand %vm1836, %vm1841
      %v1858 = vsel %vm1842, 0.0, -1e+30
      %v1859 = vsel %vm1843, 0.0, -1e+30
      %v1860 = vsel %vm1844, 0.0, -1e+30
      %v1861 = vsel %vm1845, 0.0, -1e+30
      %v1862 = vsel %vm1846, 0.0, -1e+30
      %v1863 = vsel %vm1847, 0.0, -1e+30
      %v1864 = vsel %vm1848, 0.0, -1e+30
      %v1865 = vsel %vm1849, 0.0, -1e+30
      %v1866 = vsel %vm1850, 0.0, -1e+30
      %v1867 = vsel %vm1851, 0.0, -1e+30
      %v1868 = vsel %vm1852, 0.0, -1e+30
      %v1869 = vsel %vm1853, 0.0, -1e+30
      %v1870 = vsel %vm1854, 0.0, -1e+30
      %v1871 = vsel %vm1855, 0.0, -1e+30
      %v1872 = vsel %vm1856, 0.0, -1e+30
      %v1873 = vsel %vm1857, 0.0, -1e+30
      %v1874 = vmul.f32 %v1545, %v808
      %v1875 = vmul.f32 %v1547, %v809
      %v1876 = vmul.f32 %v1550, %v810
      %v1877 = vmul.f32 %v1552, %v811
      %v1878 = vmul.f32 %v1555, %v812
      %v1879 = vmul.f32 %v1557, %v813
      %v1880 = vmul.f32 %v1560, %v814
      %v1881 = vmul.f32 %v1562, %v815
      %v1882 = vmul.f32 %v1565, %v816
      %v1883 = vmul.f32 %v1567, %v817
      %v1884 = vmul.f32 %v1570, %v818
      %v1885 = vmul.f32 %v1572, %v819
      %v1886 = vmul.f32 %v1575, %v820
      %v1887 = vmul.f32 %v1577, %v821
      %v1888 = vmul.f32 %v1580, %v822
      %v1889 = vmul.f32 %v1582, %v823
      %1906 = vrot.lane.b32.xlu0 %v824, 32
      %v1907 = vpop.permute.xlu0 %1906
      %1908 = vrot.lane.b32.xlu0 %v825, 32
      %v1909 = vpop.permute.xlu0 %1908
      %1910 = vrot.lane.b32.xlu0 %v826, 32
      %v1911 = vpop.permute.xlu0 %1910
      %1912 = vrot.lane.b32.xlu0 %v827, 32
      %v1913 = vpop.permute.xlu0 %1912
      %1914 = vrot.lane.b32.xlu0 %v828, 32
      %v1915 = vpop.permute.xlu0 %1914
      %1916 = vrot.lane.b32.xlu0 %v829, 32
      %v1917 = vpop.permute.xlu0 %1916
      %1918 = vrot.lane.b32.xlu0 %v830, 32
      %v1919 = vpop.permute.xlu0 %1918
      %1920 = vrot.lane.b32.xlu0 %v831, 32
      %v1921 = vpop.permute.xlu0 %1920
      %1922 = vrot.lane.b32.xlu0 %v832, 32
      %v1923 = vpop.permute.xlu0 %1922
      %1924 = vrot.lane.b32.xlu0 %v833, 32
      %v1925 = vpop.permute.xlu0 %1924
      %1926 = vrot.lane.b32.xlu0 %v834, 32
      %v1927 = vpop.permute.xlu0 %1926
      %1928 = vrot.lane.b32.xlu0 %v835, 32
      %v1929 = vpop.permute.xlu0 %1928
      %1930 = vrot.lane.b32.xlu0 %v836, 32
      %v1931 = vpop.permute.xlu0 %1930
      %1932 = vrot.lane.b32.xlu0 %v837, 32
      %v1933 = vpop.permute.xlu0 %1932
      %1934 = vrot.lane.b32.xlu0 %v838, 32
      %v1935 = vpop.permute.xlu0 %1934
      %1936 = vrot.lane.b32.xlu0 %v839, 32
      %v1937 = vpop.permute.xlu0 %1936
      %v1954 = vmul.f32 %v1545, %v1907
      %v1955 = vmul.f32 %v1547, %v1909
      %v1956 = vmul.f32 %v1550, %v1911
      %v1957 = vmul.f32 %v1552, %v1913
      %v1958 = vmul.f32 %v1555, %v1915
      %v1959 = vmul.f32 %v1557, %v1917
      %v1960 = vmul.f32 %v1560, %v1919
      %v1961 = vmul.f32 %v1562, %v1921
      %v1962 = vmul.f32 %v1565, %v1923
      %v1963 = vmul.f32 %v1567, %v1925
      %v1964 = vmul.f32 %v1570, %v1927
      %v1965 = vmul.f32 %v1572, %v1929
      %v1966 = vmul.f32 %v1575, %v1931
      %v1967 = vmul.f32 %v1577, %v1933
      %v1968 = vmul.f32 %v1580, %v1935
      %v1969 = vmul.f32 %v1582, %v1937
      %1986 = vrot.lane.b32.xlu0 %v1954, 96
      %v1987 = vpop.permute.xlu0 %1986
      %1988 = vrot.lane.b32.xlu0 %v1955, 96
      %v1989 = vpop.permute.xlu0 %1988
      %1990 = vrot.lane.b32.xlu0 %v1956, 96
      %v1991 = vpop.permute.xlu0 %1990
      %1992 = vrot.lane.b32.xlu0 %v1957, 96
      %v1993 = vpop.permute.xlu0 %1992
      %1994 = vrot.lane.b32.xlu0 %v1958, 96
      %v1995 = vpop.permute.xlu0 %1994
      %1996 = vrot.lane.b32.xlu0 %v1959, 96
      %v1997 = vpop.permute.xlu0 %1996
      %1998 = vrot.lane.b32.xlu0 %v1960, 96
      %v1999 = vpop.permute.xlu0 %1998
      %2000 = vrot.lane.b32.xlu0 %v1961, 96
      %v2001 = vpop.permute.xlu0 %2000
      %2002 = vrot.lane.b32.xlu0 %v1962, 96
      %v2003 = vpop.permute.xlu0 %2002
      %2004 = vrot.lane.b32.xlu0 %v1963, 96
      %v2005 = vpop.permute.xlu0 %2004
      %2006 = vrot.lane.b32.xlu0 %v1964, 96
      %v2007 = vpop.permute.xlu0 %2006
      %2008 = vrot.lane.b32.xlu0 %v1965, 96
      %v2009 = vpop.permute.xlu0 %2008
      %2010 = vrot.lane.b32.xlu0 %v1966, 96
      %v2011 = vpop.permute.xlu0 %2010
      %2012 = vrot.lane.b32.xlu0 %v1967, 96
      %v2013 = vpop.permute.xlu0 %2012
      %2014 = vrot.lane.b32.xlu0 %v1968, 96
      %v2015 = vpop.permute.xlu0 %2014
      %2016 = vrot.lane.b32.xlu0 %v1969, 96
      %v2017 = vpop.permute.xlu0 %2016
      %v2034 = vsub.f32 %v1874, %v1987
      %v2035 = vsub.f32 %v1875, %v1989
      %v2036 = vsub.f32 %v1876, %v1991
      %v2037 = vsub.f32 %v1877, %v1993
      %v2038 = vsub.f32 %v1878, %v1995
      %v2039 = vsub.f32 %v1879, %v1997
      %v2040 = vsub.f32 %v1880, %v1999
      %v2041 = vsub.f32 %v1881, %v2001
      %v2042 = vsub.f32 %v1882, %v2003
      %v2043 = vsub.f32 %v1883, %v2005
      %v2044 = vsub.f32 %v1884, %v2007
      %v2045 = vsub.f32 %v1885, %v2009
      %v2046 = vsub.f32 %v1886, %v2011
      %v2047 = vsub.f32 %v1887, %v2013
      %v2048 = vsub.f32 %v1888, %v2015
      %v2049 = vsub.f32 %v1889, %v2017
      %2066 = vrot.lane.b32.xlu0 %v808, 32
      %v2067 = vpop.permute.xlu0 %2066
      %2068 = vrot.lane.b32.xlu0 %v809, 32
      %v2069 = vpop.permute.xlu0 %2068
      %2070 = vrot.lane.b32.xlu0 %v810, 32
      %v2071 = vpop.permute.xlu0 %2070
      %2072 = vrot.lane.b32.xlu0 %v811, 32
      %v2073 = vpop.permute.xlu0 %2072
      %2074 = vrot.lane.b32.xlu0 %v812, 32
      %v2075 = vpop.permute.xlu0 %2074
      %2076 = vrot.lane.b32.xlu0 %v813, 32
      %v2077 = vpop.permute.xlu0 %2076
      %2078 = vrot.lane.b32.xlu0 %v814, 32
      %v2079 = vpop.permute.xlu0 %2078
      %2080 = vrot.lane.b32.xlu0 %v815, 32
      %v2081 = vpop.permute.xlu0 %2080
      %2082 = vrot.lane.b32.xlu0 %v816, 32
      %v2083 = vpop.permute.xlu0 %2082
      %2084 = vrot.lane.b32.xlu0 %v817, 32
      %v2085 = vpop.permute.xlu0 %2084
      %2086 = vrot.lane.b32.xlu0 %v818, 32
      %v2087 = vpop.permute.xlu0 %2086
      %2088 = vrot.lane.b32.xlu0 %v819, 32
      %v2089 = vpop.permute.xlu0 %2088
      %2090 = vrot.lane.b32.xlu0 %v820, 32
      %v2091 = vpop.permute.xlu0 %2090
      %2092 = vrot.lane.b32.xlu0 %v821, 32
      %v2093 = vpop.permute.xlu0 %2092
      %2094 = vrot.lane.b32.xlu0 %v822, 32
      %v2095 = vpop.permute.xlu0 %2094
      %2096 = vrot.lane.b32.xlu0 %v823, 32
      %v2097 = vpop.permute.xlu0 %2096
      %v2114 = vmul.f32 %v1545, %v2067
      %v2115 = vmul.f32 %v1547, %v2069
      %v2116 = vmul.f32 %v1550, %v2071
      %v2117 = vmul.f32 %v1552, %v2073
      %v2118 = vmul.f32 %v1555, %v2075
      %v2119 = vmul.f32 %v1557, %v2077
      %v2120 = vmul.f32 %v1560, %v2079
      %v2121 = vmul.f32 %v1562, %v2081
      %v2122 = vmul.f32 %v1565, %v2083
      %v2123 = vmul.f32 %v1567, %v2085
      %v2124 = vmul.f32 %v1570, %v2087
      %v2125 = vmul.f32 %v1572, %v2089
      %v2126 = vmul.f32 %v1575, %v2091
      %v2127 = vmul.f32 %v1577, %v2093
      %v2128 = vmul.f32 %v1580, %v2095
      %v2129 = vmul.f32 %v1582, %v2097
      %v2130 = vmul.f32 %v1545, %v824
      %v2131 = vmul.f32 %v1547, %v825
      %v2132 = vmul.f32 %v1550, %v826
      %v2133 = vmul.f32 %v1552, %v827
      %v2134 = vmul.f32 %v1555, %v828
      %v2135 = vmul.f32 %v1557, %v829
      %v2136 = vmul.f32 %v1560, %v830
      %v2137 = vmul.f32 %v1562, %v831
      %v2138 = vmul.f32 %v1565, %v832
      %v2139 = vmul.f32 %v1567, %v833
      %v2140 = vmul.f32 %v1570, %v834
      %v2141 = vmul.f32 %v1572, %v835
      %v2142 = vmul.f32 %v1575, %v836
      %v2143 = vmul.f32 %v1577, %v837
      %v2144 = vmul.f32 %v1580, %v838
      %v2145 = vmul.f32 %v1582, %v839
      %2162 = vrot.lane.b32.xlu0 %v2130, 32
      %v2163 = vpop.permute.xlu0 %2162
      %2164 = vrot.lane.b32.xlu0 %v2131, 32
      %v2165 = vpop.permute.xlu0 %2164
      %2166 = vrot.lane.b32.xlu0 %v2132, 32
      %v2167 = vpop.permute.xlu0 %2166
      %2168 = vrot.lane.b32.xlu0 %v2133, 32
      %v2169 = vpop.permute.xlu0 %2168
      %2170 = vrot.lane.b32.xlu0 %v2134, 32
      %v2171 = vpop.permute.xlu0 %2170
      %2172 = vrot.lane.b32.xlu0 %v2135, 32
      %v2173 = vpop.permute.xlu0 %2172
      %2174 = vrot.lane.b32.xlu0 %v2136, 32
      %v2175 = vpop.permute.xlu0 %2174
      %2176 = vrot.lane.b32.xlu0 %v2137, 32
      %v2177 = vpop.permute.xlu0 %2176
      %2178 = vrot.lane.b32.xlu0 %v2138, 32
      %v2179 = vpop.permute.xlu0 %2178
      %2180 = vrot.lane.b32.xlu0 %v2139, 32
      %v2181 = vpop.permute.xlu0 %2180
      %2182 = vrot.lane.b32.xlu0 %v2140, 32
      %v2183 = vpop.permute.xlu0 %2182
      %2184 = vrot.lane.b32.xlu0 %v2141, 32
      %v2185 = vpop.permute.xlu0 %2184
      %2186 = vrot.lane.b32.xlu0 %v2142, 32
      %v2187 = vpop.permute.xlu0 %2186
      %2188 = vrot.lane.b32.xlu0 %v2143, 32
      %v2189 = vpop.permute.xlu0 %2188
      %2190 = vrot.lane.b32.xlu0 %v2144, 32
      %v2191 = vpop.permute.xlu0 %2190
      %2192 = vrot.lane.b32.xlu0 %v2145, 32
      %v2193 = vpop.permute.xlu0 %2192
      %v2210 = vadd.f32 %v2114, %v2163
      %v2211 = vadd.f32 %v2115, %v2165
      %v2212 = vadd.f32 %v2116, %v2167
      %v2213 = vadd.f32 %v2117, %v2169
      %v2214 = vadd.f32 %v2118, %v2171
      %v2215 = vadd.f32 %v2119, %v2173
      %v2216 = vadd.f32 %v2120, %v2175
      %v2217 = vadd.f32 %v2121, %v2177
      %v2218 = vadd.f32 %v2122, %v2179
      %v2219 = vadd.f32 %v2123, %v2181
      %v2220 = vadd.f32 %v2124, %v2183
      %v2221 = vadd.f32 %v2125, %v2185
      %v2222 = vadd.f32 %v2126, %v2187
      %v2223 = vadd.f32 %v2127, %v2189
      %v2224 = vadd.f32 %v2128, %v2191
      %v2225 = vadd.f32 %v2129, %v2193
      %vm2226 = vcmask 261120
      %v2227 = vsel %vm2226, %v2034, %v2210
      %v2228 = vsel %vm2226, %v2035, %v2211
      %v2229 = vsel %vm2226, %v2036, %v2212
      %v2230 = vsel %vm2226, %v2037, %v2213
      %v2231 = vsel %vm2226, %v2038, %v2214
      %v2232 = vsel %vm2226, %v2039, %v2215
      %v2233 = vsel %vm2226, %v2040, %v2216
      %v2234 = vsel %vm2226, %v2041, %v2217
      %v2235 = vsel %vm2226, %v2042, %v2218
      %v2236 = vsel %vm2226, %v2043, %v2219
      %v2237 = vsel %vm2226, %v2044, %v2220
      %v2238 = vsel %vm2226, %v2045, %v2221
      %v2239 = vsel %vm2226, %v2046, %v2222
      %v2240 = vsel %vm2226, %v2047, %v2223
      %v2241 = vsel %vm2226, %v2048, %v2224
      %v2242 = vsel %vm2226, %v2049, %v2225
      %v2243 = vpack.c.bf16 %v2228, %v2227
      %v2244 = vpack.c.bf16 %v2230, %v2229
      %v2245 = vpack.c.bf16 %v2232, %v2231
      %v2246 = vpack.c.bf16 %v2234, %v2233
      %v2247 = vpack.c.bf16 %v2236, %v2235
      %v2248 = vpack.c.bf16 %v2238, %v2237
      %v2249 = vpack.c.bf16 %v2240, %v2239
      %v2250 = vpack.c.bf16 %v2242, %v2241
      %v2251 = vmul.f32 %v1634, %v808
      %v2252 = vmul.f32 %v1636, %v809
      %v2253 = vmul.f32 %v1639, %v810
      %v2254 = vmul.f32 %v1641, %v811
      %v2255 = vmul.f32 %v1644, %v812
      %v2256 = vmul.f32 %v1646, %v813
      %v2257 = vmul.f32 %v1649, %v814
      %v2258 = vmul.f32 %v1651, %v815
      %v2259 = vmul.f32 %v1654, %v816
      %v2260 = vmul.f32 %v1656, %v817
      %v2261 = vmul.f32 %v1659, %v818
      %v2262 = vmul.f32 %v1661, %v819
      %v2263 = vmul.f32 %v1664, %v820
      %v2264 = vmul.f32 %v1666, %v821
      %v2265 = vmul.f32 %v1669, %v822
      %v2266 = vmul.f32 %v1671, %v823
      %v2267 = vmul.f32 %v1634, %v1907
      %v2268 = vmul.f32 %v1636, %v1909
      %v2269 = vmul.f32 %v1639, %v1911
      %v2270 = vmul.f32 %v1641, %v1913
      %v2271 = vmul.f32 %v1644, %v1915
      %v2272 = vmul.f32 %v1646, %v1917
      %v2273 = vmul.f32 %v1649, %v1919
      %v2274 = vmul.f32 %v1651, %v1921
      %v2275 = vmul.f32 %v1654, %v1923
      %v2276 = vmul.f32 %v1656, %v1925
      %v2277 = vmul.f32 %v1659, %v1927
      %v2278 = vmul.f32 %v1661, %v1929
      %v2279 = vmul.f32 %v1664, %v1931
      %v2280 = vmul.f32 %v1666, %v1933
      %v2281 = vmul.f32 %v1669, %v1935
      %v2282 = vmul.f32 %v1671, %v1937
      %2299 = vrot.lane.b32.xlu0 %v2267, 96
      %v2300 = vpop.permute.xlu0 %2299
      %2301 = vrot.lane.b32.xlu0 %v2268, 96
      %v2302 = vpop.permute.xlu0 %2301
      %2303 = vrot.lane.b32.xlu0 %v2269, 96
      %v2304 = vpop.permute.xlu0 %2303
      %2305 = vrot.lane.b32.xlu0 %v2270, 96
      %v2306 = vpop.permute.xlu0 %2305
      %2307 = vrot.lane.b32.xlu0 %v2271, 96
      %v2308 = vpop.permute.xlu0 %2307
      %2309 = vrot.lane.b32.xlu0 %v2272, 96
      %v2310 = vpop.permute.xlu0 %2309
      %2311 = vrot.lane.b32.xlu0 %v2273, 96
      %v2312 = vpop.permute.xlu0 %2311
      %2313 = vrot.lane.b32.xlu0 %v2274, 96
      %v2314 = vpop.permute.xlu0 %2313
      %2315 = vrot.lane.b32.xlu0 %v2275, 96
      %v2316 = vpop.permute.xlu0 %2315
      %2317 = vrot.lane.b32.xlu0 %v2276, 96
      %v2318 = vpop.permute.xlu0 %2317
      %2319 = vrot.lane.b32.xlu0 %v2277, 96
      %v2320 = vpop.permute.xlu0 %2319
      %2321 = vrot.lane.b32.xlu0 %v2278, 96
      %v2322 = vpop.permute.xlu0 %2321
      %2323 = vrot.lane.b32.xlu0 %v2279, 96
      %v2324 = vpop.permute.xlu0 %2323
      %2325 = vrot.lane.b32.xlu0 %v2280, 96
      %v2326 = vpop.permute.xlu0 %2325
      %2327 = vrot.lane.b32.xlu0 %v2281, 96
      %v2328 = vpop.permute.xlu0 %2327
      %2329 = vrot.lane.b32.xlu0 %v2282, 96
      %v2330 = vpop.permute.xlu0 %2329
      %v2347 = vsub.f32 %v2251, %v2300
      %v2348 = vsub.f32 %v2252, %v2302
      %v2349 = vsub.f32 %v2253, %v2304
      %v2350 = vsub.f32 %v2254, %v2306
      %v2351 = vsub.f32 %v2255, %v2308
      %v2352 = vsub.f32 %v2256, %v2310
      %v2353 = vsub.f32 %v2257, %v2312
      %v2354 = vsub.f32 %v2258, %v2314
      %v2355 = vsub.f32 %v2259, %v2316
      %v2356 = vsub.f32 %v2260, %v2318
      %v2357 = vsub.f32 %v2261, %v2320
      %v2358 = vsub.f32 %v2262, %v2322
      %v2359 = vsub.f32 %v2263, %v2324
      %v2360 = vsub.f32 %v2264, %v2326
      %v2361 = vsub.f32 %v2265, %v2328
      %v2362 = vsub.f32 %v2266, %v2330
      %v2363 = vmul.f32 %v1634, %v2067
      %v2364 = vmul.f32 %v1636, %v2069
      %v2365 = vmul.f32 %v1639, %v2071
      %v2366 = vmul.f32 %v1641, %v2073
      %v2367 = vmul.f32 %v1644, %v2075
      %v2368 = vmul.f32 %v1646, %v2077
      %v2369 = vmul.f32 %v1649, %v2079
      %v2370 = vmul.f32 %v1651, %v2081
      %v2371 = vmul.f32 %v1654, %v2083
      %v2372 = vmul.f32 %v1656, %v2085
      %v2373 = vmul.f32 %v1659, %v2087
      %v2374 = vmul.f32 %v1661, %v2089
      %v2375 = vmul.f32 %v1664, %v2091
      %v2376 = vmul.f32 %v1666, %v2093
      %v2377 = vmul.f32 %v1669, %v2095
      %v2378 = vmul.f32 %v1671, %v2097
      %v2379 = vmul.f32 %v1634, %v824
      %v2380 = vmul.f32 %v1636, %v825
      %v2381 = vmul.f32 %v1639, %v826
      %v2382 = vmul.f32 %v1641, %v827
      %v2383 = vmul.f32 %v1644, %v828
      %v2384 = vmul.f32 %v1646, %v829
      %v2385 = vmul.f32 %v1649, %v830
      %v2386 = vmul.f32 %v1651, %v831
      %v2387 = vmul.f32 %v1654, %v832
      %v2388 = vmul.f32 %v1656, %v833
      %v2389 = vmul.f32 %v1659, %v834
      %v2390 = vmul.f32 %v1661, %v835
      %v2391 = vmul.f32 %v1664, %v836
      %v2392 = vmul.f32 %v1666, %v837
      %v2393 = vmul.f32 %v1669, %v838
      %v2394 = vmul.f32 %v1671, %v839
      %2411 = vrot.lane.b32.xlu0 %v2379, 32
      %v2412 = vpop.permute.xlu0 %2411
      %2413 = vrot.lane.b32.xlu0 %v2380, 32
      %v2414 = vpop.permute.xlu0 %2413
      %2415 = vrot.lane.b32.xlu0 %v2381, 32
      %v2416 = vpop.permute.xlu0 %2415
      %2417 = vrot.lane.b32.xlu0 %v2382, 32
      %v2418 = vpop.permute.xlu0 %2417
      %2419 = vrot.lane.b32.xlu0 %v2383, 32
      %v2420 = vpop.permute.xlu0 %2419
      %2421 = vrot.lane.b32.xlu0 %v2384, 32
      %v2422 = vpop.permute.xlu0 %2421
      %2423 = vrot.lane.b32.xlu0 %v2385, 32
      %v2424 = vpop.permute.xlu0 %2423
      %2425 = vrot.lane.b32.xlu0 %v2386, 32
      %v2426 = vpop.permute.xlu0 %2425
      %2427 = vrot.lane.b32.xlu0 %v2387, 32
      %v2428 = vpop.permute.xlu0 %2427
      %2429 = vrot.lane.b32.xlu0 %v2388, 32
      %v2430 = vpop.permute.xlu0 %2429
      %2431 = vrot.lane.b32.xlu0 %v2389, 32
      %v2432 = vpop.permute.xlu0 %2431
      %2433 = vrot.lane.b32.xlu0 %v2390, 32
      %v2434 = vpop.permute.xlu0 %2433
      %2435 = vrot.lane.b32.xlu0 %v2391, 32
      %v2436 = vpop.permute.xlu0 %2435
      %2437 = vrot.lane.b32.xlu0 %v2392, 32
      %v2438 = vpop.permute.xlu0 %2437
      %2439 = vrot.lane.b32.xlu0 %v2393, 32
      %v2440 = vpop.permute.xlu0 %2439
      %2441 = vrot.lane.b32.xlu0 %v2394, 32
      %v2442 = vpop.permute.xlu0 %2441
      %v2459 = vadd.f32 %v2363, %v2412
      %v2460 = vadd.f32 %v2364, %v2414
      %v2461 = vadd.f32 %v2365, %v2416
      %v2462 = vadd.f32 %v2366, %v2418
      %v2463 = vadd.f32 %v2367, %v2420
      %v2464 = vadd.f32 %v2368, %v2422
      %v2465 = vadd.f32 %v2369, %v2424
      %v2466 = vadd.f32 %v2370, %v2426
      %v2467 = vadd.f32 %v2371, %v2428
      %v2468 = vadd.f32 %v2372, %v2430
      %v2469 = vadd.f32 %v2373, %v2432
      %v2470 = vadd.f32 %v2374, %v2434
      %v2471 = vadd.f32 %v2375, %v2436
      %v2472 = vadd.f32 %v2376, %v2438
      %v2473 = vadd.f32 %v2377, %v2440
      %v2474 = vadd.f32 %v2378, %v2442
      %v2475 = vsel %vm2226, %v2347, %v2459
      %v2476 = vsel %vm2226, %v2348, %v2460
      %v2477 = vsel %vm2226, %v2349, %v2461
      %v2478 = vsel %vm2226, %v2350, %v2462
      %v2479 = vsel %vm2226, %v2351, %v2463
      %v2480 = vsel %vm2226, %v2352, %v2464
      %v2481 = vsel %vm2226, %v2353, %v2465
      %v2482 = vsel %vm2226, %v2354, %v2466
      %v2483 = vsel %vm2226, %v2355, %v2467
      %v2484 = vsel %vm2226, %v2356, %v2468
      %v2485 = vsel %vm2226, %v2357, %v2469
      %v2486 = vsel %vm2226, %v2358, %v2470
      %v2487 = vsel %vm2226, %v2359, %v2471
      %v2488 = vsel %vm2226, %v2360, %v2472
      %v2489 = vsel %vm2226, %v2361, %v2473
      %v2490 = vsel %vm2226, %v2362, %v2474
      %v2491 = vpack.c.bf16 %v2476, %v2475
      %v2492 = vpack.c.bf16 %v2478, %v2477
      %v2493 = vpack.c.bf16 %v2480, %v2479
      %v2494 = vpack.c.bf16 %v2482, %v2481
      %v2495 = vpack.c.bf16 %v2484, %v2483
      %v2496 = vpack.c.bf16 %v2486, %v2485
      %v2497 = vpack.c.bf16 %v2488, %v2487
      %v2498 = vpack.c.bf16 %v2490, %v2489
      %v2499 = vpack.c.bf16 %v1725, %v1723
      %v2500 = vpack.c.bf16 %v1730, %v1728
      %v2501 = vpack.c.bf16 %v1735, %v1733
      %v2502 = vpack.c.bf16 %v1740, %v1738
      %v2503 = vpack.c.bf16 %v1745, %v1743
      %v2504 = vpack.c.bf16 %v1750, %v1748
      %v2505 = vpack.c.bf16 %v1755, %v1753
      %v2506 = vpack.c.bf16 %v1760, %v1758
      %vm2507 = vcmask 523264
      %v2509 = vsel %vm2507, %v2243, 0
      %v2512 = vsel %vm2507, %v2244, 0
      %v2515 = vsel %vm2507, %v2245, 0
      %v2518 = vsel %vm2507, %v2246, 0
      %v2521 = vsel %vm2507, %v2247, 0
      %v2524 = vsel %vm2507, %v2248, 0
      %v2527 = vsel %vm2507, %v2249, 0
      %v2530 = vsel %vm2507, %v2250, 0
      %v2533 = vsel %vm2507, %v2491, 0
      %v2536 = vsel %vm2507, %v2492, 0
      %v2539 = vsel %vm2507, %v2493, 0
      %v2542 = vsel %vm2507, %v2494, 0
      %v2545 = vsel %vm2507, %v2495, 0
      %v2548 = vsel %vm2507, %v2496, 0
      %v2551 = vsel %vm2507, %v2497, 0
      %v2554 = vsel %vm2507, %v2498, 0
      %2556 = vmatpush.bf16.xpose.msra.mxu0 %v2554
      %2557 = vmatpush.bf16.xpose.msra.mxu0 %v2551
      %2558 = vmatpush.bf16.xpose.msra.mxu0 %v2548
      %2559 = vmatpush.bf16.xpose.msra.mxu0 %v2545
      %2560 = vmatpush.bf16.xpose.msra.mxu0 %v2542
      %2561 = vmatpush.bf16.xpose.msra.mxu0 %v2539
      %2562 = vmatpush.bf16.xpose.msra.mxu0 %v2536
      %2563 = vmatpush.bf16.xpose.msra.mxu0 %v2533
      %2564 = vmatmul.bf16.gmra.mxu0 %v2509
      %v2565 = vpop.f32.mrf.mxu0
      %v2566 = vadd.f32 %v1858, %v2565
      %v2567 = vpop.f32.mrf.mxu0
      %v2568 = vadd.f32 %v1859, %v2567
      %2569 = vmatmul.bf16.gmra.mxu0 %v2512
      %v2570 = vpop.f32.mrf.mxu0
      %v2571 = vadd.f32 %v1860, %v2570
      %v2572 = vpop.f32.mrf.mxu0
      %v2573 = vadd.f32 %v1861, %v2572
      %2574 = vmatmul.bf16.gmra.mxu0 %v2515
      %v2575 = vpop.f32.mrf.mxu0
      %v2576 = vadd.f32 %v1862, %v2575
      %v2577 = vpop.f32.mrf.mxu0
      %v2578 = vadd.f32 %v1863, %v2577
      %2579 = vmatmul.bf16.gmra.mxu0 %v2518
      %v2580 = vpop.f32.mrf.mxu0
      %v2581 = vadd.f32 %v1864, %v2580
      %v2582 = vpop.f32.mrf.mxu0
      %v2583 = vadd.f32 %v1865, %v2582
      %2584 = vmatmul.bf16.gmra.mxu0 %v2521
      %v2585 = vpop.f32.mrf.mxu0
      %v2586 = vadd.f32 %v1866, %v2585
      %v2587 = vpop.f32.mrf.mxu0
      %v2588 = vadd.f32 %v1867, %v2587
      %2589 = vmatmul.bf16.gmra.mxu0 %v2524
      %v2590 = vpop.f32.mrf.mxu0
      %v2591 = vadd.f32 %v1868, %v2590
      %v2592 = vpop.f32.mrf.mxu0
      %v2593 = vadd.f32 %v1869, %v2592
      %2594 = vmatmul.bf16.gmra.mxu0 %v2527
      %v2595 = vpop.f32.mrf.mxu0
      %v2596 = vadd.f32 %v1870, %v2595
      %v2597 = vpop.f32.mrf.mxu0
      %v2598 = vadd.f32 %v1871, %v2597
      %2599 = vmatmul.bf16.gmra.mxu0 %v2530
      %v2600 = vpop.f32.mrf.mxu0
      %v2601 = vadd.f32 %v1872, %v2600
      %v2602 = vpop.f32.mrf.mxu0
      %v2603 = vadd.f32 %v1873, %v2602
      %2604 = vdwg.mxu0
      %2605 = vmax.xlane.f32.xlu0 %v2566
      %v2606 = vpop.xlane.xlu0 %2605
      %2607 = vmax.xlane.f32.xlu0 %v2568
      %v2608 = vpop.xlane.xlu0 %2607
      %2609 = vmax.xlane.f32.xlu0 %v2571
      %v2610 = vpop.xlane.xlu0 %2609
      %2611 = vmax.xlane.f32.xlu0 %v2573
      %v2612 = vpop.xlane.xlu0 %2611
      %2613 = vmax.xlane.f32.xlu0 %v2576
      %v2614 = vpop.xlane.xlu0 %2613
      %2615 = vmax.xlane.f32.xlu0 %v2578
      %v2616 = vpop.xlane.xlu0 %2615
      %2617 = vmax.xlane.f32.xlu0 %v2581
      %v2618 = vpop.xlane.xlu0 %2617
      %2619 = vmax.xlane.f32.xlu0 %v2583
      %v2620 = vpop.xlane.xlu0 %2619
      %2621 = vmax.xlane.f32.xlu0 %v2586
      %v2622 = vpop.xlane.xlu0 %2621
      %2623 = vmax.xlane.f32.xlu0 %v2588
      %v2624 = vpop.xlane.xlu0 %2623
      %2625 = vmax.xlane.f32.xlu0 %v2591
      %v2626 = vpop.xlane.xlu0 %2625
      %2627 = vmax.xlane.f32.xlu0 %v2593
      %v2628 = vpop.xlane.xlu0 %2627
      %2629 = vmax.xlane.f32.xlu0 %v2596
      %v2630 = vpop.xlane.xlu0 %2629
      %2631 = vmax.xlane.f32.xlu0 %v2598
      %v2632 = vpop.xlane.xlu0 %2631
      %2633 = vmax.xlane.f32.xlu0 %v2601
      %v2634 = vpop.xlane.xlu0 %2633
      %2635 = vmax.xlane.f32.xlu0 %v2603
      %v2636 = vpop.xlane.xlu0 %2635
      %v2637 = vsub.f32 %v2566, %v2606
      %v2638 = vsub.f32 %v2568, %v2608
      %v2639 = vsub.f32 %v2571, %v2610
      %v2640 = vsub.f32 %v2573, %v2612
      %v2641 = vsub.f32 %v2576, %v2614
      %v2642 = vsub.f32 %v2578, %v2616
      %v2643 = vsub.f32 %v2581, %v2618
      %v2644 = vsub.f32 %v2583, %v2620
      %v2645 = vsub.f32 %v2586, %v2622
      %v2646 = vsub.f32 %v2588, %v2624
      %v2647 = vsub.f32 %v2591, %v2626
      %v2648 = vsub.f32 %v2593, %v2628
      %v2649 = vsub.f32 %v2596, %v2630
      %v2650 = vsub.f32 %v2598, %v2632
      %v2651 = vsub.f32 %v2601, %v2634
      %v2652 = vsub.f32 %v2603, %v2636
      %v2653 = vmul.f32 %v2637, 1.442695
      %v2654 = vpow.pop %v2653
      %v2655 = vmul.f32 %v2638, 1.442695
      %v2656 = vpow.pop %v2655
      %v2657 = vmul.f32 %v2639, 1.442695
      %v2658 = vpow.pop %v2657
      %v2659 = vmul.f32 %v2640, 1.442695
      %v2660 = vpow.pop %v2659
      %v2661 = vmul.f32 %v2641, 1.442695
      %v2662 = vpow.pop %v2661
      %v2663 = vmul.f32 %v2642, 1.442695
      %v2664 = vpow.pop %v2663
      %v2665 = vmul.f32 %v2643, 1.442695
      %v2666 = vpow.pop %v2665
      %v2667 = vmul.f32 %v2644, 1.442695
      %v2668 = vpow.pop %v2667
      %v2669 = vmul.f32 %v2645, 1.442695
      %v2670 = vpow.pop %v2669
      %v2671 = vmul.f32 %v2646, 1.442695
      %v2672 = vpow.pop %v2671
      %v2673 = vmul.f32 %v2647, 1.442695
      %v2674 = vpow.pop %v2673
      %v2675 = vmul.f32 %v2648, 1.442695
      %v2676 = vpow.pop %v2675
      %v2677 = vmul.f32 %v2649, 1.442695
      %v2678 = vpow.pop %v2677
      %v2679 = vmul.f32 %v2650, 1.442695
      %v2680 = vpow.pop %v2679
      %v2681 = vmul.f32 %v2651, 1.442695
      %v2682 = vpow.pop %v2681
      %v2683 = vmul.f32 %v2652, 1.442695
      %v2684 = vpow.pop %v2683
      %2685 = vadd.xlane.f32.xlu0 %v2654
      %v2686 = vpop.xlane.xlu0 %2685
      %2687 = vadd.xlane.f32.xlu0 %v2656
      %v2688 = vpop.xlane.xlu0 %2687
      %2689 = vadd.xlane.f32.xlu0 %v2658
      %v2690 = vpop.xlane.xlu0 %2689
      %2691 = vadd.xlane.f32.xlu0 %v2660
      %v2692 = vpop.xlane.xlu0 %2691
      %2693 = vadd.xlane.f32.xlu0 %v2662
      %v2694 = vpop.xlane.xlu0 %2693
      %2695 = vadd.xlane.f32.xlu0 %v2664
      %v2696 = vpop.xlane.xlu0 %2695
      %2697 = vadd.xlane.f32.xlu0 %v2666
      %v2698 = vpop.xlane.xlu0 %2697
      %2699 = vadd.xlane.f32.xlu0 %v2668
      %v2700 = vpop.xlane.xlu0 %2699
      %2701 = vadd.xlane.f32.xlu0 %v2670
      %v2702 = vpop.xlane.xlu0 %2701
      %2703 = vadd.xlane.f32.xlu0 %v2672
      %v2704 = vpop.xlane.xlu0 %2703
      %2705 = vadd.xlane.f32.xlu0 %v2674
      %v2706 = vpop.xlane.xlu0 %2705
      %2707 = vadd.xlane.f32.xlu0 %v2676
      %v2708 = vpop.xlane.xlu0 %2707
      %2709 = vadd.xlane.f32.xlu0 %v2678
      %v2710 = vpop.xlane.xlu0 %2709
      %2711 = vadd.xlane.f32.xlu0 %v2680
      %v2712 = vpop.xlane.xlu0 %2711
      %2713 = vadd.xlane.f32.xlu0 %v2682
      %v2714 = vpop.xlane.xlu0 %2713
      %2715 = vadd.xlane.f32.xlu0 %v2684
      %v2716 = vpop.xlane.xlu0 %2715
      %v2717 = vrcp.pop %v2686
      %v2718 = vrcp.pop %v2688
      %v2719 = vrcp.pop %v2690
      %v2720 = vrcp.pop %v2692
      %v2721 = vrcp.pop %v2694
      %v2722 = vrcp.pop %v2696
      %v2723 = vrcp.pop %v2698
      %v2724 = vrcp.pop %v2700
      %v2725 = vrcp.pop %v2702
      %v2726 = vrcp.pop %v2704
      %v2727 = vrcp.pop %v2706
      %v2728 = vrcp.pop %v2708
      %v2729 = vrcp.pop %v2710
      %v2730 = vrcp.pop %v2712
      %v2731 = vrcp.pop %v2714
      %v2732 = vrcp.pop %v2716
      %v2733 = vmul.f32 %v2654, %v2717
      %v2734 = vmul.f32 %v2656, %v2718
      %v2735 = vmul.f32 %v2658, %v2719
      %v2736 = vmul.f32 %v2660, %v2720
      %v2737 = vmul.f32 %v2662, %v2721
      %v2738 = vmul.f32 %v2664, %v2722
      %v2739 = vmul.f32 %v2666, %v2723
      %v2740 = vmul.f32 %v2668, %v2724
      %v2741 = vmul.f32 %v2670, %v2725
      %v2742 = vmul.f32 %v2672, %v2726
      %v2743 = vmul.f32 %v2674, %v2727
      %v2744 = vmul.f32 %v2676, %v2728
      %v2745 = vmul.f32 %v2678, %v2729
      %v2746 = vmul.f32 %v2680, %v2730
      %v2747 = vmul.f32 %v2682, %v2731
      %v2748 = vmul.f32 %v2684, %v2732
      %v2749 = vpack.c.bf16 %v2734, %v2733
      %v2750 = vpack.c.bf16 %v2736, %v2735
      %v2751 = vpack.c.bf16 %v2738, %v2737
      %v2752 = vpack.c.bf16 %v2740, %v2739
      %v2753 = vpack.c.bf16 %v2742, %v2741
      %v2754 = vpack.c.bf16 %v2744, %v2743
      %v2755 = vpack.c.bf16 %v2746, %v2745
      %v2756 = vpack.c.bf16 %v2748, %v2747
      %2757 = vmatpush.bf16.msra.mxu0 %v2506
      %2758 = vmatpush.bf16.msra.mxu0 %v2505
      %2759 = vmatpush.bf16.msra.mxu0 %v2504
      %2760 = vmatpush.bf16.msra.mxu0 %v2503
      %2761 = vmatpush.bf16.msra.mxu0 %v2502
      %2762 = vmatpush.bf16.msra.mxu0 %v2501
      %2763 = vmatpush.bf16.msra.mxu0 %v2500
      %2764 = vmatpush.bf16.msra.mxu0 %v2499
      %2765 = vmatmul.bf16.gmra.mxu0 %v2749
      %v2766 = vpop.f32.mrf.mxu0
      %v2767 = vadd.f32 0.0, %v2766
      %v2768 = vpop.f32.mrf.mxu0
      %v2769 = vadd.f32 0.0, %v2768
      %2770 = vmatmul.bf16.gmra.mxu0 %v2750
      %v2771 = vpop.f32.mrf.mxu0
      %v2772 = vadd.f32 0.0, %v2771
      %v2773 = vpop.f32.mrf.mxu0
      %v2774 = vadd.f32 0.0, %v2773
      %2775 = vmatmul.bf16.gmra.mxu0 %v2751
      %v2776 = vpop.f32.mrf.mxu0
      %v2777 = vadd.f32 0.0, %v2776
      %v2778 = vpop.f32.mrf.mxu0
      %v2779 = vadd.f32 0.0, %v2778
      %2780 = vmatmul.bf16.gmra.mxu0 %v2752
      %v2781 = vpop.f32.mrf.mxu0
      %v2782 = vadd.f32 0.0, %v2781
      %v2783 = vpop.f32.mrf.mxu0
      %v2784 = vadd.f32 0.0, %v2783
      %2785 = vmatmul.bf16.gmra.mxu0 %v2753
      %v2786 = vpop.f32.mrf.mxu0
      %v2787 = vadd.f32 0.0, %v2786
      %v2788 = vpop.f32.mrf.mxu0
      %v2789 = vadd.f32 0.0, %v2788
      %2790 = vmatmul.bf16.gmra.mxu0 %v2754
      %v2791 = vpop.f32.mrf.mxu0
      %v2792 = vadd.f32 0.0, %v2791
      %v2793 = vpop.f32.mrf.mxu0
      %v2794 = vadd.f32 0.0, %v2793
      %2795 = vmatmul.bf16.gmra.mxu0 %v2755
      %v2796 = vpop.f32.mrf.mxu0
      %v2797 = vadd.f32 0.0, %v2796
      %v2798 = vpop.f32.mrf.mxu0
      %v2799 = vadd.f32 0.0, %v2798
      %2800 = vmatmul.bf16.gmra.mxu0 %v2756
      %v2801 = vpop.f32.mrf.mxu0
      %v2802 = vadd.f32 0.0, %v2801
      %v2803 = vpop.f32.mrf.mxu0
      %v2804 = vadd.f32 0.0, %v2803
      %2805 = vdwg.mxu0
      %2806 = vrot.lane.b32.xlu0 %v808, 64
      %v2807 = vpop.permute.xlu0 %2806
      %2808 = vrot.lane.b32.xlu0 %v809, 64
      %v2809 = vpop.permute.xlu0 %2808
      %2810 = vrot.lane.b32.xlu0 %v810, 64
      %v2811 = vpop.permute.xlu0 %2810
      %2812 = vrot.lane.b32.xlu0 %v811, 64
      %v2813 = vpop.permute.xlu0 %2812
      %2814 = vrot.lane.b32.xlu0 %v812, 64
      %v2815 = vpop.permute.xlu0 %2814
      %2816 = vrot.lane.b32.xlu0 %v813, 64
      %v2817 = vpop.permute.xlu0 %2816
      %2818 = vrot.lane.b32.xlu0 %v814, 64
      %v2819 = vpop.permute.xlu0 %2818
      %2820 = vrot.lane.b32.xlu0 %v815, 64
      %v2821 = vpop.permute.xlu0 %2820
      %2822 = vrot.lane.b32.xlu0 %v816, 64
      %v2823 = vpop.permute.xlu0 %2822
      %2824 = vrot.lane.b32.xlu0 %v817, 64
      %v2825 = vpop.permute.xlu0 %2824
      %2826 = vrot.lane.b32.xlu0 %v818, 64
      %v2827 = vpop.permute.xlu0 %2826
      %2828 = vrot.lane.b32.xlu0 %v819, 64
      %v2829 = vpop.permute.xlu0 %2828
      %2830 = vrot.lane.b32.xlu0 %v820, 64
      %v2831 = vpop.permute.xlu0 %2830
      %2832 = vrot.lane.b32.xlu0 %v821, 64
      %v2833 = vpop.permute.xlu0 %2832
      %2834 = vrot.lane.b32.xlu0 %v822, 64
      %v2835 = vpop.permute.xlu0 %2834
      %2836 = vrot.lane.b32.xlu0 %v823, 64
      %v2837 = vpop.permute.xlu0 %2836
      %v2854 = vmul.f32 %v1545, %v2807
      %v2855 = vmul.f32 %v1547, %v2809
      %v2856 = vmul.f32 %v1550, %v2811
      %v2857 = vmul.f32 %v1552, %v2813
      %v2858 = vmul.f32 %v1555, %v2815
      %v2859 = vmul.f32 %v1557, %v2817
      %v2860 = vmul.f32 %v1560, %v2819
      %v2861 = vmul.f32 %v1562, %v2821
      %v2862 = vmul.f32 %v1565, %v2823
      %v2863 = vmul.f32 %v1567, %v2825
      %v2864 = vmul.f32 %v1570, %v2827
      %v2865 = vmul.f32 %v1572, %v2829
      %v2866 = vmul.f32 %v1575, %v2831
      %v2867 = vmul.f32 %v1577, %v2833
      %v2868 = vmul.f32 %v1580, %v2835
      %v2869 = vmul.f32 %v1582, %v2837
      %2870 = vrot.lane.b32.xlu0 %v824, 96
      %v2871 = vpop.permute.xlu0 %2870
      %2872 = vrot.lane.b32.xlu0 %v825, 96
      %v2873 = vpop.permute.xlu0 %2872
      %2874 = vrot.lane.b32.xlu0 %v826, 96
      %v2875 = vpop.permute.xlu0 %2874
      %2876 = vrot.lane.b32.xlu0 %v827, 96
      %v2877 = vpop.permute.xlu0 %2876
      %2878 = vrot.lane.b32.xlu0 %v828, 96
      %v2879 = vpop.permute.xlu0 %2878
      %2880 = vrot.lane.b32.xlu0 %v829, 96
      %v2881 = vpop.permute.xlu0 %2880
      %2882 = vrot.lane.b32.xlu0 %v830, 96
      %v2883 = vpop.permute.xlu0 %2882
      %2884 = vrot.lane.b32.xlu0 %v831, 96
      %v2885 = vpop.permute.xlu0 %2884
      %2886 = vrot.lane.b32.xlu0 %v832, 96
      %v2887 = vpop.permute.xlu0 %2886
      %2888 = vrot.lane.b32.xlu0 %v833, 96
      %v2889 = vpop.permute.xlu0 %2888
      %2890 = vrot.lane.b32.xlu0 %v834, 96
      %v2891 = vpop.permute.xlu0 %2890
      %2892 = vrot.lane.b32.xlu0 %v835, 96
      %v2893 = vpop.permute.xlu0 %2892
      %2894 = vrot.lane.b32.xlu0 %v836, 96
      %v2895 = vpop.permute.xlu0 %2894
      %2896 = vrot.lane.b32.xlu0 %v837, 96
      %v2897 = vpop.permute.xlu0 %2896
      %2898 = vrot.lane.b32.xlu0 %v838, 96
      %v2899 = vpop.permute.xlu0 %2898
      %2900 = vrot.lane.b32.xlu0 %v839, 96
      %v2901 = vpop.permute.xlu0 %2900
      %v2918 = vmul.f32 %v1545, %v2871
      %v2919 = vmul.f32 %v1547, %v2873
      %v2920 = vmul.f32 %v1550, %v2875
      %v2921 = vmul.f32 %v1552, %v2877
      %v2922 = vmul.f32 %v1555, %v2879
      %v2923 = vmul.f32 %v1557, %v2881
      %v2924 = vmul.f32 %v1560, %v2883
      %v2925 = vmul.f32 %v1562, %v2885
      %v2926 = vmul.f32 %v1565, %v2887
      %v2927 = vmul.f32 %v1567, %v2889
      %v2928 = vmul.f32 %v1570, %v2891
      %v2929 = vmul.f32 %v1572, %v2893
      %v2930 = vmul.f32 %v1575, %v2895
      %v2931 = vmul.f32 %v1577, %v2897
      %v2932 = vmul.f32 %v1580, %v2899
      %v2933 = vmul.f32 %v1582, %v2901
      %2950 = vrot.lane.b32.xlu0 %v2918, 96
      %v2951 = vpop.permute.xlu0 %2950
      %2952 = vrot.lane.b32.xlu0 %v2919, 96
      %v2953 = vpop.permute.xlu0 %2952
      %2954 = vrot.lane.b32.xlu0 %v2920, 96
      %v2955 = vpop.permute.xlu0 %2954
      %2956 = vrot.lane.b32.xlu0 %v2921, 96
      %v2957 = vpop.permute.xlu0 %2956
      %2958 = vrot.lane.b32.xlu0 %v2922, 96
      %v2959 = vpop.permute.xlu0 %2958
      %2960 = vrot.lane.b32.xlu0 %v2923, 96
      %v2961 = vpop.permute.xlu0 %2960
      %2962 = vrot.lane.b32.xlu0 %v2924, 96
      %v2963 = vpop.permute.xlu0 %2962
      %2964 = vrot.lane.b32.xlu0 %v2925, 96
      %v2965 = vpop.permute.xlu0 %2964
      %2966 = vrot.lane.b32.xlu0 %v2926, 96
      %v2967 = vpop.permute.xlu0 %2966
      %2968 = vrot.lane.b32.xlu0 %v2927, 96
      %v2969 = vpop.permute.xlu0 %2968
      %2970 = vrot.lane.b32.xlu0 %v2928, 96
      %v2971 = vpop.permute.xlu0 %2970
      %2972 = vrot.lane.b32.xlu0 %v2929, 96
      %v2973 = vpop.permute.xlu0 %2972
      %2974 = vrot.lane.b32.xlu0 %v2930, 96
      %v2975 = vpop.permute.xlu0 %2974
      %2976 = vrot.lane.b32.xlu0 %v2931, 96
      %v2977 = vpop.permute.xlu0 %2976
      %2978 = vrot.lane.b32.xlu0 %v2932, 96
      %v2979 = vpop.permute.xlu0 %2978
      %2980 = vrot.lane.b32.xlu0 %v2933, 96
      %v2981 = vpop.permute.xlu0 %2980
      %v2998 = vsub.f32 %v2854, %v2951
      %v2999 = vsub.f32 %v2855, %v2953
      %v3000 = vsub.f32 %v2856, %v2955
      %v3001 = vsub.f32 %v2857, %v2957
      %v3002 = vsub.f32 %v2858, %v2959
      %v3003 = vsub.f32 %v2859, %v2961
      %v3004 = vsub.f32 %v2860, %v2963
      %v3005 = vsub.f32 %v2861, %v2965
      %v3006 = vsub.f32 %v2862, %v2967
      %v3007 = vsub.f32 %v2863, %v2969
      %v3008 = vsub.f32 %v2864, %v2971
      %v3009 = vsub.f32 %v2865, %v2973
      %v3010 = vsub.f32 %v2866, %v2975
      %v3011 = vsub.f32 %v2867, %v2977
      %v3012 = vsub.f32 %v2868, %v2979
      %v3013 = vsub.f32 %v2869, %v2981
      %3014 = vrot.lane.b32.xlu0 %v808, 96
      %v3015 = vpop.permute.xlu0 %3014
      %3016 = vrot.lane.b32.xlu0 %v809, 96
      %v3017 = vpop.permute.xlu0 %3016
      %3018 = vrot.lane.b32.xlu0 %v810, 96
      %v3019 = vpop.permute.xlu0 %3018
      %3020 = vrot.lane.b32.xlu0 %v811, 96
      %v3021 = vpop.permute.xlu0 %3020
      %3022 = vrot.lane.b32.xlu0 %v812, 96
      %v3023 = vpop.permute.xlu0 %3022
      %3024 = vrot.lane.b32.xlu0 %v813, 96
      %v3025 = vpop.permute.xlu0 %3024
      %3026 = vrot.lane.b32.xlu0 %v814, 96
      %v3027 = vpop.permute.xlu0 %3026
      %3028 = vrot.lane.b32.xlu0 %v815, 96
      %v3029 = vpop.permute.xlu0 %3028
      %3030 = vrot.lane.b32.xlu0 %v816, 96
      %v3031 = vpop.permute.xlu0 %3030
      %3032 = vrot.lane.b32.xlu0 %v817, 96
      %v3033 = vpop.permute.xlu0 %3032
      %3034 = vrot.lane.b32.xlu0 %v818, 96
      %v3035 = vpop.permute.xlu0 %3034
      %3036 = vrot.lane.b32.xlu0 %v819, 96
      %v3037 = vpop.permute.xlu0 %3036
      %3038 = vrot.lane.b32.xlu0 %v820, 96
      %v3039 = vpop.permute.xlu0 %3038
      %3040 = vrot.lane.b32.xlu0 %v821, 96
      %v3041 = vpop.permute.xlu0 %3040
      %3042 = vrot.lane.b32.xlu0 %v822, 96
      %v3043 = vpop.permute.xlu0 %3042
      %3044 = vrot.lane.b32.xlu0 %v823, 96
      %v3045 = vpop.permute.xlu0 %3044
      %v3062 = vmul.f32 %v1545, %v3015
      %v3063 = vmul.f32 %v1547, %v3017
      %v3064 = vmul.f32 %v1550, %v3019
      %v3065 = vmul.f32 %v1552, %v3021
      %v3066 = vmul.f32 %v1555, %v3023
      %v3067 = vmul.f32 %v1557, %v3025
      %v3068 = vmul.f32 %v1560, %v3027
      %v3069 = vmul.f32 %v1562, %v3029
      %v3070 = vmul.f32 %v1565, %v3031
      %v3071 = vmul.f32 %v1567, %v3033
      %v3072 = vmul.f32 %v1570, %v3035
      %v3073 = vmul.f32 %v1572, %v3037
      %v3074 = vmul.f32 %v1575, %v3039
      %v3075 = vmul.f32 %v1577, %v3041
      %v3076 = vmul.f32 %v1580, %v3043
      %v3077 = vmul.f32 %v1582, %v3045
      %3078 = vrot.lane.b32.xlu0 %v824, 64
      %v3079 = vpop.permute.xlu0 %3078
      %3080 = vrot.lane.b32.xlu0 %v825, 64
      %v3081 = vpop.permute.xlu0 %3080
      %3082 = vrot.lane.b32.xlu0 %v826, 64
      %v3083 = vpop.permute.xlu0 %3082
      %3084 = vrot.lane.b32.xlu0 %v827, 64
      %v3085 = vpop.permute.xlu0 %3084
      %3086 = vrot.lane.b32.xlu0 %v828, 64
      %v3087 = vpop.permute.xlu0 %3086
      %3088 = vrot.lane.b32.xlu0 %v829, 64
      %v3089 = vpop.permute.xlu0 %3088
      %3090 = vrot.lane.b32.xlu0 %v830, 64
      %v3091 = vpop.permute.xlu0 %3090
      %3092 = vrot.lane.b32.xlu0 %v831, 64
      %v3093 = vpop.permute.xlu0 %3092
      %3094 = vrot.lane.b32.xlu0 %v832, 64
      %v3095 = vpop.permute.xlu0 %3094
      %3096 = vrot.lane.b32.xlu0 %v833, 64
      %v3097 = vpop.permute.xlu0 %3096
      %3098 = vrot.lane.b32.xlu0 %v834, 64
      %v3099 = vpop.permute.xlu0 %3098
      %3100 = vrot.lane.b32.xlu0 %v835, 64
      %v3101 = vpop.permute.xlu0 %3100
      %3102 = vrot.lane.b32.xlu0 %v836, 64
      %v3103 = vpop.permute.xlu0 %3102
      %3104 = vrot.lane.b32.xlu0 %v837, 64
      %v3105 = vpop.permute.xlu0 %3104
      %3106 = vrot.lane.b32.xlu0 %v838, 64
      %v3107 = vpop.permute.xlu0 %3106
      %3108 = vrot.lane.b32.xlu0 %v839, 64
      %v3109 = vpop.permute.xlu0 %3108
      %v3126 = vmul.f32 %v1545, %v3079
      %v3127 = vmul.f32 %v1547, %v3081
      %v3128 = vmul.f32 %v1550, %v3083
      %v3129 = vmul.f32 %v1552, %v3085
      %v3130 = vmul.f32 %v1555, %v3087
      %v3131 = vmul.f32 %v1557, %v3089
      %v3132 = vmul.f32 %v1560, %v3091
      %v3133 = vmul.f32 %v1562, %v3093
      %v3134 = vmul.f32 %v1565, %v3095
      %v3135 = vmul.f32 %v1567, %v3097
      %v3136 = vmul.f32 %v1570, %v3099
      %v3137 = vmul.f32 %v1572, %v3101
      %v3138 = vmul.f32 %v1575, %v3103
      %v3139 = vmul.f32 %v1577, %v3105
      %v3140 = vmul.f32 %v1580, %v3107
      %v3141 = vmul.f32 %v1582, %v3109
      %3158 = vrot.lane.b32.xlu0 %v3126, 32
      %v3159 = vpop.permute.xlu0 %3158
      %3160 = vrot.lane.b32.xlu0 %v3127, 32
      %v3161 = vpop.permute.xlu0 %3160
      %3162 = vrot.lane.b32.xlu0 %v3128, 32
      %v3163 = vpop.permute.xlu0 %3162
      %3164 = vrot.lane.b32.xlu0 %v3129, 32
      %v3165 = vpop.permute.xlu0 %3164
      %3166 = vrot.lane.b32.xlu0 %v3130, 32
      %v3167 = vpop.permute.xlu0 %3166
      %3168 = vrot.lane.b32.xlu0 %v3131, 32
      %v3169 = vpop.permute.xlu0 %3168
      %3170 = vrot.lane.b32.xlu0 %v3132, 32
      %v3171 = vpop.permute.xlu0 %3170
      %3172 = vrot.lane.b32.xlu0 %v3133, 32
      %v3173 = vpop.permute.xlu0 %3172
      %3174 = vrot.lane.b32.xlu0 %v3134, 32
      %v3175 = vpop.permute.xlu0 %3174
      %3176 = vrot.lane.b32.xlu0 %v3135, 32
      %v3177 = vpop.permute.xlu0 %3176
      %3178 = vrot.lane.b32.xlu0 %v3136, 32
      %v3179 = vpop.permute.xlu0 %3178
      %3180 = vrot.lane.b32.xlu0 %v3137, 32
      %v3181 = vpop.permute.xlu0 %3180
      %3182 = vrot.lane.b32.xlu0 %v3138, 32
      %v3183 = vpop.permute.xlu0 %3182
      %3184 = vrot.lane.b32.xlu0 %v3139, 32
      %v3185 = vpop.permute.xlu0 %3184
      %3186 = vrot.lane.b32.xlu0 %v3140, 32
      %v3187 = vpop.permute.xlu0 %3186
      %3188 = vrot.lane.b32.xlu0 %v3141, 32
      %v3189 = vpop.permute.xlu0 %3188
      %v3206 = vadd.f32 %v3062, %v3159
      %v3207 = vadd.f32 %v3063, %v3161
      %v3208 = vadd.f32 %v3064, %v3163
      %v3209 = vadd.f32 %v3065, %v3165
      %v3210 = vadd.f32 %v3066, %v3167
      %v3211 = vadd.f32 %v3067, %v3169
      %v3212 = vadd.f32 %v3068, %v3171
      %v3213 = vadd.f32 %v3069, %v3173
      %v3214 = vadd.f32 %v3070, %v3175
      %v3215 = vadd.f32 %v3071, %v3177
      %v3216 = vadd.f32 %v3072, %v3179
      %v3217 = vadd.f32 %v3073, %v3181
      %v3218 = vadd.f32 %v3074, %v3183
      %v3219 = vadd.f32 %v3075, %v3185
      %v3220 = vadd.f32 %v3076, %v3187
      %v3221 = vadd.f32 %v3077, %v3189
      %3238 = vrot.lane.b32.xlu0 %v2998, 64
      %v3239 = vpop.permute.xlu0 %3238
      %3240 = vrot.lane.b32.xlu0 %v2999, 64
      %v3241 = vpop.permute.xlu0 %3240
      %3242 = vrot.lane.b32.xlu0 %v3000, 64
      %v3243 = vpop.permute.xlu0 %3242
      %3244 = vrot.lane.b32.xlu0 %v3001, 64
      %v3245 = vpop.permute.xlu0 %3244
      %3246 = vrot.lane.b32.xlu0 %v3002, 64
      %v3247 = vpop.permute.xlu0 %3246
      %3248 = vrot.lane.b32.xlu0 %v3003, 64
      %v3249 = vpop.permute.xlu0 %3248
      %3250 = vrot.lane.b32.xlu0 %v3004, 64
      %v3251 = vpop.permute.xlu0 %3250
      %3252 = vrot.lane.b32.xlu0 %v3005, 64
      %v3253 = vpop.permute.xlu0 %3252
      %3254 = vrot.lane.b32.xlu0 %v3006, 64
      %v3255 = vpop.permute.xlu0 %3254
      %3256 = vrot.lane.b32.xlu0 %v3007, 64
      %v3257 = vpop.permute.xlu0 %3256
      %3258 = vrot.lane.b32.xlu0 %v3008, 64
      %v3259 = vpop.permute.xlu0 %3258
      %3260 = vrot.lane.b32.xlu0 %v3009, 64
      %v3261 = vpop.permute.xlu0 %3260
      %3262 = vrot.lane.b32.xlu0 %v3010, 64
      %v3263 = vpop.permute.xlu0 %3262
      %3264 = vrot.lane.b32.xlu0 %v3011, 64
      %v3265 = vpop.permute.xlu0 %3264
      %3266 = vrot.lane.b32.xlu0 %v3012, 64
      %v3267 = vpop.permute.xlu0 %3266
      %3268 = vrot.lane.b32.xlu0 %v3013, 64
      %v3269 = vpop.permute.xlu0 %3268
      %3302 = vrot.lane.b32.xlu0 %v3206, 64
      %v3303 = vpop.permute.xlu0 %3302
      %3304 = vrot.lane.b32.xlu0 %v3207, 64
      %v3305 = vpop.permute.xlu0 %3304
      %3306 = vrot.lane.b32.xlu0 %v3208, 64
      %v3307 = vpop.permute.xlu0 %3306
      %3308 = vrot.lane.b32.xlu0 %v3209, 64
      %v3309 = vpop.permute.xlu0 %3308
      %3310 = vrot.lane.b32.xlu0 %v3210, 64
      %v3311 = vpop.permute.xlu0 %3310
      %3312 = vrot.lane.b32.xlu0 %v3211, 64
      %v3313 = vpop.permute.xlu0 %3312
      %3314 = vrot.lane.b32.xlu0 %v3212, 64
      %v3315 = vpop.permute.xlu0 %3314
      %3316 = vrot.lane.b32.xlu0 %v3213, 64
      %v3317 = vpop.permute.xlu0 %3316
      %3318 = vrot.lane.b32.xlu0 %v3214, 64
      %v3319 = vpop.permute.xlu0 %3318
      %3320 = vrot.lane.b32.xlu0 %v3215, 64
      %v3321 = vpop.permute.xlu0 %3320
      %3322 = vrot.lane.b32.xlu0 %v3216, 64
      %v3323 = vpop.permute.xlu0 %3322
      %3324 = vrot.lane.b32.xlu0 %v3217, 64
      %v3325 = vpop.permute.xlu0 %3324
      %3326 = vrot.lane.b32.xlu0 %v3218, 64
      %v3327 = vpop.permute.xlu0 %3326
      %3328 = vrot.lane.b32.xlu0 %v3219, 64
      %v3329 = vpop.permute.xlu0 %3328
      %3330 = vrot.lane.b32.xlu0 %v3220, 64
      %v3331 = vpop.permute.xlu0 %3330
      %3332 = vrot.lane.b32.xlu0 %v3221, 64
      %v3333 = vpop.permute.xlu0 %3332
      %v3350 = vsel %vm2226, %v3239, %v3303
      %v3351 = vsel %vm2226, %v3241, %v3305
      %v3352 = vsel %vm2226, %v3243, %v3307
      %v3353 = vsel %vm2226, %v3245, %v3309
      %v3354 = vsel %vm2226, %v3247, %v3311
      %v3355 = vsel %vm2226, %v3249, %v3313
      %v3356 = vsel %vm2226, %v3251, %v3315
      %v3357 = vsel %vm2226, %v3253, %v3317
      %v3358 = vsel %vm2226, %v3255, %v3319
      %v3359 = vsel %vm2226, %v3257, %v3321
      %v3360 = vsel %vm2226, %v3259, %v3323
      %v3361 = vsel %vm2226, %v3261, %v3325
      %v3362 = vsel %vm2226, %v3263, %v3327
      %v3363 = vsel %vm2226, %v3265, %v3329
      %v3364 = vsel %vm2226, %v3267, %v3331
      %v3365 = vsel %vm2226, %v3269, %v3333
      %v3366 = vpack.c.bf16 %v3351, %v3350
      %v3367 = vpack.c.bf16 %v3353, %v3352
      %v3368 = vpack.c.bf16 %v3355, %v3354
      %v3369 = vpack.c.bf16 %v3357, %v3356
      %v3370 = vpack.c.bf16 %v3359, %v3358
      %v3371 = vpack.c.bf16 %v3361, %v3360
      %v3372 = vpack.c.bf16 %v3363, %v3362
      %v3373 = vpack.c.bf16 %v3365, %v3364
      %v3374 = vmul.f32 %v1634, %v2807
      %v3375 = vmul.f32 %v1636, %v2809
      %v3376 = vmul.f32 %v1639, %v2811
      %v3377 = vmul.f32 %v1641, %v2813
      %v3378 = vmul.f32 %v1644, %v2815
      %v3379 = vmul.f32 %v1646, %v2817
      %v3380 = vmul.f32 %v1649, %v2819
      %v3381 = vmul.f32 %v1651, %v2821
      %v3382 = vmul.f32 %v1654, %v2823
      %v3383 = vmul.f32 %v1656, %v2825
      %v3384 = vmul.f32 %v1659, %v2827
      %v3385 = vmul.f32 %v1661, %v2829
      %v3386 = vmul.f32 %v1664, %v2831
      %v3387 = vmul.f32 %v1666, %v2833
      %v3388 = vmul.f32 %v1669, %v2835
      %v3389 = vmul.f32 %v1671, %v2837
      %v3390 = vmul.f32 %v1634, %v2871
      %v3391 = vmul.f32 %v1636, %v2873
      %v3392 = vmul.f32 %v1639, %v2875
      %v3393 = vmul.f32 %v1641, %v2877
      %v3394 = vmul.f32 %v1644, %v2879
      %v3395 = vmul.f32 %v1646, %v2881
      %v3396 = vmul.f32 %v1649, %v2883
      %v3397 = vmul.f32 %v1651, %v2885
      %v3398 = vmul.f32 %v1654, %v2887
      %v3399 = vmul.f32 %v1656, %v2889
      %v3400 = vmul.f32 %v1659, %v2891
      %v3401 = vmul.f32 %v1661, %v2893
      %v3402 = vmul.f32 %v1664, %v2895
      %v3403 = vmul.f32 %v1666, %v2897
      %v3404 = vmul.f32 %v1669, %v2899
      %v3405 = vmul.f32 %v1671, %v2901
      %3422 = vrot.lane.b32.xlu0 %v3390, 96
      %v3423 = vpop.permute.xlu0 %3422
      %3424 = vrot.lane.b32.xlu0 %v3391, 96
      %v3425 = vpop.permute.xlu0 %3424
      %3426 = vrot.lane.b32.xlu0 %v3392, 96
      %v3427 = vpop.permute.xlu0 %3426
      %3428 = vrot.lane.b32.xlu0 %v3393, 96
      %v3429 = vpop.permute.xlu0 %3428
      %3430 = vrot.lane.b32.xlu0 %v3394, 96
      %v3431 = vpop.permute.xlu0 %3430
      %3432 = vrot.lane.b32.xlu0 %v3395, 96
      %v3433 = vpop.permute.xlu0 %3432
      %3434 = vrot.lane.b32.xlu0 %v3396, 96
      %v3435 = vpop.permute.xlu0 %3434
      %3436 = vrot.lane.b32.xlu0 %v3397, 96
      %v3437 = vpop.permute.xlu0 %3436
      %3438 = vrot.lane.b32.xlu0 %v3398, 96
      %v3439 = vpop.permute.xlu0 %3438
      %3440 = vrot.lane.b32.xlu0 %v3399, 96
      %v3441 = vpop.permute.xlu0 %3440
      %3442 = vrot.lane.b32.xlu0 %v3400, 96
      %v3443 = vpop.permute.xlu0 %3442
      %3444 = vrot.lane.b32.xlu0 %v3401, 96
      %v3445 = vpop.permute.xlu0 %3444
      %3446 = vrot.lane.b32.xlu0 %v3402, 96
      %v3447 = vpop.permute.xlu0 %3446
      %3448 = vrot.lane.b32.xlu0 %v3403, 96
      %v3449 = vpop.permute.xlu0 %3448
      %3450 = vrot.lane.b32.xlu0 %v3404, 96
      %v3451 = vpop.permute.xlu0 %3450
      %3452 = vrot.lane.b32.xlu0 %v3405, 96
      %v3453 = vpop.permute.xlu0 %3452
      %v3470 = vsub.f32 %v3374, %v3423
      %v3471 = vsub.f32 %v3375, %v3425
      %v3472 = vsub.f32 %v3376, %v3427
      %v3473 = vsub.f32 %v3377, %v3429
      %v3474 = vsub.f32 %v3378, %v3431
      %v3475 = vsub.f32 %v3379, %v3433
      %v3476 = vsub.f32 %v3380, %v3435
      %v3477 = vsub.f32 %v3381, %v3437
      %v3478 = vsub.f32 %v3382, %v3439
      %v3479 = vsub.f32 %v3383, %v3441
      %v3480 = vsub.f32 %v3384, %v3443
      %v3481 = vsub.f32 %v3385, %v3445
      %v3482 = vsub.f32 %v3386, %v3447
      %v3483 = vsub.f32 %v3387, %v3449
      %v3484 = vsub.f32 %v3388, %v3451
      %v3485 = vsub.f32 %v3389, %v3453
      %v3486 = vmul.f32 %v1634, %v3015
      %v3487 = vmul.f32 %v1636, %v3017
      %v3488 = vmul.f32 %v1639, %v3019
      %v3489 = vmul.f32 %v1641, %v3021
      %v3490 = vmul.f32 %v1644, %v3023
      %v3491 = vmul.f32 %v1646, %v3025
      %v3492 = vmul.f32 %v1649, %v3027
      %v3493 = vmul.f32 %v1651, %v3029
      %v3494 = vmul.f32 %v1654, %v3031
      %v3495 = vmul.f32 %v1656, %v3033
      %v3496 = vmul.f32 %v1659, %v3035
      %v3497 = vmul.f32 %v1661, %v3037
      %v3498 = vmul.f32 %v1664, %v3039
      %v3499 = vmul.f32 %v1666, %v3041
      %v3500 = vmul.f32 %v1669, %v3043
      %v3501 = vmul.f32 %v1671, %v3045
      %v3502 = vmul.f32 %v1634, %v3079
      %v3503 = vmul.f32 %v1636, %v3081
      %v3504 = vmul.f32 %v1639, %v3083
      %v3505 = vmul.f32 %v1641, %v3085
      %v3506 = vmul.f32 %v1644, %v3087
      %v3507 = vmul.f32 %v1646, %v3089
      %v3508 = vmul.f32 %v1649, %v3091
      %v3509 = vmul.f32 %v1651, %v3093
      %v3510 = vmul.f32 %v1654, %v3095
      %v3511 = vmul.f32 %v1656, %v3097
      %v3512 = vmul.f32 %v1659, %v3099
      %v3513 = vmul.f32 %v1661, %v3101
      %v3514 = vmul.f32 %v1664, %v3103
      %v3515 = vmul.f32 %v1666, %v3105
      %v3516 = vmul.f32 %v1669, %v3107
      %v3517 = vmul.f32 %v1671, %v3109
      %3534 = vrot.lane.b32.xlu0 %v3502, 32
      %v3535 = vpop.permute.xlu0 %3534
      %3536 = vrot.lane.b32.xlu0 %v3503, 32
      %v3537 = vpop.permute.xlu0 %3536
      %3538 = vrot.lane.b32.xlu0 %v3504, 32
      %v3539 = vpop.permute.xlu0 %3538
      %3540 = vrot.lane.b32.xlu0 %v3505, 32
      %v3541 = vpop.permute.xlu0 %3540
      %3542 = vrot.lane.b32.xlu0 %v3506, 32
      %v3543 = vpop.permute.xlu0 %3542
      %3544 = vrot.lane.b32.xlu0 %v3507, 32
      %v3545 = vpop.permute.xlu0 %3544
      %3546 = vrot.lane.b32.xlu0 %v3508, 32
      %v3547 = vpop.permute.xlu0 %3546
      %3548 = vrot.lane.b32.xlu0 %v3509, 32
      %v3549 = vpop.permute.xlu0 %3548
      %3550 = vrot.lane.b32.xlu0 %v3510, 32
      %v3551 = vpop.permute.xlu0 %3550
      %3552 = vrot.lane.b32.xlu0 %v3511, 32
      %v3553 = vpop.permute.xlu0 %3552
      %3554 = vrot.lane.b32.xlu0 %v3512, 32
      %v3555 = vpop.permute.xlu0 %3554
      %3556 = vrot.lane.b32.xlu0 %v3513, 32
      %v3557 = vpop.permute.xlu0 %3556
      %3558 = vrot.lane.b32.xlu0 %v3514, 32
      %v3559 = vpop.permute.xlu0 %3558
      %3560 = vrot.lane.b32.xlu0 %v3515, 32
      %v3561 = vpop.permute.xlu0 %3560
      %3562 = vrot.lane.b32.xlu0 %v3516, 32
      %v3563 = vpop.permute.xlu0 %3562
      %3564 = vrot.lane.b32.xlu0 %v3517, 32
      %v3565 = vpop.permute.xlu0 %3564
      %v3582 = vadd.f32 %v3486, %v3535
      %v3583 = vadd.f32 %v3487, %v3537
      %v3584 = vadd.f32 %v3488, %v3539
      %v3585 = vadd.f32 %v3489, %v3541
      %v3586 = vadd.f32 %v3490, %v3543
      %v3587 = vadd.f32 %v3491, %v3545
      %v3588 = vadd.f32 %v3492, %v3547
      %v3589 = vadd.f32 %v3493, %v3549
      %v3590 = vadd.f32 %v3494, %v3551
      %v3591 = vadd.f32 %v3495, %v3553
      %v3592 = vadd.f32 %v3496, %v3555
      %v3593 = vadd.f32 %v3497, %v3557
      %v3594 = vadd.f32 %v3498, %v3559
      %v3595 = vadd.f32 %v3499, %v3561
      %v3596 = vadd.f32 %v3500, %v3563
      %v3597 = vadd.f32 %v3501, %v3565
      %3614 = vrot.lane.b32.xlu0 %v3470, 64
      %v3615 = vpop.permute.xlu0 %3614
      %3616 = vrot.lane.b32.xlu0 %v3471, 64
      %v3617 = vpop.permute.xlu0 %3616
      %3618 = vrot.lane.b32.xlu0 %v3472, 64
      %v3619 = vpop.permute.xlu0 %3618
      %3620 = vrot.lane.b32.xlu0 %v3473, 64
      %v3621 = vpop.permute.xlu0 %3620
      %3622 = vrot.lane.b32.xlu0 %v3474, 64
      %v3623 = vpop.permute.xlu0 %3622
      %3624 = vrot.lane.b32.xlu0 %v3475, 64
      %v3625 = vpop.permute.xlu0 %3624
      %3626 = vrot.lane.b32.xlu0 %v3476, 64
      %v3627 = vpop.permute.xlu0 %3626
      %3628 = vrot.lane.b32.xlu0 %v3477, 64
      %v3629 = vpop.permute.xlu0 %3628
      %3630 = vrot.lane.b32.xlu0 %v3478, 64
      %v3631 = vpop.permute.xlu0 %3630
      %3632 = vrot.lane.b32.xlu0 %v3479, 64
      %v3633 = vpop.permute.xlu0 %3632
      %3634 = vrot.lane.b32.xlu0 %v3480, 64
      %v3635 = vpop.permute.xlu0 %3634
      %3636 = vrot.lane.b32.xlu0 %v3481, 64
      %v3637 = vpop.permute.xlu0 %3636
      %3638 = vrot.lane.b32.xlu0 %v3482, 64
      %v3639 = vpop.permute.xlu0 %3638
      %3640 = vrot.lane.b32.xlu0 %v3483, 64
      %v3641 = vpop.permute.xlu0 %3640
      %3642 = vrot.lane.b32.xlu0 %v3484, 64
      %v3643 = vpop.permute.xlu0 %3642
      %3644 = vrot.lane.b32.xlu0 %v3485, 64
      %v3645 = vpop.permute.xlu0 %3644
      %3678 = vrot.lane.b32.xlu0 %v3582, 64
      %v3679 = vpop.permute.xlu0 %3678
      %3680 = vrot.lane.b32.xlu0 %v3583, 64
      %v3681 = vpop.permute.xlu0 %3680
      %3682 = vrot.lane.b32.xlu0 %v3584, 64
      %v3683 = vpop.permute.xlu0 %3682
      %3684 = vrot.lane.b32.xlu0 %v3585, 64
      %v3685 = vpop.permute.xlu0 %3684
      %3686 = vrot.lane.b32.xlu0 %v3586, 64
      %v3687 = vpop.permute.xlu0 %3686
      %3688 = vrot.lane.b32.xlu0 %v3587, 64
      %v3689 = vpop.permute.xlu0 %3688
      %3690 = vrot.lane.b32.xlu0 %v3588, 64
      %v3691 = vpop.permute.xlu0 %3690
      %3692 = vrot.lane.b32.xlu0 %v3589, 64
      %v3693 = vpop.permute.xlu0 %3692
      %3694 = vrot.lane.b32.xlu0 %v3590, 64
      %v3695 = vpop.permute.xlu0 %3694
      %3696 = vrot.lane.b32.xlu0 %v3591, 64
      %v3697 = vpop.permute.xlu0 %3696
      %3698 = vrot.lane.b32.xlu0 %v3592, 64
      %v3699 = vpop.permute.xlu0 %3698
      %3700 = vrot.lane.b32.xlu0 %v3593, 64
      %v3701 = vpop.permute.xlu0 %3700
      %3702 = vrot.lane.b32.xlu0 %v3594, 64
      %v3703 = vpop.permute.xlu0 %3702
      %3704 = vrot.lane.b32.xlu0 %v3595, 64
      %v3705 = vpop.permute.xlu0 %3704
      %3706 = vrot.lane.b32.xlu0 %v3596, 64
      %v3707 = vpop.permute.xlu0 %3706
      %3708 = vrot.lane.b32.xlu0 %v3597, 64
      %v3709 = vpop.permute.xlu0 %3708
      %v3726 = vsel %vm2226, %v3615, %v3679
      %v3727 = vsel %vm2226, %v3617, %v3681
      %v3728 = vsel %vm2226, %v3619, %v3683
      %v3729 = vsel %vm2226, %v3621, %v3685
      %v3730 = vsel %vm2226, %v3623, %v3687
      %v3731 = vsel %vm2226, %v3625, %v3689
      %v3732 = vsel %vm2226, %v3627, %v3691
      %v3733 = vsel %vm2226, %v3629, %v3693
      %v3734 = vsel %vm2226, %v3631, %v3695
      %v3735 = vsel %vm2226, %v3633, %v3697
      %v3736 = vsel %vm2226, %v3635, %v3699
      %v3737 = vsel %vm2226, %v3637, %v3701
      %v3738 = vsel %vm2226, %v3639, %v3703
      %v3739 = vsel %vm2226, %v3641, %v3705
      %v3740 = vsel %vm2226, %v3643, %v3707
      %v3741 = vsel %vm2226, %v3645, %v3709
      %v3742 = vpack.c.bf16 %v3727, %v3726
      %v3743 = vpack.c.bf16 %v3729, %v3728
      %v3744 = vpack.c.bf16 %v3731, %v3730
      %v3745 = vpack.c.bf16 %v3733, %v3732
      %v3746 = vpack.c.bf16 %v3735, %v3734
      %v3747 = vpack.c.bf16 %v3737, %v3736
      %v3748 = vpack.c.bf16 %v3739, %v3738
      %v3749 = vpack.c.bf16 %v3741, %v3740
      %v3751 = vsel %vm2507, %v3366, 0
      %v3754 = vsel %vm2507, %v3367, 0
      %v3757 = vsel %vm2507, %v3368, 0
      %v3760 = vsel %vm2507, %v3369, 0
      %v3763 = vsel %vm2507, %v3370, 0
      %v3766 = vsel %vm2507, %v3371, 0
      %v3769 = vsel %vm2507, %v3372, 0
      %v3772 = vsel %vm2507, %v3373, 0
      %v3775 = vsel %vm2507, %v3742, 0
      %v3778 = vsel %vm2507, %v3743, 0
      %v3781 = vsel %vm2507, %v3744, 0
      %v3784 = vsel %vm2507, %v3745, 0
      %v3787 = vsel %vm2507, %v3746, 0
      %v3790 = vsel %vm2507, %v3747, 0
      %v3793 = vsel %vm2507, %v3748, 0
      %v3796 = vsel %vm2507, %v3749, 0
      %3798 = vmatpush.bf16.xpose.msra.mxu0 %v3796
      %3799 = vmatpush.bf16.xpose.msra.mxu0 %v3793
      %3800 = vmatpush.bf16.xpose.msra.mxu0 %v3790
      %3801 = vmatpush.bf16.xpose.msra.mxu0 %v3787
      %3802 = vmatpush.bf16.xpose.msra.mxu0 %v3784
      %3803 = vmatpush.bf16.xpose.msra.mxu0 %v3781
      %3804 = vmatpush.bf16.xpose.msra.mxu0 %v3778
      %3805 = vmatpush.bf16.xpose.msra.mxu0 %v3775
      %3806 = vmatmul.bf16.gmra.mxu0 %v3751
      %v3807 = vpop.f32.mrf.mxu0
      %v3808 = vadd.f32 %v1858, %v3807
      %v3809 = vpop.f32.mrf.mxu0
      %v3810 = vadd.f32 %v1859, %v3809
      %3811 = vmatmul.bf16.gmra.mxu0 %v3754
      %v3812 = vpop.f32.mrf.mxu0
      %v3813 = vadd.f32 %v1860, %v3812
      %v3814 = vpop.f32.mrf.mxu0
      %v3815 = vadd.f32 %v1861, %v3814
      %3816 = vmatmul.bf16.gmra.mxu0 %v3757
      %v3817 = vpop.f32.mrf.mxu0
      %v3818 = vadd.f32 %v1862, %v3817
      %v3819 = vpop.f32.mrf.mxu0
      %v3820 = vadd.f32 %v1863, %v3819
      %3821 = vmatmul.bf16.gmra.mxu0 %v3760
      %v3822 = vpop.f32.mrf.mxu0
      %v3823 = vadd.f32 %v1864, %v3822
      %v3824 = vpop.f32.mrf.mxu0
      %v3825 = vadd.f32 %v1865, %v3824
      %3826 = vmatmul.bf16.gmra.mxu0 %v3763
      %v3827 = vpop.f32.mrf.mxu0
      %v3828 = vadd.f32 %v1866, %v3827
      %v3829 = vpop.f32.mrf.mxu0
      %v3830 = vadd.f32 %v1867, %v3829
      %3831 = vmatmul.bf16.gmra.mxu0 %v3766
      %v3832 = vpop.f32.mrf.mxu0
      %v3833 = vadd.f32 %v1868, %v3832
      %v3834 = vpop.f32.mrf.mxu0
      %v3835 = vadd.f32 %v1869, %v3834
      %3836 = vmatmul.bf16.gmra.mxu0 %v3769
      %v3837 = vpop.f32.mrf.mxu0
      %v3838 = vadd.f32 %v1870, %v3837
      %v3839 = vpop.f32.mrf.mxu0
      %v3840 = vadd.f32 %v1871, %v3839
      %3841 = vmatmul.bf16.gmra.mxu0 %v3772
      %v3842 = vpop.f32.mrf.mxu0
      %v3843 = vadd.f32 %v1872, %v3842
      %v3844 = vpop.f32.mrf.mxu0
      %v3845 = vadd.f32 %v1873, %v3844
      %3846 = vdwg.mxu0
      %3847 = vmax.xlane.f32.xlu0 %v3808
      %v3848 = vpop.xlane.xlu0 %3847
      %3849 = vmax.xlane.f32.xlu0 %v3810
      %v3850 = vpop.xlane.xlu0 %3849
      %3851 = vmax.xlane.f32.xlu0 %v3813
      %v3852 = vpop.xlane.xlu0 %3851
      %3853 = vmax.xlane.f32.xlu0 %v3815
      %v3854 = vpop.xlane.xlu0 %3853
      %3855 = vmax.xlane.f32.xlu0 %v3818
      %v3856 = vpop.xlane.xlu0 %3855
      %3857 = vmax.xlane.f32.xlu0 %v3820
      %v3858 = vpop.xlane.xlu0 %3857
      %3859 = vmax.xlane.f32.xlu0 %v3823
      %v3860 = vpop.xlane.xlu0 %3859
      %3861 = vmax.xlane.f32.xlu0 %v3825
      %v3862 = vpop.xlane.xlu0 %3861
      %3863 = vmax.xlane.f32.xlu0 %v3828
      %v3864 = vpop.xlane.xlu0 %3863
      %3865 = vmax.xlane.f32.xlu0 %v3830
      %v3866 = vpop.xlane.xlu0 %3865
      %3867 = vmax.xlane.f32.xlu0 %v3833
      %v3868 = vpop.xlane.xlu0 %3867
      %3869 = vmax.xlane.f32.xlu0 %v3835
      %v3870 = vpop.xlane.xlu0 %3869
      %3871 = vmax.xlane.f32.xlu0 %v3838
      %v3872 = vpop.xlane.xlu0 %3871
      %3873 = vmax.xlane.f32.xlu0 %v3840
      %v3874 = vpop.xlane.xlu0 %3873
      %3875 = vmax.xlane.f32.xlu0 %v3843
      %v3876 = vpop.xlane.xlu0 %3875
      %3877 = vmax.xlane.f32.xlu0 %v3845
      %v3878 = vpop.xlane.xlu0 %3877
      %v3879 = vsub.f32 %v3808, %v3848
      %v3880 = vsub.f32 %v3810, %v3850
      %v3881 = vsub.f32 %v3813, %v3852
      %v3882 = vsub.f32 %v3815, %v3854
      %v3883 = vsub.f32 %v3818, %v3856
      %v3884 = vsub.f32 %v3820, %v3858
      %v3885 = vsub.f32 %v3823, %v3860
      %v3886 = vsub.f32 %v3825, %v3862
      %v3887 = vsub.f32 %v3828, %v3864
      %v3888 = vsub.f32 %v3830, %v3866
      %v3889 = vsub.f32 %v3833, %v3868
      %v3890 = vsub.f32 %v3835, %v3870
      %v3891 = vsub.f32 %v3838, %v3872
      %v3892 = vsub.f32 %v3840, %v3874
      %v3893 = vsub.f32 %v3843, %v3876
      %v3894 = vsub.f32 %v3845, %v3878
      %v3895 = vmul.f32 %v3879, 1.442695
      %v3896 = vpow.pop %v3895
      %v3897 = vmul.f32 %v3880, 1.442695
      %v3898 = vpow.pop %v3897
      %v3899 = vmul.f32 %v3881, 1.442695
      %v3900 = vpow.pop %v3899
      %v3901 = vmul.f32 %v3882, 1.442695
      %v3902 = vpow.pop %v3901
      %v3903 = vmul.f32 %v3883, 1.442695
      %v3904 = vpow.pop %v3903
      %v3905 = vmul.f32 %v3884, 1.442695
      %v3906 = vpow.pop %v3905
      %v3907 = vmul.f32 %v3885, 1.442695
      %v3908 = vpow.pop %v3907
      %v3909 = vmul.f32 %v3886, 1.442695
      %v3910 = vpow.pop %v3909
      %v3911 = vmul.f32 %v3887, 1.442695
      %v3912 = vpow.pop %v3911
      %v3913 = vmul.f32 %v3888, 1.442695
      %v3914 = vpow.pop %v3913
      %v3915 = vmul.f32 %v3889, 1.442695
      %v3916 = vpow.pop %v3915
      %v3917 = vmul.f32 %v3890, 1.442695
      %v3918 = vpow.pop %v3917
      %v3919 = vmul.f32 %v3891, 1.442695
      %v3920 = vpow.pop %v3919
      %v3921 = vmul.f32 %v3892, 1.442695
      %v3922 = vpow.pop %v3921
      %v3923 = vmul.f32 %v3893, 1.442695
      %v3924 = vpow.pop %v3923
      %v3925 = vmul.f32 %v3894, 1.442695
      %v3926 = vpow.pop %v3925
      %3927 = vadd.xlane.f32.xlu0 %v3896
      %v3928 = vpop.xlane.xlu0 %3927
      %3929 = vadd.xlane.f32.xlu0 %v3898
      %v3930 = vpop.xlane.xlu0 %3929
      %3931 = vadd.xlane.f32.xlu0 %v3900
      %v3932 = vpop.xlane.xlu0 %3931
      %3933 = vadd.xlane.f32.xlu0 %v3902
      %v3934 = vpop.xlane.xlu0 %3933
      %3935 = vadd.xlane.f32.xlu0 %v3904
      %v3936 = vpop.xlane.xlu0 %3935
      %3937 = vadd.xlane.f32.xlu0 %v3906
      %v3938 = vpop.xlane.xlu0 %3937
      %3939 = vadd.xlane.f32.xlu0 %v3908
      %v3940 = vpop.xlane.xlu0 %3939
      %3941 = vadd.xlane.f32.xlu0 %v3910
      %v3942 = vpop.xlane.xlu0 %3941
      %3943 = vadd.xlane.f32.xlu0 %v3912
      %v3944 = vpop.xlane.xlu0 %3943
      %3945 = vadd.xlane.f32.xlu0 %v3914
      %v3946 = vpop.xlane.xlu0 %3945
      %3947 = vadd.xlane.f32.xlu0 %v3916
      %v3948 = vpop.xlane.xlu0 %3947
      %3949 = vadd.xlane.f32.xlu0 %v3918
      %v3950 = vpop.xlane.xlu0 %3949
      %3951 = vadd.xlane.f32.xlu0 %v3920
      %v3952 = vpop.xlane.xlu0 %3951
      %3953 = vadd.xlane.f32.xlu0 %v3922
      %v3954 = vpop.xlane.xlu0 %3953
      %3955 = vadd.xlane.f32.xlu0 %v3924
      %v3956 = vpop.xlane.xlu0 %3955
      %3957 = vadd.xlane.f32.xlu0 %v3926
      %v3958 = vpop.xlane.xlu0 %3957
      %v3959 = vrcp.pop %v3928
      %v3960 = vrcp.pop %v3930
      %v3961 = vrcp.pop %v3932
      %v3962 = vrcp.pop %v3934
      %v3963 = vrcp.pop %v3936
      %v3964 = vrcp.pop %v3938
      %v3965 = vrcp.pop %v3940
      %v3966 = vrcp.pop %v3942
      %v3967 = vrcp.pop %v3944
      %v3968 = vrcp.pop %v3946
      %v3969 = vrcp.pop %v3948
      %v3970 = vrcp.pop %v3950
      %v3971 = vrcp.pop %v3952
      %v3972 = vrcp.pop %v3954
      %v3973 = vrcp.pop %v3956
      %v3974 = vrcp.pop %v3958
      %v3975 = vmul.f32 %v3896, %v3959
      %v3976 = vmul.f32 %v3898, %v3960
      %v3977 = vmul.f32 %v3900, %v3961
      %v3978 = vmul.f32 %v3902, %v3962
      %v3979 = vmul.f32 %v3904, %v3963
      %v3980 = vmul.f32 %v3906, %v3964
      %v3981 = vmul.f32 %v3908, %v3965
      %v3982 = vmul.f32 %v3910, %v3966
      %v3983 = vmul.f32 %v3912, %v3967
      %v3984 = vmul.f32 %v3914, %v3968
      %v3985 = vmul.f32 %v3916, %v3969
      %v3986 = vmul.f32 %v3918, %v3970
      %v3987 = vmul.f32 %v3920, %v3971
      %v3988 = vmul.f32 %v3922, %v3972
      %v3989 = vmul.f32 %v3924, %v3973
      %v3990 = vmul.f32 %v3926, %v3974
      %v3991 = vpack.c.bf16 %v3976, %v3975
      %v3992 = vpack.c.bf16 %v3978, %v3977
      %v3993 = vpack.c.bf16 %v3980, %v3979
      %v3994 = vpack.c.bf16 %v3982, %v3981
      %v3995 = vpack.c.bf16 %v3984, %v3983
      %v3996 = vpack.c.bf16 %v3986, %v3985
      %v3997 = vpack.c.bf16 %v3988, %v3987
      %v3998 = vpack.c.bf16 %v3990, %v3989
      %4007 = vrot.lane.b32.xlu0 %v2499, 64
      %v4008 = vpop.permute.xlu0 %4007
      %4009 = vrot.lane.b32.xlu0 %v2500, 64
      %v4010 = vpop.permute.xlu0 %4009
      %4011 = vrot.lane.b32.xlu0 %v2501, 64
      %v4012 = vpop.permute.xlu0 %4011
      %4013 = vrot.lane.b32.xlu0 %v2502, 64
      %v4014 = vpop.permute.xlu0 %4013
      %4015 = vrot.lane.b32.xlu0 %v2503, 64
      %v4016 = vpop.permute.xlu0 %4015
      %4017 = vrot.lane.b32.xlu0 %v2504, 64
      %v4018 = vpop.permute.xlu0 %4017
      %4019 = vrot.lane.b32.xlu0 %v2505, 64
      %v4020 = vpop.permute.xlu0 %4019
      %4021 = vrot.lane.b32.xlu0 %v2506, 64
      %v4022 = vpop.permute.xlu0 %4021
      %4031 = vmatpush.bf16.msra.mxu0 %v4022
      %4032 = vmatpush.bf16.msra.mxu0 %v4020
      %4033 = vmatpush.bf16.msra.mxu0 %v4018
      %4034 = vmatpush.bf16.msra.mxu0 %v4016
      %4035 = vmatpush.bf16.msra.mxu0 %v4014
      %4036 = vmatpush.bf16.msra.mxu0 %v4012
      %4037 = vmatpush.bf16.msra.mxu0 %v4010
      %4038 = vmatpush.bf16.msra.mxu0 %v4008
      %4039 = vmatmul.bf16.gmra.mxu0 %v3991
      %v4040 = vpop.f32.mrf.mxu0
      %v4041 = vadd.f32 0.0, %v4040
      %v4042 = vpop.f32.mrf.mxu0
      %v4043 = vadd.f32 0.0, %v4042
      %4044 = vmatmul.bf16.gmra.mxu0 %v3992
      %v4045 = vpop.f32.mrf.mxu0
      %v4046 = vadd.f32 0.0, %v4045
      %v4047 = vpop.f32.mrf.mxu0
      %v4048 = vadd.f32 0.0, %v4047
      %4049 = vmatmul.bf16.gmra.mxu0 %v3993
      %v4050 = vpop.f32.mrf.mxu0
      %v4051 = vadd.f32 0.0, %v4050
      %v4052 = vpop.f32.mrf.mxu0
      %v4053 = vadd.f32 0.0, %v4052
      %4054 = vmatmul.bf16.gmra.mxu0 %v3994
      %v4055 = vpop.f32.mrf.mxu0
      %v4056 = vadd.f32 0.0, %v4055
      %v4057 = vpop.f32.mrf.mxu0
      %v4058 = vadd.f32 0.0, %v4057
      %4059 = vmatmul.bf16.gmra.mxu0 %v3995
      %v4060 = vpop.f32.mrf.mxu0
      %v4061 = vadd.f32 0.0, %v4060
      %v4062 = vpop.f32.mrf.mxu0
      %v4063 = vadd.f32 0.0, %v4062
      %4064 = vmatmul.bf16.gmra.mxu0 %v3996
      %v4065 = vpop.f32.mrf.mxu0
      %v4066 = vadd.f32 0.0, %v4065
      %v4067 = vpop.f32.mrf.mxu0
      %v4068 = vadd.f32 0.0, %v4067
      %4069 = vmatmul.bf16.gmra.mxu0 %v3997
      %v4070 = vpop.f32.mrf.mxu0
      %v4071 = vadd.f32 0.0, %v4070
      %v4072 = vpop.f32.mrf.mxu0
      %v4073 = vadd.f32 0.0, %v4072
      %4074 = vmatmul.bf16.gmra.mxu0 %v3998
      %v4075 = vpop.f32.mrf.mxu0
      %v4076 = vadd.f32 0.0, %v4075
      %v4077 = vpop.f32.mrf.mxu0
      %v4078 = vadd.f32 0.0, %v4077
      %4079 = vdwg.mxu0
      %4096 = vrot.lane.b32.xlu0 %v4041, 64
      %v4097 = vpop.permute.xlu0 %4096
      %4098 = vrot.lane.b32.xlu0 %v4043, 64
      %v4099 = vpop.permute.xlu0 %4098
      %4100 = vrot.lane.b32.xlu0 %v4046, 64
      %v4101 = vpop.permute.xlu0 %4100
      %4102 = vrot.lane.b32.xlu0 %v4048, 64
      %v4103 = vpop.permute.xlu0 %4102
      %4104 = vrot.lane.b32.xlu0 %v4051, 64
      %v4105 = vpop.permute.xlu0 %4104
      %4106 = vrot.lane.b32.xlu0 %v4053, 64
      %v4107 = vpop.permute.xlu0 %4106
      %4108 = vrot.lane.b32.xlu0 %v4056, 64
      %v4109 = vpop.permute.xlu0 %4108
      %4110 = vrot.lane.b32.xlu0 %v4058, 64
      %v4111 = vpop.permute.xlu0 %4110
      %4112 = vrot.lane.b32.xlu0 %v4061, 64
      %v4113 = vpop.permute.xlu0 %4112
      %4114 = vrot.lane.b32.xlu0 %v4063, 64
      %v4115 = vpop.permute.xlu0 %4114
      %4116 = vrot.lane.b32.xlu0 %v4066, 64
      %v4117 = vpop.permute.xlu0 %4116
      %4118 = vrot.lane.b32.xlu0 %v4068, 64
      %v4119 = vpop.permute.xlu0 %4118
      %4120 = vrot.lane.b32.xlu0 %v4071, 64
      %v4121 = vpop.permute.xlu0 %4120
      %4122 = vrot.lane.b32.xlu0 %v4073, 64
      %v4123 = vpop.permute.xlu0 %4122
      %4124 = vrot.lane.b32.xlu0 %v4076, 64
      %v4125 = vpop.permute.xlu0 %4124
      %4126 = vrot.lane.b32.xlu0 %v4078, 64
      %v4127 = vpop.permute.xlu0 %4126
      %v4144 = vsel %vm2507, %v2767, %v4097
      %v4145 = vsel %vm2507, %v2769, %v4099
      %v4146 = vsel %vm2507, %v2772, %v4101
      %v4147 = vsel %vm2507, %v2774, %v4103
      %v4148 = vsel %vm2507, %v2777, %v4105
      %v4149 = vsel %vm2507, %v2779, %v4107
      %v4150 = vsel %vm2507, %v2782, %v4109
      %v4151 = vsel %vm2507, %v2784, %v4111
      %v4152 = vsel %vm2507, %v2787, %v4113
      %v4153 = vsel %vm2507, %v2789, %v4115
      %v4154 = vsel %vm2507, %v2792, %v4117
      %v4155 = vsel %vm2507, %v2794, %v4119
      %v4156 = vsel %vm2507, %v2797, %v4121
      %v4157 = vsel %vm2507, %v2799, %v4123
      %v4158 = vsel %vm2507, %v2802, %v4125
      %v4159 = vsel %vm2507, %v2804, %v4127
      %s4160 = scalar_lea.vmem %s504, 1
      %v4161 = vld [vmem:[%s4160] sm:$0x1]
      %vm4162 = vcmp.gt.f32.partialorder %v4161, 0.5
      %v4163 = vsel %vm4162, 1, 0
      %v4164 = vperm.slane %v4163, 0
      %vm4165 = vcmp.eq.s32.totalorder %v4164, 1
      %vm4166 = vmand %vm1821, %vm4165
      %vm4167 = vmand %vm1822, %vm4165
      %vm4168 = vmand %vm1823, %vm4165
      %vm4169 = vmand %vm1824, %vm4165
      %vm4170 = vmand %vm1825, %vm4165
      %vm4171 = vmand %vm1826, %vm4165
      %vm4172 = vmand %vm1827, %vm4165
      %vm4173 = vmand %vm1828, %vm4165
      %vm4174 = vmand %vm1829, %vm4165
      %vm4175 = vmand %vm1830, %vm4165
      %vm4176 = vmand %vm1831, %vm4165
      %vm4177 = vmand %vm1832, %vm4165
      %vm4178 = vmand %vm1833, %vm4165
      %vm4179 = vmand %vm1834, %vm4165
      %vm4180 = vmand %vm1835, %vm4165
      %vm4181 = vmand %vm1836, %vm4165
      %v4182 = vsel %vm4166, 0.0, -1e+30
      %v4183 = vsel %vm4167, 0.0, -1e+30
      %v4184 = vsel %vm4168, 0.0, -1e+30
      %v4185 = vsel %vm4169, 0.0, -1e+30
      %v4186 = vsel %vm4170, 0.0, -1e+30
      %v4187 = vsel %vm4171, 0.0, -1e+30
      %v4188 = vsel %vm4172, 0.0, -1e+30
      %v4189 = vsel %vm4173, 0.0, -1e+30
      %v4190 = vsel %vm4174, 0.0, -1e+30
      %v4191 = vsel %vm4175, 0.0, -1e+30
      %v4192 = vsel %vm4176, 0.0, -1e+30
      %v4193 = vsel %vm4177, 0.0, -1e+30
      %v4194 = vsel %vm4178, 0.0, -1e+30
      %v4195 = vsel %vm4179, 0.0, -1e+30
      %v4196 = vsel %vm4180, 0.0, -1e+30
      %v4197 = vsel %vm4181, 0.0, -1e+30
      %v4198 = vmul.f32 %v1585, %v808
      %v4199 = vmul.f32 %v1587, %v809
      %v4200 = vmul.f32 %v1590, %v810
      %v4201 = vmul.f32 %v1592, %v811
      %v4202 = vmul.f32 %v1595, %v812
      %v4203 = vmul.f32 %v1597, %v813
      %v4204 = vmul.f32 %v1600, %v814
      %v4205 = vmul.f32 %v1602, %v815
      %v4206 = vmul.f32 %v1605, %v816
      %v4207 = vmul.f32 %v1607, %v817
      %v4208 = vmul.f32 %v1610, %v818
      %v4209 = vmul.f32 %v1612, %v819
      %v4210 = vmul.f32 %v1615, %v820
      %v4211 = vmul.f32 %v1617, %v821
      %v4212 = vmul.f32 %v1620, %v822
      %v4213 = vmul.f32 %v1622, %v823
      %v4214 = vmul.f32 %v1585, %v1907
      %v4215 = vmul.f32 %v1587, %v1909
      %v4216 = vmul.f32 %v1590, %v1911
      %v4217 = vmul.f32 %v1592, %v1913
      %v4218 = vmul.f32 %v1595, %v1915
      %v4219 = vmul.f32 %v1597, %v1917
      %v4220 = vmul.f32 %v1600, %v1919
      %v4221 = vmul.f32 %v1602, %v1921
      %v4222 = vmul.f32 %v1605, %v1923
      %v4223 = vmul.f32 %v1607, %v1925
      %v4224 = vmul.f32 %v1610, %v1927
      %v4225 = vmul.f32 %v1612, %v1929
      %v4226 = vmul.f32 %v1615, %v1931
      %v4227 = vmul.f32 %v1617, %v1933
      %v4228 = vmul.f32 %v1620, %v1935
      %v4229 = vmul.f32 %v1622, %v1937
      %4246 = vrot.lane.b32.xlu0 %v4214, 96
      %v4247 = vpop.permute.xlu0 %4246
      %4248 = vrot.lane.b32.xlu0 %v4215, 96
      %v4249 = vpop.permute.xlu0 %4248
      %4250 = vrot.lane.b32.xlu0 %v4216, 96
      %v4251 = vpop.permute.xlu0 %4250
      %4252 = vrot.lane.b32.xlu0 %v4217, 96
      %v4253 = vpop.permute.xlu0 %4252
      %4254 = vrot.lane.b32.xlu0 %v4218, 96
      %v4255 = vpop.permute.xlu0 %4254
      %4256 = vrot.lane.b32.xlu0 %v4219, 96
      %v4257 = vpop.permute.xlu0 %4256
      %4258 = vrot.lane.b32.xlu0 %v4220, 96
      %v4259 = vpop.permute.xlu0 %4258
      %4260 = vrot.lane.b32.xlu0 %v4221, 96
      %v4261 = vpop.permute.xlu0 %4260
      %4262 = vrot.lane.b32.xlu0 %v4222, 96
      %v4263 = vpop.permute.xlu0 %4262
      %4264 = vrot.lane.b32.xlu0 %v4223, 96
      %v4265 = vpop.permute.xlu0 %4264
      %4266 = vrot.lane.b32.xlu0 %v4224, 96
      %v4267 = vpop.permute.xlu0 %4266
      %4268 = vrot.lane.b32.xlu0 %v4225, 96
      %v4269 = vpop.permute.xlu0 %4268
      %4270 = vrot.lane.b32.xlu0 %v4226, 96
      %v4271 = vpop.permute.xlu0 %4270
      %4272 = vrot.lane.b32.xlu0 %v4227, 96
      %v4273 = vpop.permute.xlu0 %4272
      %4274 = vrot.lane.b32.xlu0 %v4228, 96
      %v4275 = vpop.permute.xlu0 %4274
      %4276 = vrot.lane.b32.xlu0 %v4229, 96
      %v4277 = vpop.permute.xlu0 %4276
      %v4294 = vsub.f32 %v4198, %v4247
      %v4295 = vsub.f32 %v4199, %v4249
      %v4296 = vsub.f32 %v4200, %v4251
      %v4297 = vsub.f32 %v4201, %v4253
      %v4298 = vsub.f32 %v4202, %v4255
      %v4299 = vsub.f32 %v4203, %v4257
      %v4300 = vsub.f32 %v4204, %v4259
      %v4301 = vsub.f32 %v4205, %v4261
      %v4302 = vsub.f32 %v4206, %v4263
      %v4303 = vsub.f32 %v4207, %v4265
      %v4304 = vsub.f32 %v4208, %v4267
      %v4305 = vsub.f32 %v4209, %v4269
      %v4306 = vsub.f32 %v4210, %v4271
      %v4307 = vsub.f32 %v4211, %v4273
      %v4308 = vsub.f32 %v4212, %v4275
      %v4309 = vsub.f32 %v4213, %v4277
      %v4310 = vmul.f32 %v1585, %v2067
      %v4311 = vmul.f32 %v1587, %v2069
      %v4312 = vmul.f32 %v1590, %v2071
      %v4313 = vmul.f32 %v1592, %v2073
      %v4314 = vmul.f32 %v1595, %v2075
      %v4315 = vmul.f32 %v1597, %v2077
      %v4316 = vmul.f32 %v1600, %v2079
      %v4317 = vmul.f32 %v1602, %v2081
      %v4318 = vmul.f32 %v1605, %v2083
      %v4319 = vmul.f32 %v1607, %v2085
      %v4320 = vmul.f32 %v1610, %v2087
      %v4321 = vmul.f32 %v1612, %v2089
      %v4322 = vmul.f32 %v1615, %v2091
      %v4323 = vmul.f32 %v1617, %v2093
      %v4324 = vmul.f32 %v1620, %v2095
      %v4325 = vmul.f32 %v1622, %v2097
      %v4326 = vmul.f32 %v1585, %v824
      %v4327 = vmul.f32 %v1587, %v825
      %v4328 = vmul.f32 %v1590, %v826
      %v4329 = vmul.f32 %v1592, %v827
      %v4330 = vmul.f32 %v1595, %v828
      %v4331 = vmul.f32 %v1597, %v829
      %v4332 = vmul.f32 %v1600, %v830
      %v4333 = vmul.f32 %v1602, %v831
      %v4334 = vmul.f32 %v1605, %v832
      %v4335 = vmul.f32 %v1607, %v833
      %v4336 = vmul.f32 %v1610, %v834
      %v4337 = vmul.f32 %v1612, %v835
      %v4338 = vmul.f32 %v1615, %v836
      %v4339 = vmul.f32 %v1617, %v837
      %v4340 = vmul.f32 %v1620, %v838
      %v4341 = vmul.f32 %v1622, %v839
      %4358 = vrot.lane.b32.xlu0 %v4326, 32
      %v4359 = vpop.permute.xlu0 %4358
      %4360 = vrot.lane.b32.xlu0 %v4327, 32
      %v4361 = vpop.permute.xlu0 %4360
      %4362 = vrot.lane.b32.xlu0 %v4328, 32
      %v4363 = vpop.permute.xlu0 %4362
      %4364 = vrot.lane.b32.xlu0 %v4329, 32
      %v4365 = vpop.permute.xlu0 %4364
      %4366 = vrot.lane.b32.xlu0 %v4330, 32
      %v4367 = vpop.permute.xlu0 %4366
      %4368 = vrot.lane.b32.xlu0 %v4331, 32
      %v4369 = vpop.permute.xlu0 %4368
      %4370 = vrot.lane.b32.xlu0 %v4332, 32
      %v4371 = vpop.permute.xlu0 %4370
      %4372 = vrot.lane.b32.xlu0 %v4333, 32
      %v4373 = vpop.permute.xlu0 %4372
      %4374 = vrot.lane.b32.xlu0 %v4334, 32
      %v4375 = vpop.permute.xlu0 %4374
      %4376 = vrot.lane.b32.xlu0 %v4335, 32
      %v4377 = vpop.permute.xlu0 %4376
      %4378 = vrot.lane.b32.xlu0 %v4336, 32
      %v4379 = vpop.permute.xlu0 %4378
      %4380 = vrot.lane.b32.xlu0 %v4337, 32
      %v4381 = vpop.permute.xlu0 %4380
      %4382 = vrot.lane.b32.xlu0 %v4338, 32
      %v4383 = vpop.permute.xlu0 %4382
      %4384 = vrot.lane.b32.xlu0 %v4339, 32
      %v4385 = vpop.permute.xlu0 %4384
      %4386 = vrot.lane.b32.xlu0 %v4340, 32
      %v4387 = vpop.permute.xlu0 %4386
      %4388 = vrot.lane.b32.xlu0 %v4341, 32
      %v4389 = vpop.permute.xlu0 %4388
      %v4406 = vadd.f32 %v4310, %v4359
      %v4407 = vadd.f32 %v4311, %v4361
      %v4408 = vadd.f32 %v4312, %v4363
      %v4409 = vadd.f32 %v4313, %v4365
      %v4410 = vadd.f32 %v4314, %v4367
      %v4411 = vadd.f32 %v4315, %v4369
      %v4412 = vadd.f32 %v4316, %v4371
      %v4413 = vadd.f32 %v4317, %v4373
      %v4414 = vadd.f32 %v4318, %v4375
      %v4415 = vadd.f32 %v4319, %v4377
      %v4416 = vadd.f32 %v4320, %v4379
      %v4417 = vadd.f32 %v4321, %v4381
      %v4418 = vadd.f32 %v4322, %v4383
      %v4419 = vadd.f32 %v4323, %v4385
      %v4420 = vadd.f32 %v4324, %v4387
      %v4421 = vadd.f32 %v4325, %v4389
      %v4422 = vsel %vm2226, %v4294, %v4406
      %v4423 = vsel %vm2226, %v4295, %v4407
      %v4424 = vsel %vm2226, %v4296, %v4408
      %v4425 = vsel %vm2226, %v4297, %v4409
      %v4426 = vsel %vm2226, %v4298, %v4410
      %v4427 = vsel %vm2226, %v4299, %v4411
      %v4428 = vsel %vm2226, %v4300, %v4412
      %v4429 = vsel %vm2226, %v4301, %v4413
      %v4430 = vsel %vm2226, %v4302, %v4414
      %v4431 = vsel %vm2226, %v4303, %v4415
      %v4432 = vsel %vm2226, %v4304, %v4416
      %v4433 = vsel %vm2226, %v4305, %v4417
      %v4434 = vsel %vm2226, %v4306, %v4418
      %v4435 = vsel %vm2226, %v4307, %v4419
      %v4436 = vsel %vm2226, %v4308, %v4420
      %v4437 = vsel %vm2226, %v4309, %v4421
      %v4438 = vpack.c.bf16 %v4423, %v4422
      %v4439 = vpack.c.bf16 %v4425, %v4424
      %v4440 = vpack.c.bf16 %v4427, %v4426
      %v4441 = vpack.c.bf16 %v4429, %v4428
      %v4442 = vpack.c.bf16 %v4431, %v4430
      %v4443 = vpack.c.bf16 %v4433, %v4432
      %v4444 = vpack.c.bf16 %v4435, %v4434
      %v4445 = vpack.c.bf16 %v4437, %v4436
      %v4446 = vmul.f32 %v1674, %v808
      %v4447 = vmul.f32 %v1676, %v809
      %v4448 = vmul.f32 %v1679, %v810
      %v4449 = vmul.f32 %v1681, %v811
      %v4450 = vmul.f32 %v1684, %v812
      %v4451 = vmul.f32 %v1686, %v813
      %v4452 = vmul.f32 %v1689, %v814
      %v4453 = vmul.f32 %v1691, %v815
      %v4454 = vmul.f32 %v1694, %v816
      %v4455 = vmul.f32 %v1696, %v817
      %v4456 = vmul.f32 %v1699, %v818
      %v4457 = vmul.f32 %v1701, %v819
      %v4458 = vmul.f32 %v1704, %v820
      %v4459 = vmul.f32 %v1706, %v821
      %v4460 = vmul.f32 %v1709, %v822
      %v4461 = vmul.f32 %v1711, %v823
      %v4462 = vmul.f32 %v1674, %v1907
      %v4463 = vmul.f32 %v1676, %v1909
      %v4464 = vmul.f32 %v1679, %v1911
      %v4465 = vmul.f32 %v1681, %v1913
      %v4466 = vmul.f32 %v1684, %v1915
      %v4467 = vmul.f32 %v1686, %v1917
      %v4468 = vmul.f32 %v1689, %v1919
      %v4469 = vmul.f32 %v1691, %v1921
      %v4470 = vmul.f32 %v1694, %v1923
      %v4471 = vmul.f32 %v1696, %v1925
      %v4472 = vmul.f32 %v1699, %v1927
      %v4473 = vmul.f32 %v1701, %v1929
      %v4474 = vmul.f32 %v1704, %v1931
      %v4475 = vmul.f32 %v1706, %v1933
      %v4476 = vmul.f32 %v1709, %v1935
      %v4477 = vmul.f32 %v1711, %v1937
      %4494 = vrot.lane.b32.xlu0 %v4462, 96
      %v4495 = vpop.permute.xlu0 %4494
      %4496 = vrot.lane.b32.xlu0 %v4463, 96
      %v4497 = vpop.permute.xlu0 %4496
      %4498 = vrot.lane.b32.xlu0 %v4464, 96
      %v4499 = vpop.permute.xlu0 %4498
      %4500 = vrot.lane.b32.xlu0 %v4465, 96
      %v4501 = vpop.permute.xlu0 %4500
      %4502 = vrot.lane.b32.xlu0 %v4466, 96
      %v4503 = vpop.permute.xlu0 %4502
      %4504 = vrot.lane.b32.xlu0 %v4467, 96
      %v4505 = vpop.permute.xlu0 %4504
      %4506 = vrot.lane.b32.xlu0 %v4468, 96
      %v4507 = vpop.permute.xlu0 %4506
      %4508 = vrot.lane.b32.xlu0 %v4469, 96
      %v4509 = vpop.permute.xlu0 %4508
      %4510 = vrot.lane.b32.xlu0 %v4470, 96
      %v4511 = vpop.permute.xlu0 %4510
      %4512 = vrot.lane.b32.xlu0 %v4471, 96
      %v4513 = vpop.permute.xlu0 %4512
      %4514 = vrot.lane.b32.xlu0 %v4472, 96
      %v4515 = vpop.permute.xlu0 %4514
      %4516 = vrot.lane.b32.xlu0 %v4473, 96
      %v4517 = vpop.permute.xlu0 %4516
      %4518 = vrot.lane.b32.xlu0 %v4474, 96
      %v4519 = vpop.permute.xlu0 %4518
      %4520 = vrot.lane.b32.xlu0 %v4475, 96
      %v4521 = vpop.permute.xlu0 %4520
      %4522 = vrot.lane.b32.xlu0 %v4476, 96
      %v4523 = vpop.permute.xlu0 %4522
      %4524 = vrot.lane.b32.xlu0 %v4477, 96
      %v4525 = vpop.permute.xlu0 %4524
      %v4542 = vsub.f32 %v4446, %v4495
      %v4543 = vsub.f32 %v4447, %v4497
      %v4544 = vsub.f32 %v4448, %v4499
      %v4545 = vsub.f32 %v4449, %v4501
      %v4546 = vsub.f32 %v4450, %v4503
      %v4547 = vsub.f32 %v4451, %v4505
      %v4548 = vsub.f32 %v4452, %v4507
      %v4549 = vsub.f32 %v4453, %v4509
      %v4550 = vsub.f32 %v4454, %v4511
      %v4551 = vsub.f32 %v4455, %v4513
      %v4552 = vsub.f32 %v4456, %v4515
      %v4553 = vsub.f32 %v4457, %v4517
      %v4554 = vsub.f32 %v4458, %v4519
      %v4555 = vsub.f32 %v4459, %v4521
      %v4556 = vsub.f32 %v4460, %v4523
      %v4557 = vsub.f32 %v4461, %v4525
      %v4558 = vmul.f32 %v1674, %v2067
      %v4559 = vmul.f32 %v1676, %v2069
      %v4560 = vmul.f32 %v1679, %v2071
      %v4561 = vmul.f32 %v1681, %v2073
      %v4562 = vmul.f32 %v1684, %v2075
      %v4563 = vmul.f32 %v1686, %v2077
      %v4564 = vmul.f32 %v1689, %v2079
      %v4565 = vmul.f32 %v1691, %v2081
      %v4566 = vmul.f32 %v1694, %v2083
      %v4567 = vmul.f32 %v1696, %v2085
      %v4568 = vmul.f32 %v1699, %v2087
      %v4569 = vmul.f32 %v1701, %v2089
      %v4570 = vmul.f32 %v1704, %v2091
      %v4571 = vmul.f32 %v1706, %v2093
      %v4572 = vmul.f32 %v1709, %v2095
      %v4573 = vmul.f32 %v1711, %v2097
      %v4574 = vmul.f32 %v1674, %v824
      %v4575 = vmul.f32 %v1676, %v825
      %v4576 = vmul.f32 %v1679, %v826
      %v4577 = vmul.f32 %v1681, %v827
      %v4578 = vmul.f32 %v1684, %v828
      %v4579 = vmul.f32 %v1686, %v829
      %v4580 = vmul.f32 %v1689, %v830
      %v4581 = vmul.f32 %v1691, %v831
      %v4582 = vmul.f32 %v1694, %v832
      %v4583 = vmul.f32 %v1696, %v833
      %v4584 = vmul.f32 %v1699, %v834
      %v4585 = vmul.f32 %v1701, %v835
      %v4586 = vmul.f32 %v1704, %v836
      %v4587 = vmul.f32 %v1706, %v837
      %v4588 = vmul.f32 %v1709, %v838
      %v4589 = vmul.f32 %v1711, %v839
      %4606 = vrot.lane.b32.xlu0 %v4574, 32
      %v4607 = vpop.permute.xlu0 %4606
      %4608 = vrot.lane.b32.xlu0 %v4575, 32
      %v4609 = vpop.permute.xlu0 %4608
      %4610 = vrot.lane.b32.xlu0 %v4576, 32
      %v4611 = vpop.permute.xlu0 %4610
      %4612 = vrot.lane.b32.xlu0 %v4577, 32
      %v4613 = vpop.permute.xlu0 %4612
      %4614 = vrot.lane.b32.xlu0 %v4578, 32
      %v4615 = vpop.permute.xlu0 %4614
      %4616 = vrot.lane.b32.xlu0 %v4579, 32
      %v4617 = vpop.permute.xlu0 %4616
      %4618 = vrot.lane.b32.xlu0 %v4580, 32
      %v4619 = vpop.permute.xlu0 %4618
      %4620 = vrot.lane.b32.xlu0 %v4581, 32
      %v4621 = vpop.permute.xlu0 %4620
      %4622 = vrot.lane.b32.xlu0 %v4582, 32
      %v4623 = vpop.permute.xlu0 %4622
      %4624 = vrot.lane.b32.xlu0 %v4583, 32
      %v4625 = vpop.permute.xlu0 %4624
      %4626 = vrot.lane.b32.xlu0 %v4584, 32
      %v4627 = vpop.permute.xlu0 %4626
      %4628 = vrot.lane.b32.xlu0 %v4585, 32
      %v4629 = vpop.permute.xlu0 %4628
      %4630 = vrot.lane.b32.xlu0 %v4586, 32
      %v4631 = vpop.permute.xlu0 %4630
      %4632 = vrot.lane.b32.xlu0 %v4587, 32
      %v4633 = vpop.permute.xlu0 %4632
      %4634 = vrot.lane.b32.xlu0 %v4588, 32
      %v4635 = vpop.permute.xlu0 %4634
      %4636 = vrot.lane.b32.xlu0 %v4589, 32
      %v4637 = vpop.permute.xlu0 %4636
      %v4654 = vadd.f32 %v4558, %v4607
      %v4655 = vadd.f32 %v4559, %v4609
      %v4656 = vadd.f32 %v4560, %v4611
      %v4657 = vadd.f32 %v4561, %v4613
      %v4658 = vadd.f32 %v4562, %v4615
      %v4659 = vadd.f32 %v4563, %v4617
      %v4660 = vadd.f32 %v4564, %v4619
      %v4661 = vadd.f32 %v4565, %v4621
      %v4662 = vadd.f32 %v4566, %v4623
      %v4663 = vadd.f32 %v4567, %v4625
      %v4664 = vadd.f32 %v4568, %v4627
      %v4665 = vadd.f32 %v4569, %v4629
      %v4666 = vadd.f32 %v4570, %v4631
      %v4667 = vadd.f32 %v4571, %v4633
      %v4668 = vadd.f32 %v4572, %v4635
      %v4669 = vadd.f32 %v4573, %v4637
      %v4670 = vsel %vm2226, %v4542, %v4654
      %v4671 = vsel %vm2226, %v4543, %v4655
      %v4672 = vsel %vm2226, %v4544, %v4656
      %v4673 = vsel %vm2226, %v4545, %v4657
      %v4674 = vsel %vm2226, %v4546, %v4658
      %v4675 = vsel %vm2226, %v4547, %v4659
      %v4676 = vsel %vm2226, %v4548, %v4660
      %v4677 = vsel %vm2226, %v4549, %v4661
      %v4678 = vsel %vm2226, %v4550, %v4662
      %v4679 = vsel %vm2226, %v4551, %v4663
      %v4680 = vsel %vm2226, %v4552, %v4664
      %v4681 = vsel %vm2226, %v4553, %v4665
      %v4682 = vsel %vm2226, %v4554, %v4666
      %v4683 = vsel %vm2226, %v4555, %v4667
      %v4684 = vsel %vm2226, %v4556, %v4668
      %v4685 = vsel %vm2226, %v4557, %v4669
      %v4686 = vpack.c.bf16 %v4671, %v4670
      %v4687 = vpack.c.bf16 %v4673, %v4672
      %v4688 = vpack.c.bf16 %v4675, %v4674
      %v4689 = vpack.c.bf16 %v4677, %v4676
      %v4690 = vpack.c.bf16 %v4679, %v4678
      %v4691 = vpack.c.bf16 %v4681, %v4680
      %v4692 = vpack.c.bf16 %v4683, %v4682
      %v4693 = vpack.c.bf16 %v4685, %v4684
      %v4694 = vpack.c.bf16 %v1765, %v1763
      %v4695 = vpack.c.bf16 %v1770, %v1768
      %v4696 = vpack.c.bf16 %v1775, %v1773
      %v4697 = vpack.c.bf16 %v1780, %v1778
      %v4698 = vpack.c.bf16 %v1785, %v1783
      %v4699 = vpack.c.bf16 %v1790, %v1788
      %v4700 = vpack.c.bf16 %v1795, %v1793
      %v4701 = vpack.c.bf16 %v1800, %v1798
      %v4703 = vsel %vm2507, %v4438, 0
      %v4706 = vsel %vm2507, %v4439, 0
      %v4709 = vsel %vm2507, %v4440, 0
      %v4712 = vsel %vm2507, %v4441, 0
      %v4715 = vsel %vm2507, %v4442, 0
      %v4718 = vsel %vm2507, %v4443, 0
      %v4721 = vsel %vm2507, %v4444, 0
      %v4724 = vsel %vm2507, %v4445, 0
      %v4727 = vsel %vm2507, %v4686, 0
      %v4730 = vsel %vm2507, %v4687, 0
      %v4733 = vsel %vm2507, %v4688, 0
      %v4736 = vsel %vm2507, %v4689, 0
      %v4739 = vsel %vm2507, %v4690, 0
      %v4742 = vsel %vm2507, %v4691, 0
      %v4745 = vsel %vm2507, %v4692, 0
      %v4748 = vsel %vm2507, %v4693, 0
      %4750 = vmatpush.bf16.xpose.msra.mxu0 %v4748
      %4751 = vmatpush.bf16.xpose.msra.mxu0 %v4745
      %4752 = vmatpush.bf16.xpose.msra.mxu0 %v4742
      %4753 = vmatpush.bf16.xpose.msra.mxu0 %v4739
      %4754 = vmatpush.bf16.xpose.msra.mxu0 %v4736
      %4755 = vmatpush.bf16.xpose.msra.mxu0 %v4733
      %4756 = vmatpush.bf16.xpose.msra.mxu0 %v4730
      %4757 = vmatpush.bf16.xpose.msra.mxu0 %v4727
      %4758 = vmatmul.bf16.gmra.mxu0 %v4703
      %v4759 = vpop.f32.mrf.mxu0
      %v4760 = vadd.f32 %v4182, %v4759
      %v4761 = vpop.f32.mrf.mxu0
      %v4762 = vadd.f32 %v4183, %v4761
      %4763 = vmatmul.bf16.gmra.mxu0 %v4706
      %v4764 = vpop.f32.mrf.mxu0
      %v4765 = vadd.f32 %v4184, %v4764
      %v4766 = vpop.f32.mrf.mxu0
      %v4767 = vadd.f32 %v4185, %v4766
      %4768 = vmatmul.bf16.gmra.mxu0 %v4709
      %v4769 = vpop.f32.mrf.mxu0
      %v4770 = vadd.f32 %v4186, %v4769
      %v4771 = vpop.f32.mrf.mxu0
      %v4772 = vadd.f32 %v4187, %v4771
      %4773 = vmatmul.bf16.gmra.mxu0 %v4712
      %v4774 = vpop.f32.mrf.mxu0
      %v4775 = vadd.f32 %v4188, %v4774
      %v4776 = vpop.f32.mrf.mxu0
      %v4777 = vadd.f32 %v4189, %v4776
      %4778 = vmatmul.bf16.gmra.mxu0 %v4715
      %v4779 = vpop.f32.mrf.mxu0
      %v4780 = vadd.f32 %v4190, %v4779
      %v4781 = vpop.f32.mrf.mxu0
      %v4782 = vadd.f32 %v4191, %v4781
      %4783 = vmatmul.bf16.gmra.mxu0 %v4718
      %v4784 = vpop.f32.mrf.mxu0
      %v4785 = vadd.f32 %v4192, %v4784
      %v4786 = vpop.f32.mrf.mxu0
      %v4787 = vadd.f32 %v4193, %v4786
      %4788 = vmatmul.bf16.gmra.mxu0 %v4721
      %v4789 = vpop.f32.mrf.mxu0
      %v4790 = vadd.f32 %v4194, %v4789
      %v4791 = vpop.f32.mrf.mxu0
      %v4792 = vadd.f32 %v4195, %v4791
      %4793 = vmatmul.bf16.gmra.mxu0 %v4724
      %v4794 = vpop.f32.mrf.mxu0
      %v4795 = vadd.f32 %v4196, %v4794
      %v4796 = vpop.f32.mrf.mxu0
      %v4797 = vadd.f32 %v4197, %v4796
      %4798 = vdwg.mxu0
      %4799 = vmax.xlane.f32.xlu0 %v4760
      %v4800 = vpop.xlane.xlu0 %4799
      %4801 = vmax.xlane.f32.xlu0 %v4762
      %v4802 = vpop.xlane.xlu0 %4801
      %4803 = vmax.xlane.f32.xlu0 %v4765
      %v4804 = vpop.xlane.xlu0 %4803
      %4805 = vmax.xlane.f32.xlu0 %v4767
      %v4806 = vpop.xlane.xlu0 %4805
      %4807 = vmax.xlane.f32.xlu0 %v4770
      %v4808 = vpop.xlane.xlu0 %4807
      %4809 = vmax.xlane.f32.xlu0 %v4772
      %v4810 = vpop.xlane.xlu0 %4809
      %4811 = vmax.xlane.f32.xlu0 %v4775
      %v4812 = vpop.xlane.xlu0 %4811
      %4813 = vmax.xlane.f32.xlu0 %v4777
      %v4814 = vpop.xlane.xlu0 %4813
      %4815 = vmax.xlane.f32.xlu0 %v4780
      %v4816 = vpop.xlane.xlu0 %4815
      %4817 = vmax.xlane.f32.xlu0 %v4782
      %v4818 = vpop.xlane.xlu0 %4817
      %4819 = vmax.xlane.f32.xlu0 %v4785
      %v4820 = vpop.xlane.xlu0 %4819
      %4821 = vmax.xlane.f32.xlu0 %v4787
      %v4822 = vpop.xlane.xlu0 %4821
      %4823 = vmax.xlane.f32.xlu0 %v4790
      %v4824 = vpop.xlane.xlu0 %4823
      %4825 = vmax.xlane.f32.xlu0 %v4792
      %v4826 = vpop.xlane.xlu0 %4825
      %4827 = vmax.xlane.f32.xlu0 %v4795
      %v4828 = vpop.xlane.xlu0 %4827
      %4829 = vmax.xlane.f32.xlu0 %v4797
      %v4830 = vpop.xlane.xlu0 %4829
      %v4831 = vsub.f32 %v4760, %v4800
      %v4832 = vsub.f32 %v4762, %v4802
      %v4833 = vsub.f32 %v4765, %v4804
      %v4834 = vsub.f32 %v4767, %v4806
      %v4835 = vsub.f32 %v4770, %v4808
      %v4836 = vsub.f32 %v4772, %v4810
      %v4837 = vsub.f32 %v4775, %v4812
      %v4838 = vsub.f32 %v4777, %v4814
      %v4839 = vsub.f32 %v4780, %v4816
      %v4840 = vsub.f32 %v4782, %v4818
      %v4841 = vsub.f32 %v4785, %v4820
      %v4842 = vsub.f32 %v4787, %v4822
      %v4843 = vsub.f32 %v4790, %v4824
      %v4844 = vsub.f32 %v4792, %v4826
      %v4845 = vsub.f32 %v4795, %v4828
      %v4846 = vsub.f32 %v4797, %v4830
      %v4847 = vmul.f32 %v4831, 1.442695
      %v4848 = vpow.pop %v4847
      %v4849 = vmul.f32 %v4832, 1.442695
      %v4850 = vpow.pop %v4849
      %v4851 = vmul.f32 %v4833, 1.442695
      %v4852 = vpow.pop %v4851
      %v4853 = vmul.f32 %v4834, 1.442695
      %v4854 = vpow.pop %v4853
      %v4855 = vmul.f32 %v4835, 1.442695
      %v4856 = vpow.pop %v4855
      %v4857 = vmul.f32 %v4836, 1.442695
      %v4858 = vpow.pop %v4857
      %v4859 = vmul.f32 %v4837, 1.442695
      %v4860 = vpow.pop %v4859
      %v4861 = vmul.f32 %v4838, 1.442695
      %v4862 = vpow.pop %v4861
      %v4863 = vmul.f32 %v4839, 1.442695
      %v4864 = vpow.pop %v4863
      %v4865 = vmul.f32 %v4840, 1.442695
      %v4866 = vpow.pop %v4865
      %v4867 = vmul.f32 %v4841, 1.442695
      %v4868 = vpow.pop %v4867
      %v4869 = vmul.f32 %v4842, 1.442695
      %v4870 = vpow.pop %v4869
      %v4871 = vmul.f32 %v4843, 1.442695
      %v4872 = vpow.pop %v4871
      %v4873 = vmul.f32 %v4844, 1.442695
      %v4874 = vpow.pop %v4873
      %v4875 = vmul.f32 %v4845, 1.442695
      %v4876 = vpow.pop %v4875
      %v4877 = vmul.f32 %v4846, 1.442695
      %v4878 = vpow.pop %v4877
      %4879 = vadd.xlane.f32.xlu0 %v4848
      %v4880 = vpop.xlane.xlu0 %4879
      %4881 = vadd.xlane.f32.xlu0 %v4850
      %v4882 = vpop.xlane.xlu0 %4881
      %4883 = vadd.xlane.f32.xlu0 %v4852
      %v4884 = vpop.xlane.xlu0 %4883
      %4885 = vadd.xlane.f32.xlu0 %v4854
      %v4886 = vpop.xlane.xlu0 %4885
      %4887 = vadd.xlane.f32.xlu0 %v4856
      %v4888 = vpop.xlane.xlu0 %4887
      %4889 = vadd.xlane.f32.xlu0 %v4858
      %v4890 = vpop.xlane.xlu0 %4889
      %4891 = vadd.xlane.f32.xlu0 %v4860
      %v4892 = vpop.xlane.xlu0 %4891
      %4893 = vadd.xlane.f32.xlu0 %v4862
      %v4894 = vpop.xlane.xlu0 %4893
      %4895 = vadd.xlane.f32.xlu0 %v4864
      %v4896 = vpop.xlane.xlu0 %4895
      %4897 = vadd.xlane.f32.xlu0 %v4866
      %v4898 = vpop.xlane.xlu0 %4897
      %4899 = vadd.xlane.f32.xlu0 %v4868
      %v4900 = vpop.xlane.xlu0 %4899
      %4901 = vadd.xlane.f32.xlu0 %v4870
      %v4902 = vpop.xlane.xlu0 %4901
      %4903 = vadd.xlane.f32.xlu0 %v4872
      %v4904 = vpop.xlane.xlu0 %4903
      %4905 = vadd.xlane.f32.xlu0 %v4874
      %v4906 = vpop.xlane.xlu0 %4905
      %4907 = vadd.xlane.f32.xlu0 %v4876
      %v4908 = vpop.xlane.xlu0 %4907
      %4909 = vadd.xlane.f32.xlu0 %v4878
      %v4910 = vpop.xlane.xlu0 %4909
      %v4911 = vrcp.pop %v4880
      %v4912 = vrcp.pop %v4882
      %v4913 = vrcp.pop %v4884
      %v4914 = vrcp.pop %v4886
      %v4915 = vrcp.pop %v4888
      %v4916 = vrcp.pop %v4890
      %v4917 = vrcp.pop %v4892
      %v4918 = vrcp.pop %v4894
      %v4919 = vrcp.pop %v4896
      %v4920 = vrcp.pop %v4898
      %v4921 = vrcp.pop %v4900
      %v4922 = vrcp.pop %v4902
      %v4923 = vrcp.pop %v4904
      %v4924 = vrcp.pop %v4906
      %v4925 = vrcp.pop %v4908
      %v4926 = vrcp.pop %v4910
      %v4927 = vmul.f32 %v4848, %v4911
      %v4928 = vmul.f32 %v4850, %v4912
      %v4929 = vmul.f32 %v4852, %v4913
      %v4930 = vmul.f32 %v4854, %v4914
      %v4931 = vmul.f32 %v4856, %v4915
      %v4932 = vmul.f32 %v4858, %v4916
      %v4933 = vmul.f32 %v4860, %v4917
      %v4934 = vmul.f32 %v4862, %v4918
      %v4935 = vmul.f32 %v4864, %v4919
      %v4936 = vmul.f32 %v4866, %v4920
      %v4937 = vmul.f32 %v4868, %v4921
      %v4938 = vmul.f32 %v4870, %v4922
      %v4939 = vmul.f32 %v4872, %v4923
      %v4940 = vmul.f32 %v4874, %v4924
      %v4941 = vmul.f32 %v4876, %v4925
      %v4942 = vmul.f32 %v4878, %v4926
      %v4943 = vpack.c.bf16 %v4928, %v4927
      %v4944 = vpack.c.bf16 %v4930, %v4929
      %v4945 = vpack.c.bf16 %v4932, %v4931
      %v4946 = vpack.c.bf16 %v4934, %v4933
      %v4947 = vpack.c.bf16 %v4936, %v4935
      %v4948 = vpack.c.bf16 %v4938, %v4937
      %v4949 = vpack.c.bf16 %v4940, %v4939
      %v4950 = vpack.c.bf16 %v4942, %v4941
      %4951 = vmatpush.bf16.msra.mxu0 %v4701
      %4952 = vmatpush.bf16.msra.mxu0 %v4700
      %4953 = vmatpush.bf16.msra.mxu0 %v4699
      %4954 = vmatpush.bf16.msra.mxu0 %v4698
      %4955 = vmatpush.bf16.msra.mxu0 %v4697
      %4956 = vmatpush.bf16.msra.mxu0 %v4696
      %4957 = vmatpush.bf16.msra.mxu0 %v4695
      %4958 = vmatpush.bf16.msra.mxu0 %v4694
      %4959 = vmatmul.bf16.gmra.mxu0 %v4943
      %v4960 = vpop.f32.mrf.mxu0
      %v4961 = vadd.f32 0.0, %v4960
      %v4962 = vpop.f32.mrf.mxu0
      %v4963 = vadd.f32 0.0, %v4962
      %4964 = vmatmul.bf16.gmra.mxu0 %v4944
      %v4965 = vpop.f32.mrf.mxu0
      %v4966 = vadd.f32 0.0, %v4965
      %v4967 = vpop.f32.mrf.mxu0
      %v4968 = vadd.f32 0.0, %v4967
      %4969 = vmatmul.bf16.gmra.mxu0 %v4945
      %v4970 = vpop.f32.mrf.mxu0
      %v4971 = vadd.f32 0.0, %v4970
      %v4972 = vpop.f32.mrf.mxu0
      %v4973 = vadd.f32 0.0, %v4972
      %4974 = vmatmul.bf16.gmra.mxu0 %v4946
      %v4975 = vpop.f32.mrf.mxu0
      %v4976 = vadd.f32 0.0, %v4975
      %v4977 = vpop.f32.mrf.mxu0
      %v4978 = vadd.f32 0.0, %v4977
      %4979 = vmatmul.bf16.gmra.mxu0 %v4947
      %v4980 = vpop.f32.mrf.mxu0
      %v4981 = vadd.f32 0.0, %v4980
      %v4982 = vpop.f32.mrf.mxu0
      %v4983 = vadd.f32 0.0, %v4982
      %4984 = vmatmul.bf16.gmra.mxu0 %v4948
      %v4985 = vpop.f32.mrf.mxu0
      %v4986 = vadd.f32 0.0, %v4985
      %v4987 = vpop.f32.mrf.mxu0
      %v4988 = vadd.f32 0.0, %v4987
      %4989 = vmatmul.bf16.gmra.mxu0 %v4949
      %v4990 = vpop.f32.mrf.mxu0
      %v4991 = vadd.f32 0.0, %v4990
      %v4992 = vpop.f32.mrf.mxu0
      %v4993 = vadd.f32 0.0, %v4992
      %4994 = vmatmul.bf16.gmra.mxu0 %v4950
      %v4995 = vpop.f32.mrf.mxu0
      %v4996 = vadd.f32 0.0, %v4995
      %v4997 = vpop.f32.mrf.mxu0
      %v4998 = vadd.f32 0.0, %v4997
      %4999 = vdwg.mxu0
      %v5000 = vmul.f32 %v1585, %v2807
      %v5001 = vmul.f32 %v1587, %v2809
      %v5002 = vmul.f32 %v1590, %v2811
      %v5003 = vmul.f32 %v1592, %v2813
      %v5004 = vmul.f32 %v1595, %v2815
      %v5005 = vmul.f32 %v1597, %v2817
      %v5006 = vmul.f32 %v1600, %v2819
      %v5007 = vmul.f32 %v1602, %v2821
      %v5008 = vmul.f32 %v1605, %v2823
      %v5009 = vmul.f32 %v1607, %v2825
      %v5010 = vmul.f32 %v1610, %v2827
      %v5011 = vmul.f32 %v1612, %v2829
      %v5012 = vmul.f32 %v1615, %v2831
      %v5013 = vmul.f32 %v1617, %v2833
      %v5014 = vmul.f32 %v1620, %v2835
      %v5015 = vmul.f32 %v1622, %v2837
      %v5016 = vmul.f32 %v1585, %v2871
      %v5017 = vmul.f32 %v1587, %v2873
      %v5018 = vmul.f32 %v1590, %v2875
      %v5019 = vmul.f32 %v1592, %v2877
      %v5020 = vmul.f32 %v1595, %v2879
      %v5021 = vmul.f32 %v1597, %v2881
      %v5022 = vmul.f32 %v1600, %v2883
      %v5023 = vmul.f32 %v1602, %v2885
      %v5024 = vmul.f32 %v1605, %v2887
      %v5025 = vmul.f32 %v1607, %v2889
      %v5026 = vmul.f32 %v1610, %v2891
      %v5027 = vmul.f32 %v1612, %v2893
      %v5028 = vmul.f32 %v1615, %v2895
      %v5029 = vmul.f32 %v1617, %v2897
      %v5030 = vmul.f32 %v1620, %v2899
      %v5031 = vmul.f32 %v1622, %v2901
      %5048 = vrot.lane.b32.xlu0 %v5016, 96
      %v5049 = vpop.permute.xlu0 %5048
      %5050 = vrot.lane.b32.xlu0 %v5017, 96
      %v5051 = vpop.permute.xlu0 %5050
      %5052 = vrot.lane.b32.xlu0 %v5018, 96
      %v5053 = vpop.permute.xlu0 %5052
      %5054 = vrot.lane.b32.xlu0 %v5019, 96
      %v5055 = vpop.permute.xlu0 %5054
      %5056 = vrot.lane.b32.xlu0 %v5020, 96
      %v5057 = vpop.permute.xlu0 %5056
      %5058 = vrot.lane.b32.xlu0 %v5021, 96
      %v5059 = vpop.permute.xlu0 %5058
      %5060 = vrot.lane.b32.xlu0 %v5022, 96
      %v5061 = vpop.permute.xlu0 %5060
      %5062 = vrot.lane.b32.xlu0 %v5023, 96
      %v5063 = vpop.permute.xlu0 %5062
      %5064 = vrot.lane.b32.xlu0 %v5024, 96
      %v5065 = vpop.permute.xlu0 %5064
      %5066 = vrot.lane.b32.xlu0 %v5025, 96
      %v5067 = vpop.permute.xlu0 %5066
      %5068 = vrot.lane.b32.xlu0 %v5026, 96
      %v5069 = vpop.permute.xlu0 %5068
      %5070 = vrot.lane.b32.xlu0 %v5027, 96
      %v5071 = vpop.permute.xlu0 %5070
      %5072 = vrot.lane.b32.xlu0 %v5028, 96
      %v5073 = vpop.permute.xlu0 %5072
      %5074 = vrot.lane.b32.xlu0 %v5029, 96
      %v5075 = vpop.permute.xlu0 %5074
      %5076 = vrot.lane.b32.xlu0 %v5030, 96
      %v5077 = vpop.permute.xlu0 %5076
      %5078 = vrot.lane.b32.xlu0 %v5031, 96
      %v5079 = vpop.permute.xlu0 %5078
      %v5096 = vsub.f32 %v5000, %v5049
      %v5097 = vsub.f32 %v5001, %v5051
      %v5098 = vsub.f32 %v5002, %v5053
      %v5099 = vsub.f32 %v5003, %v5055
      %v5100 = vsub.f32 %v5004, %v5057
      %v5101 = vsub.f32 %v5005, %v5059
      %v5102 = vsub.f32 %v5006, %v5061
      %v5103 = vsub.f32 %v5007, %v5063
      %v5104 = vsub.f32 %v5008, %v5065
      %v5105 = vsub.f32 %v5009, %v5067
      %v5106 = vsub.f32 %v5010, %v5069
      %v5107 = vsub.f32 %v5011, %v5071
      %v5108 = vsub.f32 %v5012, %v5073
      %v5109 = vsub.f32 %v5013, %v5075
      %v5110 = vsub.f32 %v5014, %v5077
      %v5111 = vsub.f32 %v5015, %v5079
      %v5112 = vmul.f32 %v1585, %v3015
      %v5113 = vmul.f32 %v1587, %v3017
      %v5114 = vmul.f32 %v1590, %v3019
      %v5115 = vmul.f32 %v1592, %v3021
      %v5116 = vmul.f32 %v1595, %v3023
      %v5117 = vmul.f32 %v1597, %v3025
      %v5118 = vmul.f32 %v1600, %v3027
      %v5119 = vmul.f32 %v1602, %v3029
      %v5120 = vmul.f32 %v1605, %v3031
      %v5121 = vmul.f32 %v1607, %v3033
      %v5122 = vmul.f32 %v1610, %v3035
      %v5123 = vmul.f32 %v1612, %v3037
      %v5124 = vmul.f32 %v1615, %v3039
      %v5125 = vmul.f32 %v1617, %v3041
      %v5126 = vmul.f32 %v1620, %v3043
      %v5127 = vmul.f32 %v1622, %v3045
      %v5128 = vmul.f32 %v1585, %v3079
      %v5129 = vmul.f32 %v1587, %v3081
      %v5130 = vmul.f32 %v1590, %v3083
      %v5131 = vmul.f32 %v1592, %v3085
      %v5132 = vmul.f32 %v1595, %v3087
      %v5133 = vmul.f32 %v1597, %v3089
      %v5134 = vmul.f32 %v1600, %v3091
      %v5135 = vmul.f32 %v1602, %v3093
      %v5136 = vmul.f32 %v1605, %v3095
      %v5137 = vmul.f32 %v1607, %v3097
      %v5138 = vmul.f32 %v1610, %v3099
      %v5139 = vmul.f32 %v1612, %v3101
      %v5140 = vmul.f32 %v1615, %v3103
      %v5141 = vmul.f32 %v1617, %v3105
      %v5142 = vmul.f32 %v1620, %v3107
      %v5143 = vmul.f32 %v1622, %v3109
      %5160 = vrot.lane.b32.xlu0 %v5128, 32
      %v5161 = vpop.permute.xlu0 %5160
      %5162 = vrot.lane.b32.xlu0 %v5129, 32
      %v5163 = vpop.permute.xlu0 %5162
      %5164 = vrot.lane.b32.xlu0 %v5130, 32
      %v5165 = vpop.permute.xlu0 %5164
      %5166 = vrot.lane.b32.xlu0 %v5131, 32
      %v5167 = vpop.permute.xlu0 %5166
      %5168 = vrot.lane.b32.xlu0 %v5132, 32
      %v5169 = vpop.permute.xlu0 %5168
      %5170 = vrot.lane.b32.xlu0 %v5133, 32
      %v5171 = vpop.permute.xlu0 %5170
      %5172 = vrot.lane.b32.xlu0 %v5134, 32
      %v5173 = vpop.permute.xlu0 %5172
      %5174 = vrot.lane.b32.xlu0 %v5135, 32
      %v5175 = vpop.permute.xlu0 %5174
      %5176 = vrot.lane.b32.xlu0 %v5136, 32
      %v5177 = vpop.permute.xlu0 %5176
      %5178 = vrot.lane.b32.xlu0 %v5137, 32
      %v5179 = vpop.permute.xlu0 %5178
      %5180 = vrot.lane.b32.xlu0 %v5138, 32
      %v5181 = vpop.permute.xlu0 %5180
      %5182 = vrot.lane.b32.xlu0 %v5139, 32
      %v5183 = vpop.permute.xlu0 %5182
      %5184 = vrot.lane.b32.xlu0 %v5140, 32
      %v5185 = vpop.permute.xlu0 %5184
      %5186 = vrot.lane.b32.xlu0 %v5141, 32
      %v5187 = vpop.permute.xlu0 %5186
      %5188 = vrot.lane.b32.xlu0 %v5142, 32
      %v5189 = vpop.permute.xlu0 %5188
      %5190 = vrot.lane.b32.xlu0 %v5143, 32
      %v5191 = vpop.permute.xlu0 %5190
      %v5208 = vadd.f32 %v5112, %v5161
      %v5209 = vadd.f32 %v5113, %v5163
      %v5210 = vadd.f32 %v5114, %v5165
      %v5211 = vadd.f32 %v5115, %v5167
      %v5212 = vadd.f32 %v5116, %v5169
      %v5213 = vadd.f32 %v5117, %v5171
      %v5214 = vadd.f32 %v5118, %v5173
      %v5215 = vadd.f32 %v5119, %v5175
      %v5216 = vadd.f32 %v5120, %v5177
      %v5217 = vadd.f32 %v5121, %v5179
      %v5218 = vadd.f32 %v5122, %v5181
      %v5219 = vadd.f32 %v5123, %v5183
      %v5220 = vadd.f32 %v5124, %v5185
      %v5221 = vadd.f32 %v5125, %v5187
      %v5222 = vadd.f32 %v5126, %v5189
      %v5223 = vadd.f32 %v5127, %v5191
      %5240 = vrot.lane.b32.xlu0 %v5096, 64
      %v5241 = vpop.permute.xlu0 %5240
      %5242 = vrot.lane.b32.xlu0 %v5097, 64
      %v5243 = vpop.permute.xlu0 %5242
      %5244 = vrot.lane.b32.xlu0 %v5098, 64
      %v5245 = vpop.permute.xlu0 %5244
      %5246 = vrot.lane.b32.xlu0 %v5099, 64
      %v5247 = vpop.permute.xlu0 %5246
      %5248 = vrot.lane.b32.xlu0 %v5100, 64
      %v5249 = vpop.permute.xlu0 %5248
      %5250 = vrot.lane.b32.xlu0 %v5101, 64
      %v5251 = vpop.permute.xlu0 %5250
      %5252 = vrot.lane.b32.xlu0 %v5102, 64
      %v5253 = vpop.permute.xlu0 %5252
      %5254 = vrot.lane.b32.xlu0 %v5103, 64
      %v5255 = vpop.permute.xlu0 %5254
      %5256 = vrot.lane.b32.xlu0 %v5104, 64
      %v5257 = vpop.permute.xlu0 %5256
      %5258 = vrot.lane.b32.xlu0 %v5105, 64
      %v5259 = vpop.permute.xlu0 %5258
      %5260 = vrot.lane.b32.xlu0 %v5106, 64
      %v5261 = vpop.permute.xlu0 %5260
      %5262 = vrot.lane.b32.xlu0 %v5107, 64
      %v5263 = vpop.permute.xlu0 %5262
      %5264 = vrot.lane.b32.xlu0 %v5108, 64
      %v5265 = vpop.permute.xlu0 %5264
      %5266 = vrot.lane.b32.xlu0 %v5109, 64
      %v5267 = vpop.permute.xlu0 %5266
      %5268 = vrot.lane.b32.xlu0 %v5110, 64
      %v5269 = vpop.permute.xlu0 %5268
      %5270 = vrot.lane.b32.xlu0 %v5111, 64
      %v5271 = vpop.permute.xlu0 %5270
      %5304 = vrot.lane.b32.xlu0 %v5208, 64
      %v5305 = vpop.permute.xlu0 %5304
      %5306 = vrot.lane.b32.xlu0 %v5209, 64
      %v5307 = vpop.permute.xlu0 %5306
      %5308 = vrot.lane.b32.xlu0 %v5210, 64
      %v5309 = vpop.permute.xlu0 %5308
      %5310 = vrot.lane.b32.xlu0 %v5211, 64
      %v5311 = vpop.permute.xlu0 %5310
      %5312 = vrot.lane.b32.xlu0 %v5212, 64
      %v5313 = vpop.permute.xlu0 %5312
      %5314 = vrot.lane.b32.xlu0 %v5213, 64
      %v5315 = vpop.permute.xlu0 %5314
      %5316 = vrot.lane.b32.xlu0 %v5214, 64
      %v5317 = vpop.permute.xlu0 %5316
      %5318 = vrot.lane.b32.xlu0 %v5215, 64
      %v5319 = vpop.permute.xlu0 %5318
      %5320 = vrot.lane.b32.xlu0 %v5216, 64
      %v5321 = vpop.permute.xlu0 %5320
      %5322 = vrot.lane.b32.xlu0 %v5217, 64
      %v5323 = vpop.permute.xlu0 %5322
      %5324 = vrot.lane.b32.xlu0 %v5218, 64
      %v5325 = vpop.permute.xlu0 %5324
      %5326 = vrot.lane.b32.xlu0 %v5219, 64
      %v5327 = vpop.permute.xlu0 %5326
      %5328 = vrot.lane.b32.xlu0 %v5220, 64
      %v5329 = vpop.permute.xlu0 %5328
      %5330 = vrot.lane.b32.xlu0 %v5221, 64
      %v5331 = vpop.permute.xlu0 %5330
      %5332 = vrot.lane.b32.xlu0 %v5222, 64
      %v5333 = vpop.permute.xlu0 %5332
      %5334 = vrot.lane.b32.xlu0 %v5223, 64
      %v5335 = vpop.permute.xlu0 %5334
      %v5352 = vsel %vm2226, %v5241, %v5305
      %v5353 = vsel %vm2226, %v5243, %v5307
      %v5354 = vsel %vm2226, %v5245, %v5309
      %v5355 = vsel %vm2226, %v5247, %v5311
      %v5356 = vsel %vm2226, %v5249, %v5313
      %v5357 = vsel %vm2226, %v5251, %v5315
      %v5358 = vsel %vm2226, %v5253, %v5317
      %v5359 = vsel %vm2226, %v5255, %v5319
      %v5360 = vsel %vm2226, %v5257, %v5321
      %v5361 = vsel %vm2226, %v5259, %v5323
      %v5362 = vsel %vm2226, %v5261, %v5325
      %v5363 = vsel %vm2226, %v5263, %v5327
      %v5364 = vsel %vm2226, %v5265, %v5329
      %v5365 = vsel %vm2226, %v5267, %v5331
      %v5366 = vsel %vm2226, %v5269, %v5333
      %v5367 = vsel %vm2226, %v5271, %v5335
      %v5368 = vpack.c.bf16 %v5353, %v5352
      %v5369 = vpack.c.bf16 %v5355, %v5354
      %v5370 = vpack.c.bf16 %v5357, %v5356
      %v5371 = vpack.c.bf16 %v5359, %v5358
      %v5372 = vpack.c.bf16 %v5361, %v5360
      %v5373 = vpack.c.bf16 %v5363, %v5362
      %v5374 = vpack.c.bf16 %v5365, %v5364
      %v5375 = vpack.c.bf16 %v5367, %v5366
      %v5376 = vmul.f32 %v1674, %v2807
      %v5377 = vmul.f32 %v1676, %v2809
      %v5378 = vmul.f32 %v1679, %v2811
      %v5379 = vmul.f32 %v1681, %v2813
      %v5380 = vmul.f32 %v1684, %v2815
      %v5381 = vmul.f32 %v1686, %v2817
      %v5382 = vmul.f32 %v1689, %v2819
      %v5383 = vmul.f32 %v1691, %v2821
      %v5384 = vmul.f32 %v1694, %v2823
      %v5385 = vmul.f32 %v1696, %v2825
      %v5386 = vmul.f32 %v1699, %v2827
      %v5387 = vmul.f32 %v1701, %v2829
      %v5388 = vmul.f32 %v1704, %v2831
      %v5389 = vmul.f32 %v1706, %v2833
      %v5390 = vmul.f32 %v1709, %v2835
      %v5391 = vmul.f32 %v1711, %v2837
      %v5392 = vmul.f32 %v1674, %v2871
      %v5393 = vmul.f32 %v1676, %v2873
      %v5394 = vmul.f32 %v1679, %v2875
      %v5395 = vmul.f32 %v1681, %v2877
      %v5396 = vmul.f32 %v1684, %v2879
      %v5397 = vmul.f32 %v1686, %v2881
      %v5398 = vmul.f32 %v1689, %v2883
      %v5399 = vmul.f32 %v1691, %v2885
      %v5400 = vmul.f32 %v1694, %v2887
      %v5401 = vmul.f32 %v1696, %v2889
      %v5402 = vmul.f32 %v1699, %v2891
      %v5403 = vmul.f32 %v1701, %v2893
      %v5404 = vmul.f32 %v1704, %v2895
      %v5405 = vmul.f32 %v1706, %v2897
      %v5406 = vmul.f32 %v1709, %v2899
      %v5407 = vmul.f32 %v1711, %v2901
      %5424 = vrot.lane.b32.xlu0 %v5392, 96
      %v5425 = vpop.permute.xlu0 %5424
      %5426 = vrot.lane.b32.xlu0 %v5393, 96
      %v5427 = vpop.permute.xlu0 %5426
      %5428 = vrot.lane.b32.xlu0 %v5394, 96
      %v5429 = vpop.permute.xlu0 %5428
      %5430 = vrot.lane.b32.xlu0 %v5395, 96
      %v5431 = vpop.permute.xlu0 %5430
      %5432 = vrot.lane.b32.xlu0 %v5396, 96
      %v5433 = vpop.permute.xlu0 %5432
      %5434 = vrot.lane.b32.xlu0 %v5397, 96
      %v5435 = vpop.permute.xlu0 %5434
      %5436 = vrot.lane.b32.xlu0 %v5398, 96
      %v5437 = vpop.permute.xlu0 %5436
      %5438 = vrot.lane.b32.xlu0 %v5399, 96
      %v5439 = vpop.permute.xlu0 %5438
      %5440 = vrot.lane.b32.xlu0 %v5400, 96
      %v5441 = vpop.permute.xlu0 %5440
      %5442 = vrot.lane.b32.xlu0 %v5401, 96
      %v5443 = vpop.permute.xlu0 %5442
      %5444 = vrot.lane.b32.xlu0 %v5402, 96
      %v5445 = vpop.permute.xlu0 %5444
      %5446 = vrot.lane.b32.xlu0 %v5403, 96
      %v5447 = vpop.permute.xlu0 %5446
      %5448 = vrot.lane.b32.xlu0 %v5404, 96
      %v5449 = vpop.permute.xlu0 %5448
      %5450 = vrot.lane.b32.xlu0 %v5405, 96
      %v5451 = vpop.permute.xlu0 %5450
      %5452 = vrot.lane.b32.xlu0 %v5406, 96
      %v5453 = vpop.permute.xlu0 %5452
      %5454 = vrot.lane.b32.xlu0 %v5407, 96
      %v5455 = vpop.permute.xlu0 %5454
      %v5472 = vsub.f32 %v5376, %v5425
      %v5473 = vsub.f32 %v5377, %v5427
      %v5474 = vsub.f32 %v5378, %v5429
      %v5475 = vsub.f32 %v5379, %v5431
      %v5476 = vsub.f32 %v5380, %v5433
      %v5477 = vsub.f32 %v5381, %v5435
      %v5478 = vsub.f32 %v5382, %v5437
      %v5479 = vsub.f32 %v5383, %v5439
      %v5480 = vsub.f32 %v5384, %v5441
      %v5481 = vsub.f32 %v5385, %v5443
      %v5482 = vsub.f32 %v5386, %v5445
      %v5483 = vsub.f32 %v5387, %v5447
      %v5484 = vsub.f32 %v5388, %v5449
      %v5485 = vsub.f32 %v5389, %v5451
      %v5486 = vsub.f32 %v5390, %v5453
      %v5487 = vsub.f32 %v5391, %v5455
      %v5488 = vmul.f32 %v1674, %v3015
      %v5489 = vmul.f32 %v1676, %v3017
      %v5490 = vmul.f32 %v1679, %v3019
      %v5491 = vmul.f32 %v1681, %v3021
      %v5492 = vmul.f32 %v1684, %v3023
      %v5493 = vmul.f32 %v1686, %v3025
      %v5494 = vmul.f32 %v1689, %v3027
      %v5495 = vmul.f32 %v1691, %v3029
      %v5496 = vmul.f32 %v1694, %v3031
      %v5497 = vmul.f32 %v1696, %v3033
      %v5498 = vmul.f32 %v1699, %v3035
      %v5499 = vmul.f32 %v1701, %v3037
      %v5500 = vmul.f32 %v1704, %v3039
      %v5501 = vmul.f32 %v1706, %v3041
      %v5502 = vmul.f32 %v1709, %v3043
      %v5503 = vmul.f32 %v1711, %v3045
      %v5504 = vmul.f32 %v1674, %v3079
      %v5505 = vmul.f32 %v1676, %v3081
      %v5506 = vmul.f32 %v1679, %v3083
      %v5507 = vmul.f32 %v1681, %v3085
      %v5508 = vmul.f32 %v1684, %v3087
      %v5509 = vmul.f32 %v1686, %v3089
      %v5510 = vmul.f32 %v1689, %v3091
      %v5511 = vmul.f32 %v1691, %v3093
      %v5512 = vmul.f32 %v1694, %v3095
      %v5513 = vmul.f32 %v1696, %v3097
      %v5514 = vmul.f32 %v1699, %v3099
      %v5515 = vmul.f32 %v1701, %v3101
      %v5516 = vmul.f32 %v1704, %v3103
      %v5517 = vmul.f32 %v1706, %v3105
      %v5518 = vmul.f32 %v1709, %v3107
      %v5519 = vmul.f32 %v1711, %v3109
      %5536 = vrot.lane.b32.xlu0 %v5504, 32
      %v5537 = vpop.permute.xlu0 %5536
      %5538 = vrot.lane.b32.xlu0 %v5505, 32
      %v5539 = vpop.permute.xlu0 %5538
      %5540 = vrot.lane.b32.xlu0 %v5506, 32
      %v5541 = vpop.permute.xlu0 %5540
      %5542 = vrot.lane.b32.xlu0 %v5507, 32
      %v5543 = vpop.permute.xlu0 %5542
      %5544 = vrot.lane.b32.xlu0 %v5508, 32
      %v5545 = vpop.permute.xlu0 %5544
      %5546 = vrot.lane.b32.xlu0 %v5509, 32
      %v5547 = vpop.permute.xlu0 %5546
      %5548 = vrot.lane.b32.xlu0 %v5510, 32
      %v5549 = vpop.permute.xlu0 %5548
      %5550 = vrot.lane.b32.xlu0 %v5511, 32
      %v5551 = vpop.permute.xlu0 %5550
      %5552 = vrot.lane.b32.xlu0 %v5512, 32
      %v5553 = vpop.permute.xlu0 %5552
      %5554 = vrot.lane.b32.xlu0 %v5513, 32
      %v5555 = vpop.permute.xlu0 %5554
      %5556 = vrot.lane.b32.xlu0 %v5514, 32
      %v5557 = vpop.permute.xlu0 %5556
      %5558 = vrot.lane.b32.xlu0 %v5515, 32
      %v5559 = vpop.permute.xlu0 %5558
      %5560 = vrot.lane.b32.xlu0 %v5516, 32
      %v5561 = vpop.permute.xlu0 %5560
      %5562 = vrot.lane.b32.xlu0 %v5517, 32
      %v5563 = vpop.permute.xlu0 %5562
      %5564 = vrot.lane.b32.xlu0 %v5518, 32
      %v5565 = vpop.permute.xlu0 %5564
      %5566 = vrot.lane.b32.xlu0 %v5519, 32
      %v5567 = vpop.permute.xlu0 %5566
      %v5584 = vadd.f32 %v5488, %v5537
      %v5585 = vadd.f32 %v5489, %v5539
      %v5586 = vadd.f32 %v5490, %v5541
      %v5587 = vadd.f32 %v5491, %v5543
      %v5588 = vadd.f32 %v5492, %v5545
      %v5589 = vadd.f32 %v5493, %v5547
      %v5590 = vadd.f32 %v5494, %v5549
      %v5591 = vadd.f32 %v5495, %v5551
      %v5592 = vadd.f32 %v5496, %v5553
      %v5593 = vadd.f32 %v5497, %v5555
      %v5594 = vadd.f32 %v5498, %v5557
      %v5595 = vadd.f32 %v5499, %v5559
      %v5596 = vadd.f32 %v5500, %v5561
      %v5597 = vadd.f32 %v5501, %v5563
      %v5598 = vadd.f32 %v5502, %v5565
      %v5599 = vadd.f32 %v5503, %v5567
      %5616 = vrot.lane.b32.xlu0 %v5472, 64
      %v5617 = vpop.permute.xlu0 %5616
      %5618 = vrot.lane.b32.xlu0 %v5473, 64
      %v5619 = vpop.permute.xlu0 %5618
      %5620 = vrot.lane.b32.xlu0 %v5474, 64
      %v5621 = vpop.permute.xlu0 %5620
      %5622 = vrot.lane.b32.xlu0 %v5475, 64
      %v5623 = vpop.permute.xlu0 %5622
      %5624 = vrot.lane.b32.xlu0 %v5476, 64
      %v5625 = vpop.permute.xlu0 %5624
      %5626 = vrot.lane.b32.xlu0 %v5477, 64
      %v5627 = vpop.permute.xlu0 %5626
      %5628 = vrot.lane.b32.xlu0 %v5478, 64
      %v5629 = vpop.permute.xlu0 %5628
      %5630 = vrot.lane.b32.xlu0 %v5479, 64
      %v5631 = vpop.permute.xlu0 %5630
      %5632 = vrot.lane.b32.xlu0 %v5480, 64
      %v5633 = vpop.permute.xlu0 %5632
      %5634 = vrot.lane.b32.xlu0 %v5481, 64
      %v5635 = vpop.permute.xlu0 %5634
      %5636 = vrot.lane.b32.xlu0 %v5482, 64
      %v5637 = vpop.permute.xlu0 %5636
      %5638 = vrot.lane.b32.xlu0 %v5483, 64
      %v5639 = vpop.permute.xlu0 %5638
      %5640 = vrot.lane.b32.xlu0 %v5484, 64
      %v5641 = vpop.permute.xlu0 %5640
      %5642 = vrot.lane.b32.xlu0 %v5485, 64
      %v5643 = vpop.permute.xlu0 %5642
      %5644 = vrot.lane.b32.xlu0 %v5486, 64
      %v5645 = vpop.permute.xlu0 %5644
      %5646 = vrot.lane.b32.xlu0 %v5487, 64
      %v5647 = vpop.permute.xlu0 %5646
      %5680 = vrot.lane.b32.xlu0 %v5584, 64
      %v5681 = vpop.permute.xlu0 %5680
      %5682 = vrot.lane.b32.xlu0 %v5585, 64
      %v5683 = vpop.permute.xlu0 %5682
      %5684 = vrot.lane.b32.xlu0 %v5586, 64
      %v5685 = vpop.permute.xlu0 %5684
      %5686 = vrot.lane.b32.xlu0 %v5587, 64
      %v5687 = vpop.permute.xlu0 %5686
      %5688 = vrot.lane.b32.xlu0 %v5588, 64
      %v5689 = vpop.permute.xlu0 %5688
      %5690 = vrot.lane.b32.xlu0 %v5589, 64
      %v5691 = vpop.permute.xlu0 %5690
      %5692 = vrot.lane.b32.xlu0 %v5590, 64
      %v5693 = vpop.permute.xlu0 %5692
      %5694 = vrot.lane.b32.xlu0 %v5591, 64
      %v5695 = vpop.permute.xlu0 %5694
      %5696 = vrot.lane.b32.xlu0 %v5592, 64
      %v5697 = vpop.permute.xlu0 %5696
      %5698 = vrot.lane.b32.xlu0 %v5593, 64
      %v5699 = vpop.permute.xlu0 %5698
      %5700 = vrot.lane.b32.xlu0 %v5594, 64
      %v5701 = vpop.permute.xlu0 %5700
      %5702 = vrot.lane.b32.xlu0 %v5595, 64
      %v5703 = vpop.permute.xlu0 %5702
      %5704 = vrot.lane.b32.xlu0 %v5596, 64
      %v5705 = vpop.permute.xlu0 %5704
      %5706 = vrot.lane.b32.xlu0 %v5597, 64
      %v5707 = vpop.permute.xlu0 %5706
      %5708 = vrot.lane.b32.xlu0 %v5598, 64
      %v5709 = vpop.permute.xlu0 %5708
      %5710 = vrot.lane.b32.xlu0 %v5599, 64
      %v5711 = vpop.permute.xlu0 %5710
      %v5728 = vsel %vm2226, %v5617, %v5681
      %v5729 = vsel %vm2226, %v5619, %v5683
      %v5730 = vsel %vm2226, %v5621, %v5685
      %v5731 = vsel %vm2226, %v5623, %v5687
      %v5732 = vsel %vm2226, %v5625, %v5689
      %v5733 = vsel %vm2226, %v5627, %v5691
      %v5734 = vsel %vm2226, %v5629, %v5693
      %v5735 = vsel %vm2226, %v5631, %v5695
      %v5736 = vsel %vm2226, %v5633, %v5697
      %v5737 = vsel %vm2226, %v5635, %v5699
      %v5738 = vsel %vm2226, %v5637, %v5701
      %v5739 = vsel %vm2226, %v5639, %v5703
      %v5740 = vsel %vm2226, %v5641, %v5705
      %v5741 = vsel %vm2226, %v5643, %v5707
      %v5742 = vsel %vm2226, %v5645, %v5709
      %v5743 = vsel %vm2226, %v5647, %v5711
      %v5744 = vpack.c.bf16 %v5729, %v5728
      %v5745 = vpack.c.bf16 %v5731, %v5730
      %v5746 = vpack.c.bf16 %v5733, %v5732
      %v5747 = vpack.c.bf16 %v5735, %v5734
      %v5748 = vpack.c.bf16 %v5737, %v5736
      %v5749 = vpack.c.bf16 %v5739, %v5738
      %v5750 = vpack.c.bf16 %v5741, %v5740
      %v5751 = vpack.c.bf16 %v5743, %v5742
      %v5753 = vsel %vm2507, %v5368, 0
      %v5756 = vsel %vm2507, %v5369, 0
      %v5759 = vsel %vm2507, %v5370, 0
      %v5762 = vsel %vm2507, %v5371, 0
      %v5765 = vsel %vm2507, %v5372, 0
      %v5768 = vsel %vm2507, %v5373, 0
      %v5771 = vsel %vm2507, %v5374, 0
      %v5774 = vsel %vm2507, %v5375, 0
      %v5777 = vsel %vm2507, %v5744, 0
      %v5780 = vsel %vm2507, %v5745, 0
      %v5783 = vsel %vm2507, %v5746, 0
      %v5786 = vsel %vm2507, %v5747, 0
      %v5789 = vsel %vm2507, %v5748, 0
      %v5792 = vsel %vm2507, %v5749, 0
      %v5795 = vsel %vm2507, %v5750, 0
      %v5798 = vsel %vm2507, %v5751, 0
      %5800 = vmatpush.bf16.xpose.msra.mxu0 %v5798
      %5801 = vmatpush.bf16.xpose.msra.mxu0 %v5795
      %5802 = vmatpush.bf16.xpose.msra.mxu0 %v5792
      %5803 = vmatpush.bf16.xpose.msra.mxu0 %v5789
      %5804 = vmatpush.bf16.xpose.msra.mxu0 %v5786
      %5805 = vmatpush.bf16.xpose.msra.mxu0 %v5783
      %5806 = vmatpush.bf16.xpose.msra.mxu0 %v5780
      %5807 = vmatpush.bf16.xpose.msra.mxu0 %v5777
      %5808 = vmatmul.bf16.gmra.mxu0 %v5753
      %v5809 = vpop.f32.mrf.mxu0
      %v5810 = vadd.f32 %v4182, %v5809
      %v5811 = vpop.f32.mrf.mxu0
      %v5812 = vadd.f32 %v4183, %v5811
      %5813 = vmatmul.bf16.gmra.mxu0 %v5756
      %v5814 = vpop.f32.mrf.mxu0
      %v5815 = vadd.f32 %v4184, %v5814
      %v5816 = vpop.f32.mrf.mxu0
      %v5817 = vadd.f32 %v4185, %v5816
      %5818 = vmatmul.bf16.gmra.mxu0 %v5759
      %v5819 = vpop.f32.mrf.mxu0
      %v5820 = vadd.f32 %v4186, %v5819
      %v5821 = vpop.f32.mrf.mxu0
      %v5822 = vadd.f32 %v4187, %v5821
      %5823 = vmatmul.bf16.gmra.mxu0 %v5762
      %v5824 = vpop.f32.mrf.mxu0
      %v5825 = vadd.f32 %v4188, %v5824
      %v5826 = vpop.f32.mrf.mxu0
      %v5827 = vadd.f32 %v4189, %v5826
      %5828 = vmatmul.bf16.gmra.mxu0 %v5765
      %v5829 = vpop.f32.mrf.mxu0
      %v5830 = vadd.f32 %v4190, %v5829
      %v5831 = vpop.f32.mrf.mxu0
      %v5832 = vadd.f32 %v4191, %v5831
      %5833 = vmatmul.bf16.gmra.mxu0 %v5768
      %v5834 = vpop.f32.mrf.mxu0
      %v5835 = vadd.f32 %v4192, %v5834
      %v5836 = vpop.f32.mrf.mxu0
      %v5837 = vadd.f32 %v4193, %v5836
      %5838 = vmatmul.bf16.gmra.mxu0 %v5771
      %v5839 = vpop.f32.mrf.mxu0
      %v5840 = vadd.f32 %v4194, %v5839
      %v5841 = vpop.f32.mrf.mxu0
      %v5842 = vadd.f32 %v4195, %v5841
      %5843 = vmatmul.bf16.gmra.mxu0 %v5774
      %v5844 = vpop.f32.mrf.mxu0
      %v5845 = vadd.f32 %v4196, %v5844
      %v5846 = vpop.f32.mrf.mxu0
      %v5847 = vadd.f32 %v4197, %v5846
      %5848 = vdwg.mxu0
      %5849 = vmax.xlane.f32.xlu0 %v5810
      %v5850 = vpop.xlane.xlu0 %5849
      %5851 = vmax.xlane.f32.xlu0 %v5812
      %v5852 = vpop.xlane.xlu0 %5851
      %5853 = vmax.xlane.f32.xlu0 %v5815
      %v5854 = vpop.xlane.xlu0 %5853
      %5855 = vmax.xlane.f32.xlu0 %v5817
      %v5856 = vpop.xlane.xlu0 %5855
      %5857 = vmax.xlane.f32.xlu0 %v5820
      %v5858 = vpop.xlane.xlu0 %5857
      %5859 = vmax.xlane.f32.xlu0 %v5822
      %v5860 = vpop.xlane.xlu0 %5859
      %5861 = vmax.xlane.f32.xlu0 %v5825
      %v5862 = vpop.xlane.xlu0 %5861
      %5863 = vmax.xlane.f32.xlu0 %v5827
      %v5864 = vpop.xlane.xlu0 %5863
      %5865 = vmax.xlane.f32.xlu0 %v5830
      %v5866 = vpop.xlane.xlu0 %5865
      %5867 = vmax.xlane.f32.xlu0 %v5832
      %v5868 = vpop.xlane.xlu0 %5867
      %5869 = vmax.xlane.f32.xlu0 %v5835
      %v5870 = vpop.xlane.xlu0 %5869
      %5871 = vmax.xlane.f32.xlu0 %v5837
      %v5872 = vpop.xlane.xlu0 %5871
      %5873 = vmax.xlane.f32.xlu0 %v5840
      %v5874 = vpop.xlane.xlu0 %5873
      %5875 = vmax.xlane.f32.xlu0 %v5842
      %v5876 = vpop.xlane.xlu0 %5875
      %5877 = vmax.xlane.f32.xlu0 %v5845
      %v5878 = vpop.xlane.xlu0 %5877
      %5879 = vmax.xlane.f32.xlu0 %v5847
      %v5880 = vpop.xlane.xlu0 %5879
      %v5881 = vsub.f32 %v5810, %v5850
      %v5882 = vsub.f32 %v5812, %v5852
      %v5883 = vsub.f32 %v5815, %v5854
      %v5884 = vsub.f32 %v5817, %v5856
      %v5885 = vsub.f32 %v5820, %v5858
      %v5886 = vsub.f32 %v5822, %v5860
      %v5887 = vsub.f32 %v5825, %v5862
      %v5888 = vsub.f32 %v5827, %v5864
      %v5889 = vsub.f32 %v5830, %v5866
      %v5890 = vsub.f32 %v5832, %v5868
      %v5891 = vsub.f32 %v5835, %v5870
      %v5892 = vsub.f32 %v5837, %v5872
      %v5893 = vsub.f32 %v5840, %v5874
      %v5894 = vsub.f32 %v5842, %v5876
      %v5895 = vsub.f32 %v5845, %v5878
      %v5896 = vsub.f32 %v5847, %v5880
      %v5897 = vmul.f32 %v5881, 1.442695
      %v5898 = vpow.pop %v5897
      %v5899 = vmul.f32 %v5882, 1.442695
      %v5900 = vpow.pop %v5899
      %v5901 = vmul.f32 %v5883, 1.442695
      %v5902 = vpow.pop %v5901
      %v5903 = vmul.f32 %v5884, 1.442695
      %v5904 = vpow.pop %v5903
      %v5905 = vmul.f32 %v5885, 1.442695
      %v5906 = vpow.pop %v5905
      %v5907 = vmul.f32 %v5886, 1.442695
      %v5908 = vpow.pop %v5907
      %v5909 = vmul.f32 %v5887, 1.442695
      %v5910 = vpow.pop %v5909
      %v5911 = vmul.f32 %v5888, 1.442695
      %v5912 = vpow.pop %v5911
      %v5913 = vmul.f32 %v5889, 1.442695
      %v5914 = vpow.pop %v5913
      %v5915 = vmul.f32 %v5890, 1.442695
      %v5916 = vpow.pop %v5915
      %v5917 = vmul.f32 %v5891, 1.442695
      %v5918 = vpow.pop %v5917
      %v5919 = vmul.f32 %v5892, 1.442695
      %v5920 = vpow.pop %v5919
      %v5921 = vmul.f32 %v5893, 1.442695
      %v5922 = vpow.pop %v5921
      %v5923 = vmul.f32 %v5894, 1.442695
      %v5924 = vpow.pop %v5923
      %v5925 = vmul.f32 %v5895, 1.442695
      %v5926 = vpow.pop %v5925
      %v5927 = vmul.f32 %v5896, 1.442695
      %v5928 = vpow.pop %v5927
      %5929 = vadd.xlane.f32.xlu0 %v5898
      %v5930 = vpop.xlane.xlu0 %5929
      %5931 = vadd.xlane.f32.xlu0 %v5900
      %v5932 = vpop.xlane.xlu0 %5931
      %5933 = vadd.xlane.f32.xlu0 %v5902
      %v5934 = vpop.xlane.xlu0 %5933
      %5935 = vadd.xlane.f32.xlu0 %v5904
      %v5936 = vpop.xlane.xlu0 %5935
      %5937 = vadd.xlane.f32.xlu0 %v5906
      %v5938 = vpop.xlane.xlu0 %5937
      %5939 = vadd.xlane.f32.xlu0 %v5908
      %v5940 = vpop.xlane.xlu0 %5939
      %5941 = vadd.xlane.f32.xlu0 %v5910
      %v5942 = vpop.xlane.xlu0 %5941
      %5943 = vadd.xlane.f32.xlu0 %v5912
      %v5944 = vpop.xlane.xlu0 %5943
      %5945 = vadd.xlane.f32.xlu0 %v5914
      %v5946 = vpop.xlane.xlu0 %5945
      %5947 = vadd.xlane.f32.xlu0 %v5916
      %v5948 = vpop.xlane.xlu0 %5947
      %5949 = vadd.xlane.f32.xlu0 %v5918
      %v5950 = vpop.xlane.xlu0 %5949
      %5951 = vadd.xlane.f32.xlu0 %v5920
      %v5952 = vpop.xlane.xlu0 %5951
      %5953 = vadd.xlane.f32.xlu0 %v5922
      %v5954 = vpop.xlane.xlu0 %5953
      %5955 = vadd.xlane.f32.xlu0 %v5924
      %v5956 = vpop.xlane.xlu0 %5955
      %5957 = vadd.xlane.f32.xlu0 %v5926
      %v5958 = vpop.xlane.xlu0 %5957
      %5959 = vadd.xlane.f32.xlu0 %v5928
      %v5960 = vpop.xlane.xlu0 %5959
      %v5961 = vrcp.pop %v5930
      %v5962 = vrcp.pop %v5932
      %v5963 = vrcp.pop %v5934
      %v5964 = vrcp.pop %v5936
      %v5965 = vrcp.pop %v5938
      %v5966 = vrcp.pop %v5940
      %v5967 = vrcp.pop %v5942
      %v5968 = vrcp.pop %v5944
      %v5969 = vrcp.pop %v5946
      %v5970 = vrcp.pop %v5948
      %v5971 = vrcp.pop %v5950
      %v5972 = vrcp.pop %v5952
      %v5973 = vrcp.pop %v5954
      %v5974 = vrcp.pop %v5956
      %v5975 = vrcp.pop %v5958
      %v5976 = vrcp.pop %v5960
      %v5977 = vmul.f32 %v5898, %v5961
      %v5978 = vmul.f32 %v5900, %v5962
      %v5979 = vmul.f32 %v5902, %v5963
      %v5980 = vmul.f32 %v5904, %v5964
      %v5981 = vmul.f32 %v5906, %v5965
      %v5982 = vmul.f32 %v5908, %v5966
      %v5983 = vmul.f32 %v5910, %v5967
      %v5984 = vmul.f32 %v5912, %v5968
      %v5985 = vmul.f32 %v5914, %v5969
      %v5986 = vmul.f32 %v5916, %v5970
      %v5987 = vmul.f32 %v5918, %v5971
      %v5988 = vmul.f32 %v5920, %v5972
      %v5989 = vmul.f32 %v5922, %v5973
      %v5990 = vmul.f32 %v5924, %v5974
      %v5991 = vmul.f32 %v5926, %v5975
      %v5992 = vmul.f32 %v5928, %v5976
      %v5993 = vpack.c.bf16 %v5978, %v5977
      %v5994 = vpack.c.bf16 %v5980, %v5979
      %v5995 = vpack.c.bf16 %v5982, %v5981
      %v5996 = vpack.c.bf16 %v5984, %v5983
      %v5997 = vpack.c.bf16 %v5986, %v5985
      %v5998 = vpack.c.bf16 %v5988, %v5987
      %v5999 = vpack.c.bf16 %v5990, %v5989
      %v6000 = vpack.c.bf16 %v5992, %v5991
      %6009 = vrot.lane.b32.xlu0 %v4694, 64
      %v6010 = vpop.permute.xlu0 %6009
      %6011 = vrot.lane.b32.xlu0 %v4695, 64
      %v6012 = vpop.permute.xlu0 %6011
      %6013 = vrot.lane.b32.xlu0 %v4696, 64
      %v6014 = vpop.permute.xlu0 %6013
      %6015 = vrot.lane.b32.xlu0 %v4697, 64
      %v6016 = vpop.permute.xlu0 %6015
      %6017 = vrot.lane.b32.xlu0 %v4698, 64
      %v6018 = vpop.permute.xlu0 %6017
      %6019 = vrot.lane.b32.xlu0 %v4699, 64
      %v6020 = vpop.permute.xlu0 %6019
      %6021 = vrot.lane.b32.xlu0 %v4700, 64
      %v6022 = vpop.permute.xlu0 %6021
      %6023 = vrot.lane.b32.xlu0 %v4701, 64
      %v6024 = vpop.permute.xlu0 %6023
      %6033 = vmatpush.bf16.msra.mxu0 %v6024
      %6034 = vmatpush.bf16.msra.mxu0 %v6022
      %6035 = vmatpush.bf16.msra.mxu0 %v6020
      %6036 = vmatpush.bf16.msra.mxu0 %v6018
      %6037 = vmatpush.bf16.msra.mxu0 %v6016
      %6038 = vmatpush.bf16.msra.mxu0 %v6014
      %6039 = vmatpush.bf16.msra.mxu0 %v6012
      %6040 = vmatpush.bf16.msra.mxu0 %v6010
      %6041 = vmatmul.bf16.gmra.mxu0 %v5993
      %v6042 = vpop.f32.mrf.mxu0
      %v6043 = vadd.f32 0.0, %v6042
      %v6044 = vpop.f32.mrf.mxu0
      %v6045 = vadd.f32 0.0, %v6044
      %6046 = vmatmul.bf16.gmra.mxu0 %v5994
      %v6047 = vpop.f32.mrf.mxu0
      %v6048 = vadd.f32 0.0, %v6047
      %v6049 = vpop.f32.mrf.mxu0
      %v6050 = vadd.f32 0.0, %v6049
      %6051 = vmatmul.bf16.gmra.mxu0 %v5995
      %v6052 = vpop.f32.mrf.mxu0
      %v6053 = vadd.f32 0.0, %v6052
      %v6054 = vpop.f32.mrf.mxu0
      %v6055 = vadd.f32 0.0, %v6054
      %6056 = vmatmul.bf16.gmra.mxu0 %v5996
      %v6057 = vpop.f32.mrf.mxu0
      %v6058 = vadd.f32 0.0, %v6057
      %v6059 = vpop.f32.mrf.mxu0
      %v6060 = vadd.f32 0.0, %v6059
      %6061 = vmatmul.bf16.gmra.mxu0 %v5997
      %v6062 = vpop.f32.mrf.mxu0
      %v6063 = vadd.f32 0.0, %v6062
      %v6064 = vpop.f32.mrf.mxu0
      %v6065 = vadd.f32 0.0, %v6064
      %6066 = vmatmul.bf16.gmra.mxu0 %v5998
      %v6067 = vpop.f32.mrf.mxu0
      %v6068 = vadd.f32 0.0, %v6067
      %v6069 = vpop.f32.mrf.mxu0
      %v6070 = vadd.f32 0.0, %v6069
      %6071 = vmatmul.bf16.gmra.mxu0 %v5999
      %v6072 = vpop.f32.mrf.mxu0
      %v6073 = vadd.f32 0.0, %v6072
      %v6074 = vpop.f32.mrf.mxu0
      %v6075 = vadd.f32 0.0, %v6074
      %6076 = vmatmul.bf16.gmra.mxu0 %v6000
      %v6077 = vpop.f32.mrf.mxu0
      %v6078 = vadd.f32 0.0, %v6077
      %v6079 = vpop.f32.mrf.mxu0
      %v6080 = vadd.f32 0.0, %v6079
      %6081 = vdwg.mxu0
      %6098 = vrot.lane.b32.xlu0 %v6043, 64
      %v6099 = vpop.permute.xlu0 %6098
      %6100 = vrot.lane.b32.xlu0 %v6045, 64
      %v6101 = vpop.permute.xlu0 %6100
      %6102 = vrot.lane.b32.xlu0 %v6048, 64
      %v6103 = vpop.permute.xlu0 %6102
      %6104 = vrot.lane.b32.xlu0 %v6050, 64
      %v6105 = vpop.permute.xlu0 %6104
      %6106 = vrot.lane.b32.xlu0 %v6053, 64
      %v6107 = vpop.permute.xlu0 %6106
      %6108 = vrot.lane.b32.xlu0 %v6055, 64
      %v6109 = vpop.permute.xlu0 %6108
      %6110 = vrot.lane.b32.xlu0 %v6058, 64
      %v6111 = vpop.permute.xlu0 %6110
      %6112 = vrot.lane.b32.xlu0 %v6060, 64
      %v6113 = vpop.permute.xlu0 %6112
      %6114 = vrot.lane.b32.xlu0 %v6063, 64
      %v6115 = vpop.permute.xlu0 %6114
      %6116 = vrot.lane.b32.xlu0 %v6065, 64
      %v6117 = vpop.permute.xlu0 %6116
      %6118 = vrot.lane.b32.xlu0 %v6068, 64
      %v6119 = vpop.permute.xlu0 %6118
      %6120 = vrot.lane.b32.xlu0 %v6070, 64
      %v6121 = vpop.permute.xlu0 %6120
      %6122 = vrot.lane.b32.xlu0 %v6073, 64
      %v6123 = vpop.permute.xlu0 %6122
      %6124 = vrot.lane.b32.xlu0 %v6075, 64
      %v6125 = vpop.permute.xlu0 %6124
      %6126 = vrot.lane.b32.xlu0 %v6078, 64
      %v6127 = vpop.permute.xlu0 %6126
      %6128 = vrot.lane.b32.xlu0 %v6080, 64
      %v6129 = vpop.permute.xlu0 %6128
      %v6146 = vsel %vm2507, %v4961, %v6099
      %v6147 = vsel %vm2507, %v4963, %v6101
      %v6148 = vsel %vm2507, %v4966, %v6103
      %v6149 = vsel %vm2507, %v4968, %v6105
      %v6150 = vsel %vm2507, %v4971, %v6107
      %v6151 = vsel %vm2507, %v4973, %v6109
      %v6152 = vsel %vm2507, %v4976, %v6111
      %v6153 = vsel %vm2507, %v4978, %v6113
      %v6154 = vsel %vm2507, %v4981, %v6115
      %v6155 = vsel %vm2507, %v4983, %v6117
      %v6156 = vsel %vm2507, %v4986, %v6119
      %v6157 = vsel %vm2507, %v4988, %v6121
      %v6158 = vsel %vm2507, %v4991, %v6123
      %v6159 = vsel %vm2507, %v4993, %v6125
      %v6160 = vsel %vm2507, %v4996, %v6127
      %v6161 = vsel %vm2507, %v4998, %v6129
      %v6162 = vpack.c.bf16 %v4145, %v4144
      %v6163 = vpack.c.bf16 %v4147, %v4146
      %v6164 = vpack.c.bf16 %v4149, %v4148
      %v6165 = vpack.c.bf16 %v4151, %v4150
      %v6166 = vpack.c.bf16 %v4153, %v4152
      %v6167 = vpack.c.bf16 %v4155, %v4154
      %v6168 = vpack.c.bf16 %v4157, %v4156
      %v6169 = vpack.c.bf16 %v4159, %v4158
      %v6170 = vpack.c.bf16 %v6147, %v6146
      %v6171 = vpack.c.bf16 %v6149, %v6148
      %v6172 = vpack.c.bf16 %v6151, %v6150
      %v6173 = vpack.c.bf16 %v6153, %v6152
      %v6174 = vpack.c.bf16 %v6155, %v6154
      %v6175 = vpack.c.bf16 %v6157, %v6156
      %v6176 = vpack.c.bf16 %v6159, %v6158
      %v6177 = vpack.c.bf16 %v6161, %v6160
      %v6178 = vld [vmem:[%s515] sm:$0xf]
      %v6179 = vld [vmem:[%s515 + $0x4] sm:$0xf]
      %v6180 = vld [vmem:[%s515 + $0x8] sm:$0xf]
      %v6181 = vld [vmem:[%s515 + $0xc] sm:$0xf]
      %v6182 = vld [vmem:[%s515 + $0x10] sm:$0xf]
      %v6183 = vld [vmem:[%s515 + $0x14] sm:$0xf]
      %v6184 = vld [vmem:[%s515 + $0x18] sm:$0xf]
      %v6185 = vld [vmem:[%s515 + $0x1c] sm:$0xf]
      %v6186 = vld [vmem:[%s515 + $0x20] sm:$0xf]
      %v6187 = vld [vmem:[%s515 + $0x24] sm:$0xf]
      %v6188 = vld [vmem:[%s515 + $0x28] sm:$0xf]
      %v6189 = vld [vmem:[%s515 + $0x2c] sm:$0xf]
      %v6190 = vld [vmem:[%s515 + $0x30] sm:$0xf]
      %v6191 = vld [vmem:[%s515 + $0x34] sm:$0xf]
      %v6192 = vld [vmem:[%s515 + $0x38] sm:$0xf]
      %v6193 = vld [vmem:[%s515 + $0x3c] sm:$0xf]
      %v6210 = vunpack.c.l.b16 %v6178
      %v6211 = vunpack.c.l.b16 %v6179
      %v6212 = vunpack.c.l.b16 %v6180
      %v6213 = vunpack.c.l.b16 %v6181
      %v6214 = vunpack.c.l.b16 %v6182
      %v6215 = vunpack.c.l.b16 %v6183
      %v6216 = vunpack.c.l.b16 %v6184
      %v6217 = vunpack.c.l.b16 %v6185
      %v6218 = vunpack.c.l.b16 %v6186
      %v6219 = vunpack.c.l.b16 %v6187
      %v6220 = vunpack.c.l.b16 %v6188
      %v6221 = vunpack.c.l.b16 %v6189
      %v6222 = vunpack.c.l.b16 %v6190
      %v6223 = vunpack.c.l.b16 %v6191
      %v6224 = vunpack.c.l.b16 %v6192
      %v6225 = vunpack.c.l.b16 %v6193
      %v6226 = vpack.c.b16 %v6211, %v6210
      %v6227 = vpack.c.b16 %v6213, %v6212
      %v6228 = vpack.c.b16 %v6215, %v6214
      %v6229 = vpack.c.b16 %v6217, %v6216
      %v6230 = vpack.c.b16 %v6219, %v6218
      %v6231 = vpack.c.b16 %v6221, %v6220
      %v6232 = vpack.c.b16 %v6223, %v6222
      %v6233 = vpack.c.b16 %v6225, %v6224
      %6242 = vmatpush.bf16.msra.mxu0 %v6233
      %6243 = vmatpush.bf16.msra.mxu0 %v6232
      %6244 = vmatpush.bf16.msra.mxu0 %v6231
      %6245 = vmatpush.bf16.msra.mxu0 %v6230
      %6246 = vmatpush.bf16.msra.mxu0 %v6229
      %6247 = vmatpush.bf16.msra.mxu0 %v6228
      %6248 = vmatpush.bf16.msra.mxu0 %v6227
      %6249 = vmatpush.bf16.msra.mxu0 %v6226
      %6250 = vmatmul.bf16.gmra.mxu0 %v6162
      %v6251 = vpop.f32.mrf.mxu0
      %v6252 = vadd.f32 0.0, %v6251
      %v6253 = vpop.f32.mrf.mxu0
      %v6254 = vadd.f32 0.0, %v6253
      %6255 = vmatmul.bf16.gmra.mxu0 %v6163
      %v6256 = vpop.f32.mrf.mxu0
      %v6257 = vadd.f32 0.0, %v6256
      %v6258 = vpop.f32.mrf.mxu0
      %v6259 = vadd.f32 0.0, %v6258
      %6260 = vmatmul.bf16.gmra.mxu0 %v6164
      %v6261 = vpop.f32.mrf.mxu0
      %v6262 = vadd.f32 0.0, %v6261
      %v6263 = vpop.f32.mrf.mxu0
      %v6264 = vadd.f32 0.0, %v6263
      %6265 = vmatmul.bf16.gmra.mxu0 %v6165
      %v6266 = vpop.f32.mrf.mxu0
      %v6267 = vadd.f32 0.0, %v6266
      %v6268 = vpop.f32.mrf.mxu0
      %v6269 = vadd.f32 0.0, %v6268
      %6270 = vmatmul.bf16.gmra.mxu0 %v6166
      %v6271 = vpop.f32.mrf.mxu0
      %v6272 = vadd.f32 0.0, %v6271
      %v6273 = vpop.f32.mrf.mxu0
      %v6274 = vadd.f32 0.0, %v6273
      %6275 = vmatmul.bf16.gmra.mxu0 %v6167
      %v6276 = vpop.f32.mrf.mxu0
      %v6277 = vadd.f32 0.0, %v6276
      %v6278 = vpop.f32.mrf.mxu0
      %v6279 = vadd.f32 0.0, %v6278
      %6280 = vmatmul.bf16.gmra.mxu0 %v6168
      %v6281 = vpop.f32.mrf.mxu0
      %v6282 = vadd.f32 0.0, %v6281
      %v6283 = vpop.f32.mrf.mxu0
      %v6284 = vadd.f32 0.0, %v6283
      %6285 = vmatmul.bf16.gmra.mxu0 %v6169
      %v6286 = vpop.f32.mrf.mxu0
      %v6287 = vadd.f32 0.0, %v6286
      %v6288 = vpop.f32.mrf.mxu0
      %v6289 = vadd.f32 0.0, %v6288
      %6290 = vmatmul.bf16.gmra.mxu0 %v6170
      %v6291 = vpop.f32.mrf.mxu0
      %v6292 = vadd.f32 0.0, %v6291
      %v6293 = vpop.f32.mrf.mxu0
      %v6294 = vadd.f32 0.0, %v6293
      %6295 = vmatmul.bf16.gmra.mxu0 %v6171
      %v6296 = vpop.f32.mrf.mxu0
      %v6297 = vadd.f32 0.0, %v6296
      %v6298 = vpop.f32.mrf.mxu0
      %v6299 = vadd.f32 0.0, %v6298
      %6300 = vmatmul.bf16.gmra.mxu0 %v6172
      %v6301 = vpop.f32.mrf.mxu0
      %v6302 = vadd.f32 0.0, %v6301
      %v6303 = vpop.f32.mrf.mxu0
      %v6304 = vadd.f32 0.0, %v6303
      %6305 = vmatmul.bf16.gmra.mxu0 %v6173
      %v6306 = vpop.f32.mrf.mxu0
      %v6307 = vadd.f32 0.0, %v6306
      %v6308 = vpop.f32.mrf.mxu0
      %v6309 = vadd.f32 0.0, %v6308
      %6310 = vmatmul.bf16.gmra.mxu0 %v6174
      %v6311 = vpop.f32.mrf.mxu0
      %v6312 = vadd.f32 0.0, %v6311
      %v6313 = vpop.f32.mrf.mxu0
      %v6314 = vadd.f32 0.0, %v6313
      %6315 = vmatmul.bf16.gmra.mxu0 %v6175
      %v6316 = vpop.f32.mrf.mxu0
      %v6317 = vadd.f32 0.0, %v6316
      %v6318 = vpop.f32.mrf.mxu0
      %v6319 = vadd.f32 0.0, %v6318
      %6320 = vmatmul.bf16.gmra.mxu0 %v6176
      %v6321 = vpop.f32.mrf.mxu0
      %v6322 = vadd.f32 0.0, %v6321
      %v6323 = vpop.f32.mrf.mxu0
      %v6324 = vadd.f32 0.0, %v6323
      %6325 = vmatmul.bf16.gmra.mxu0 %v6177
      %v6326 = vpop.f32.mrf.mxu0
      %v6327 = vadd.f32 0.0, %v6326
      %v6328 = vpop.f32.mrf.mxu0
      %v6329 = vadd.f32 0.0, %v6328
      %6330 = vdwg.mxu0
      %v6331 = vadd.f32 %v776, %v6252
      %v6332 = vadd.f32 %v777, %v6254
      %v6333 = vadd.f32 %v778, %v6257
      %v6334 = vadd.f32 %v779, %v6259
      %v6335 = vadd.f32 %v780, %v6262
      %v6336 = vadd.f32 %v781, %v6264
      %v6337 = vadd.f32 %v782, %v6267
      %v6338 = vadd.f32 %v783, %v6269
      %v6339 = vadd.f32 %v784, %v6272
      %v6340 = vadd.f32 %v785, %v6274
      %v6341 = vadd.f32 %v786, %v6277
      %v6342 = vadd.f32 %v787, %v6279
      %v6343 = vadd.f32 %v788, %v6282
      %v6344 = vadd.f32 %v789, %v6284
      %v6345 = vadd.f32 %v790, %v6287
      %v6346 = vadd.f32 %v791, %v6289
      %v6347 = vadd.f32 %v792, %v6292
      %v6348 = vadd.f32 %v793, %v6294
      %v6349 = vadd.f32 %v794, %v6297
      %v6350 = vadd.f32 %v795, %v6299
      %v6351 = vadd.f32 %v796, %v6302
      %v6352 = vadd.f32 %v797, %v6304
      %v6353 = vadd.f32 %v798, %v6307
      %v6354 = vadd.f32 %v799, %v6309
      %v6355 = vadd.f32 %v800, %v6312
      %v6356 = vadd.f32 %v801, %v6314
      %v6357 = vadd.f32 %v802, %v6317
      %v6358 = vadd.f32 %v803, %v6319
      %v6359 = vadd.f32 %v804, %v6322
      %v6360 = vadd.f32 %v805, %v6324
      %v6361 = vadd.f32 %v806, %v6327
      %v6362 = vadd.f32 %v807, %v6329
      %v6363 = vmul.f32 %v6331, %v6331
      %v6364 = vmul.f32 %v6332, %v6332
      %v6365 = vmul.f32 %v6333, %v6333
      %v6366 = vmul.f32 %v6334, %v6334
      %v6367 = vmul.f32 %v6335, %v6335
      %v6368 = vmul.f32 %v6336, %v6336
      %v6369 = vmul.f32 %v6337, %v6337
      %v6370 = vmul.f32 %v6338, %v6338
      %v6371 = vmul.f32 %v6339, %v6339
      %v6372 = vmul.f32 %v6340, %v6340
      %v6373 = vmul.f32 %v6341, %v6341
      %v6374 = vmul.f32 %v6342, %v6342
      %v6375 = vmul.f32 %v6343, %v6343
      %v6376 = vmul.f32 %v6344, %v6344
      %v6377 = vmul.f32 %v6345, %v6345
      %v6378 = vmul.f32 %v6346, %v6346
      %v6379 = vmul.f32 %v6347, %v6347
      %v6380 = vmul.f32 %v6348, %v6348
      %v6381 = vmul.f32 %v6349, %v6349
      %v6382 = vmul.f32 %v6350, %v6350
      %v6383 = vmul.f32 %v6351, %v6351
      %v6384 = vmul.f32 %v6352, %v6352
      %v6385 = vmul.f32 %v6353, %v6353
      %v6386 = vmul.f32 %v6354, %v6354
      %v6387 = vmul.f32 %v6355, %v6355
      %v6388 = vmul.f32 %v6356, %v6356
      %v6389 = vmul.f32 %v6357, %v6357
      %v6390 = vmul.f32 %v6358, %v6358
      %v6391 = vmul.f32 %v6359, %v6359
      %v6392 = vmul.f32 %v6360, %v6360
      %v6393 = vmul.f32 %v6361, %v6361
      %v6394 = vmul.f32 %v6362, %v6362
      %6395 = vadd.xlane.f32.xlu0 %v6363
      %v6396 = vpop.xlane.xlu0 %6395
      %6397 = vadd.xlane.f32.xlu0 %v6364
      %v6398 = vpop.xlane.xlu0 %6397
      %6399 = vadd.xlane.f32.xlu0 %v6365
      %v6400 = vpop.xlane.xlu0 %6399
      %6401 = vadd.xlane.f32.xlu0 %v6366
      %v6402 = vpop.xlane.xlu0 %6401
      %6403 = vadd.xlane.f32.xlu0 %v6367
      %v6404 = vpop.xlane.xlu0 %6403
      %6405 = vadd.xlane.f32.xlu0 %v6368
      %v6406 = vpop.xlane.xlu0 %6405
      %6407 = vadd.xlane.f32.xlu0 %v6369
      %v6408 = vpop.xlane.xlu0 %6407
      %6409 = vadd.xlane.f32.xlu0 %v6370
      %v6410 = vpop.xlane.xlu0 %6409
      %6411 = vadd.xlane.f32.xlu0 %v6371
      %v6412 = vpop.xlane.xlu0 %6411
      %6413 = vadd.xlane.f32.xlu0 %v6372
      %v6414 = vpop.xlane.xlu0 %6413
      %6415 = vadd.xlane.f32.xlu0 %v6373
      %v6416 = vpop.xlane.xlu0 %6415
      %6417 = vadd.xlane.f32.xlu0 %v6374
      %v6418 = vpop.xlane.xlu0 %6417
      %6419 = vadd.xlane.f32.xlu0 %v6375
      %v6420 = vpop.xlane.xlu0 %6419
      %6421 = vadd.xlane.f32.xlu0 %v6376
      %v6422 = vpop.xlane.xlu0 %6421
      %6423 = vadd.xlane.f32.xlu0 %v6377
      %v6424 = vpop.xlane.xlu0 %6423
      %6425 = vadd.xlane.f32.xlu0 %v6378
      %v6426 = vpop.xlane.xlu0 %6425
      %6427 = vadd.xlane.f32.xlu0 %v6379
      %v6428 = vpop.xlane.xlu0 %6427
      %6429 = vadd.xlane.f32.xlu0 %v6380
      %v6430 = vpop.xlane.xlu0 %6429
      %6431 = vadd.xlane.f32.xlu0 %v6381
      %v6432 = vpop.xlane.xlu0 %6431
      %6433 = vadd.xlane.f32.xlu0 %v6382
      %v6434 = vpop.xlane.xlu0 %6433
      %6435 = vadd.xlane.f32.xlu0 %v6383
      %v6436 = vpop.xlane.xlu0 %6435
      %6437 = vadd.xlane.f32.xlu0 %v6384
      %v6438 = vpop.xlane.xlu0 %6437
      %6439 = vadd.xlane.f32.xlu0 %v6385
      %v6440 = vpop.xlane.xlu0 %6439
      %6441 = vadd.xlane.f32.xlu0 %v6386
      %v6442 = vpop.xlane.xlu0 %6441
      %6443 = vadd.xlane.f32.xlu0 %v6387
      %v6444 = vpop.xlane.xlu0 %6443
      %6445 = vadd.xlane.f32.xlu0 %v6388
      %v6446 = vpop.xlane.xlu0 %6445
      %6447 = vadd.xlane.f32.xlu0 %v6389
      %v6448 = vpop.xlane.xlu0 %6447
      %6449 = vadd.xlane.f32.xlu0 %v6390
      %v6450 = vpop.xlane.xlu0 %6449
      %6451 = vadd.xlane.f32.xlu0 %v6391
      %v6452 = vpop.xlane.xlu0 %6451
      %6453 = vadd.xlane.f32.xlu0 %v6392
      %v6454 = vpop.xlane.xlu0 %6453
      %6455 = vadd.xlane.f32.xlu0 %v6393
      %v6456 = vpop.xlane.xlu0 %6455
      %6457 = vadd.xlane.f32.xlu0 %v6394
      %v6458 = vpop.xlane.xlu0 %6457
      %v6459 = vmul.f32 %v6396, %v942
      %v6460 = vmul.f32 %v6398, %v942
      %v6461 = vmul.f32 %v6400, %v942
      %v6462 = vmul.f32 %v6402, %v942
      %v6463 = vmul.f32 %v6404, %v942
      %v6464 = vmul.f32 %v6406, %v942
      %v6465 = vmul.f32 %v6408, %v942
      %v6466 = vmul.f32 %v6410, %v942
      %v6467 = vmul.f32 %v6412, %v942
      %v6468 = vmul.f32 %v6414, %v942
      %v6469 = vmul.f32 %v6416, %v942
      %v6470 = vmul.f32 %v6418, %v942
      %v6471 = vmul.f32 %v6420, %v942
      %v6472 = vmul.f32 %v6422, %v942
      %v6473 = vmul.f32 %v6424, %v942
      %v6474 = vmul.f32 %v6426, %v942
      %v6475 = vmul.f32 %v6428, %v942
      %v6476 = vmul.f32 %v6430, %v942
      %v6477 = vmul.f32 %v6432, %v942
      %v6478 = vmul.f32 %v6434, %v942
      %v6479 = vmul.f32 %v6436, %v942
      %v6480 = vmul.f32 %v6438, %v942
      %v6481 = vmul.f32 %v6440, %v942
      %v6482 = vmul.f32 %v6442, %v942
      %v6483 = vmul.f32 %v6444, %v942
      %v6484 = vmul.f32 %v6446, %v942
      %v6485 = vmul.f32 %v6448, %v942
      %v6486 = vmul.f32 %v6450, %v942
      %v6487 = vmul.f32 %v6452, %v942
      %v6488 = vmul.f32 %v6454, %v942
      %v6489 = vmul.f32 %v6456, %v942
      %v6490 = vmul.f32 %v6458, %v942
      %v6491 = vadd.f32 %v6459, 1e-06
      %v6492 = vadd.f32 %v6460, 1e-06
      %v6493 = vadd.f32 %v6461, 1e-06
      %v6494 = vadd.f32 %v6462, 1e-06
      %v6495 = vadd.f32 %v6463, 1e-06
      %v6496 = vadd.f32 %v6464, 1e-06
      %v6497 = vadd.f32 %v6465, 1e-06
      %v6498 = vadd.f32 %v6466, 1e-06
      %v6499 = vadd.f32 %v6467, 1e-06
      %v6500 = vadd.f32 %v6468, 1e-06
      %v6501 = vadd.f32 %v6469, 1e-06
      %v6502 = vadd.f32 %v6470, 1e-06
      %v6503 = vadd.f32 %v6471, 1e-06
      %v6504 = vadd.f32 %v6472, 1e-06
      %v6505 = vadd.f32 %v6473, 1e-06
      %v6506 = vadd.f32 %v6474, 1e-06
      %v6507 = vadd.f32 %v6475, 1e-06
      %v6508 = vadd.f32 %v6476, 1e-06
      %v6509 = vadd.f32 %v6477, 1e-06
      %v6510 = vadd.f32 %v6478, 1e-06
      %v6511 = vadd.f32 %v6479, 1e-06
      %v6512 = vadd.f32 %v6480, 1e-06
      %v6513 = vadd.f32 %v6481, 1e-06
      %v6514 = vadd.f32 %v6482, 1e-06
      %v6515 = vadd.f32 %v6483, 1e-06
      %v6516 = vadd.f32 %v6484, 1e-06
      %v6517 = vadd.f32 %v6485, 1e-06
      %v6518 = vadd.f32 %v6486, 1e-06
      %v6519 = vadd.f32 %v6487, 1e-06
      %v6520 = vadd.f32 %v6488, 1e-06
      %v6521 = vadd.f32 %v6489, 1e-06
      %v6522 = vadd.f32 %v6490, 1e-06
      %v6523 = vrsqrt.pop %v6491
      %v6524 = vmul.f32 %v6523, %v6491
      %v6525 = vmul.f32 %v6524, %v6523
      %v6526 = vmul.f32 0.5, %v6525
      %v6527 = vsub.f32 1.5, %v6526
      %v6528 = vmul.f32 %v6523, %v6527
      %vm6529 = vweird.f32 %v6491
      %vm6530 = vweird.f32 %v6523
      %vm6531 = vmor %vm6529, %vm6530
      %v6532 = vsel %vm6531, %v6523, %v6528
      %v6533 = vrsqrt.pop %v6492
      %v6534 = vmul.f32 %v6533, %v6492
      %v6535 = vmul.f32 %v6534, %v6533
      %v6536 = vmul.f32 0.5, %v6535
      %v6537 = vsub.f32 1.5, %v6536
      %v6538 = vmul.f32 %v6533, %v6537
      %vm6539 = vweird.f32 %v6492
      %vm6540 = vweird.f32 %v6533
      %vm6541 = vmor %vm6539, %vm6540
      %v6542 = vsel %vm6541, %v6533, %v6538
      %v6543 = vrsqrt.pop %v6493
      %v6544 = vmul.f32 %v6543, %v6493
      %v6545 = vmul.f32 %v6544, %v6543
      %v6546 = vmul.f32 0.5, %v6545
      %v6547 = vsub.f32 1.5, %v6546
      %v6548 = vmul.f32 %v6543, %v6547
      %vm6549 = vweird.f32 %v6493
      %vm6550 = vweird.f32 %v6543
      %vm6551 = vmor %vm6549, %vm6550
      %v6552 = vsel %vm6551, %v6543, %v6548
      %v6553 = vrsqrt.pop %v6494
      %v6554 = vmul.f32 %v6553, %v6494
      %v6555 = vmul.f32 %v6554, %v6553
      %v6556 = vmul.f32 0.5, %v6555
      %v6557 = vsub.f32 1.5, %v6556
      %v6558 = vmul.f32 %v6553, %v6557
      %vm6559 = vweird.f32 %v6494
      %vm6560 = vweird.f32 %v6553
      %vm6561 = vmor %vm6559, %vm6560
      %v6562 = vsel %vm6561, %v6553, %v6558
      %v6563 = vrsqrt.pop %v6495
      %v6564 = vmul.f32 %v6563, %v6495
      %v6565 = vmul.f32 %v6564, %v6563
      %v6566 = vmul.f32 0.5, %v6565
      %v6567 = vsub.f32 1.5, %v6566
      %v6568 = vmul.f32 %v6563, %v6567
      %vm6569 = vweird.f32 %v6495
      %vm6570 = vweird.f32 %v6563
      %vm6571 = vmor %vm6569, %vm6570
      %v6572 = vsel %vm6571, %v6563, %v6568
      %v6573 = vrsqrt.pop %v6496
      %v6574 = vmul.f32 %v6573, %v6496
      %v6575 = vmul.f32 %v6574, %v6573
      %v6576 = vmul.f32 0.5, %v6575
      %v6577 = vsub.f32 1.5, %v6576
      %v6578 = vmul.f32 %v6573, %v6577
      %vm6579 = vweird.f32 %v6496
      %vm6580 = vweird.f32 %v6573
      %vm6581 = vmor %vm6579, %vm6580
      %v6582 = vsel %vm6581, %v6573, %v6578
      %v6583 = vrsqrt.pop %v6497
      %v6584 = vmul.f32 %v6583, %v6497
      %v6585 = vmul.f32 %v6584, %v6583
      %v6586 = vmul.f32 0.5, %v6585
      %v6587 = vsub.f32 1.5, %v6586
      %v6588 = vmul.f32 %v6583, %v6587
      %vm6589 = vweird.f32 %v6497
      %vm6590 = vweird.f32 %v6583
      %vm6591 = vmor %vm6589, %vm6590
      %v6592 = vsel %vm6591, %v6583, %v6588
      %v6593 = vrsqrt.pop %v6498
      %v6594 = vmul.f32 %v6593, %v6498
      %v6595 = vmul.f32 %v6594, %v6593
      %v6596 = vmul.f32 0.5, %v6595
      %v6597 = vsub.f32 1.5, %v6596
      %v6598 = vmul.f32 %v6593, %v6597
      %vm6599 = vweird.f32 %v6498
      %vm6600 = vweird.f32 %v6593
      %vm6601 = vmor %vm6599, %vm6600
      %v6602 = vsel %vm6601, %v6593, %v6598
      %v6603 = vrsqrt.pop %v6499
      %v6604 = vmul.f32 %v6603, %v6499
      %v6605 = vmul.f32 %v6604, %v6603
      %v6606 = vmul.f32 0.5, %v6605
      %v6607 = vsub.f32 1.5, %v6606
      %v6608 = vmul.f32 %v6603, %v6607
      %vm6609 = vweird.f32 %v6499
      %vm6610 = vweird.f32 %v6603
      %vm6611 = vmor %vm6609, %vm6610
      %v6612 = vsel %vm6611, %v6603, %v6608
      %v6613 = vrsqrt.pop %v6500
      %v6614 = vmul.f32 %v6613, %v6500
      %v6615 = vmul.f32 %v6614, %v6613
      %v6616 = vmul.f32 0.5, %v6615
      %v6617 = vsub.f32 1.5, %v6616
      %v6618 = vmul.f32 %v6613, %v6617
      %vm6619 = vweird.f32 %v6500
      %vm6620 = vweird.f32 %v6613
      %vm6621 = vmor %vm6619, %vm6620
      %v6622 = vsel %vm6621, %v6613, %v6618
      %v6623 = vrsqrt.pop %v6501
      %v6624 = vmul.f32 %v6623, %v6501
      %v6625 = vmul.f32 %v6624, %v6623
      %v6626 = vmul.f32 0.5, %v6625
      %v6627 = vsub.f32 1.5, %v6626
      %v6628 = vmul.f32 %v6623, %v6627
      %vm6629 = vweird.f32 %v6501
      %vm6630 = vweird.f32 %v6623
      %vm6631 = vmor %vm6629, %vm6630
      %v6632 = vsel %vm6631, %v6623, %v6628
      %v6633 = vrsqrt.pop %v6502
      %v6634 = vmul.f32 %v6633, %v6502
      %v6635 = vmul.f32 %v6634, %v6633
      %v6636 = vmul.f32 0.5, %v6635
      %v6637 = vsub.f32 1.5, %v6636
      %v6638 = vmul.f32 %v6633, %v6637
      %vm6639 = vweird.f32 %v6502
      %vm6640 = vweird.f32 %v6633
      %vm6641 = vmor %vm6639, %vm6640
      %v6642 = vsel %vm6641, %v6633, %v6638
      %v6643 = vrsqrt.pop %v6503
      %v6644 = vmul.f32 %v6643, %v6503
      %v6645 = vmul.f32 %v6644, %v6643
      %v6646 = vmul.f32 0.5, %v6645
      %v6647 = vsub.f32 1.5, %v6646
      %v6648 = vmul.f32 %v6643, %v6647
      %vm6649 = vweird.f32 %v6503
      %vm6650 = vweird.f32 %v6643
      %vm6651 = vmor %vm6649, %vm6650
      %v6652 = vsel %vm6651, %v6643, %v6648
      %v6653 = vrsqrt.pop %v6504
      %v6654 = vmul.f32 %v6653, %v6504
      %v6655 = vmul.f32 %v6654, %v6653
      %v6656 = vmul.f32 0.5, %v6655
      %v6657 = vsub.f32 1.5, %v6656
      %v6658 = vmul.f32 %v6653, %v6657
      %vm6659 = vweird.f32 %v6504
      %vm6660 = vweird.f32 %v6653
      %vm6661 = vmor %vm6659, %vm6660
      %v6662 = vsel %vm6661, %v6653, %v6658
      %v6663 = vrsqrt.pop %v6505
      %v6664 = vmul.f32 %v6663, %v6505
      %v6665 = vmul.f32 %v6664, %v6663
      %v6666 = vmul.f32 0.5, %v6665
      %v6667 = vsub.f32 1.5, %v6666
      %v6668 = vmul.f32 %v6663, %v6667
      %vm6669 = vweird.f32 %v6505
      %vm6670 = vweird.f32 %v6663
      %vm6671 = vmor %vm6669, %vm6670
      %v6672 = vsel %vm6671, %v6663, %v6668
      %v6673 = vrsqrt.pop %v6506
      %v6674 = vmul.f32 %v6673, %v6506
      %v6675 = vmul.f32 %v6674, %v6673
      %v6676 = vmul.f32 0.5, %v6675
      %v6677 = vsub.f32 1.5, %v6676
      %v6678 = vmul.f32 %v6673, %v6677
      %vm6679 = vweird.f32 %v6506
      %vm6680 = vweird.f32 %v6673
      %vm6681 = vmor %vm6679, %vm6680
      %v6682 = vsel %vm6681, %v6673, %v6678
      %v6683 = vrsqrt.pop %v6507
      %v6684 = vmul.f32 %v6683, %v6507
      %v6685 = vmul.f32 %v6684, %v6683
      %v6686 = vmul.f32 0.5, %v6685
      %v6687 = vsub.f32 1.5, %v6686
      %v6688 = vmul.f32 %v6683, %v6687
      %vm6689 = vweird.f32 %v6507
      %vm6690 = vweird.f32 %v6683
      %vm6691 = vmor %vm6689, %vm6690
      %v6692 = vsel %vm6691, %v6683, %v6688
      %v6693 = vrsqrt.pop %v6508
      %v6694 = vmul.f32 %v6693, %v6508
      %v6695 = vmul.f32 %v6694, %v6693
      %v6696 = vmul.f32 0.5, %v6695
      %v6697 = vsub.f32 1.5, %v6696
      %v6698 = vmul.f32 %v6693, %v6697
      %vm6699 = vweird.f32 %v6508
      %vm6700 = vweird.f32 %v6693
      %vm6701 = vmor %vm6699, %vm6700
      %v6702 = vsel %vm6701, %v6693, %v6698
      %v6703 = vrsqrt.pop %v6509
      %v6704 = vmul.f32 %v6703, %v6509
      %v6705 = vmul.f32 %v6704, %v6703
      %v6706 = vmul.f32 0.5, %v6705
      %v6707 = vsub.f32 1.5, %v6706
      %v6708 = vmul.f32 %v6703, %v6707
      %vm6709 = vweird.f32 %v6509
      %vm6710 = vweird.f32 %v6703
      %vm6711 = vmor %vm6709, %vm6710
      %v6712 = vsel %vm6711, %v6703, %v6708
      %v6713 = vrsqrt.pop %v6510
      %v6714 = vmul.f32 %v6713, %v6510
      %v6715 = vmul.f32 %v6714, %v6713
      %v6716 = vmul.f32 0.5, %v6715
      %v6717 = vsub.f32 1.5, %v6716
      %v6718 = vmul.f32 %v6713, %v6717
      %vm6719 = vweird.f32 %v6510
      %vm6720 = vweird.f32 %v6713
      %vm6721 = vmor %vm6719, %vm6720
      %v6722 = vsel %vm6721, %v6713, %v6718
      %v6723 = vrsqrt.pop %v6511
      %v6724 = vmul.f32 %v6723, %v6511
      %v6725 = vmul.f32 %v6724, %v6723
      %v6726 = vmul.f32 0.5, %v6725
      %v6727 = vsub.f32 1.5, %v6726
      %v6728 = vmul.f32 %v6723, %v6727
      %vm6729 = vweird.f32 %v6511
      %vm6730 = vweird.f32 %v6723
      %vm6731 = vmor %vm6729, %vm6730
      %v6732 = vsel %vm6731, %v6723, %v6728
      %v6733 = vrsqrt.pop %v6512
      %v6734 = vmul.f32 %v6733, %v6512
      %v6735 = vmul.f32 %v6734, %v6733
      %v6736 = vmul.f32 0.5, %v6735
      %v6737 = vsub.f32 1.5, %v6736
      %v6738 = vmul.f32 %v6733, %v6737
      %vm6739 = vweird.f32 %v6512
      %vm6740 = vweird.f32 %v6733
      %vm6741 = vmor %vm6739, %vm6740
      %v6742 = vsel %vm6741, %v6733, %v6738
      %v6743 = vrsqrt.pop %v6513
      %v6744 = vmul.f32 %v6743, %v6513
      %v6745 = vmul.f32 %v6744, %v6743
      %v6746 = vmul.f32 0.5, %v6745
      %v6747 = vsub.f32 1.5, %v6746
      %v6748 = vmul.f32 %v6743, %v6747
      %vm6749 = vweird.f32 %v6513
      %vm6750 = vweird.f32 %v6743
      %vm6751 = vmor %vm6749, %vm6750
      %v6752 = vsel %vm6751, %v6743, %v6748
      %v6753 = vrsqrt.pop %v6514
      %v6754 = vmul.f32 %v6753, %v6514
      %v6755 = vmul.f32 %v6754, %v6753
      %v6756 = vmul.f32 0.5, %v6755
      %v6757 = vsub.f32 1.5, %v6756
      %v6758 = vmul.f32 %v6753, %v6757
      %vm6759 = vweird.f32 %v6514
      %vm6760 = vweird.f32 %v6753
      %vm6761 = vmor %vm6759, %vm6760
      %v6762 = vsel %vm6761, %v6753, %v6758
      %v6763 = vrsqrt.pop %v6515
      %v6764 = vmul.f32 %v6763, %v6515
      %v6765 = vmul.f32 %v6764, %v6763
      %v6766 = vmul.f32 0.5, %v6765
      %v6767 = vsub.f32 1.5, %v6766
      %v6768 = vmul.f32 %v6763, %v6767
      %vm6769 = vweird.f32 %v6515
      %vm6770 = vweird.f32 %v6763
      %vm6771 = vmor %vm6769, %vm6770
      %v6772 = vsel %vm6771, %v6763, %v6768
      %v6773 = vrsqrt.pop %v6516
      %v6774 = vmul.f32 %v6773, %v6516
      %v6775 = vmul.f32 %v6774, %v6773
      %v6776 = vmul.f32 0.5, %v6775
      %v6777 = vsub.f32 1.5, %v6776
      %v6778 = vmul.f32 %v6773, %v6777
      %vm6779 = vweird.f32 %v6516
      %vm6780 = vweird.f32 %v6773
      %vm6781 = vmor %vm6779, %vm6780
      %v6782 = vsel %vm6781, %v6773, %v6778
      %v6783 = vrsqrt.pop %v6517
      %v6784 = vmul.f32 %v6783, %v6517
      %v6785 = vmul.f32 %v6784, %v6783
      %v6786 = vmul.f32 0.5, %v6785
      %v6787 = vsub.f32 1.5, %v6786
      %v6788 = vmul.f32 %v6783, %v6787
      %vm6789 = vweird.f32 %v6517
      %vm6790 = vweird.f32 %v6783
      %vm6791 = vmor %vm6789, %vm6790
      %v6792 = vsel %vm6791, %v6783, %v6788
      %v6793 = vrsqrt.pop %v6518
      %v6794 = vmul.f32 %v6793, %v6518
      %v6795 = vmul.f32 %v6794, %v6793
      %v6796 = vmul.f32 0.5, %v6795
      %v6797 = vsub.f32 1.5, %v6796
      %v6798 = vmul.f32 %v6793, %v6797
      %vm6799 = vweird.f32 %v6518
      %vm6800 = vweird.f32 %v6793
      %vm6801 = vmor %vm6799, %vm6800
      %v6802 = vsel %vm6801, %v6793, %v6798
      %v6803 = vrsqrt.pop %v6519
      %v6804 = vmul.f32 %v6803, %v6519
      %v6805 = vmul.f32 %v6804, %v6803
      %v6806 = vmul.f32 0.5, %v6805
      %v6807 = vsub.f32 1.5, %v6806
      %v6808 = vmul.f32 %v6803, %v6807
      %vm6809 = vweird.f32 %v6519
      %vm6810 = vweird.f32 %v6803
      %vm6811 = vmor %vm6809, %vm6810
      %v6812 = vsel %vm6811, %v6803, %v6808
      %v6813 = vrsqrt.pop %v6520
      %v6814 = vmul.f32 %v6813, %v6520
      %v6815 = vmul.f32 %v6814, %v6813
      %v6816 = vmul.f32 0.5, %v6815
      %v6817 = vsub.f32 1.5, %v6816
      %v6818 = vmul.f32 %v6813, %v6817
      %vm6819 = vweird.f32 %v6520
      %vm6820 = vweird.f32 %v6813
      %vm6821 = vmor %vm6819, %vm6820
      %v6822 = vsel %vm6821, %v6813, %v6818
      %v6823 = vrsqrt.pop %v6521
      %v6824 = vmul.f32 %v6823, %v6521
      %v6825 = vmul.f32 %v6824, %v6823
      %v6826 = vmul.f32 0.5, %v6825
      %v6827 = vsub.f32 1.5, %v6826
      %v6828 = vmul.f32 %v6823, %v6827
      %vm6829 = vweird.f32 %v6521
      %vm6830 = vweird.f32 %v6823
      %vm6831 = vmor %vm6829, %vm6830
      %v6832 = vsel %vm6831, %v6823, %v6828
      %v6833 = vrsqrt.pop %v6522
      %v6834 = vmul.f32 %v6833, %v6522
      %v6835 = vmul.f32 %v6834, %v6833
      %v6836 = vmul.f32 0.5, %v6835
      %v6837 = vsub.f32 1.5, %v6836
      %v6838 = vmul.f32 %v6833, %v6837
      %vm6839 = vweird.f32 %v6522
      %vm6840 = vweird.f32 %v6833
      %vm6841 = vmor %vm6839, %vm6840
      %v6842 = vsel %vm6841, %v6833, %v6838
      %v6843 = vmul.f32 %v6331, %v6532
      %v6844 = vmul.f32 %v6332, %v6542
      %v6845 = vmul.f32 %v6333, %v6552
      %v6846 = vmul.f32 %v6334, %v6562
      %v6847 = vmul.f32 %v6335, %v6572
      %v6848 = vmul.f32 %v6336, %v6582
      %v6849 = vmul.f32 %v6337, %v6592
      %v6850 = vmul.f32 %v6338, %v6602
      %v6851 = vmul.f32 %v6339, %v6612
      %v6852 = vmul.f32 %v6340, %v6622
      %v6853 = vmul.f32 %v6341, %v6632
      %v6854 = vmul.f32 %v6342, %v6642
      %v6855 = vmul.f32 %v6343, %v6652
      %v6856 = vmul.f32 %v6344, %v6662
      %v6857 = vmul.f32 %v6345, %v6672
      %v6858 = vmul.f32 %v6346, %v6682
      %v6859 = vmul.f32 %v6347, %v6692
      %v6860 = vmul.f32 %v6348, %v6702
      %v6861 = vmul.f32 %v6349, %v6712
      %v6862 = vmul.f32 %v6350, %v6722
      %v6863 = vmul.f32 %v6351, %v6732
      %v6864 = vmul.f32 %v6352, %v6742
      %v6865 = vmul.f32 %v6353, %v6752
      %v6866 = vmul.f32 %v6354, %v6762
      %v6867 = vmul.f32 %v6355, %v6772
      %v6868 = vmul.f32 %v6356, %v6782
      %v6869 = vmul.f32 %v6357, %v6792
      %v6870 = vmul.f32 %v6358, %v6802
      %v6871 = vmul.f32 %v6359, %v6812
      %v6872 = vmul.f32 %v6360, %v6822
      %v6873 = vmul.f32 %v6361, %v6832
      %v6874 = vmul.f32 %v6362, %v6842
      %v6875 = vpack.c.bf16 %v6844, %v6843
      %v6876 = vpack.c.bf16 %v6846, %v6845
      %v6877 = vpack.c.bf16 %v6848, %v6847
      %v6878 = vpack.c.bf16 %v6850, %v6849
      %v6879 = vpack.c.bf16 %v6852, %v6851
      %v6880 = vpack.c.bf16 %v6854, %v6853
      %v6881 = vpack.c.bf16 %v6856, %v6855
      %v6882 = vpack.c.bf16 %v6858, %v6857
      %v6883 = vpack.c.bf16 %v6860, %v6859
      %v6884 = vpack.c.bf16 %v6862, %v6861
      %v6885 = vpack.c.bf16 %v6864, %v6863
      %v6886 = vpack.c.bf16 %v6866, %v6865
      %v6887 = vpack.c.bf16 %v6868, %v6867
      %v6888 = vpack.c.bf16 %v6870, %v6869
      %v6889 = vpack.c.bf16 %v6872, %v6871
      %v6890 = vpack.c.bf16 %v6874, %v6873
      %v6891 = vld [vmem:[%s520] sm:$0xff]
      %v6892 = vld [vmem:[%s520 + $0x8] sm:$0xff]
      %v6893 = vld [vmem:[%s520 + $0x10] sm:$0xff]
      %v6894 = vld [vmem:[%s520 + $0x18] sm:$0xff]
      %v6895 = vld [vmem:[%s520 + $0x20] sm:$0xff]
      %v6896 = vld [vmem:[%s520 + $0x28] sm:$0xff]
      %v6897 = vld [vmem:[%s520 + $0x30] sm:$0xff]
      %v6898 = vld [vmem:[%s520 + $0x38] sm:$0xff]
      %v6899 = vld [vmem:[%s520 + $0x40] sm:$0xff]
      %v6900 = vld [vmem:[%s520 + $0x48] sm:$0xff]
      %v6901 = vld [vmem:[%s520 + $0x50] sm:$0xff]
      %v6902 = vld [vmem:[%s520 + $0x58] sm:$0xff]
      %v6903 = vld [vmem:[%s520 + $0x60] sm:$0xff]
      %v6904 = vld [vmem:[%s520 + $0x68] sm:$0xff]
      %v6905 = vld [vmem:[%s520 + $0x70] sm:$0xff]
      %v6906 = vld [vmem:[%s520 + $0x78] sm:$0xff]
      %v6907 = vld [vmem:[%s520 + $0x80] sm:$0xff]
      %v6908 = vld [vmem:[%s520 + $0x88] sm:$0xff]
      %v6909 = vld [vmem:[%s520 + $0x90] sm:$0xff]
      %v6910 = vld [vmem:[%s520 + $0x98] sm:$0xff]
      %v6911 = vld [vmem:[%s520 + $0xa0] sm:$0xff]
      %v6912 = vld [vmem:[%s520 + $0xa8] sm:$0xff]
      %v6913 = vld [vmem:[%s520 + $0xb0] sm:$0xff]
      %v6914 = vld [vmem:[%s520 + $0xb8] sm:$0xff]
      %v6915 = vld [vmem:[%s520 + $0xc0] sm:$0xff]
      %v6916 = vld [vmem:[%s520 + $0xc8] sm:$0xff]
      %v6917 = vld [vmem:[%s520 + $0xd0] sm:$0xff]
      %v6918 = vld [vmem:[%s520 + $0xd8] sm:$0xff]
      %v6919 = vld [vmem:[%s520 + $0xe0] sm:$0xff]
      %v6920 = vld [vmem:[%s520 + $0xe8] sm:$0xff]
      %v6921 = vld [vmem:[%s520 + $0xf0] sm:$0xff]
      %v6922 = vld [vmem:[%s520 + $0xf8] sm:$0xff]
      %v6955 = vunpack.c.l.b16 %v6891
      %v6956 = vunpack.c.h.b16 %v6891
      %v6957 = vunpack.c.l.b16 %v6892
      %v6958 = vunpack.c.h.b16 %v6892
      %v6959 = vunpack.c.l.b16 %v6893
      %v6960 = vunpack.c.h.b16 %v6893
      %v6961 = vunpack.c.l.b16 %v6894
      %v6962 = vunpack.c.h.b16 %v6894
      %v6963 = vunpack.c.l.b16 %v6895
      %v6964 = vunpack.c.h.b16 %v6895
      %v6965 = vunpack.c.l.b16 %v6896
      %v6966 = vunpack.c.h.b16 %v6896
      %v6967 = vunpack.c.l.b16 %v6897
      %v6968 = vunpack.c.h.b16 %v6897
      %v6969 = vunpack.c.l.b16 %v6898
      %v6970 = vunpack.c.h.b16 %v6898
      %v6971 = vunpack.c.l.b16 %v6899
      %v6972 = vunpack.c.h.b16 %v6899
      %v6973 = vunpack.c.l.b16 %v6900
      %v6974 = vunpack.c.h.b16 %v6900
      %v6975 = vunpack.c.l.b16 %v6901
      %v6976 = vunpack.c.h.b16 %v6901
      %v6977 = vunpack.c.l.b16 %v6902
      %v6978 = vunpack.c.h.b16 %v6902
      %v6979 = vunpack.c.l.b16 %v6903
      %v6980 = vunpack.c.h.b16 %v6903
      %v6981 = vunpack.c.l.b16 %v6904
      %v6982 = vunpack.c.h.b16 %v6904
      %v6983 = vunpack.c.l.b16 %v6905
      %v6984 = vunpack.c.h.b16 %v6905
      %v6985 = vunpack.c.l.b16 %v6906
      %v6986 = vunpack.c.h.b16 %v6906
      %v6987 = vunpack.c.l.b16 %v6907
      %v6988 = vunpack.c.h.b16 %v6907
      %v6989 = vunpack.c.l.b16 %v6908
      %v6990 = vunpack.c.h.b16 %v6908
      %v6991 = vunpack.c.l.b16 %v6909
      %v6992 = vunpack.c.h.b16 %v6909
      %v6993 = vunpack.c.l.b16 %v6910
      %v6994 = vunpack.c.h.b16 %v6910
      %v6995 = vunpack.c.l.b16 %v6911
      %v6996 = vunpack.c.h.b16 %v6911
      %v6997 = vunpack.c.l.b16 %v6912
      %v6998 = vunpack.c.h.b16 %v6912
      %v6999 = vunpack.c.l.b16 %v6913
      %v7000 = vunpack.c.h.b16 %v6913
      %v7001 = vunpack.c.l.b16 %v6914
      %v7002 = vunpack.c.h.b16 %v6914
      %v7003 = vunpack.c.l.b16 %v6915
      %v7004 = vunpack.c.h.b16 %v6915
      %v7005 = vunpack.c.l.b16 %v6916
      %v7006 = vunpack.c.h.b16 %v6916
      %v7007 = vunpack.c.l.b16 %v6917
      %v7008 = vunpack.c.h.b16 %v6917
      %v7009 = vunpack.c.l.b16 %v6918
      %v7010 = vunpack.c.h.b16 %v6918
      %v7011 = vunpack.c.l.b16 %v6919
      %v7012 = vunpack.c.h.b16 %v6919
      %v7013 = vunpack.c.l.b16 %v6920
      %v7014 = vunpack.c.h.b16 %v6920
      %v7015 = vunpack.c.l.b16 %v6921
      %v7016 = vunpack.c.h.b16 %v6921
      %v7017 = vunpack.c.l.b16 %v6922
      %v7018 = vunpack.c.h.b16 %v6922
      %v7019 = vpack.c.b16 %v6959, %v6955
      %v7020 = vpack.c.b16 %v6960, %v6956
      %v7021 = vpack.c.b16 %v6961, %v6957
      %v7022 = vpack.c.b16 %v6962, %v6958
      %v7023 = vpack.c.b16 %v6967, %v6963
      %v7024 = vpack.c.b16 %v6968, %v6964
      %v7025 = vpack.c.b16 %v6969, %v6965
      %v7026 = vpack.c.b16 %v6970, %v6966
      %v7027 = vpack.c.b16 %v6975, %v6971
      %v7028 = vpack.c.b16 %v6976, %v6972
      %v7029 = vpack.c.b16 %v6977, %v6973
      %v7030 = vpack.c.b16 %v6978, %v6974
      %v7031 = vpack.c.b16 %v6983, %v6979
      %v7032 = vpack.c.b16 %v6984, %v6980
      %v7033 = vpack.c.b16 %v6985, %v6981
      %v7034 = vpack.c.b16 %v6986, %v6982
      %v7035 = vpack.c.b16 %v6991, %v6987
      %v7036 = vpack.c.b16 %v6992, %v6988
      %v7037 = vpack.c.b16 %v6993, %v6989
      %v7038 = vpack.c.b16 %v6994, %v6990
      %v7039 = vpack.c.b16 %v6999, %v6995
      %v7040 = vpack.c.b16 %v7000, %v6996
      %v7041 = vpack.c.b16 %v7001, %v6997
      %v7042 = vpack.c.b16 %v7002, %v6998
      %v7043 = vpack.c.b16 %v7007, %v7003
      %v7044 = vpack.c.b16 %v7008, %v7004
      %v7045 = vpack.c.b16 %v7009, %v7005
      %v7046 = vpack.c.b16 %v7010, %v7006
      %v7047 = vpack.c.b16 %v7015, %v7011
      %v7048 = vpack.c.b16 %v7016, %v7012
      %v7049 = vpack.c.b16 %v7017, %v7013
      %v7050 = vpack.c.b16 %v7018, %v7014
      %7083 = vmatpush.bf16.msra.mxu0 %v7047
      %7084 = vmatpush.bf16.msra.mxu0 %v7043
      %7085 = vmatpush.bf16.msra.mxu0 %v7039
      %7086 = vmatpush.bf16.msra.mxu0 %v7035
      %7087 = vmatpush.bf16.msra.mxu0 %v7031
      %7088 = vmatpush.bf16.msra.mxu0 %v7027
      %7089 = vmatpush.bf16.msra.mxu0 %v7023
      %7090 = vmatpush.bf16.msra.mxu0 %v7019
      %7091 = vmatmul.bf16.gmra.mxu0 %v6875
      %v7092 = vpop.f32.mrf.mxu0
      %v7093 = vadd.f32 0.0, %v7092
      %v7094 = vpop.f32.mrf.mxu0
      %v7095 = vadd.f32 0.0, %v7094
      %7096 = vmatmul.bf16.gmra.mxu0 %v6876
      %v7097 = vpop.f32.mrf.mxu0
      %v7098 = vadd.f32 0.0, %v7097
      %v7099 = vpop.f32.mrf.mxu0
      %v7100 = vadd.f32 0.0, %v7099
      %7101 = vmatmul.bf16.gmra.mxu0 %v6877
      %v7102 = vpop.f32.mrf.mxu0
      %v7103 = vadd.f32 0.0, %v7102
      %v7104 = vpop.f32.mrf.mxu0
      %v7105 = vadd.f32 0.0, %v7104
      %7106 = vmatmul.bf16.gmra.mxu0 %v6878
      %v7107 = vpop.f32.mrf.mxu0
      %v7108 = vadd.f32 0.0, %v7107
      %v7109 = vpop.f32.mrf.mxu0
      %v7110 = vadd.f32 0.0, %v7109
      %7111 = vmatmul.bf16.gmra.mxu0 %v6879
      %v7112 = vpop.f32.mrf.mxu0
      %v7113 = vadd.f32 0.0, %v7112
      %v7114 = vpop.f32.mrf.mxu0
      %v7115 = vadd.f32 0.0, %v7114
      %7116 = vmatmul.bf16.gmra.mxu0 %v6880
      %v7117 = vpop.f32.mrf.mxu0
      %v7118 = vadd.f32 0.0, %v7117
      %v7119 = vpop.f32.mrf.mxu0
      %v7120 = vadd.f32 0.0, %v7119
      %7121 = vmatmul.bf16.gmra.mxu0 %v6881
      %v7122 = vpop.f32.mrf.mxu0
      %v7123 = vadd.f32 0.0, %v7122
      %v7124 = vpop.f32.mrf.mxu0
      %v7125 = vadd.f32 0.0, %v7124
      %7126 = vmatmul.bf16.gmra.mxu0 %v6882
      %v7127 = vpop.f32.mrf.mxu0
      %v7128 = vadd.f32 0.0, %v7127
      %v7129 = vpop.f32.mrf.mxu0
      %v7130 = vadd.f32 0.0, %v7129
      %7131 = vmatmul.bf16.gmra.mxu0 %v6883
      %v7132 = vpop.f32.mrf.mxu0
      %v7133 = vadd.f32 0.0, %v7132
      %v7134 = vpop.f32.mrf.mxu0
      %v7135 = vadd.f32 0.0, %v7134
      %7136 = vmatmul.bf16.gmra.mxu0 %v6884
      %v7137 = vpop.f32.mrf.mxu0
      %v7138 = vadd.f32 0.0, %v7137
      %v7139 = vpop.f32.mrf.mxu0
      %v7140 = vadd.f32 0.0, %v7139
      %7141 = vmatmul.bf16.gmra.mxu0 %v6885
      %v7142 = vpop.f32.mrf.mxu0
      %v7143 = vadd.f32 0.0, %v7142
      %v7144 = vpop.f32.mrf.mxu0
      %v7145 = vadd.f32 0.0, %v7144
      %7146 = vmatmul.bf16.gmra.mxu0 %v6886
      %v7147 = vpop.f32.mrf.mxu0
      %v7148 = vadd.f32 0.0, %v7147
      %v7149 = vpop.f32.mrf.mxu0
      %v7150 = vadd.f32 0.0, %v7149
      %7151 = vmatmul.bf16.gmra.mxu0 %v6887
      %v7152 = vpop.f32.mrf.mxu0
      %v7153 = vadd.f32 0.0, %v7152
      %v7154 = vpop.f32.mrf.mxu0
      %v7155 = vadd.f32 0.0, %v7154
      %7156 = vmatmul.bf16.gmra.mxu0 %v6888
      %v7157 = vpop.f32.mrf.mxu0
      %v7158 = vadd.f32 0.0, %v7157
      %v7159 = vpop.f32.mrf.mxu0
      %v7160 = vadd.f32 0.0, %v7159
      %7161 = vmatmul.bf16.gmra.mxu0 %v6889
      %v7162 = vpop.f32.mrf.mxu0
      %v7163 = vadd.f32 0.0, %v7162
      %v7164 = vpop.f32.mrf.mxu0
      %v7165 = vadd.f32 0.0, %v7164
      %7166 = vmatmul.bf16.gmra.mxu0 %v6890
      %v7167 = vpop.f32.mrf.mxu0
      %v7168 = vadd.f32 0.0, %v7167
      %v7169 = vpop.f32.mrf.mxu0
      %v7170 = vadd.f32 0.0, %v7169
      %7171 = vdwg.mxu0
      %7172 = vmatpush.bf16.msra.mxu0 %v7048
      %7173 = vmatpush.bf16.msra.mxu0 %v7044
      %7174 = vmatpush.bf16.msra.mxu0 %v7040
      %7175 = vmatpush.bf16.msra.mxu0 %v7036
      %7176 = vmatpush.bf16.msra.mxu0 %v7032
      %7177 = vmatpush.bf16.msra.mxu0 %v7028
      %7178 = vmatpush.bf16.msra.mxu0 %v7024
      %7179 = vmatpush.bf16.msra.mxu0 %v7020
      %7180 = vmatmul.bf16.gmra.mxu0 %v6875
      %v7181 = vpop.f32.mrf.mxu0
      %v7182 = vadd.f32 0.0, %v7181
      %v7183 = vpop.f32.mrf.mxu0
      %v7184 = vadd.f32 0.0, %v7183
      %7185 = vmatmul.bf16.gmra.mxu0 %v6876
      %v7186 = vpop.f32.mrf.mxu0
      %v7187 = vadd.f32 0.0, %v7186
      %v7188 = vpop.f32.mrf.mxu0
      %v7189 = vadd.f32 0.0, %v7188
      %7190 = vmatmul.bf16.gmra.mxu0 %v6877
      %v7191 = vpop.f32.mrf.mxu0
      %v7192 = vadd.f32 0.0, %v7191
      %v7193 = vpop.f32.mrf.mxu0
      %v7194 = vadd.f32 0.0, %v7193
      %7195 = vmatmul.bf16.gmra.mxu0 %v6878
      %v7196 = vpop.f32.mrf.mxu0
      %v7197 = vadd.f32 0.0, %v7196
      %v7198 = vpop.f32.mrf.mxu0
      %v7199 = vadd.f32 0.0, %v7198
      %7200 = vmatmul.bf16.gmra.mxu0 %v6879
      %v7201 = vpop.f32.mrf.mxu0
      %v7202 = vadd.f32 0.0, %v7201
      %v7203 = vpop.f32.mrf.mxu0
      %v7204 = vadd.f32 0.0, %v7203
      %7205 = vmatmul.bf16.gmra.mxu0 %v6880
      %v7206 = vpop.f32.mrf.mxu0
      %v7207 = vadd.f32 0.0, %v7206
      %v7208 = vpop.f32.mrf.mxu0
      %v7209 = vadd.f32 0.0, %v7208
      %7210 = vmatmul.bf16.gmra.mxu0 %v6881
      %v7211 = vpop.f32.mrf.mxu0
      %v7212 = vadd.f32 0.0, %v7211
      %v7213 = vpop.f32.mrf.mxu0
      %v7214 = vadd.f32 0.0, %v7213
      %7215 = vmatmul.bf16.gmra.mxu0 %v6882
      %v7216 = vpop.f32.mrf.mxu0
      %v7217 = vadd.f32 0.0, %v7216
      %v7218 = vpop.f32.mrf.mxu0
      %v7219 = vadd.f32 0.0, %v7218
      %7220 = vmatmul.bf16.gmra.mxu0 %v6883
      %v7221 = vpop.f32.mrf.mxu0
      %v7222 = vadd.f32 0.0, %v7221
      %v7223 = vpop.f32.mrf.mxu0
      %v7224 = vadd.f32 0.0, %v7223
      %7225 = vmatmul.bf16.gmra.mxu0 %v6884
      %v7226 = vpop.f32.mrf.mxu0
      %v7227 = vadd.f32 0.0, %v7226
      %v7228 = vpop.f32.mrf.mxu0
      %v7229 = vadd.f32 0.0, %v7228
      %7230 = vmatmul.bf16.gmra.mxu0 %v6885
      %v7231 = vpop.f32.mrf.mxu0
      %v7232 = vadd.f32 0.0, %v7231
      %v7233 = vpop.f32.mrf.mxu0
      %v7234 = vadd.f32 0.0, %v7233
      %7235 = vmatmul.bf16.gmra.mxu0 %v6886
      %v7236 = vpop.f32.mrf.mxu0
      %v7237 = vadd.f32 0.0, %v7236
      %v7238 = vpop.f32.mrf.mxu0
      %v7239 = vadd.f32 0.0, %v7238
      %7240 = vmatmul.bf16.gmra.mxu0 %v6887
      %v7241 = vpop.f32.mrf.mxu0
      %v7242 = vadd.f32 0.0, %v7241
      %v7243 = vpop.f32.mrf.mxu0
      %v7244 = vadd.f32 0.0, %v7243
      %7245 = vmatmul.bf16.gmra.mxu0 %v6888
      %v7246 = vpop.f32.mrf.mxu0
      %v7247 = vadd.f32 0.0, %v7246
      %v7248 = vpop.f32.mrf.mxu0
      %v7249 = vadd.f32 0.0, %v7248
      %7250 = vmatmul.bf16.gmra.mxu0 %v6889
      %v7251 = vpop.f32.mrf.mxu0
      %v7252 = vadd.f32 0.0, %v7251
      %v7253 = vpop.f32.mrf.mxu0
      %v7254 = vadd.f32 0.0, %v7253
      %7255 = vmatmul.bf16.gmra.mxu0 %v6890
      %v7256 = vpop.f32.mrf.mxu0
      %v7257 = vadd.f32 0.0, %v7256
      %v7258 = vpop.f32.mrf.mxu0
      %v7259 = vadd.f32 0.0, %v7258
      %7260 = vdwg.mxu0
      %7261 = vmatpush.bf16.msra.mxu0 %v7049
      %7262 = vmatpush.bf16.msra.mxu0 %v7045
      %7263 = vmatpush.bf16.msra.mxu0 %v7041
      %7264 = vmatpush.bf16.msra.mxu0 %v7037
      %7265 = vmatpush.bf16.msra.mxu0 %v7033
      %7266 = vmatpush.bf16.msra.mxu0 %v7029
      %7267 = vmatpush.bf16.msra.mxu0 %v7025
      %7268 = vmatpush.bf16.msra.mxu0 %v7021
      %7269 = vmatmul.bf16.gmra.mxu0 %v6875
      %v7270 = vpop.f32.mrf.mxu0
      %v7271 = vadd.f32 0.0, %v7270
      %v7272 = vpop.f32.mrf.mxu0
      %v7273 = vadd.f32 0.0, %v7272
      %7274 = vmatmul.bf16.gmra.mxu0 %v6876
      %v7275 = vpop.f32.mrf.mxu0
      %v7276 = vadd.f32 0.0, %v7275
      %v7277 = vpop.f32.mrf.mxu0
      %v7278 = vadd.f32 0.0, %v7277
      %7279 = vmatmul.bf16.gmra.mxu0 %v6877
      %v7280 = vpop.f32.mrf.mxu0
      %v7281 = vadd.f32 0.0, %v7280
      %v7282 = vpop.f32.mrf.mxu0
      %v7283 = vadd.f32 0.0, %v7282
      %7284 = vmatmul.bf16.gmra.mxu0 %v6878
      %v7285 = vpop.f32.mrf.mxu0
      %v7286 = vadd.f32 0.0, %v7285
      %v7287 = vpop.f32.mrf.mxu0
      %v7288 = vadd.f32 0.0, %v7287
      %7289 = vmatmul.bf16.gmra.mxu0 %v6879
      %v7290 = vpop.f32.mrf.mxu0
      %v7291 = vadd.f32 0.0, %v7290
      %v7292 = vpop.f32.mrf.mxu0
      %v7293 = vadd.f32 0.0, %v7292
      %7294 = vmatmul.bf16.gmra.mxu0 %v6880
      %v7295 = vpop.f32.mrf.mxu0
      %v7296 = vadd.f32 0.0, %v7295
      %v7297 = vpop.f32.mrf.mxu0
      %v7298 = vadd.f32 0.0, %v7297
      %7299 = vmatmul.bf16.gmra.mxu0 %v6881
      %v7300 = vpop.f32.mrf.mxu0
      %v7301 = vadd.f32 0.0, %v7300
      %v7302 = vpop.f32.mrf.mxu0
      %v7303 = vadd.f32 0.0, %v7302
      %7304 = vmatmul.bf16.gmra.mxu0 %v6882
      %v7305 = vpop.f32.mrf.mxu0
      %v7306 = vadd.f32 0.0, %v7305
      %v7307 = vpop.f32.mrf.mxu0
      %v7308 = vadd.f32 0.0, %v7307
      %7309 = vmatmul.bf16.gmra.mxu0 %v6883
      %v7310 = vpop.f32.mrf.mxu0
      %v7311 = vadd.f32 0.0, %v7310
      %v7312 = vpop.f32.mrf.mxu0
      %v7313 = vadd.f32 0.0, %v7312
      %7314 = vmatmul.bf16.gmra.mxu0 %v6884
      %v7315 = vpop.f32.mrf.mxu0
      %v7316 = vadd.f32 0.0, %v7315
      %v7317 = vpop.f32.mrf.mxu0
      %v7318 = vadd.f32 0.0, %v7317
      %7319 = vmatmul.bf16.gmra.mxu0 %v6885
      %v7320 = vpop.f32.mrf.mxu0
      %v7321 = vadd.f32 0.0, %v7320
      %v7322 = vpop.f32.mrf.mxu0
      %v7323 = vadd.f32 0.0, %v7322
      %7324 = vmatmul.bf16.gmra.mxu0 %v6886
      %v7325 = vpop.f32.mrf.mxu0
      %v7326 = vadd.f32 0.0, %v7325
      %v7327 = vpop.f32.mrf.mxu0
      %v7328 = vadd.f32 0.0, %v7327
      %7329 = vmatmul.bf16.gmra.mxu0 %v6887
      %v7330 = vpop.f32.mrf.mxu0
      %v7331 = vadd.f32 0.0, %v7330
      %v7332 = vpop.f32.mrf.mxu0
      %v7333 = vadd.f32 0.0, %v7332
      %7334 = vmatmul.bf16.gmra.mxu0 %v6888
      %v7335 = vpop.f32.mrf.mxu0
      %v7336 = vadd.f32 0.0, %v7335
      %v7337 = vpop.f32.mrf.mxu0
      %v7338 = vadd.f32 0.0, %v7337
      %7339 = vmatmul.bf16.gmra.mxu0 %v6889
      %v7340 = vpop.f32.mrf.mxu0
      %v7341 = vadd.f32 0.0, %v7340
      %v7342 = vpop.f32.mrf.mxu0
      %v7343 = vadd.f32 0.0, %v7342
      %7344 = vmatmul.bf16.gmra.mxu0 %v6890
      %v7345 = vpop.f32.mrf.mxu0
      %v7346 = vadd.f32 0.0, %v7345
      %v7347 = vpop.f32.mrf.mxu0
      %v7348 = vadd.f32 0.0, %v7347
      %7349 = vdwg.mxu0
      %7350 = vmatpush.bf16.msra.mxu0 %v7050
      %7351 = vmatpush.bf16.msra.mxu0 %v7046
      %7352 = vmatpush.bf16.msra.mxu0 %v7042
      %7353 = vmatpush.bf16.msra.mxu0 %v7038
      %7354 = vmatpush.bf16.msra.mxu0 %v7034
      %7355 = vmatpush.bf16.msra.mxu0 %v7030
      %7356 = vmatpush.bf16.msra.mxu0 %v7026
      %7357 = vmatpush.bf16.msra.mxu0 %v7022
      %7358 = vmatmul.bf16.gmra.mxu0 %v6875
      %v7359 = vpop.f32.mrf.mxu0
      %v7360 = vadd.f32 0.0, %v7359
      %v7361 = vpop.f32.mrf.mxu0
      %v7362 = vadd.f32 0.0, %v7361
      %7363 = vmatmul.bf16.gmra.mxu0 %v6876
      %v7364 = vpop.f32.mrf.mxu0
      %v7365 = vadd.f32 0.0, %v7364
      %v7366 = vpop.f32.mrf.mxu0
      %v7367 = vadd.f32 0.0, %v7366
      %7368 = vmatmul.bf16.gmra.mxu0 %v6877
      %v7369 = vpop.f32.mrf.mxu0
      %v7370 = vadd.f32 0.0, %v7369
      %v7371 = vpop.f32.mrf.mxu0
      %v7372 = vadd.f32 0.0, %v7371
      %7373 = vmatmul.bf16.gmra.mxu0 %v6878
      %v7374 = vpop.f32.mrf.mxu0
      %v7375 = vadd.f32 0.0, %v7374
      %v7376 = vpop.f32.mrf.mxu0
      %v7377 = vadd.f32 0.0, %v7376
      %7378 = vmatmul.bf16.gmra.mxu0 %v6879
      %v7379 = vpop.f32.mrf.mxu0
      %v7380 = vadd.f32 0.0, %v7379
      %v7381 = vpop.f32.mrf.mxu0
      %v7382 = vadd.f32 0.0, %v7381
      %7383 = vmatmul.bf16.gmra.mxu0 %v6880
      %v7384 = vpop.f32.mrf.mxu0
      %v7385 = vadd.f32 0.0, %v7384
      %v7386 = vpop.f32.mrf.mxu0
      %v7387 = vadd.f32 0.0, %v7386
      %7388 = vmatmul.bf16.gmra.mxu0 %v6881
      %v7389 = vpop.f32.mrf.mxu0
      %v7390 = vadd.f32 0.0, %v7389
      %v7391 = vpop.f32.mrf.mxu0
      %v7392 = vadd.f32 0.0, %v7391
      %7393 = vmatmul.bf16.gmra.mxu0 %v6882
      %v7394 = vpop.f32.mrf.mxu0
      %v7395 = vadd.f32 0.0, %v7394
      %v7396 = vpop.f32.mrf.mxu0
      %v7397 = vadd.f32 0.0, %v7396
      %7398 = vmatmul.bf16.gmra.mxu0 %v6883
      %v7399 = vpop.f32.mrf.mxu0
      %v7400 = vadd.f32 0.0, %v7399
      %v7401 = vpop.f32.mrf.mxu0
      %v7402 = vadd.f32 0.0, %v7401
      %7403 = vmatmul.bf16.gmra.mxu0 %v6884
      %v7404 = vpop.f32.mrf.mxu0
      %v7405 = vadd.f32 0.0, %v7404
      %v7406 = vpop.f32.mrf.mxu0
      %v7407 = vadd.f32 0.0, %v7406
      %7408 = vmatmul.bf16.gmra.mxu0 %v6885
      %v7409 = vpop.f32.mrf.mxu0
      %v7410 = vadd.f32 0.0, %v7409
      %v7411 = vpop.f32.mrf.mxu0
      %v7412 = vadd.f32 0.0, %v7411
      %7413 = vmatmul.bf16.gmra.mxu0 %v6886
      %v7414 = vpop.f32.mrf.mxu0
      %v7415 = vadd.f32 0.0, %v7414
      %v7416 = vpop.f32.mrf.mxu0
      %v7417 = vadd.f32 0.0, %v7416
      %7418 = vmatmul.bf16.gmra.mxu0 %v6887
      %v7419 = vpop.f32.mrf.mxu0
      %v7420 = vadd.f32 0.0, %v7419
      %v7421 = vpop.f32.mrf.mxu0
      %v7422 = vadd.f32 0.0, %v7421
      %7423 = vmatmul.bf16.gmra.mxu0 %v6888
      %v7424 = vpop.f32.mrf.mxu0
      %v7425 = vadd.f32 0.0, %v7424
      %v7426 = vpop.f32.mrf.mxu0
      %v7427 = vadd.f32 0.0, %v7426
      %7428 = vmatmul.bf16.gmra.mxu0 %v6889
      %v7429 = vpop.f32.mrf.mxu0
      %v7430 = vadd.f32 0.0, %v7429
      %v7431 = vpop.f32.mrf.mxu0
      %v7432 = vadd.f32 0.0, %v7431
      %7433 = vmatmul.bf16.gmra.mxu0 %v6890
      %v7434 = vpop.f32.mrf.mxu0
      %v7435 = vadd.f32 0.0, %v7434
      %v7436 = vpop.f32.mrf.mxu0
      %v7437 = vadd.f32 0.0, %v7436
      %7438 = vdwg.mxu0
      %v7439 = vxor.u32 %v7093, 2147483648
      %v7440 = vxor.u32 %v7182, 2147483648
      %v7441 = vxor.u32 %v7095, 2147483648
      %v7442 = vxor.u32 %v7184, 2147483648
      %v7443 = vxor.u32 %v7098, 2147483648
      %v7444 = vxor.u32 %v7187, 2147483648
      %v7445 = vxor.u32 %v7100, 2147483648
      %v7446 = vxor.u32 %v7189, 2147483648
      %v7447 = vxor.u32 %v7103, 2147483648
      %v7448 = vxor.u32 %v7192, 2147483648
      %v7449 = vxor.u32 %v7105, 2147483648
      %v7450 = vxor.u32 %v7194, 2147483648
      %v7451 = vxor.u32 %v7108, 2147483648
      %v7452 = vxor.u32 %v7197, 2147483648
      %v7453 = vxor.u32 %v7110, 2147483648
      %v7454 = vxor.u32 %v7199, 2147483648
      %v7455 = vxor.u32 %v7113, 2147483648
      %v7456 = vxor.u32 %v7202, 2147483648
      %v7457 = vxor.u32 %v7115, 2147483648
      %v7458 = vxor.u32 %v7204, 2147483648
      %v7459 = vxor.u32 %v7118, 2147483648
      %v7460 = vxor.u32 %v7207, 2147483648
      %v7461 = vxor.u32 %v7120, 2147483648
      %v7462 = vxor.u32 %v7209, 2147483648
      %v7463 = vxor.u32 %v7123, 2147483648
      %v7464 = vxor.u32 %v7212, 2147483648
      %v7465 = vxor.u32 %v7125, 2147483648
      %v7466 = vxor.u32 %v7214, 2147483648
      %v7467 = vxor.u32 %v7128, 2147483648
      %v7468 = vxor.u32 %v7217, 2147483648
      %v7469 = vxor.u32 %v7130, 2147483648
      %v7470 = vxor.u32 %v7219, 2147483648
      %v7471 = vxor.u32 %v7133, 2147483648
      %v7472 = vxor.u32 %v7222, 2147483648
      %v7473 = vxor.u32 %v7135, 2147483648
      %v7474 = vxor.u32 %v7224, 2147483648
      %v7475 = vxor.u32 %v7138, 2147483648
      %v7476 = vxor.u32 %v7227, 2147483648
      %v7477 = vxor.u32 %v7140, 2147483648
      %v7478 = vxor.u32 %v7229, 2147483648
      %v7479 = vxor.u32 %v7143, 2147483648
      %v7480 = vxor.u32 %v7232, 2147483648
      %v7481 = vxor.u32 %v7145, 2147483648
      %v7482 = vxor.u32 %v7234, 2147483648
      %v7483 = vxor.u32 %v7148, 2147483648
      %v7484 = vxor.u32 %v7237, 2147483648
      %v7485 = vxor.u32 %v7150, 2147483648
      %v7486 = vxor.u32 %v7239, 2147483648
      %v7487 = vxor.u32 %v7153, 2147483648
      %v7488 = vxor.u32 %v7242, 2147483648
      %v7489 = vxor.u32 %v7155, 2147483648
      %v7490 = vxor.u32 %v7244, 2147483648
      %v7491 = vxor.u32 %v7158, 2147483648
      %v7492 = vxor.u32 %v7247, 2147483648
      %v7493 = vxor.u32 %v7160, 2147483648
      %v7494 = vxor.u32 %v7249, 2147483648
      %v7495 = vxor.u32 %v7163, 2147483648
      %v7496 = vxor.u32 %v7252, 2147483648
      %v7497 = vxor.u32 %v7165, 2147483648
      %v7498 = vxor.u32 %v7254, 2147483648
      %v7499 = vxor.u32 %v7168, 2147483648
      %v7500 = vxor.u32 %v7257, 2147483648
      %v7501 = vxor.u32 %v7170, 2147483648
      %v7502 = vxor.u32 %v7259, 2147483648
      %v7503 = vmul.f32 %v7439, 1.442695
      %v7504 = vpow.pop %v7503
      %v7505 = vmul.f32 %v7440, 1.442695
      %v7506 = vpow.pop %v7505
      %v7507 = vmul.f32 %v7441, 1.442695
      %v7508 = vpow.pop %v7507
      %v7509 = vmul.f32 %v7442, 1.442695
      %v7510 = vpow.pop %v7509
      %v7511 = vmul.f32 %v7443, 1.442695
      %v7512 = vpow.pop %v7511
      %v7513 = vmul.f32 %v7444, 1.442695
      %v7514 = vpow.pop %v7513
      %v7515 = vmul.f32 %v7445, 1.442695
      %v7516 = vpow.pop %v7515
      %v7517 = vmul.f32 %v7446, 1.442695
      %v7518 = vpow.pop %v7517
      %v7519 = vmul.f32 %v7447, 1.442695
      %v7520 = vpow.pop %v7519
      %v7521 = vmul.f32 %v7448, 1.442695
      %v7522 = vpow.pop %v7521
      %v7523 = vmul.f32 %v7449, 1.442695
      %v7524 = vpow.pop %v7523
      %v7525 = vmul.f32 %v7450, 1.442695
      %v7526 = vpow.pop %v7525
      %v7527 = vmul.f32 %v7451, 1.442695
      %v7528 = vpow.pop %v7527
      %v7529 = vmul.f32 %v7452, 1.442695
      %v7530 = vpow.pop %v7529
      %v7531 = vmul.f32 %v7453, 1.442695
      %v7532 = vpow.pop %v7531
      %v7533 = vmul.f32 %v7454, 1.442695
      %v7534 = vpow.pop %v7533
      %v7535 = vmul.f32 %v7455, 1.442695
      %v7536 = vpow.pop %v7535
      %v7537 = vmul.f32 %v7456, 1.442695
      %v7538 = vpow.pop %v7537
      %v7539 = vmul.f32 %v7457, 1.442695
      %v7540 = vpow.pop %v7539
      %v7541 = vmul.f32 %v7458, 1.442695
      %v7542 = vpow.pop %v7541
      %v7543 = vmul.f32 %v7459, 1.442695
      %v7544 = vpow.pop %v7543
      %v7545 = vmul.f32 %v7460, 1.442695
      %v7546 = vpow.pop %v7545
      %v7547 = vmul.f32 %v7461, 1.442695
      %v7548 = vpow.pop %v7547
      %v7549 = vmul.f32 %v7462, 1.442695
      %v7550 = vpow.pop %v7549
      %v7551 = vmul.f32 %v7463, 1.442695
      %v7552 = vpow.pop %v7551
      %v7553 = vmul.f32 %v7464, 1.442695
      %v7554 = vpow.pop %v7553
      %v7555 = vmul.f32 %v7465, 1.442695
      %v7556 = vpow.pop %v7555
      %v7557 = vmul.f32 %v7466, 1.442695
      %v7558 = vpow.pop %v7557
      %v7559 = vmul.f32 %v7467, 1.442695
      %v7560 = vpow.pop %v7559
      %v7561 = vmul.f32 %v7468, 1.442695
      %v7562 = vpow.pop %v7561
      %v7563 = vmul.f32 %v7469, 1.442695
      %v7564 = vpow.pop %v7563
      %v7565 = vmul.f32 %v7470, 1.442695
      %v7566 = vpow.pop %v7565
      %v7567 = vmul.f32 %v7471, 1.442695
      %v7568 = vpow.pop %v7567
      %v7569 = vmul.f32 %v7472, 1.442695
      %v7570 = vpow.pop %v7569
      %v7571 = vmul.f32 %v7473, 1.442695
      %v7572 = vpow.pop %v7571
      %v7573 = vmul.f32 %v7474, 1.442695
      %v7574 = vpow.pop %v7573
      %v7575 = vmul.f32 %v7475, 1.442695
      %v7576 = vpow.pop %v7575
      %v7577 = vmul.f32 %v7476, 1.442695
      %v7578 = vpow.pop %v7577
      %v7579 = vmul.f32 %v7477, 1.442695
      %v7580 = vpow.pop %v7579
      %v7581 = vmul.f32 %v7478, 1.442695
      %v7582 = vpow.pop %v7581
      %v7583 = vmul.f32 %v7479, 1.442695
      %v7584 = vpow.pop %v7583
      %v7585 = vmul.f32 %v7480, 1.442695
      %v7586 = vpow.pop %v7585
      %v7587 = vmul.f32 %v7481, 1.442695
      %v7588 = vpow.pop %v7587
      %v7589 = vmul.f32 %v7482, 1.442695
      %v7590 = vpow.pop %v7589
      %v7591 = vmul.f32 %v7483, 1.442695
      %v7592 = vpow.pop %v7591
      %v7593 = vmul.f32 %v7484, 1.442695
      %v7594 = vpow.pop %v7593
      %v7595 = vmul.f32 %v7485, 1.442695
      %v7596 = vpow.pop %v7595
      %v7597 = vmul.f32 %v7486, 1.442695
      %v7598 = vpow.pop %v7597
      %v7599 = vmul.f32 %v7487, 1.442695
      %v7600 = vpow.pop %v7599
      %v7601 = vmul.f32 %v7488, 1.442695
      %v7602 = vpow.pop %v7601
      %v7603 = vmul.f32 %v7489, 1.442695
      %v7604 = vpow.pop %v7603
      %v7605 = vmul.f32 %v7490, 1.442695
      %v7606 = vpow.pop %v7605
      %v7607 = vmul.f32 %v7491, 1.442695
      %v7608 = vpow.pop %v7607
      %v7609 = vmul.f32 %v7492, 1.442695
      %v7610 = vpow.pop %v7609
      %v7611 = vmul.f32 %v7493, 1.442695
      %v7612 = vpow.pop %v7611
      %v7613 = vmul.f32 %v7494, 1.442695
      %v7614 = vpow.pop %v7613
      %v7615 = vmul.f32 %v7495, 1.442695
      %v7616 = vpow.pop %v7615
      %v7617 = vmul.f32 %v7496, 1.442695
      %v7618 = vpow.pop %v7617
      %v7619 = vmul.f32 %v7497, 1.442695
      %v7620 = vpow.pop %v7619
      %v7621 = vmul.f32 %v7498, 1.442695
      %v7622 = vpow.pop %v7621
      %v7623 = vmul.f32 %v7499, 1.442695
      %v7624 = vpow.pop %v7623
      %v7625 = vmul.f32 %v7500, 1.442695
      %v7626 = vpow.pop %v7625
      %v7627 = vmul.f32 %v7501, 1.442695
      %v7628 = vpow.pop %v7627
      %v7629 = vmul.f32 %v7502, 1.442695
      %v7630 = vpow.pop %v7629
      %v7631 = vadd.f32 %v7504, 1.0
      %v7632 = vadd.f32 %v7506, 1.0
      %v7633 = vadd.f32 %v7508, 1.0
      %v7634 = vadd.f32 %v7510, 1.0
      %v7635 = vadd.f32 %v7512, 1.0
      %v7636 = vadd.f32 %v7514, 1.0
      %v7637 = vadd.f32 %v7516, 1.0
      %v7638 = vadd.f32 %v7518, 1.0
      %v7639 = vadd.f32 %v7520, 1.0
      %v7640 = vadd.f32 %v7522, 1.0
      %v7641 = vadd.f32 %v7524, 1.0
      %v7642 = vadd.f32 %v7526, 1.0
      %v7643 = vadd.f32 %v7528, 1.0
      %v7644 = vadd.f32 %v7530, 1.0
      %v7645 = vadd.f32 %v7532, 1.0
      %v7646 = vadd.f32 %v7534, 1.0
      %v7647 = vadd.f32 %v7536, 1.0
      %v7648 = vadd.f32 %v7538, 1.0
      %v7649 = vadd.f32 %v7540, 1.0
      %v7650 = vadd.f32 %v7542, 1.0
      %v7651 = vadd.f32 %v7544, 1.0
      %v7652 = vadd.f32 %v7546, 1.0
      %v7653 = vadd.f32 %v7548, 1.0
      %v7654 = vadd.f32 %v7550, 1.0
      %v7655 = vadd.f32 %v7552, 1.0
      %v7656 = vadd.f32 %v7554, 1.0
      %v7657 = vadd.f32 %v7556, 1.0
      %v7658 = vadd.f32 %v7558, 1.0
      %v7659 = vadd.f32 %v7560, 1.0
      %v7660 = vadd.f32 %v7562, 1.0
      %v7661 = vadd.f32 %v7564, 1.0
      %v7662 = vadd.f32 %v7566, 1.0
      %v7663 = vadd.f32 %v7568, 1.0
      %v7664 = vadd.f32 %v7570, 1.0
      %v7665 = vadd.f32 %v7572, 1.0
      %v7666 = vadd.f32 %v7574, 1.0
      %v7667 = vadd.f32 %v7576, 1.0
      %v7668 = vadd.f32 %v7578, 1.0
      %v7669 = vadd.f32 %v7580, 1.0
      %v7670 = vadd.f32 %v7582, 1.0
      %v7671 = vadd.f32 %v7584, 1.0
      %v7672 = vadd.f32 %v7586, 1.0
      %v7673 = vadd.f32 %v7588, 1.0
      %v7674 = vadd.f32 %v7590, 1.0
      %v7675 = vadd.f32 %v7592, 1.0
      %v7676 = vadd.f32 %v7594, 1.0
      %v7677 = vadd.f32 %v7596, 1.0
      %v7678 = vadd.f32 %v7598, 1.0
      %v7679 = vadd.f32 %v7600, 1.0
      %v7680 = vadd.f32 %v7602, 1.0
      %v7681 = vadd.f32 %v7604, 1.0
      %v7682 = vadd.f32 %v7606, 1.0
      %v7683 = vadd.f32 %v7608, 1.0
      %v7684 = vadd.f32 %v7610, 1.0
      %v7685 = vadd.f32 %v7612, 1.0
      %v7686 = vadd.f32 %v7614, 1.0
      %v7687 = vadd.f32 %v7616, 1.0
      %v7688 = vadd.f32 %v7618, 1.0
      %v7689 = vadd.f32 %v7620, 1.0
      %v7690 = vadd.f32 %v7622, 1.0
      %v7691 = vadd.f32 %v7624, 1.0
      %v7692 = vadd.f32 %v7626, 1.0
      %v7693 = vadd.f32 %v7628, 1.0
      %v7694 = vadd.f32 %v7630, 1.0
      %v7695 = vrcp.pop %v7631
      %v7696 = vmul.f32 %v7631, %v7695
      %v7697 = vsub.f32 1.0, %v7696
      %v7698 = vmul.f32 %v7695, %v7697
      %v7699 = vadd.f32 %v7695, %v7698
      %vm7700 = vweird.f32 %v7631
      %vm7701 = vweird.f32 %v7695
      %vm7702 = vmor %vm7700, %vm7701
      %v7703 = vsel %vm7702, %v7695, %v7699
      %v7704 = vand.u32 2147483647, %v7631
      %vm7705 = vcmp.eq.f32.partialorder %v7704, 8.507059e+37
      %v7706 = vand.u32 %v7631, 2147483648
      %v7707 = vor.u32 1.1754944e-38, %v7706
      %v7708 = vsel %vm7705, %v7707, %v7703
      %v7709 = vmul.f32 1.0, %v7708
      %v7710 = vrcp.pop %v7632
      %v7711 = vmul.f32 %v7632, %v7710
      %v7712 = vsub.f32 1.0, %v7711
      %v7713 = vmul.f32 %v7710, %v7712
      %v7714 = vadd.f32 %v7710, %v7713
      %vm7715 = vweird.f32 %v7632
      %vm7716 = vweird.f32 %v7710
      %vm7717 = vmor %vm7715, %vm7716
      %v7718 = vsel %vm7717, %v7710, %v7714
      %v7719 = vand.u32 2147483647, %v7632
      %vm7720 = vcmp.eq.f32.partialorder %v7719, 8.507059e+37
      %v7721 = vand.u32 %v7632, 2147483648
      %v7722 = vor.u32 1.1754944e-38, %v7721
      %v7723 = vsel %vm7720, %v7722, %v7718
      %v7724 = vmul.f32 1.0, %v7723
      %v7725 = vrcp.pop %v7633
      %v7726 = vmul.f32 %v7633, %v7725
      %v7727 = vsub.f32 1.0, %v7726
      %v7728 = vmul.f32 %v7725, %v7727
      %v7729 = vadd.f32 %v7725, %v7728
      %vm7730 = vweird.f32 %v7633
      %vm7731 = vweird.f32 %v7725
      %vm7732 = vmor %vm7730, %vm7731
      %v7733 = vsel %vm7732, %v7725, %v7729
      %v7734 = vand.u32 2147483647, %v7633
      %vm7735 = vcmp.eq.f32.partialorder %v7734, 8.507059e+37
      %v7736 = vand.u32 %v7633, 2147483648
      %v7737 = vor.u32 1.1754944e-38, %v7736
      %v7738 = vsel %vm7735, %v7737, %v7733
      %v7739 = vmul.f32 1.0, %v7738
      %v7740 = vrcp.pop %v7634
      %v7741 = vmul.f32 %v7634, %v7740
      %v7742 = vsub.f32 1.0, %v7741
      %v7743 = vmul.f32 %v7740, %v7742
      %v7744 = vadd.f32 %v7740, %v7743
      %vm7745 = vweird.f32 %v7634
      %vm7746 = vweird.f32 %v7740
      %vm7747 = vmor %vm7745, %vm7746
      %v7748 = vsel %vm7747, %v7740, %v7744
      %v7749 = vand.u32 2147483647, %v7634
      %vm7750 = vcmp.eq.f32.partialorder %v7749, 8.507059e+37
      %v7751 = vand.u32 %v7634, 2147483648
      %v7752 = vor.u32 1.1754944e-38, %v7751
      %v7753 = vsel %vm7750, %v7752, %v7748
      %v7754 = vmul.f32 1.0, %v7753
      %v7755 = vrcp.pop %v7635
      %v7756 = vmul.f32 %v7635, %v7755
      %v7757 = vsub.f32 1.0, %v7756
      %v7758 = vmul.f32 %v7755, %v7757
      %v7759 = vadd.f32 %v7755, %v7758
      %vm7760 = vweird.f32 %v7635
      %vm7761 = vweird.f32 %v7755
      %vm7762 = vmor %vm7760, %vm7761
      %v7763 = vsel %vm7762, %v7755, %v7759
      %v7764 = vand.u32 2147483647, %v7635
      %vm7765 = vcmp.eq.f32.partialorder %v7764, 8.507059e+37
      %v7766 = vand.u32 %v7635, 2147483648
      %v7767 = vor.u32 1.1754944e-38, %v7766
      %v7768 = vsel %vm7765, %v7767, %v7763
      %v7769 = vmul.f32 1.0, %v7768
      %v7770 = vrcp.pop %v7636
      %v7771 = vmul.f32 %v7636, %v7770
      %v7772 = vsub.f32 1.0, %v7771
      %v7773 = vmul.f32 %v7770, %v7772
      %v7774 = vadd.f32 %v7770, %v7773
      %vm7775 = vweird.f32 %v7636
      %vm7776 = vweird.f32 %v7770
      %vm7777 = vmor %vm7775, %vm7776
      %v7778 = vsel %vm7777, %v7770, %v7774
      %v7779 = vand.u32 2147483647, %v7636
      %vm7780 = vcmp.eq.f32.partialorder %v7779, 8.507059e+37
      %v7781 = vand.u32 %v7636, 2147483648
      %v7782 = vor.u32 1.1754944e-38, %v7781
      %v7783 = vsel %vm7780, %v7782, %v7778
      %v7784 = vmul.f32 1.0, %v7783
      %v7785 = vrcp.pop %v7637
      %v7786 = vmul.f32 %v7637, %v7785
      %v7787 = vsub.f32 1.0, %v7786
      %v7788 = vmul.f32 %v7785, %v7787
      %v7789 = vadd.f32 %v7785, %v7788
      %vm7790 = vweird.f32 %v7637
      %vm7791 = vweird.f32 %v7785
      %vm7792 = vmor %vm7790, %vm7791
      %v7793 = vsel %vm7792, %v7785, %v7789
      %v7794 = vand.u32 2147483647, %v7637
      %vm7795 = vcmp.eq.f32.partialorder %v7794, 8.507059e+37
      %v7796 = vand.u32 %v7637, 2147483648
      %v7797 = vor.u32 1.1754944e-38, %v7796
      %v7798 = vsel %vm7795, %v7797, %v7793
      %v7799 = vmul.f32 1.0, %v7798
      %v7800 = vrcp.pop %v7638
      %v7801 = vmul.f32 %v7638, %v7800
      %v7802 = vsub.f32 1.0, %v7801
      %v7803 = vmul.f32 %v7800, %v7802
      %v7804 = vadd.f32 %v7800, %v7803
      %vm7805 = vweird.f32 %v7638
      %vm7806 = vweird.f32 %v7800
      %vm7807 = vmor %vm7805, %vm7806
      %v7808 = vsel %vm7807, %v7800, %v7804
      %v7809 = vand.u32 2147483647, %v7638
      %vm7810 = vcmp.eq.f32.partialorder %v7809, 8.507059e+37
      %v7811 = vand.u32 %v7638, 2147483648
      %v7812 = vor.u32 1.1754944e-38, %v7811
      %v7813 = vsel %vm7810, %v7812, %v7808
      %v7814 = vmul.f32 1.0, %v7813
      %v7815 = vrcp.pop %v7639
      %v7816 = vmul.f32 %v7639, %v7815
      %v7817 = vsub.f32 1.0, %v7816
      %v7818 = vmul.f32 %v7815, %v7817
      %v7819 = vadd.f32 %v7815, %v7818
      %vm7820 = vweird.f32 %v7639
      %vm7821 = vweird.f32 %v7815
      %vm7822 = vmor %vm7820, %vm7821
      %v7823 = vsel %vm7822, %v7815, %v7819
      %v7824 = vand.u32 2147483647, %v7639
      %vm7825 = vcmp.eq.f32.partialorder %v7824, 8.507059e+37
      %v7826 = vand.u32 %v7639, 2147483648
      %v7827 = vor.u32 1.1754944e-38, %v7826
      %v7828 = vsel %vm7825, %v7827, %v7823
      %v7829 = vmul.f32 1.0, %v7828
      %v7830 = vrcp.pop %v7640
      %v7831 = vmul.f32 %v7640, %v7830
      %v7832 = vsub.f32 1.0, %v7831
      %v7833 = vmul.f32 %v7830, %v7832
      %v7834 = vadd.f32 %v7830, %v7833
      %vm7835 = vweird.f32 %v7640
      %vm7836 = vweird.f32 %v7830
      %vm7837 = vmor %vm7835, %vm7836
      %v7838 = vsel %vm7837, %v7830, %v7834
      %v7839 = vand.u32 2147483647, %v7640
      %vm7840 = vcmp.eq.f32.partialorder %v7839, 8.507059e+37
      %v7841 = vand.u32 %v7640, 2147483648
      %v7842 = vor.u32 1.1754944e-38, %v7841
      %v7843 = vsel %vm7840, %v7842, %v7838
      %v7844 = vmul.f32 1.0, %v7843
      %v7845 = vrcp.pop %v7641
      %v7846 = vmul.f32 %v7641, %v7845
      %v7847 = vsub.f32 1.0, %v7846
      %v7848 = vmul.f32 %v7845, %v7847
      %v7849 = vadd.f32 %v7845, %v7848
      %vm7850 = vweird.f32 %v7641
      %vm7851 = vweird.f32 %v7845
      %vm7852 = vmor %vm7850, %vm7851
      %v7853 = vsel %vm7852, %v7845, %v7849
      %v7854 = vand.u32 2147483647, %v7641
      %vm7855 = vcmp.eq.f32.partialorder %v7854, 8.507059e+37
      %v7856 = vand.u32 %v7641, 2147483648
      %v7857 = vor.u32 1.1754944e-38, %v7856
      %v7858 = vsel %vm7855, %v7857, %v7853
      %v7859 = vmul.f32 1.0, %v7858
      %v7860 = vrcp.pop %v7642
      %v7861 = vmul.f32 %v7642, %v7860
      %v7862 = vsub.f32 1.0, %v7861
      %v7863 = vmul.f32 %v7860, %v7862
      %v7864 = vadd.f32 %v7860, %v7863
      %vm7865 = vweird.f32 %v7642
      %vm7866 = vweird.f32 %v7860
      %vm7867 = vmor %vm7865, %vm7866
      %v7868 = vsel %vm7867, %v7860, %v7864
      %v7869 = vand.u32 2147483647, %v7642
      %vm7870 = vcmp.eq.f32.partialorder %v7869, 8.507059e+37
      %v7871 = vand.u32 %v7642, 2147483648
      %v7872 = vor.u32 1.1754944e-38, %v7871
      %v7873 = vsel %vm7870, %v7872, %v7868
      %v7874 = vmul.f32 1.0, %v7873
      %v7875 = vrcp.pop %v7643
      %v7876 = vmul.f32 %v7643, %v7875
      %v7877 = vsub.f32 1.0, %v7876
      %v7878 = vmul.f32 %v7875, %v7877
      %v7879 = vadd.f32 %v7875, %v7878
      %vm7880 = vweird.f32 %v7643
      %vm7881 = vweird.f32 %v7875
      %vm7882 = vmor %vm7880, %vm7881
      %v7883 = vsel %vm7882, %v7875, %v7879
      %v7884 = vand.u32 2147483647, %v7643
      %vm7885 = vcmp.eq.f32.partialorder %v7884, 8.507059e+37
      %v7886 = vand.u32 %v7643, 2147483648
      %v7887 = vor.u32 1.1754944e-38, %v7886
      %v7888 = vsel %vm7885, %v7887, %v7883
      %v7889 = vmul.f32 1.0, %v7888
      %v7890 = vrcp.pop %v7644
      %v7891 = vmul.f32 %v7644, %v7890
      %v7892 = vsub.f32 1.0, %v7891
      %v7893 = vmul.f32 %v7890, %v7892
      %v7894 = vadd.f32 %v7890, %v7893
      %vm7895 = vweird.f32 %v7644
      %vm7896 = vweird.f32 %v7890
      %vm7897 = vmor %vm7895, %vm7896
      %v7898 = vsel %vm7897, %v7890, %v7894
      %v7899 = vand.u32 2147483647, %v7644
      %vm7900 = vcmp.eq.f32.partialorder %v7899, 8.507059e+37
      %v7901 = vand.u32 %v7644, 2147483648
      %v7902 = vor.u32 1.1754944e-38, %v7901
      %v7903 = vsel %vm7900, %v7902, %v7898
      %v7904 = vmul.f32 1.0, %v7903
      %v7905 = vrcp.pop %v7645
      %v7906 = vmul.f32 %v7645, %v7905
      %v7907 = vsub.f32 1.0, %v7906
      %v7908 = vmul.f32 %v7905, %v7907
      %v7909 = vadd.f32 %v7905, %v7908
      %vm7910 = vweird.f32 %v7645
      %vm7911 = vweird.f32 %v7905
      %vm7912 = vmor %vm7910, %vm7911
      %v7913 = vsel %vm7912, %v7905, %v7909
      %v7914 = vand.u32 2147483647, %v7645
      %vm7915 = vcmp.eq.f32.partialorder %v7914, 8.507059e+37
      %v7916 = vand.u32 %v7645, 2147483648
      %v7917 = vor.u32 1.1754944e-38, %v7916
      %v7918 = vsel %vm7915, %v7917, %v7913
      %v7919 = vmul.f32 1.0, %v7918
      %v7920 = vrcp.pop %v7646
      %v7921 = vmul.f32 %v7646, %v7920
      %v7922 = vsub.f32 1.0, %v7921
      %v7923 = vmul.f32 %v7920, %v7922
      %v7924 = vadd.f32 %v7920, %v7923
      %vm7925 = vweird.f32 %v7646
      %vm7926 = vweird.f32 %v7920
      %vm7927 = vmor %vm7925, %vm7926
      %v7928 = vsel %vm7927, %v7920, %v7924
      %v7929 = vand.u32 2147483647, %v7646
      %vm7930 = vcmp.eq.f32.partialorder %v7929, 8.507059e+37
      %v7931 = vand.u32 %v7646, 2147483648
      %v7932 = vor.u32 1.1754944e-38, %v7931
      %v7933 = vsel %vm7930, %v7932, %v7928
      %v7934 = vmul.f32 1.0, %v7933
      %v7935 = vrcp.pop %v7647
      %v7936 = vmul.f32 %v7647, %v7935
      %v7937 = vsub.f32 1.0, %v7936
      %v7938 = vmul.f32 %v7935, %v7937
      %v7939 = vadd.f32 %v7935, %v7938
      %vm7940 = vweird.f32 %v7647
      %vm7941 = vweird.f32 %v7935
      %vm7942 = vmor %vm7940, %vm7941
      %v7943 = vsel %vm7942, %v7935, %v7939
      %v7944 = vand.u32 2147483647, %v7647
      %vm7945 = vcmp.eq.f32.partialorder %v7944, 8.507059e+37
      %v7946 = vand.u32 %v7647, 2147483648
      %v7947 = vor.u32 1.1754944e-38, %v7946
      %v7948 = vsel %vm7945, %v7947, %v7943
      %v7949 = vmul.f32 1.0, %v7948
      %v7950 = vrcp.pop %v7648
      %v7951 = vmul.f32 %v7648, %v7950
      %v7952 = vsub.f32 1.0, %v7951
      %v7953 = vmul.f32 %v7950, %v7952
      %v7954 = vadd.f32 %v7950, %v7953
      %vm7955 = vweird.f32 %v7648
      %vm7956 = vweird.f32 %v7950
      %vm7957 = vmor %vm7955, %vm7956
      %v7958 = vsel %vm7957, %v7950, %v7954
      %v7959 = vand.u32 2147483647, %v7648
      %vm7960 = vcmp.eq.f32.partialorder %v7959, 8.507059e+37
      %v7961 = vand.u32 %v7648, 2147483648
      %v7962 = vor.u32 1.1754944e-38, %v7961
      %v7963 = vsel %vm7960, %v7962, %v7958
      %v7964 = vmul.f32 1.0, %v7963
      %v7965 = vrcp.pop %v7649
      %v7966 = vmul.f32 %v7649, %v7965
      %v7967 = vsub.f32 1.0, %v7966
      %v7968 = vmul.f32 %v7965, %v7967
      %v7969 = vadd.f32 %v7965, %v7968
      %vm7970 = vweird.f32 %v7649
      %vm7971 = vweird.f32 %v7965
      %vm7972 = vmor %vm7970, %vm7971
      %v7973 = vsel %vm7972, %v7965, %v7969
      %v7974 = vand.u32 2147483647, %v7649
      %vm7975 = vcmp.eq.f32.partialorder %v7974, 8.507059e+37
      %v7976 = vand.u32 %v7649, 2147483648
      %v7977 = vor.u32 1.1754944e-38, %v7976
      %v7978 = vsel %vm7975, %v7977, %v7973
      %v7979 = vmul.f32 1.0, %v7978
      %v7980 = vrcp.pop %v7650
      %v7981 = vmul.f32 %v7650, %v7980
      %v7982 = vsub.f32 1.0, %v7981
      %v7983 = vmul.f32 %v7980, %v7982
      %v7984 = vadd.f32 %v7980, %v7983
      %vm7985 = vweird.f32 %v7650
      %vm7986 = vweird.f32 %v7980
      %vm7987 = vmor %vm7985, %vm7986
      %v7988 = vsel %vm7987, %v7980, %v7984
      %v7989 = vand.u32 2147483647, %v7650
      %vm7990 = vcmp.eq.f32.partialorder %v7989, 8.507059e+37
      %v7991 = vand.u32 %v7650, 2147483648
      %v7992 = vor.u32 1.1754944e-38, %v7991
      %v7993 = vsel %vm7990, %v7992, %v7988
      %v7994 = vmul.f32 1.0, %v7993
      %v7995 = vrcp.pop %v7651
      %v7996 = vmul.f32 %v7651, %v7995
      %v7997 = vsub.f32 1.0, %v7996
      %v7998 = vmul.f32 %v7995, %v7997
      %v7999 = vadd.f32 %v7995, %v7998
      %vm8000 = vweird.f32 %v7651
      %vm8001 = vweird.f32 %v7995
      %vm8002 = vmor %vm8000, %vm8001
      %v8003 = vsel %vm8002, %v7995, %v7999
      %v8004 = vand.u32 2147483647, %v7651
      %vm8005 = vcmp.eq.f32.partialorder %v8004, 8.507059e+37
      %v8006 = vand.u32 %v7651, 2147483648
      %v8007 = vor.u32 1.1754944e-38, %v8006
      %v8008 = vsel %vm8005, %v8007, %v8003
      %v8009 = vmul.f32 1.0, %v8008
      %v8010 = vrcp.pop %v7652
      %v8011 = vmul.f32 %v7652, %v8010
      %v8012 = vsub.f32 1.0, %v8011
      %v8013 = vmul.f32 %v8010, %v8012
      %v8014 = vadd.f32 %v8010, %v8013
      %vm8015 = vweird.f32 %v7652
      %vm8016 = vweird.f32 %v8010
      %vm8017 = vmor %vm8015, %vm8016
      %v8018 = vsel %vm8017, %v8010, %v8014
      %v8019 = vand.u32 2147483647, %v7652
      %vm8020 = vcmp.eq.f32.partialorder %v8019, 8.507059e+37
      %v8021 = vand.u32 %v7652, 2147483648
      %v8022 = vor.u32 1.1754944e-38, %v8021
      %v8023 = vsel %vm8020, %v8022, %v8018
      %v8024 = vmul.f32 1.0, %v8023
      %v8025 = vrcp.pop %v7653
      %v8026 = vmul.f32 %v7653, %v8025
      %v8027 = vsub.f32 1.0, %v8026
      %v8028 = vmul.f32 %v8025, %v8027
      %v8029 = vadd.f32 %v8025, %v8028
      %vm8030 = vweird.f32 %v7653
      %vm8031 = vweird.f32 %v8025
      %vm8032 = vmor %vm8030, %vm8031
      %v8033 = vsel %vm8032, %v8025, %v8029
      %v8034 = vand.u32 2147483647, %v7653
      %vm8035 = vcmp.eq.f32.partialorder %v8034, 8.507059e+37
      %v8036 = vand.u32 %v7653, 2147483648
      %v8037 = vor.u32 1.1754944e-38, %v8036
      %v8038 = vsel %vm8035, %v8037, %v8033
      %v8039 = vmul.f32 1.0, %v8038
      %v8040 = vrcp.pop %v7654
      %v8041 = vmul.f32 %v7654, %v8040
      %v8042 = vsub.f32 1.0, %v8041
      %v8043 = vmul.f32 %v8040, %v8042
      %v8044 = vadd.f32 %v8040, %v8043
      %vm8045 = vweird.f32 %v7654
      %vm8046 = vweird.f32 %v8040
      %vm8047 = vmor %vm8045, %vm8046
      %v8048 = vsel %vm8047, %v8040, %v8044
      %v8049 = vand.u32 2147483647, %v7654
      %vm8050 = vcmp.eq.f32.partialorder %v8049, 8.507059e+37
      %v8051 = vand.u32 %v7654, 2147483648
      %v8052 = vor.u32 1.1754944e-38, %v8051
      %v8053 = vsel %vm8050, %v8052, %v8048
      %v8054 = vmul.f32 1.0, %v8053
      %v8055 = vrcp.pop %v7655
      %v8056 = vmul.f32 %v7655, %v8055
      %v8057 = vsub.f32 1.0, %v8056
      %v8058 = vmul.f32 %v8055, %v8057
      %v8059 = vadd.f32 %v8055, %v8058
      %vm8060 = vweird.f32 %v7655
      %vm8061 = vweird.f32 %v8055
      %vm8062 = vmor %vm8060, %vm8061
      %v8063 = vsel %vm8062, %v8055, %v8059
      %v8064 = vand.u32 2147483647, %v7655
      %vm8065 = vcmp.eq.f32.partialorder %v8064, 8.507059e+37
      %v8066 = vand.u32 %v7655, 2147483648
      %v8067 = vor.u32 1.1754944e-38, %v8066
      %v8068 = vsel %vm8065, %v8067, %v8063
      %v8069 = vmul.f32 1.0, %v8068
      %v8070 = vrcp.pop %v7656
      %v8071 = vmul.f32 %v7656, %v8070
      %v8072 = vsub.f32 1.0, %v8071
      %v8073 = vmul.f32 %v8070, %v8072
      %v8074 = vadd.f32 %v8070, %v8073
      %vm8075 = vweird.f32 %v7656
      %vm8076 = vweird.f32 %v8070
      %vm8077 = vmor %vm8075, %vm8076
      %v8078 = vsel %vm8077, %v8070, %v8074
      %v8079 = vand.u32 2147483647, %v7656
      %vm8080 = vcmp.eq.f32.partialorder %v8079, 8.507059e+37
      %v8081 = vand.u32 %v7656, 2147483648
      %v8082 = vor.u32 1.1754944e-38, %v8081
      %v8083 = vsel %vm8080, %v8082, %v8078
      %v8084 = vmul.f32 1.0, %v8083
      %v8085 = vrcp.pop %v7657
      %v8086 = vmul.f32 %v7657, %v8085
      %v8087 = vsub.f32 1.0, %v8086
      %v8088 = vmul.f32 %v8085, %v8087
      %v8089 = vadd.f32 %v8085, %v8088
      %vm8090 = vweird.f32 %v7657
      %vm8091 = vweird.f32 %v8085
      %vm8092 = vmor %vm8090, %vm8091
      %v8093 = vsel %vm8092, %v8085, %v8089
      %v8094 = vand.u32 2147483647, %v7657
      %vm8095 = vcmp.eq.f32.partialorder %v8094, 8.507059e+37
      %v8096 = vand.u32 %v7657, 2147483648
      %v8097 = vor.u32 1.1754944e-38, %v8096
      %v8098 = vsel %vm8095, %v8097, %v8093
      %v8099 = vmul.f32 1.0, %v8098
      %v8100 = vrcp.pop %v7658
      %v8101 = vmul.f32 %v7658, %v8100
      %v8102 = vsub.f32 1.0, %v8101
      %v8103 = vmul.f32 %v8100, %v8102
      %v8104 = vadd.f32 %v8100, %v8103
      %vm8105 = vweird.f32 %v7658
      %vm8106 = vweird.f32 %v8100
      %vm8107 = vmor %vm8105, %vm8106
      %v8108 = vsel %vm8107, %v8100, %v8104
      %v8109 = vand.u32 2147483647, %v7658
      %vm8110 = vcmp.eq.f32.partialorder %v8109, 8.507059e+37
      %v8111 = vand.u32 %v7658, 2147483648
      %v8112 = vor.u32 1.1754944e-38, %v8111
      %v8113 = vsel %vm8110, %v8112, %v8108
      %v8114 = vmul.f32 1.0, %v8113
      %v8115 = vrcp.pop %v7659
      %v8116 = vmul.f32 %v7659, %v8115
      %v8117 = vsub.f32 1.0, %v8116
      %v8118 = vmul.f32 %v8115, %v8117
      %v8119 = vadd.f32 %v8115, %v8118
      %vm8120 = vweird.f32 %v7659
      %vm8121 = vweird.f32 %v8115
      %vm8122 = vmor %vm8120, %vm8121
      %v8123 = vsel %vm8122, %v8115, %v8119
      %v8124 = vand.u32 2147483647, %v7659
      %vm8125 = vcmp.eq.f32.partialorder %v8124, 8.507059e+37
      %v8126 = vand.u32 %v7659, 2147483648
      %v8127 = vor.u32 1.1754944e-38, %v8126
      %v8128 = vsel %vm8125, %v8127, %v8123
      %v8129 = vmul.f32 1.0, %v8128
      %v8130 = vrcp.pop %v7660
      %v8131 = vmul.f32 %v7660, %v8130
      %v8132 = vsub.f32 1.0, %v8131
      %v8133 = vmul.f32 %v8130, %v8132
      %v8134 = vadd.f32 %v8130, %v8133
      %vm8135 = vweird.f32 %v7660
      %vm8136 = vweird.f32 %v8130
      %vm8137 = vmor %vm8135, %vm8136
      %v8138 = vsel %vm8137, %v8130, %v8134
      %v8139 = vand.u32 2147483647, %v7660
      %vm8140 = vcmp.eq.f32.partialorder %v8139, 8.507059e+37
      %v8141 = vand.u32 %v7660, 2147483648
      %v8142 = vor.u32 1.1754944e-38, %v8141
      %v8143 = vsel %vm8140, %v8142, %v8138
      %v8144 = vmul.f32 1.0, %v8143
      %v8145 = vrcp.pop %v7661
      %v8146 = vmul.f32 %v7661, %v8145
      %v8147 = vsub.f32 1.0, %v8146
      %v8148 = vmul.f32 %v8145, %v8147
      %v8149 = vadd.f32 %v8145, %v8148
      %vm8150 = vweird.f32 %v7661
      %vm8151 = vweird.f32 %v8145
      %vm8152 = vmor %vm8150, %vm8151
      %v8153 = vsel %vm8152, %v8145, %v8149
      %v8154 = vand.u32 2147483647, %v7661
      %vm8155 = vcmp.eq.f32.partialorder %v8154, 8.507059e+37
      %v8156 = vand.u32 %v7661, 2147483648
      %v8157 = vor.u32 1.1754944e-38, %v8156
      %v8158 = vsel %vm8155, %v8157, %v8153
      %v8159 = vmul.f32 1.0, %v8158
      %v8160 = vrcp.pop %v7662
      %v8161 = vmul.f32 %v7662, %v8160
      %v8162 = vsub.f32 1.0, %v8161
      %v8163 = vmul.f32 %v8160, %v8162
      %v8164 = vadd.f32 %v8160, %v8163
      %vm8165 = vweird.f32 %v7662
      %vm8166 = vweird.f32 %v8160
      %vm8167 = vmor %vm8165, %vm8166
      %v8168 = vsel %vm8167, %v8160, %v8164
      %v8169 = vand.u32 2147483647, %v7662
      %vm8170 = vcmp.eq.f32.partialorder %v8169, 8.507059e+37
      %v8171 = vand.u32 %v7662, 2147483648
      %v8172 = vor.u32 1.1754944e-38, %v8171
      %v8173 = vsel %vm8170, %v8172, %v8168
      %v8174 = vmul.f32 1.0, %v8173
      %v8175 = vrcp.pop %v7663
      %v8176 = vmul.f32 %v7663, %v8175
      %v8177 = vsub.f32 1.0, %v8176
      %v8178 = vmul.f32 %v8175, %v8177
      %v8179 = vadd.f32 %v8175, %v8178
      %vm8180 = vweird.f32 %v7663
      %vm8181 = vweird.f32 %v8175
      %vm8182 = vmor %vm8180, %vm8181
      %v8183 = vsel %vm8182, %v8175, %v8179
      %v8184 = vand.u32 2147483647, %v7663
      %vm8185 = vcmp.eq.f32.partialorder %v8184, 8.507059e+37
      %v8186 = vand.u32 %v7663, 2147483648
      %v8187 = vor.u32 1.1754944e-38, %v8186
      %v8188 = vsel %vm8185, %v8187, %v8183
      %v8189 = vmul.f32 1.0, %v8188
      %v8190 = vrcp.pop %v7664
      %v8191 = vmul.f32 %v7664, %v8190
      %v8192 = vsub.f32 1.0, %v8191
      %v8193 = vmul.f32 %v8190, %v8192
      %v8194 = vadd.f32 %v8190, %v8193
      %vm8195 = vweird.f32 %v7664
      %vm8196 = vweird.f32 %v8190
      %vm8197 = vmor %vm8195, %vm8196
      %v8198 = vsel %vm8197, %v8190, %v8194
      %v8199 = vand.u32 2147483647, %v7664
      %vm8200 = vcmp.eq.f32.partialorder %v8199, 8.507059e+37
      %v8201 = vand.u32 %v7664, 2147483648
      %v8202 = vor.u32 1.1754944e-38, %v8201
      %v8203 = vsel %vm8200, %v8202, %v8198
      %v8204 = vmul.f32 1.0, %v8203
      %v8205 = vrcp.pop %v7665
      %v8206 = vmul.f32 %v7665, %v8205
      %v8207 = vsub.f32 1.0, %v8206
      %v8208 = vmul.f32 %v8205, %v8207
      %v8209 = vadd.f32 %v8205, %v8208
      %vm8210 = vweird.f32 %v7665
      %vm8211 = vweird.f32 %v8205
      %vm8212 = vmor %vm8210, %vm8211
      %v8213 = vsel %vm8212, %v8205, %v8209
      %v8214 = vand.u32 2147483647, %v7665
      %vm8215 = vcmp.eq.f32.partialorder %v8214, 8.507059e+37
      %v8216 = vand.u32 %v7665, 2147483648
      %v8217 = vor.u32 1.1754944e-38, %v8216
      %v8218 = vsel %vm8215, %v8217, %v8213
      %v8219 = vmul.f32 1.0, %v8218
      %v8220 = vrcp.pop %v7666
      %v8221 = vmul.f32 %v7666, %v8220
      %v8222 = vsub.f32 1.0, %v8221
      %v8223 = vmul.f32 %v8220, %v8222
      %v8224 = vadd.f32 %v8220, %v8223
      %vm8225 = vweird.f32 %v7666
      %vm8226 = vweird.f32 %v8220
      %vm8227 = vmor %vm8225, %vm8226
      %v8228 = vsel %vm8227, %v8220, %v8224
      %v8229 = vand.u32 2147483647, %v7666
      %vm8230 = vcmp.eq.f32.partialorder %v8229, 8.507059e+37
      %v8231 = vand.u32 %v7666, 2147483648
      %v8232 = vor.u32 1.1754944e-38, %v8231
      %v8233 = vsel %vm8230, %v8232, %v8228
      %v8234 = vmul.f32 1.0, %v8233
      %v8235 = vrcp.pop %v7667
      %v8236 = vmul.f32 %v7667, %v8235
      %v8237 = vsub.f32 1.0, %v8236
      %v8238 = vmul.f32 %v8235, %v8237
      %v8239 = vadd.f32 %v8235, %v8238
      %vm8240 = vweird.f32 %v7667
      %vm8241 = vweird.f32 %v8235
      %vm8242 = vmor %vm8240, %vm8241
      %v8243 = vsel %vm8242, %v8235, %v8239
      %v8244 = vand.u32 2147483647, %v7667
      %vm8245 = vcmp.eq.f32.partialorder %v8244, 8.507059e+37
      %v8246 = vand.u32 %v7667, 2147483648
      %v8247 = vor.u32 1.1754944e-38, %v8246
      %v8248 = vsel %vm8245, %v8247, %v8243
      %v8249 = vmul.f32 1.0, %v8248
      %v8250 = vrcp.pop %v7668
      %v8251 = vmul.f32 %v7668, %v8250
      %v8252 = vsub.f32 1.0, %v8251
      %v8253 = vmul.f32 %v8250, %v8252
      %v8254 = vadd.f32 %v8250, %v8253
      %vm8255 = vweird.f32 %v7668
      %vm8256 = vweird.f32 %v8250
      %vm8257 = vmor %vm8255, %vm8256
      %v8258 = vsel %vm8257, %v8250, %v8254
      %v8259 = vand.u32 2147483647, %v7668
      %vm8260 = vcmp.eq.f32.partialorder %v8259, 8.507059e+37
      %v8261 = vand.u32 %v7668, 2147483648
      %v8262 = vor.u32 1.1754944e-38, %v8261
      %v8263 = vsel %vm8260, %v8262, %v8258
      %v8264 = vmul.f32 1.0, %v8263
      %v8265 = vrcp.pop %v7669
      %v8266 = vmul.f32 %v7669, %v8265
      %v8267 = vsub.f32 1.0, %v8266
      %v8268 = vmul.f32 %v8265, %v8267
      %v8269 = vadd.f32 %v8265, %v8268
      %vm8270 = vweird.f32 %v7669
      %vm8271 = vweird.f32 %v8265
      %vm8272 = vmor %vm8270, %vm8271
      %v8273 = vsel %vm8272, %v8265, %v8269
      %v8274 = vand.u32 2147483647, %v7669
      %vm8275 = vcmp.eq.f32.partialorder %v8274, 8.507059e+37
      %v8276 = vand.u32 %v7669, 2147483648
      %v8277 = vor.u32 1.1754944e-38, %v8276
      %v8278 = vsel %vm8275, %v8277, %v8273
      %v8279 = vmul.f32 1.0, %v8278
      %v8280 = vrcp.pop %v7670
      %v8281 = vmul.f32 %v7670, %v8280
      %v8282 = vsub.f32 1.0, %v8281
      %v8283 = vmul.f32 %v8280, %v8282
      %v8284 = vadd.f32 %v8280, %v8283
      %vm8285 = vweird.f32 %v7670
      %vm8286 = vweird.f32 %v8280
      %vm8287 = vmor %vm8285, %vm8286
      %v8288 = vsel %vm8287, %v8280, %v8284
      %v8289 = vand.u32 2147483647, %v7670
      %vm8290 = vcmp.eq.f32.partialorder %v8289, 8.507059e+37
      %v8291 = vand.u32 %v7670, 2147483648
      %v8292 = vor.u32 1.1754944e-38, %v8291
      %v8293 = vsel %vm8290, %v8292, %v8288
      %v8294 = vmul.f32 1.0, %v8293
      %v8295 = vrcp.pop %v7671
      %v8296 = vmul.f32 %v7671, %v8295
      %v8297 = vsub.f32 1.0, %v8296
      %v8298 = vmul.f32 %v8295, %v8297
      %v8299 = vadd.f32 %v8295, %v8298
      %vm8300 = vweird.f32 %v7671
      %vm8301 = vweird.f32 %v8295
      %vm8302 = vmor %vm8300, %vm8301
      %v8303 = vsel %vm8302, %v8295, %v8299
      %v8304 = vand.u32 2147483647, %v7671
      %vm8305 = vcmp.eq.f32.partialorder %v8304, 8.507059e+37
      %v8306 = vand.u32 %v7671, 2147483648
      %v8307 = vor.u32 1.1754944e-38, %v8306
      %v8308 = vsel %vm8305, %v8307, %v8303
      %v8309 = vmul.f32 1.0, %v8308
      %v8310 = vrcp.pop %v7672
      %v8311 = vmul.f32 %v7672, %v8310
      %v8312 = vsub.f32 1.0, %v8311
      %v8313 = vmul.f32 %v8310, %v8312
      %v8314 = vadd.f32 %v8310, %v8313
      %vm8315 = vweird.f32 %v7672
      %vm8316 = vweird.f32 %v8310
      %vm8317 = vmor %vm8315, %vm8316
      %v8318 = vsel %vm8317, %v8310, %v8314
      %v8319 = vand.u32 2147483647, %v7672
      %vm8320 = vcmp.eq.f32.partialorder %v8319, 8.507059e+37
      %v8321 = vand.u32 %v7672, 2147483648
      %v8322 = vor.u32 1.1754944e-38, %v8321
      %v8323 = vsel %vm8320, %v8322, %v8318
      %v8324 = vmul.f32 1.0, %v8323
      %v8325 = vrcp.pop %v7673
      %v8326 = vmul.f32 %v7673, %v8325
      %v8327 = vsub.f32 1.0, %v8326
      %v8328 = vmul.f32 %v8325, %v8327
      %v8329 = vadd.f32 %v8325, %v8328
      %vm8330 = vweird.f32 %v7673
      %vm8331 = vweird.f32 %v8325
      %vm8332 = vmor %vm8330, %vm8331
      %v8333 = vsel %vm8332, %v8325, %v8329
      %v8334 = vand.u32 2147483647, %v7673
      %vm8335 = vcmp.eq.f32.partialorder %v8334, 8.507059e+37
      %v8336 = vand.u32 %v7673, 2147483648
      %v8337 = vor.u32 1.1754944e-38, %v8336
      %v8338 = vsel %vm8335, %v8337, %v8333
      %v8339 = vmul.f32 1.0, %v8338
      %v8340 = vrcp.pop %v7674
      %v8341 = vmul.f32 %v7674, %v8340
      %v8342 = vsub.f32 1.0, %v8341
      %v8343 = vmul.f32 %v8340, %v8342
      %v8344 = vadd.f32 %v8340, %v8343
      %vm8345 = vweird.f32 %v7674
      %vm8346 = vweird.f32 %v8340
      %vm8347 = vmor %vm8345, %vm8346
      %v8348 = vsel %vm8347, %v8340, %v8344
      %v8349 = vand.u32 2147483647, %v7674
      %vm8350 = vcmp.eq.f32.partialorder %v8349, 8.507059e+37
      %v8351 = vand.u32 %v7674, 2147483648
      %v8352 = vor.u32 1.1754944e-38, %v8351
      %v8353 = vsel %vm8350, %v8352, %v8348
      %v8354 = vmul.f32 1.0, %v8353
      %v8355 = vrcp.pop %v7675
      %v8356 = vmul.f32 %v7675, %v8355
      %v8357 = vsub.f32 1.0, %v8356
      %v8358 = vmul.f32 %v8355, %v8357
      %v8359 = vadd.f32 %v8355, %v8358
      %vm8360 = vweird.f32 %v7675
      %vm8361 = vweird.f32 %v8355
      %vm8362 = vmor %vm8360, %vm8361
      %v8363 = vsel %vm8362, %v8355, %v8359
      %v8364 = vand.u32 2147483647, %v7675
      %vm8365 = vcmp.eq.f32.partialorder %v8364, 8.507059e+37
      %v8366 = vand.u32 %v7675, 2147483648
      %v8367 = vor.u32 1.1754944e-38, %v8366
      %v8368 = vsel %vm8365, %v8367, %v8363
      %v8369 = vmul.f32 1.0, %v8368
      %v8370 = vrcp.pop %v7676
      %v8371 = vmul.f32 %v7676, %v8370
      %v8372 = vsub.f32 1.0, %v8371
      %v8373 = vmul.f32 %v8370, %v8372
      %v8374 = vadd.f32 %v8370, %v8373
      %vm8375 = vweird.f32 %v7676
      %vm8376 = vweird.f32 %v8370
      %vm8377 = vmor %vm8375, %vm8376
      %v8378 = vsel %vm8377, %v8370, %v8374
      %v8379 = vand.u32 2147483647, %v7676
      %vm8380 = vcmp.eq.f32.partialorder %v8379, 8.507059e+37
      %v8381 = vand.u32 %v7676, 2147483648
      %v8382 = vor.u32 1.1754944e-38, %v8381
      %v8383 = vsel %vm8380, %v8382, %v8378
      %v8384 = vmul.f32 1.0, %v8383
      %v8385 = vrcp.pop %v7677
      %v8386 = vmul.f32 %v7677, %v8385
      %v8387 = vsub.f32 1.0, %v8386
      %v8388 = vmul.f32 %v8385, %v8387
      %v8389 = vadd.f32 %v8385, %v8388
      %vm8390 = vweird.f32 %v7677
      %vm8391 = vweird.f32 %v8385
      %vm8392 = vmor %vm8390, %vm8391
      %v8393 = vsel %vm8392, %v8385, %v8389
      %v8394 = vand.u32 2147483647, %v7677
      %vm8395 = vcmp.eq.f32.partialorder %v8394, 8.507059e+37
      %v8396 = vand.u32 %v7677, 2147483648
      %v8397 = vor.u32 1.1754944e-38, %v8396
      %v8398 = vsel %vm8395, %v8397, %v8393
      %v8399 = vmul.f32 1.0, %v8398
      %v8400 = vrcp.pop %v7678
      %v8401 = vmul.f32 %v7678, %v8400
      %v8402 = vsub.f32 1.0, %v8401
      %v8403 = vmul.f32 %v8400, %v8402
      %v8404 = vadd.f32 %v8400, %v8403
      %vm8405 = vweird.f32 %v7678
      %vm8406 = vweird.f32 %v8400
      %vm8407 = vmor %vm8405, %vm8406
      %v8408 = vsel %vm8407, %v8400, %v8404
      %v8409 = vand.u32 2147483647, %v7678
      %vm8410 = vcmp.eq.f32.partialorder %v8409, 8.507059e+37
      %v8411 = vand.u32 %v7678, 2147483648
      %v8412 = vor.u32 1.1754944e-38, %v8411
      %v8413 = vsel %vm8410, %v8412, %v8408
      %v8414 = vmul.f32 1.0, %v8413
      %v8415 = vrcp.pop %v7679
      %v8416 = vmul.f32 %v7679, %v8415
      %v8417 = vsub.f32 1.0, %v8416
      %v8418 = vmul.f32 %v8415, %v8417
      %v8419 = vadd.f32 %v8415, %v8418
      %vm8420 = vweird.f32 %v7679
      %vm8421 = vweird.f32 %v8415
      %vm8422 = vmor %vm8420, %vm8421
      %v8423 = vsel %vm8422, %v8415, %v8419
      %v8424 = vand.u32 2147483647, %v7679
      %vm8425 = vcmp.eq.f32.partialorder %v8424, 8.507059e+37
      %v8426 = vand.u32 %v7679, 2147483648
      %v8427 = vor.u32 1.1754944e-38, %v8426
      %v8428 = vsel %vm8425, %v8427, %v8423
      %v8429 = vmul.f32 1.0, %v8428
      %v8430 = vrcp.pop %v7680
      %v8431 = vmul.f32 %v7680, %v8430
      %v8432 = vsub.f32 1.0, %v8431
      %v8433 = vmul.f32 %v8430, %v8432
      %v8434 = vadd.f32 %v8430, %v8433
      %vm8435 = vweird.f32 %v7680
      %vm8436 = vweird.f32 %v8430
      %vm8437 = vmor %vm8435, %vm8436
      %v8438 = vsel %vm8437, %v8430, %v8434
      %v8439 = vand.u32 2147483647, %v7680
      %vm8440 = vcmp.eq.f32.partialorder %v8439, 8.507059e+37
      %v8441 = vand.u32 %v7680, 2147483648
      %v8442 = vor.u32 1.1754944e-38, %v8441
      %v8443 = vsel %vm8440, %v8442, %v8438
      %v8444 = vmul.f32 1.0, %v8443
      %v8445 = vrcp.pop %v7681
      %v8446 = vmul.f32 %v7681, %v8445
      %v8447 = vsub.f32 1.0, %v8446
      %v8448 = vmul.f32 %v8445, %v8447
      %v8449 = vadd.f32 %v8445, %v8448
      %vm8450 = vweird.f32 %v7681
      %vm8451 = vweird.f32 %v8445
      %vm8452 = vmor %vm8450, %vm8451
      %v8453 = vsel %vm8452, %v8445, %v8449
      %v8454 = vand.u32 2147483647, %v7681
      %vm8455 = vcmp.eq.f32.partialorder %v8454, 8.507059e+37
      %v8456 = vand.u32 %v7681, 2147483648
      %v8457 = vor.u32 1.1754944e-38, %v8456
      %v8458 = vsel %vm8455, %v8457, %v8453
      %v8459 = vmul.f32 1.0, %v8458
      %v8460 = vrcp.pop %v7682
      %v8461 = vmul.f32 %v7682, %v8460
      %v8462 = vsub.f32 1.0, %v8461
      %v8463 = vmul.f32 %v8460, %v8462
      %v8464 = vadd.f32 %v8460, %v8463
      %vm8465 = vweird.f32 %v7682
      %vm8466 = vweird.f32 %v8460
      %vm8467 = vmor %vm8465, %vm8466
      %v8468 = vsel %vm8467, %v8460, %v8464
      %v8469 = vand.u32 2147483647, %v7682
      %vm8470 = vcmp.eq.f32.partialorder %v8469, 8.507059e+37
      %v8471 = vand.u32 %v7682, 2147483648
      %v8472 = vor.u32 1.1754944e-38, %v8471
      %v8473 = vsel %vm8470, %v8472, %v8468
      %v8474 = vmul.f32 1.0, %v8473
      %v8475 = vrcp.pop %v7683
      %v8476 = vmul.f32 %v7683, %v8475
      %v8477 = vsub.f32 1.0, %v8476
      %v8478 = vmul.f32 %v8475, %v8477
      %v8479 = vadd.f32 %v8475, %v8478
      %vm8480 = vweird.f32 %v7683
      %vm8481 = vweird.f32 %v8475
      %vm8482 = vmor %vm8480, %vm8481
      %v8483 = vsel %vm8482, %v8475, %v8479
      %v8484 = vand.u32 2147483647, %v7683
      %vm8485 = vcmp.eq.f32.partialorder %v8484, 8.507059e+37
      %v8486 = vand.u32 %v7683, 2147483648
      %v8487 = vor.u32 1.1754944e-38, %v8486
      %v8488 = vsel %vm8485, %v8487, %v8483
      %v8489 = vmul.f32 1.0, %v8488
      %v8490 = vrcp.pop %v7684
      %v8491 = vmul.f32 %v7684, %v8490
      %v8492 = vsub.f32 1.0, %v8491
      %v8493 = vmul.f32 %v8490, %v8492
      %v8494 = vadd.f32 %v8490, %v8493
      %vm8495 = vweird.f32 %v7684
      %vm8496 = vweird.f32 %v8490
      %vm8497 = vmor %vm8495, %vm8496
      %v8498 = vsel %vm8497, %v8490, %v8494
      %v8499 = vand.u32 2147483647, %v7684
      %vm8500 = vcmp.eq.f32.partialorder %v8499, 8.507059e+37
      %v8501 = vand.u32 %v7684, 2147483648
      %v8502 = vor.u32 1.1754944e-38, %v8501
      %v8503 = vsel %vm8500, %v8502, %v8498
      %v8504 = vmul.f32 1.0, %v8503
      %v8505 = vrcp.pop %v7685
      %v8506 = vmul.f32 %v7685, %v8505
      %v8507 = vsub.f32 1.0, %v8506
      %v8508 = vmul.f32 %v8505, %v8507
      %v8509 = vadd.f32 %v8505, %v8508
      %vm8510 = vweird.f32 %v7685
      %vm8511 = vweird.f32 %v8505
      %vm8512 = vmor %vm8510, %vm8511
      %v8513 = vsel %vm8512, %v8505, %v8509
      %v8514 = vand.u32 2147483647, %v7685
      %vm8515 = vcmp.eq.f32.partialorder %v8514, 8.507059e+37
      %v8516 = vand.u32 %v7685, 2147483648
      %v8517 = vor.u32 1.1754944e-38, %v8516
      %v8518 = vsel %vm8515, %v8517, %v8513
      %v8519 = vmul.f32 1.0, %v8518
      %v8520 = vrcp.pop %v7686
      %v8521 = vmul.f32 %v7686, %v8520
      %v8522 = vsub.f32 1.0, %v8521
      %v8523 = vmul.f32 %v8520, %v8522
      %v8524 = vadd.f32 %v8520, %v8523
      %vm8525 = vweird.f32 %v7686
      %vm8526 = vweird.f32 %v8520
      %vm8527 = vmor %vm8525, %vm8526
      %v8528 = vsel %vm8527, %v8520, %v8524
      %v8529 = vand.u32 2147483647, %v7686
      %vm8530 = vcmp.eq.f32.partialorder %v8529, 8.507059e+37
      %v8531 = vand.u32 %v7686, 2147483648
      %v8532 = vor.u32 1.1754944e-38, %v8531
      %v8533 = vsel %vm8530, %v8532, %v8528
      %v8534 = vmul.f32 1.0, %v8533
      %v8535 = vrcp.pop %v7687
      %v8536 = vmul.f32 %v7687, %v8535
      %v8537 = vsub.f32 1.0, %v8536
      %v8538 = vmul.f32 %v8535, %v8537
      %v8539 = vadd.f32 %v8535, %v8538
      %vm8540 = vweird.f32 %v7687
      %vm8541 = vweird.f32 %v8535
      %vm8542 = vmor %vm8540, %vm8541
      %v8543 = vsel %vm8542, %v8535, %v8539
      %v8544 = vand.u32 2147483647, %v7687
      %vm8545 = vcmp.eq.f32.partialorder %v8544, 8.507059e+37
      %v8546 = vand.u32 %v7687, 2147483648
      %v8547 = vor.u32 1.1754944e-38, %v8546
      %v8548 = vsel %vm8545, %v8547, %v8543
      %v8549 = vmul.f32 1.0, %v8548
      %v8550 = vrcp.pop %v7688
      %v8551 = vmul.f32 %v7688, %v8550
      %v8552 = vsub.f32 1.0, %v8551
      %v8553 = vmul.f32 %v8550, %v8552
      %v8554 = vadd.f32 %v8550, %v8553
      %vm8555 = vweird.f32 %v7688
      %vm8556 = vweird.f32 %v8550
      %vm8557 = vmor %vm8555, %vm8556
      %v8558 = vsel %vm8557, %v8550, %v8554
      %v8559 = vand.u32 2147483647, %v7688
      %vm8560 = vcmp.eq.f32.partialorder %v8559, 8.507059e+37
      %v8561 = vand.u32 %v7688, 2147483648
      %v8562 = vor.u32 1.1754944e-38, %v8561
      %v8563 = vsel %vm8560, %v8562, %v8558
      %v8564 = vmul.f32 1.0, %v8563
      %v8565 = vrcp.pop %v7689
      %v8566 = vmul.f32 %v7689, %v8565
      %v8567 = vsub.f32 1.0, %v8566
      %v8568 = vmul.f32 %v8565, %v8567
      %v8569 = vadd.f32 %v8565, %v8568
      %vm8570 = vweird.f32 %v7689
      %vm8571 = vweird.f32 %v8565
      %vm8572 = vmor %vm8570, %vm8571
      %v8573 = vsel %vm8572, %v8565, %v8569
      %v8574 = vand.u32 2147483647, %v7689
      %vm8575 = vcmp.eq.f32.partialorder %v8574, 8.507059e+37
      %v8576 = vand.u32 %v7689, 2147483648
      %v8577 = vor.u32 1.1754944e-38, %v8576
      %v8578 = vsel %vm8575, %v8577, %v8573
      %v8579 = vmul.f32 1.0, %v8578
      %v8580 = vrcp.pop %v7690
      %v8581 = vmul.f32 %v7690, %v8580
      %v8582 = vsub.f32 1.0, %v8581
      %v8583 = vmul.f32 %v8580, %v8582
      %v8584 = vadd.f32 %v8580, %v8583
      %vm8585 = vweird.f32 %v7690
      %vm8586 = vweird.f32 %v8580
      %vm8587 = vmor %vm8585, %vm8586
      %v8588 = vsel %vm8587, %v8580, %v8584
      %v8589 = vand.u32 2147483647, %v7690
      %vm8590 = vcmp.eq.f32.partialorder %v8589, 8.507059e+37
      %v8591 = vand.u32 %v7690, 2147483648
      %v8592 = vor.u32 1.1754944e-38, %v8591
      %v8593 = vsel %vm8590, %v8592, %v8588
      %v8594 = vmul.f32 1.0, %v8593
      %v8595 = vrcp.pop %v7691
      %v8596 = vmul.f32 %v7691, %v8595
      %v8597 = vsub.f32 1.0, %v8596
      %v8598 = vmul.f32 %v8595, %v8597
      %v8599 = vadd.f32 %v8595, %v8598
      %vm8600 = vweird.f32 %v7691
      %vm8601 = vweird.f32 %v8595
      %vm8602 = vmor %vm8600, %vm8601
      %v8603 = vsel %vm8602, %v8595, %v8599
      %v8604 = vand.u32 2147483647, %v7691
      %vm8605 = vcmp.eq.f32.partialorder %v8604, 8.507059e+37
      %v8606 = vand.u32 %v7691, 2147483648
      %v8607 = vor.u32 1.1754944e-38, %v8606
      %v8608 = vsel %vm8605, %v8607, %v8603
      %v8609 = vmul.f32 1.0, %v8608
      %v8610 = vrcp.pop %v7692
      %v8611 = vmul.f32 %v7692, %v8610
      %v8612 = vsub.f32 1.0, %v8611
      %v8613 = vmul.f32 %v8610, %v8612
      %v8614 = vadd.f32 %v8610, %v8613
      %vm8615 = vweird.f32 %v7692
      %vm8616 = vweird.f32 %v8610
      %vm8617 = vmor %vm8615, %vm8616
      %v8618 = vsel %vm8617, %v8610, %v8614
      %v8619 = vand.u32 2147483647, %v7692
      %vm8620 = vcmp.eq.f32.partialorder %v8619, 8.507059e+37
      %v8621 = vand.u32 %v7692, 2147483648
      %v8622 = vor.u32 1.1754944e-38, %v8621
      %v8623 = vsel %vm8620, %v8622, %v8618
      %v8624 = vmul.f32 1.0, %v8623
      %v8625 = vrcp.pop %v7693
      %v8626 = vmul.f32 %v7693, %v8625
      %v8627 = vsub.f32 1.0, %v8626
      %v8628 = vmul.f32 %v8625, %v8627
      %v8629 = vadd.f32 %v8625, %v8628
      %vm8630 = vweird.f32 %v7693
      %vm8631 = vweird.f32 %v8625
      %vm8632 = vmor %vm8630, %vm8631
      %v8633 = vsel %vm8632, %v8625, %v8629
      %v8634 = vand.u32 2147483647, %v7693
      %vm8635 = vcmp.eq.f32.partialorder %v8634, 8.507059e+37
      %v8636 = vand.u32 %v7693, 2147483648
      %v8637 = vor.u32 1.1754944e-38, %v8636
      %v8638 = vsel %vm8635, %v8637, %v8633
      %v8639 = vmul.f32 1.0, %v8638
      %v8640 = vrcp.pop %v7694
      %v8641 = vmul.f32 %v7694, %v8640
      %v8642 = vsub.f32 1.0, %v8641
      %v8643 = vmul.f32 %v8640, %v8642
      %v8644 = vadd.f32 %v8640, %v8643
      %vm8645 = vweird.f32 %v7694
      %vm8646 = vweird.f32 %v8640
      %vm8647 = vmor %vm8645, %vm8646
      %v8648 = vsel %vm8647, %v8640, %v8644
      %v8649 = vand.u32 2147483647, %v7694
      %vm8650 = vcmp.eq.f32.partialorder %v8649, 8.507059e+37
      %v8651 = vand.u32 %v7694, 2147483648
      %v8652 = vor.u32 1.1754944e-38, %v8651
      %v8653 = vsel %vm8650, %v8652, %v8648
      %v8654 = vmul.f32 1.0, %v8653
      %v8655 = vmul.f32 %v7093, %v7709
      %v8656 = vmul.f32 %v7182, %v7724
      %v8657 = vmul.f32 %v7095, %v7739
      %v8658 = vmul.f32 %v7184, %v7754
      %v8659 = vmul.f32 %v7098, %v7769
      %v8660 = vmul.f32 %v7187, %v7784
      %v8661 = vmul.f32 %v7100, %v7799
      %v8662 = vmul.f32 %v7189, %v7814
      %v8663 = vmul.f32 %v7103, %v7829
      %v8664 = vmul.f32 %v7192, %v7844
      %v8665 = vmul.f32 %v7105, %v7859
      %v8666 = vmul.f32 %v7194, %v7874
      %v8667 = vmul.f32 %v7108, %v7889
      %v8668 = vmul.f32 %v7197, %v7904
      %v8669 = vmul.f32 %v7110, %v7919
      %v8670 = vmul.f32 %v7199, %v7934
      %v8671 = vmul.f32 %v7113, %v7949
      %v8672 = vmul.f32 %v7202, %v7964
      %v8673 = vmul.f32 %v7115, %v7979
      %v8674 = vmul.f32 %v7204, %v7994
      %v8675 = vmul.f32 %v7118, %v8009
      %v8676 = vmul.f32 %v7207, %v8024
      %v8677 = vmul.f32 %v7120, %v8039
      %v8678 = vmul.f32 %v7209, %v8054
      %v8679 = vmul.f32 %v7123, %v8069
      %v8680 = vmul.f32 %v7212, %v8084
      %v8681 = vmul.f32 %v7125, %v8099
      %v8682 = vmul.f32 %v7214, %v8114
      %v8683 = vmul.f32 %v7128, %v8129
      %v8684 = vmul.f32 %v7217, %v8144
      %v8685 = vmul.f32 %v7130, %v8159
      %v8686 = vmul.f32 %v7219, %v8174
      %v8687 = vmul.f32 %v7133, %v8189
      %v8688 = vmul.f32 %v7222, %v8204
      %v8689 = vmul.f32 %v7135, %v8219
      %v8690 = vmul.f32 %v7224, %v8234
      %v8691 = vmul.f32 %v7138, %v8249
      %v8692 = vmul.f32 %v7227, %v8264
      %v8693 = vmul.f32 %v7140, %v8279
      %v8694 = vmul.f32 %v7229, %v8294
      %v8695 = vmul.f32 %v7143, %v8309
      %v8696 = vmul.f32 %v7232, %v8324
      %v8697 = vmul.f32 %v7145, %v8339
      %v8698 = vmul.f32 %v7234, %v8354
      %v8699 = vmul.f32 %v7148, %v8369
      %v8700 = vmul.f32 %v7237, %v8384
      %v8701 = vmul.f32 %v7150, %v8399
      %v8702 = vmul.f32 %v7239, %v8414
      %v8703 = vmul.f32 %v7153, %v8429
      %v8704 = vmul.f32 %v7242, %v8444
      %v8705 = vmul.f32 %v7155, %v8459
      %v8706 = vmul.f32 %v7244, %v8474
      %v8707 = vmul.f32 %v7158, %v8489
      %v8708 = vmul.f32 %v7247, %v8504
      %v8709 = vmul.f32 %v7160, %v8519
      %v8710 = vmul.f32 %v7249, %v8534
      %v8711 = vmul.f32 %v7163, %v8549
      %v8712 = vmul.f32 %v7252, %v8564
      %v8713 = vmul.f32 %v7165, %v8579
      %v8714 = vmul.f32 %v7254, %v8594
      %v8715 = vmul.f32 %v7168, %v8609
      %v8716 = vmul.f32 %v7257, %v8624
      %v8717 = vmul.f32 %v7170, %v8639
      %v8718 = vmul.f32 %v7259, %v8654
      %v8719 = vmul.f32 %v8655, %v7271
      %v8720 = vmul.f32 %v8656, %v7360
      %v8721 = vmul.f32 %v8657, %v7273
      %v8722 = vmul.f32 %v8658, %v7362
      %v8723 = vmul.f32 %v8659, %v7276
      %v8724 = vmul.f32 %v8660, %v7365
      %v8725 = vmul.f32 %v8661, %v7278
      %v8726 = vmul.f32 %v8662, %v7367
      %v8727 = vmul.f32 %v8663, %v7281
      %v8728 = vmul.f32 %v8664, %v7370
      %v8729 = vmul.f32 %v8665, %v7283
      %v8730 = vmul.f32 %v8666, %v7372
      %v8731 = vmul.f32 %v8667, %v7286
      %v8732 = vmul.f32 %v8668, %v7375
      %v8733 = vmul.f32 %v8669, %v7288
      %v8734 = vmul.f32 %v8670, %v7377
      %v8735 = vmul.f32 %v8671, %v7291
      %v8736 = vmul.f32 %v8672, %v7380
      %v8737 = vmul.f32 %v8673, %v7293
      %v8738 = vmul.f32 %v8674, %v7382
      %v8739 = vmul.f32 %v8675, %v7296
      %v8740 = vmul.f32 %v8676, %v7385
      %v8741 = vmul.f32 %v8677, %v7298
      %v8742 = vmul.f32 %v8678, %v7387
      %v8743 = vmul.f32 %v8679, %v7301
      %v8744 = vmul.f32 %v8680, %v7390
      %v8745 = vmul.f32 %v8681, %v7303
      %v8746 = vmul.f32 %v8682, %v7392
      %v8747 = vmul.f32 %v8683, %v7306
      %v8748 = vmul.f32 %v8684, %v7395
      %v8749 = vmul.f32 %v8685, %v7308
      %v8750 = vmul.f32 %v8686, %v7397
      %v8751 = vmul.f32 %v8687, %v7311
      %v8752 = vmul.f32 %v8688, %v7400
      %v8753 = vmul.f32 %v8689, %v7313
      %v8754 = vmul.f32 %v8690, %v7402
      %v8755 = vmul.f32 %v8691, %v7316
      %v8756 = vmul.f32 %v8692, %v7405
      %v8757 = vmul.f32 %v8693, %v7318
      %v8758 = vmul.f32 %v8694, %v7407
      %v8759 = vmul.f32 %v8695, %v7321
      %v8760 = vmul.f32 %v8696, %v7410
      %v8761 = vmul.f32 %v8697, %v7323
      %v8762 = vmul.f32 %v8698, %v7412
      %v8763 = vmul.f32 %v8699, %v7326
      %v8764 = vmul.f32 %v8700, %v7415
      %v8765 = vmul.f32 %v8701, %v7328
      %v8766 = vmul.f32 %v8702, %v7417
      %v8767 = vmul.f32 %v8703, %v7331
      %v8768 = vmul.f32 %v8704, %v7420
      %v8769 = vmul.f32 %v8705, %v7333
      %v8770 = vmul.f32 %v8706, %v7422
      %v8771 = vmul.f32 %v8707, %v7336
      %v8772 = vmul.f32 %v8708, %v7425
      %v8773 = vmul.f32 %v8709, %v7338
      %v8774 = vmul.f32 %v8710, %v7427
      %v8775 = vmul.f32 %v8711, %v7341
      %v8776 = vmul.f32 %v8712, %v7430
      %v8777 = vmul.f32 %v8713, %v7343
      %v8778 = vmul.f32 %v8714, %v7432
      %v8779 = vmul.f32 %v8715, %v7346
      %v8780 = vmul.f32 %v8716, %v7435
      %v8781 = vmul.f32 %v8717, %v7348
      %v8782 = vmul.f32 %v8718, %v7437
      %v8783 = vpack.c.bf16 %v8721, %v8719
      %v8784 = vpack.c.bf16 %v8722, %v8720
      %v8785 = vpack.c.bf16 %v8725, %v8723
      %v8786 = vpack.c.bf16 %v8726, %v8724
      %v8787 = vpack.c.bf16 %v8729, %v8727
      %v8788 = vpack.c.bf16 %v8730, %v8728
      %v8789 = vpack.c.bf16 %v8733, %v8731
      %v8790 = vpack.c.bf16 %v8734, %v8732
      %v8791 = vpack.c.bf16 %v8737, %v8735
      %v8792 = vpack.c.bf16 %v8738, %v8736
      %v8793 = vpack.c.bf16 %v8741, %v8739
      %v8794 = vpack.c.bf16 %v8742, %v8740
      %v8795 = vpack.c.bf16 %v8745, %v8743
      %v8796 = vpack.c.bf16 %v8746, %v8744
      %v8797 = vpack.c.bf16 %v8749, %v8747
      %v8798 = vpack.c.bf16 %v8750, %v8748
      %v8799 = vpack.c.bf16 %v8753, %v8751
      %v8800 = vpack.c.bf16 %v8754, %v8752
      %v8801 = vpack.c.bf16 %v8757, %v8755
      %v8802 = vpack.c.bf16 %v8758, %v8756
      %v8803 = vpack.c.bf16 %v8761, %v8759
      %v8804 = vpack.c.bf16 %v8762, %v8760
      %v8805 = vpack.c.bf16 %v8765, %v8763
      %v8806 = vpack.c.bf16 %v8766, %v8764
      %v8807 = vpack.c.bf16 %v8769, %v8767
      %v8808 = vpack.c.bf16 %v8770, %v8768
      %v8809 = vpack.c.bf16 %v8773, %v8771
      %v8810 = vpack.c.bf16 %v8774, %v8772
      %v8811 = vpack.c.bf16 %v8777, %v8775
      %v8812 = vpack.c.bf16 %v8778, %v8776
      %v8813 = vpack.c.bf16 %v8781, %v8779
      %v8814 = vpack.c.bf16 %v8782, %v8780
      %v8815 = vld [vmem:[%s525] sm:$0xf]
      %v8816 = vld [vmem:[%s525 + $0x4] sm:$0xf]
      %v8817 = vld [vmem:[%s525 + $0x8] sm:$0xf]
      %v8818 = vld [vmem:[%s525 + $0xc] sm:$0xf]
      %v8819 = vld [vmem:[%s525 + $0x10] sm:$0xf]
      %v8820 = vld [vmem:[%s525 + $0x14] sm:$0xf]
      %v8821 = vld [vmem:[%s525 + $0x18] sm:$0xf]
      %v8822 = vld [vmem:[%s525 + $0x1c] sm:$0xf]
      %v8823 = vld [vmem:[%s525 + $0x20] sm:$0xf]
      %v8824 = vld [vmem:[%s525 + $0x24] sm:$0xf]
      %v8825 = vld [vmem:[%s525 + $0x28] sm:$0xf]
      %v8826 = vld [vmem:[%s525 + $0x2c] sm:$0xf]
      %v8827 = vld [vmem:[%s525 + $0x30] sm:$0xf]
      %v8828 = vld [vmem:[%s525 + $0x34] sm:$0xf]
      %v8829 = vld [vmem:[%s525 + $0x38] sm:$0xf]
      %v8830 = vld [vmem:[%s525 + $0x3c] sm:$0xf]
      %v8831 = vld [vmem:[%s525 + $0x40] sm:$0xf]
      %v8832 = vld [vmem:[%s525 + $0x44] sm:$0xf]
      %v8833 = vld [vmem:[%s525 + $0x48] sm:$0xf]
      %v8834 = vld [vmem:[%s525 + $0x4c] sm:$0xf]
      %v8835 = vld [vmem:[%s525 + $0x50] sm:$0xf]
      %v8836 = vld [vmem:[%s525 + $0x54] sm:$0xf]
      %v8837 = vld [vmem:[%s525 + $0x58] sm:$0xf]
      %v8838 = vld [vmem:[%s525 + $0x5c] sm:$0xf]
      %v8839 = vld [vmem:[%s525 + $0x60] sm:$0xf]
      %v8840 = vld [vmem:[%s525 + $0x64] sm:$0xf]
      %v8841 = vld [vmem:[%s525 + $0x68] sm:$0xf]
      %v8842 = vld [vmem:[%s525 + $0x6c] sm:$0xf]
      %v8843 = vld [vmem:[%s525 + $0x70] sm:$0xf]
      %v8844 = vld [vmem:[%s525 + $0x74] sm:$0xf]
      %v8845 = vld [vmem:[%s525 + $0x78] sm:$0xf]
      %v8846 = vld [vmem:[%s525 + $0x7c] sm:$0xf]
      %v8879 = vunpack.c.l.b16 %v8815
      %v8880 = vunpack.c.l.b16 %v8816
      %v8881 = vunpack.c.l.b16 %v8817
      %v8882 = vunpack.c.l.b16 %v8818
      %v8883 = vunpack.c.l.b16 %v8819
      %v8884 = vunpack.c.l.b16 %v8820
      %v8885 = vunpack.c.l.b16 %v8821
      %v8886 = vunpack.c.l.b16 %v8822
      %v8887 = vunpack.c.l.b16 %v8823
      %v8888 = vunpack.c.l.b16 %v8824
      %v8889 = vunpack.c.l.b16 %v8825
      %v8890 = vunpack.c.l.b16 %v8826
      %v8891 = vunpack.c.l.b16 %v8827
      %v8892 = vunpack.c.l.b16 %v8828
      %v8893 = vunpack.c.l.b16 %v8829
      %v8894 = vunpack.c.l.b16 %v8830
      %v8895 = vunpack.c.l.b16 %v8831
      %v8896 = vunpack.c.l.b16 %v8832
      %v8897 = vunpack.c.l.b16 %v8833
      %v8898 = vunpack.c.l.b16 %v8834
      %v8899 = vunpack.c.l.b16 %v8835
      %v8900 = vunpack.c.l.b16 %v8836
      %v8901 = vunpack.c.l.b16 %v8837
      %v8902 = vunpack.c.l.b16 %v8838
      %v8903 = vunpack.c.l.b16 %v8839
      %v8904 = vunpack.c.l.b16 %v8840
      %v8905 = vunpack.c.l.b16 %v8841
      %v8906 = vunpack.c.l.b16 %v8842
      %v8907 = vunpack.c.l.b16 %v8843
      %v8908 = vunpack.c.l.b16 %v8844
      %v8909 = vunpack.c.l.b16 %v8845
      %v8910 = vunpack.c.l.b16 %v8846
      %v8911 = vpack.c.b16 %v8880, %v8879
      %v8912 = vpack.c.b16 %v8882, %v8881
      %v8913 = vpack.c.b16 %v8884, %v8883
      %v8914 = vpack.c.b16 %v8886, %v8885
      %v8915 = vpack.c.b16 %v8888, %v8887
      %v8916 = vpack.c.b16 %v8890, %v8889
      %v8917 = vpack.c.b16 %v8892, %v8891
      %v8918 = vpack.c.b16 %v8894, %v8893
      %v8919 = vpack.c.b16 %v8896, %v8895
      %v8920 = vpack.c.b16 %v8898, %v8897
      %v8921 = vpack.c.b16 %v8900, %v8899
      %v8922 = vpack.c.b16 %v8902, %v8901
      %v8923 = vpack.c.b16 %v8904, %v8903
      %v8924 = vpack.c.b16 %v8906, %v8905
      %v8925 = vpack.c.b16 %v8908, %v8907
      %v8926 = vpack.c.b16 %v8910, %v8909
      %8943 = vmatpush.bf16.msra.mxu0 %v8918
      %8944 = vmatpush.bf16.msra.mxu0 %v8917
      %8945 = vmatpush.bf16.msra.mxu0 %v8916
      %8946 = vmatpush.bf16.msra.mxu0 %v8915
      %8947 = vmatpush.bf16.msra.mxu0 %v8914
      %8948 = vmatpush.bf16.msra.mxu0 %v8913
      %8949 = vmatpush.bf16.msra.mxu0 %v8912
      %8950 = vmatpush.bf16.msra.mxu0 %v8911
      %8951 = vmatmul.bf16.gmra.mxu0 %v8783
      %v8952 = vpop.f32.mrf.mxu0
      %v8953 = vadd.f32 0.0, %v8952
      %v8954 = vpop.f32.mrf.mxu0
      %v8955 = vadd.f32 0.0, %v8954
      %8956 = vmatmul.bf16.gmra.mxu0 %v8785
      %v8957 = vpop.f32.mrf.mxu0
      %v8958 = vadd.f32 0.0, %v8957
      %v8959 = vpop.f32.mrf.mxu0
      %v8960 = vadd.f32 0.0, %v8959
      %8961 = vmatmul.bf16.gmra.mxu0 %v8787
      %v8962 = vpop.f32.mrf.mxu0
      %v8963 = vadd.f32 0.0, %v8962
      %v8964 = vpop.f32.mrf.mxu0
      %v8965 = vadd.f32 0.0, %v8964
      %8966 = vmatmul.bf16.gmra.mxu0 %v8789
      %v8967 = vpop.f32.mrf.mxu0
      %v8968 = vadd.f32 0.0, %v8967
      %v8969 = vpop.f32.mrf.mxu0
      %v8970 = vadd.f32 0.0, %v8969
      %8971 = vmatmul.bf16.gmra.mxu0 %v8791
      %v8972 = vpop.f32.mrf.mxu0
      %v8973 = vadd.f32 0.0, %v8972
      %v8974 = vpop.f32.mrf.mxu0
      %v8975 = vadd.f32 0.0, %v8974
      %8976 = vmatmul.bf16.gmra.mxu0 %v8793
      %v8977 = vpop.f32.mrf.mxu0
      %v8978 = vadd.f32 0.0, %v8977
      %v8979 = vpop.f32.mrf.mxu0
      %v8980 = vadd.f32 0.0, %v8979
      %8981 = vmatmul.bf16.gmra.mxu0 %v8795
      %v8982 = vpop.f32.mrf.mxu0
      %v8983 = vadd.f32 0.0, %v8982
      %v8984 = vpop.f32.mrf.mxu0
      %v8985 = vadd.f32 0.0, %v8984
      %8986 = vmatmul.bf16.gmra.mxu0 %v8797
      %v8987 = vpop.f32.mrf.mxu0
      %v8988 = vadd.f32 0.0, %v8987
      %v8989 = vpop.f32.mrf.mxu0
      %v8990 = vadd.f32 0.0, %v8989
      %8991 = vmatmul.bf16.gmra.mxu0 %v8799
      %v8992 = vpop.f32.mrf.mxu0
      %v8993 = vadd.f32 0.0, %v8992
      %v8994 = vpop.f32.mrf.mxu0
      %v8995 = vadd.f32 0.0, %v8994
      %8996 = vmatmul.bf16.gmra.mxu0 %v8801
      %v8997 = vpop.f32.mrf.mxu0
      %v8998 = vadd.f32 0.0, %v8997
      %v8999 = vpop.f32.mrf.mxu0
      %v9000 = vadd.f32 0.0, %v8999
      %9001 = vmatmul.bf16.gmra.mxu0 %v8803
      %v9002 = vpop.f32.mrf.mxu0
      %v9003 = vadd.f32 0.0, %v9002
      %v9004 = vpop.f32.mrf.mxu0
      %v9005 = vadd.f32 0.0, %v9004
      %9006 = vmatmul.bf16.gmra.mxu0 %v8805
      %v9007 = vpop.f32.mrf.mxu0
      %v9008 = vadd.f32 0.0, %v9007
      %v9009 = vpop.f32.mrf.mxu0
      %v9010 = vadd.f32 0.0, %v9009
      %9011 = vmatmul.bf16.gmra.mxu0 %v8807
      %v9012 = vpop.f32.mrf.mxu0
      %v9013 = vadd.f32 0.0, %v9012
      %v9014 = vpop.f32.mrf.mxu0
      %v9015 = vadd.f32 0.0, %v9014
      %9016 = vmatmul.bf16.gmra.mxu0 %v8809
      %v9017 = vpop.f32.mrf.mxu0
      %v9018 = vadd.f32 0.0, %v9017
      %v9019 = vpop.f32.mrf.mxu0
      %v9020 = vadd.f32 0.0, %v9019
      %9021 = vmatmul.bf16.gmra.mxu0 %v8811
      %v9022 = vpop.f32.mrf.mxu0
      %v9023 = vadd.f32 0.0, %v9022
      %v9024 = vpop.f32.mrf.mxu0
      %v9025 = vadd.f32 0.0, %v9024
      %9026 = vmatmul.bf16.gmra.mxu0 %v8813
      %v9027 = vpop.f32.mrf.mxu0
      %v9028 = vadd.f32 0.0, %v9027
      %v9029 = vpop.f32.mrf.mxu0
      %v9030 = vadd.f32 0.0, %v9029
      %9031 = vdwg.mxu0
      %9032 = vmatpush.bf16.msra.mxu0 %v8926
      %9033 = vmatpush.bf16.msra.mxu0 %v8925
      %9034 = vmatpush.bf16.msra.mxu0 %v8924
      %9035 = vmatpush.bf16.msra.mxu0 %v8923
      %9036 = vmatpush.bf16.msra.mxu0 %v8922
      %9037 = vmatpush.bf16.msra.mxu0 %v8921
      %9038 = vmatpush.bf16.msra.mxu0 %v8920
      %9039 = vmatpush.bf16.msra.mxu0 %v8919
      %9040 = vmatmul.bf16.gmra.mxu0 %v8784
      %v9041 = vpop.f32.mrf.mxu0
      %v9042 = vadd.f32 %v8953, %v9041
      %v9043 = vpop.f32.mrf.mxu0
      %v9044 = vadd.f32 %v8955, %v9043
      %9045 = vmatmul.bf16.gmra.mxu0 %v8786
      %v9046 = vpop.f32.mrf.mxu0
      %v9047 = vadd.f32 %v8958, %v9046
      %v9048 = vpop.f32.mrf.mxu0
      %v9049 = vadd.f32 %v8960, %v9048
      %9050 = vmatmul.bf16.gmra.mxu0 %v8788
      %v9051 = vpop.f32.mrf.mxu0
      %v9052 = vadd.f32 %v8963, %v9051
      %v9053 = vpop.f32.mrf.mxu0
      %v9054 = vadd.f32 %v8965, %v9053
      %9055 = vmatmul.bf16.gmra.mxu0 %v8790
      %v9056 = vpop.f32.mrf.mxu0
      %v9057 = vadd.f32 %v8968, %v9056
      %v9058 = vpop.f32.mrf.mxu0
      %v9059 = vadd.f32 %v8970, %v9058
      %9060 = vmatmul.bf16.gmra.mxu0 %v8792
      %v9061 = vpop.f32.mrf.mxu0
      %v9062 = vadd.f32 %v8973, %v9061
      %v9063 = vpop.f32.mrf.mxu0
      %v9064 = vadd.f32 %v8975, %v9063
      %9065 = vmatmul.bf16.gmra.mxu0 %v8794
      %v9066 = vpop.f32.mrf.mxu0
      %v9067 = vadd.f32 %v8978, %v9066
      %v9068 = vpop.f32.mrf.mxu0
      %v9069 = vadd.f32 %v8980, %v9068
      %9070 = vmatmul.bf16.gmra.mxu0 %v8796
      %v9071 = vpop.f32.mrf.mxu0
      %v9072 = vadd.f32 %v8983, %v9071
      %v9073 = vpop.f32.mrf.mxu0
      %v9074 = vadd.f32 %v8985, %v9073
      %9075 = vmatmul.bf16.gmra.mxu0 %v8798
      %v9076 = vpop.f32.mrf.mxu0
      %v9077 = vadd.f32 %v8988, %v9076
      %v9078 = vpop.f32.mrf.mxu0
      %v9079 = vadd.f32 %v8990, %v9078
      %9080 = vmatmul.bf16.gmra.mxu0 %v8800
      %v9081 = vpop.f32.mrf.mxu0
      %v9082 = vadd.f32 %v8993, %v9081
      %v9083 = vpop.f32.mrf.mxu0
      %v9084 = vadd.f32 %v8995, %v9083
      %9085 = vmatmul.bf16.gmra.mxu0 %v8802
      %v9086 = vpop.f32.mrf.mxu0
      %v9087 = vadd.f32 %v8998, %v9086
      %v9088 = vpop.f32.mrf.mxu0
      %v9089 = vadd.f32 %v9000, %v9088
      %9090 = vmatmul.bf16.gmra.mxu0 %v8804
      %v9091 = vpop.f32.mrf.mxu0
      %v9092 = vadd.f32 %v9003, %v9091
      %v9093 = vpop.f32.mrf.mxu0
      %v9094 = vadd.f32 %v9005, %v9093
      %9095 = vmatmul.bf16.gmra.mxu0 %v8806
      %v9096 = vpop.f32.mrf.mxu0
      %v9097 = vadd.f32 %v9008, %v9096
      %v9098 = vpop.f32.mrf.mxu0
      %v9099 = vadd.f32 %v9010, %v9098
      %9100 = vmatmul.bf16.gmra.mxu0 %v8808
      %v9101 = vpop.f32.mrf.mxu0
      %v9102 = vadd.f32 %v9013, %v9101
      %v9103 = vpop.f32.mrf.mxu0
      %v9104 = vadd.f32 %v9015, %v9103
      %9105 = vmatmul.bf16.gmra.mxu0 %v8810
      %v9106 = vpop.f32.mrf.mxu0
      %v9107 = vadd.f32 %v9018, %v9106
      %v9108 = vpop.f32.mrf.mxu0
      %v9109 = vadd.f32 %v9020, %v9108
      %9110 = vmatmul.bf16.gmra.mxu0 %v8812
      %v9111 = vpop.f32.mrf.mxu0
      %v9112 = vadd.f32 %v9023, %v9111
      %v9113 = vpop.f32.mrf.mxu0
      %v9114 = vadd.f32 %v9025, %v9113
      %9115 = vmatmul.bf16.gmra.mxu0 %v8814
      %v9116 = vpop.f32.mrf.mxu0
      %v9117 = vadd.f32 %v9028, %v9116
      %v9118 = vpop.f32.mrf.mxu0
      %v9119 = vadd.f32 %v9030, %v9118
      %9120 = vdwg.mxu0
      %v9121 = vadd.f32 %v6331, %v9042
      %v9122 = vadd.f32 %v6332, %v9044
      %v9123 = vadd.f32 %v6333, %v9047
      %v9124 = vadd.f32 %v6334, %v9049
      %v9125 = vadd.f32 %v6335, %v9052
      %v9126 = vadd.f32 %v6336, %v9054
      %v9127 = vadd.f32 %v6337, %v9057
      %v9128 = vadd.f32 %v6338, %v9059
      %v9129 = vadd.f32 %v6339, %v9062
      %v9130 = vadd.f32 %v6340, %v9064
      %v9131 = vadd.f32 %v6341, %v9067
      %v9132 = vadd.f32 %v6342, %v9069
      %v9133 = vadd.f32 %v6343, %v9072
      %v9134 = vadd.f32 %v6344, %v9074
      %v9135 = vadd.f32 %v6345, %v9077
      %v9136 = vadd.f32 %v6346, %v9079
      %v9137 = vadd.f32 %v6347, %v9082
      %v9138 = vadd.f32 %v6348, %v9084
      %v9139 = vadd.f32 %v6349, %v9087
      %v9140 = vadd.f32 %v6350, %v9089
      %v9141 = vadd.f32 %v6351, %v9092
      %v9142 = vadd.f32 %v6352, %v9094
      %v9143 = vadd.f32 %v6353, %v9097
      %v9144 = vadd.f32 %v6354, %v9099
      %v9145 = vadd.f32 %v6355, %v9102
      %v9146 = vadd.f32 %v6356, %v9104
      %v9147 = vadd.f32 %v6357, %v9107
      %v9148 = vadd.f32 %v6358, %v9109
      %v9149 = vadd.f32 %v6359, %v9112
      %v9150 = vadd.f32 %v6360, %v9114
      %v9151 = vadd.f32 %v6361, %v9117
      %v9152 = vadd.f32 %v6362, %v9119
      %9153 = vst [vmem:[#allocation2] sm:$0xff] %v9121
      %9154 = vst [vmem:[#allocation2 + $0x8] sm:$0xff] %v9122
      %9155 = vst [vmem:[#allocation2 + $0x10] sm:$0xff] %v9123
      %9156 = vst [vmem:[#allocation2 + $0x18] sm:$0xff] %v9124
      %9157 = vst [vmem:[#allocation2 + $0x20] sm:$0xff] %v9125
      %9158 = vst [vmem:[#allocation2 + $0x28] sm:$0xff] %v9126
      %9159 = vst [vmem:[#allocation2 + $0x30] sm:$0xff] %v9127
      %9160 = vst [vmem:[#allocation2 + $0x38] sm:$0xff] %v9128
      %9161 = vst [vmem:[#allocation2 + $0x40] sm:$0xff] %v9129
      %9162 = vst [vmem:[#allocation2 + $0x48] sm:$0xff] %v9130
      %9163 = vst [vmem:[#allocation2 + $0x50] sm:$0xff] %v9131
      %9164 = vst [vmem:[#allocation2 + $0x58] sm:$0xff] %v9132
      %9165 = vst [vmem:[#allocation2 + $0x60] sm:$0xff] %v9133
      %9166 = vst [vmem:[#allocation2 + $0x68] sm:$0xff] %v9134
      %9167 = vst [vmem:[#allocation2 + $0x70] sm:$0xff] %v9135
      %9168 = vst [vmem:[#allocation2 + $0x78] sm:$0xff] %v9136
      %9169 = vst [vmem:[#allocation2 + $0x80] sm:$0xff] %v9137
      %9170 = vst [vmem:[#allocation2 + $0x88] sm:$0xff] %v9138
      %9171 = vst [vmem:[#allocation2 + $0x90] sm:$0xff] %v9139
      %9172 = vst [vmem:[#allocation2 + $0x98] sm:$0xff] %v9140
      %9173 = vst [vmem:[#allocation2 + $0xa0] sm:$0xff] %v9141
      %9174 = vst [vmem:[#allocation2 + $0xa8] sm:$0xff] %v9142
      %9175 = vst [vmem:[#allocation2 + $0xb0] sm:$0xff] %v9143
      %9176 = vst [vmem:[#allocation2 + $0xb8] sm:$0xff] %v9144
      %9177 = vst [vmem:[#allocation2 + $0xc0] sm:$0xff] %v9145
      %9178 = vst [vmem:[#allocation2 + $0xc8] sm:$0xff] %v9146
      %9179 = vst [vmem:[#allocation2 + $0xd0] sm:$0xff] %v9147
      %9180 = vst [vmem:[#allocation2 + $0xd8] sm:$0xff] %v9148
      %9181 = vst [vmem:[#allocation2 + $0xe0] sm:$0xff] %v9149
      %9182 = vst [vmem:[#allocation2 + $0xe8] sm:$0xff] %v9150
      %9183 = vst [vmem:[#allocation2 + $0xf0] sm:$0xff] %v9151
      %9184 = vst [vmem:[#allocation2 + $0xf8] sm:$0xff] %v9152
      %p9185 = scmp.eq.s32.totalorder %s28, 1
      // Predicated region
      $region73: #{speech_generator_ctc_forward.1} parent=67 // pred_check
        %p9186 = pneg %p9185
      $region74: #{speech_generator_ctc_forward.1} parent=67 // pred_check_branch
        %9188 = sbr.rel (%p9186) target = $region76
      $region75: #{speech_generator_ctc_forward.1} parent=67 // pred_region
        %v9189 = vpack.c.bf16 %v9122, %v9121
        %v9190 = vpack.c.bf16 %v9124, %v9123
        %v9191 = vpack.c.bf16 %v9126, %v9125
        %v9192 = vpack.c.bf16 %v9128, %v9127
        %v9193 = vpack.c.bf16 %v9130, %v9129
        %v9194 = vpack.c.bf16 %v9132, %v9131
        %v9195 = vpack.c.bf16 %v9134, %v9133
        %v9196 = vpack.c.bf16 %v9136, %v9135
        %v9197 = vpack.c.bf16 %v9138, %v9137
        %v9198 = vpack.c.bf16 %v9140, %v9139
        %v9199 = vpack.c.bf16 %v9142, %v9141
        %v9200 = vpack.c.bf16 %v9144, %v9143
        %v9201 = vpack.c.bf16 %v9146, %v9145
        %v9202 = vpack.c.bf16 %v9148, %v9147
        %v9203 = vpack.c.bf16 %v9150, %v9149
        %v9204 = vpack.c.bf16 %v9152, %v9151
        %v9205 = vld [vmem:[%s10] sm:$0xf]
        %v9206 = vld [vmem:[%s10 + $0x4] sm:$0xf]
        %v9207 = vld [vmem:[%s10 + $0x8] sm:$0xf]
        %v9208 = vld [vmem:[%s10 + $0xc] sm:$0xf]
        %v9209 = vld [vmem:[%s10 + $0x10] sm:$0xf]
        %v9210 = vld [vmem:[%s10 + $0x14] sm:$0xf]
        %v9211 = vld [vmem:[%s10 + $0x18] sm:$0xf]
        %v9212 = vld [vmem:[%s10 + $0x1c] sm:$0xf]
        %v9213 = vld [vmem:[%s10 + $0x20] sm:$0xf]
        %v9214 = vld [vmem:[%s10 + $0x24] sm:$0xf]
        %v9215 = vld [vmem:[%s10 + $0x28] sm:$0xf]
        %v9216 = vld [vmem:[%s10 + $0x2c] sm:$0xf]
        %v9217 = vld [vmem:[%s10 + $0x30] sm:$0xf]
        %v9218 = vld [vmem:[%s10 + $0x34] sm:$0xf]
        %v9219 = vld [vmem:[%s10 + $0x38] sm:$0xf]
        %v9220 = vld [vmem:[%s10 + $0x3c] sm:$0xf]
        %v9221 = vld [vmem:[%s11] sm:$0x1]
        %v9223 = vperm.slane %v9221, 0
        %v9241 = vunpack.c.l.b16 %v9205
        %v9242 = vunpack.c.l.b16 %v9206
        %v9243 = vunpack.c.l.b16 %v9207
        %v9244 = vunpack.c.l.b16 %v9208
        %v9245 = vunpack.c.l.b16 %v9209
        %v9246 = vunpack.c.l.b16 %v9210
        %v9247 = vunpack.c.l.b16 %v9211
        %v9248 = vunpack.c.l.b16 %v9212
        %v9249 = vunpack.c.l.b16 %v9213
        %v9250 = vunpack.c.l.b16 %v9214
        %v9251 = vunpack.c.l.b16 %v9215
        %v9252 = vunpack.c.l.b16 %v9216
        %v9253 = vunpack.c.l.b16 %v9217
        %v9254 = vunpack.c.l.b16 %v9218
        %v9255 = vunpack.c.l.b16 %v9219
        %v9256 = vunpack.c.l.b16 %v9220
        %v9257 = vpack.c.b16 %v9242, %v9241
        %v9258 = vpack.c.b16 %v9244, %v9243
        %v9259 = vpack.c.b16 %v9246, %v9245
        %v9260 = vpack.c.b16 %v9248, %v9247
        %v9261 = vpack.c.b16 %v9250, %v9249
        %v9262 = vpack.c.b16 %v9252, %v9251
        %v9263 = vpack.c.b16 %v9254, %v9253
        %v9264 = vpack.c.b16 %v9256, %v9255
        %9273 = vmatpush.bf16.msra.mxu0 %v9264
        %9274 = vmatpush.bf16.msra.mxu0 %v9263
        %9275 = vmatpush.bf16.msra.mxu0 %v9262
        %9276 = vmatpush.bf16.msra.mxu0 %v9261
        %9277 = vmatpush.bf16.msra.mxu0 %v9260
        %9278 = vmatpush.bf16.msra.mxu0 %v9259
        %9279 = vmatpush.bf16.msra.mxu0 %v9258
        %9280 = vmatpush.bf16.msra.mxu0 %v9257
        %9281 = vmatmul.bf16.gmra.mxu0 %v9189
        %v9282 = vpop.f32.mrf.mxu0
        %v9283 = vadd.f32 %v9223, %v9282
        %v9284 = vpop.f32.mrf.mxu0
        %v9285 = vadd.f32 %v9223, %v9284
        %9286 = vmatmul.bf16.gmra.mxu0 %v9190
        %v9287 = vpop.f32.mrf.mxu0
        %v9288 = vadd.f32 %v9223, %v9287
        %v9289 = vpop.f32.mrf.mxu0
        %v9290 = vadd.f32 %v9223, %v9289
        %9291 = vmatmul.bf16.gmra.mxu0 %v9191
        %v9292 = vpop.f32.mrf.mxu0
        %v9293 = vadd.f32 %v9223, %v9292
        %v9294 = vpop.f32.mrf.mxu0
        %v9295 = vadd.f32 %v9223, %v9294
        %9296 = vmatmul.bf16.gmra.mxu0 %v9192
        %v9297 = vpop.f32.mrf.mxu0
        %v9298 = vadd.f32 %v9223, %v9297
        %v9299 = vpop.f32.mrf.mxu0
        %v9300 = vadd.f32 %v9223, %v9299
        %9301 = vmatmul.bf16.gmra.mxu0 %v9193
        %v9302 = vpop.f32.mrf.mxu0
        %v9303 = vadd.f32 %v9223, %v9302
        %v9304 = vpop.f32.mrf.mxu0
        %v9305 = vadd.f32 %v9223, %v9304
        %9306 = vmatmul.bf16.gmra.mxu0 %v9194
        %v9307 = vpop.f32.mrf.mxu0
        %v9308 = vadd.f32 %v9223, %v9307
        %v9309 = vpop.f32.mrf.mxu0
        %v9310 = vadd.f32 %v9223, %v9309
        %9311 = vmatmul.bf16.gmra.mxu0 %v9195
        %v9312 = vpop.f32.mrf.mxu0
        %v9313 = vadd.f32 %v9223, %v9312
        %v9314 = vpop.f32.mrf.mxu0
        %v9315 = vadd.f32 %v9223, %v9314
        %9316 = vmatmul.bf16.gmra.mxu0 %v9196
        %v9317 = vpop.f32.mrf.mxu0
        %v9318 = vadd.f32 %v9223, %v9317
        %v9319 = vpop.f32.mrf.mxu0
        %v9320 = vadd.f32 %v9223, %v9319
        %9321 = vmatmul.bf16.gmra.mxu0 %v9197
        %v9322 = vpop.f32.mrf.mxu0
        %v9323 = vadd.f32 %v9223, %v9322
        %v9324 = vpop.f32.mrf.mxu0
        %v9325 = vadd.f32 %v9223, %v9324
        %9326 = vmatmul.bf16.gmra.mxu0 %v9198
        %v9327 = vpop.f32.mrf.mxu0
        %v9328 = vadd.f32 %v9223, %v9327
        %v9329 = vpop.f32.mrf.mxu0
        %v9330 = vadd.f32 %v9223, %v9329
        %9331 = vmatmul.bf16.gmra.mxu0 %v9199
        %v9332 = vpop.f32.mrf.mxu0
        %v9333 = vadd.f32 %v9223, %v9332
        %v9334 = vpop.f32.mrf.mxu0
        %v9335 = vadd.f32 %v9223, %v9334
        %9336 = vmatmul.bf16.gmra.mxu0 %v9200
        %v9337 = vpop.f32.mrf.mxu0
        %v9338 = vadd.f32 %v9223, %v9337
        %v9339 = vpop.f32.mrf.mxu0
        %v9340 = vadd.f32 %v9223, %v9339
        %9341 = vmatmul.bf16.gmra.mxu0 %v9201
        %v9342 = vpop.f32.mrf.mxu0
        %v9343 = vadd.f32 %v9223, %v9342
        %v9344 = vpop.f32.mrf.mxu0
        %v9345 = vadd.f32 %v9223, %v9344
        %9346 = vmatmul.bf16.gmra.mxu0 %v9202
        %v9347 = vpop.f32.mrf.mxu0
        %v9348 = vadd.f32 %v9223, %v9347
        %v9349 = vpop.f32.mrf.mxu0
        %v9350 = vadd.f32 %v9223, %v9349
        %9351 = vmatmul.bf16.gmra.mxu0 %v9203
        %v9352 = vpop.f32.mrf.mxu0
        %v9353 = vadd.f32 %v9223, %v9352
        %v9354 = vpop.f32.mrf.mxu0
        %v9355 = vadd.f32 %v9223, %v9354
        %9356 = vmatmul.bf16.gmra.mxu0 %v9204
        %v9357 = vpop.f32.mrf.mxu0
        %v9358 = vadd.f32 %v9223, %v9357
        %v9359 = vpop.f32.mrf.mxu0
        %v9360 = vadd.f32 %v9223, %v9359
        %9361 = vdwg.mxu0
        %9362 = vmax.xlane.f32.xlu0 %v9283
        %v9363 = vpop.xlane.xlu0 %9362
        %9364 = vmax.xlane.f32.xlu0 %v9285
        %v9365 = vpop.xlane.xlu0 %9364
        %9366 = vmax.xlane.f32.xlu0 %v9288
        %v9367 = vpop.xlane.xlu0 %9366
        %9368 = vmax.xlane.f32.xlu0 %v9290
        %v9369 = vpop.xlane.xlu0 %9368
        %9370 = vmax.xlane.f32.xlu0 %v9293
        %v9371 = vpop.xlane.xlu0 %9370
        %9372 = vmax.xlane.f32.xlu0 %v9295
        %v9373 = vpop.xlane.xlu0 %9372
        %9374 = vmax.xlane.f32.xlu0 %v9298
        %v9375 = vpop.xlane.xlu0 %9374
        %9376 = vmax.xlane.f32.xlu0 %v9300
        %v9377 = vpop.xlane.xlu0 %9376
        %9378 = vmax.xlane.f32.xlu0 %v9303
        %v9379 = vpop.xlane.xlu0 %9378
        %9380 = vmax.xlane.f32.xlu0 %v9305
        %v9381 = vpop.xlane.xlu0 %9380
        %9382 = vmax.xlane.f32.xlu0 %v9308
        %v9383 = vpop.xlane.xlu0 %9382
        %9384 = vmax.xlane.f32.xlu0 %v9310
        %v9385 = vpop.xlane.xlu0 %9384
        %9386 = vmax.xlane.f32.xlu0 %v9313
        %v9387 = vpop.xlane.xlu0 %9386
        %9388 = vmax.xlane.f32.xlu0 %v9315
        %v9389 = vpop.xlane.xlu0 %9388
        %9390 = vmax.xlane.f32.xlu0 %v9318
        %v9391 = vpop.xlane.xlu0 %9390
        %9392 = vmax.xlane.f32.xlu0 %v9320
        %v9393 = vpop.xlane.xlu0 %9392
        %9394 = vmax.xlane.f32.xlu0 %v9323
        %v9395 = vpop.xlane.xlu0 %9394
        %9396 = vmax.xlane.f32.xlu0 %v9325
        %v9397 = vpop.xlane.xlu0 %9396
        %9398 = vmax.xlane.f32.xlu0 %v9328
        %v9399 = vpop.xlane.xlu0 %9398
        %9400 = vmax.xlane.f32.xlu0 %v9330
        %v9401 = vpop.xlane.xlu0 %9400
        %9402 = vmax.xlane.f32.xlu0 %v9333
        %v9403 = vpop.xlane.xlu0 %9402
        %9404 = vmax.xlane.f32.xlu0 %v9335
        %v9405 = vpop.xlane.xlu0 %9404
        %9406 = vmax.xlane.f32.xlu0 %v9338
        %v9407 = vpop.xlane.xlu0 %9406
        %9408 = vmax.xlane.f32.xlu0 %v9340
        %v9409 = vpop.xlane.xlu0 %9408
        %9410 = vmax.xlane.f32.xlu0 %v9343
        %v9411 = vpop.xlane.xlu0 %9410
        %9412 = vmax.xlane.f32.xlu0 %v9345
        %v9413 = vpop.xlane.xlu0 %9412
        %9414 = vmax.xlane.f32.xlu0 %v9348
        %v9415 = vpop.xlane.xlu0 %9414
        %9416 = vmax.xlane.f32.xlu0 %v9350
        %v9417 = vpop.xlane.xlu0 %9416
        %9418 = vmax.xlane.f32.xlu0 %v9353
        %v9419 = vpop.xlane.xlu0 %9418
        %9420 = vmax.xlane.f32.xlu0 %v9355
        %v9421 = vpop.xlane.xlu0 %9420
        %9422 = vmax.xlane.f32.xlu0 %v9358
        %v9423 = vpop.xlane.xlu0 %9422
        %9424 = vmax.xlane.f32.xlu0 %v9360
        %v9425 = vpop.xlane.xlu0 %9424
        %v9426 = vsub.f32 %v9283, %v9363
        %v9427 = vsub.f32 %v9285, %v9365
        %v9428 = vsub.f32 %v9288, %v9367
        %v9429 = vsub.f32 %v9290, %v9369
        %v9430 = vsub.f32 %v9293, %v9371
        %v9431 = vsub.f32 %v9295, %v9373
        %v9432 = vsub.f32 %v9298, %v9375
        %v9433 = vsub.f32 %v9300, %v9377
        %v9434 = vsub.f32 %v9303, %v9379
        %v9435 = vsub.f32 %v9305, %v9381
        %v9436 = vsub.f32 %v9308, %v9383
        %v9437 = vsub.f32 %v9310, %v9385
        %v9438 = vsub.f32 %v9313, %v9387
        %v9439 = vsub.f32 %v9315, %v9389
        %v9440 = vsub.f32 %v9318, %v9391
        %v9441 = vsub.f32 %v9320, %v9393
        %v9442 = vsub.f32 %v9323, %v9395
        %v9443 = vsub.f32 %v9325, %v9397
        %v9444 = vsub.f32 %v9328, %v9399
        %v9445 = vsub.f32 %v9330, %v9401
        %v9446 = vsub.f32 %v9333, %v9403
        %v9447 = vsub.f32 %v9335, %v9405
        %v9448 = vsub.f32 %v9338, %v9407
        %v9449 = vsub.f32 %v9340, %v9409
        %v9450 = vsub.f32 %v9343, %v9411
        %v9451 = vsub.f32 %v9345, %v9413
        %v9452 = vsub.f32 %v9348, %v9415
        %v9453 = vsub.f32 %v9350, %v9417
        %v9454 = vsub.f32 %v9353, %v9419
        %v9455 = vsub.f32 %v9355, %v9421
        %v9456 = vsub.f32 %v9358, %v9423
        %v9457 = vsub.f32 %v9360, %v9425
        %v9458 = vmul.f32 %v9426, 1.442695
        %v9459 = vpow.pop %v9458
        %v9460 = vmul.f32 %v9427, 1.442695
        %v9461 = vpow.pop %v9460
        %v9462 = vmul.f32 %v9428, 1.442695
        %v9463 = vpow.pop %v9462
        %v9464 = vmul.f32 %v9429, 1.442695
        %v9465 = vpow.pop %v9464
        %v9466 = vmul.f32 %v9430, 1.442695
        %v9467 = vpow.pop %v9466
        %v9468 = vmul.f32 %v9431, 1.442695
        %v9469 = vpow.pop %v9468
        %v9470 = vmul.f32 %v9432, 1.442695
        %v9471 = vpow.pop %v9470
        %v9472 = vmul.f32 %v9433, 1.442695
        %v9473 = vpow.pop %v9472
        %v9474 = vmul.f32 %v9434, 1.442695
        %v9475 = vpow.pop %v9474
        %v9476 = vmul.f32 %v9435, 1.442695
        %v9477 = vpow.pop %v9476
        %v9478 = vmul.f32 %v9436, 1.442695
        %v9479 = vpow.pop %v9478
        %v9480 = vmul.f32 %v9437, 1.442695
        %v9481 = vpow.pop %v9480
        %v9482 = vmul.f32 %v9438, 1.442695
        %v9483 = vpow.pop %v9482
        %v9484 = vmul.f32 %v9439, 1.442695
        %v9485 = vpow.pop %v9484
        %v9486 = vmul.f32 %v9440, 1.442695
        %v9487 = vpow.pop %v9486
        %v9488 = vmul.f32 %v9441, 1.442695
        %v9489 = vpow.pop %v9488
        %v9490 = vmul.f32 %v9442, 1.442695
        %v9491 = vpow.pop %v9490
        %v9492 = vmul.f32 %v9443, 1.442695
        %v9493 = vpow.pop %v9492
        %v9494 = vmul.f32 %v9444, 1.442695
        %v9495 = vpow.pop %v9494
        %v9496 = vmul.f32 %v9445, 1.442695
        %v9497 = vpow.pop %v9496
        %v9498 = vmul.f32 %v9446, 1.442695
        %v9499 = vpow.pop %v9498
        %v9500 = vmul.f32 %v9447, 1.442695
        %v9501 = vpow.pop %v9500
        %v9502 = vmul.f32 %v9448, 1.442695
        %v9503 = vpow.pop %v9502
        %v9504 = vmul.f32 %v9449, 1.442695
        %v9505 = vpow.pop %v9504
        %v9506 = vmul.f32 %v9450, 1.442695
        %v9507 = vpow.pop %v9506
        %v9508 = vmul.f32 %v9451, 1.442695
        %v9509 = vpow.pop %v9508
        %v9510 = vmul.f32 %v9452, 1.442695
        %v9511 = vpow.pop %v9510
        %v9512 = vmul.f32 %v9453, 1.442695
        %v9513 = vpow.pop %v9512
        %v9514 = vmul.f32 %v9454, 1.442695
        %v9515 = vpow.pop %v9514
        %v9516 = vmul.f32 %v9455, 1.442695
        %v9517 = vpow.pop %v9516
        %v9518 = vmul.f32 %v9456, 1.442695
        %v9519 = vpow.pop %v9518
        %v9520 = vmul.f32 %v9457, 1.442695
        %v9521 = vpow.pop %v9520
        %9522 = vadd.xlane.f32.xlu0 %v9459
        %v9523 = vpop.xlane.xlu0 %9522
        %9524 = vadd.xlane.f32.xlu0 %v9461
        %v9525 = vpop.xlane.xlu0 %9524
        %9526 = vadd.xlane.f32.xlu0 %v9463
        %v9527 = vpop.xlane.xlu0 %9526
        %9528 = vadd.xlane.f32.xlu0 %v9465
        %v9529 = vpop.xlane.xlu0 %9528
        %9530 = vadd.xlane.f32.xlu0 %v9467
        %v9531 = vpop.xlane.xlu0 %9530
        %9532 = vadd.xlane.f32.xlu0 %v9469
        %v9533 = vpop.xlane.xlu0 %9532
        %9534 = vadd.xlane.f32.xlu0 %v9471
        %v9535 = vpop.xlane.xlu0 %9534
        %9536 = vadd.xlane.f32.xlu0 %v9473
        %v9537 = vpop.xlane.xlu0 %9536
        %9538 = vadd.xlane.f32.xlu0 %v9475
        %v9539 = vpop.xlane.xlu0 %9538
        %9540 = vadd.xlane.f32.xlu0 %v9477
        %v9541 = vpop.xlane.xlu0 %9540
        %9542 = vadd.xlane.f32.xlu0 %v9479
        %v9543 = vpop.xlane.xlu0 %9542
        %9544 = vadd.xlane.f32.xlu0 %v9481
        %v9545 = vpop.xlane.xlu0 %9544
        %9546 = vadd.xlane.f32.xlu0 %v9483
        %v9547 = vpop.xlane.xlu0 %9546
        %9548 = vadd.xlane.f32.xlu0 %v9485
        %v9549 = vpop.xlane.xlu0 %9548
        %9550 = vadd.xlane.f32.xlu0 %v9487
        %v9551 = vpop.xlane.xlu0 %9550
        %9552 = vadd.xlane.f32.xlu0 %v9489
        %v9553 = vpop.xlane.xlu0 %9552
        %9554 = vadd.xlane.f32.xlu0 %v9491
        %v9555 = vpop.xlane.xlu0 %9554
        %9556 = vadd.xlane.f32.xlu0 %v9493
        %v9557 = vpop.xlane.xlu0 %9556
        %9558 = vadd.xlane.f32.xlu0 %v9495
        %v9559 = vpop.xlane.xlu0 %9558
        %9560 = vadd.xlane.f32.xlu0 %v9497
        %v9561 = vpop.xlane.xlu0 %9560
        %9562 = vadd.xlane.f32.xlu0 %v9499
        %v9563 = vpop.xlane.xlu0 %9562
        %9564 = vadd.xlane.f32.xlu0 %v9501
        %v9565 = vpop.xlane.xlu0 %9564
        %9566 = vadd.xlane.f32.xlu0 %v9503
        %v9567 = vpop.xlane.xlu0 %9566
        %9568 = vadd.xlane.f32.xlu0 %v9505
        %v9569 = vpop.xlane.xlu0 %9568
        %9570 = vadd.xlane.f32.xlu0 %v9507
        %v9571 = vpop.xlane.xlu0 %9570
        %9572 = vadd.xlane.f32.xlu0 %v9509
        %v9573 = vpop.xlane.xlu0 %9572
        %9574 = vadd.xlane.f32.xlu0 %v9511
        %v9575 = vpop.xlane.xlu0 %9574
        %9576 = vadd.xlane.f32.xlu0 %v9513
        %v9577 = vpop.xlane.xlu0 %9576
        %9578 = vadd.xlane.f32.xlu0 %v9515
        %v9579 = vpop.xlane.xlu0 %9578
        %9580 = vadd.xlane.f32.xlu0 %v9517
        %v9581 = vpop.xlane.xlu0 %9580
        %9582 = vadd.xlane.f32.xlu0 %v9519
        %v9583 = vpop.xlane.xlu0 %9582
        %9584 = vadd.xlane.f32.xlu0 %v9521
        %v9585 = vpop.xlane.xlu0 %9584
        %v9586 = vlog2.pop %v9523
        %v9587 = vmul.f32 %v9586, 0.6931472
        %v9588 = vlog2.pop %v9525
        %v9589 = vmul.f32 %v9588, 0.6931472
        %v9590 = vlog2.pop %v9527
        %v9591 = vmul.f32 %v9590, 0.6931472
        %v9592 = vlog2.pop %v9529
        %v9593 = vmul.f32 %v9592, 0.6931472
        %v9594 = vlog2.pop %v9531
        %v9595 = vmul.f32 %v9594, 0.6931472
        %v9596 = vlog2.pop %v9533
        %v9597 = vmul.f32 %v9596, 0.6931472
        %v9598 = vlog2.pop %v9535
        %v9599 = vmul.f32 %v9598, 0.6931472
        %v9600 = vlog2.pop %v9537
        %v9601 = vmul.f32 %v9600, 0.6931472
        %v9602 = vlog2.pop %v9539
        %v9603 = vmul.f32 %v9602, 0.6931472
        %v9604 = vlog2.pop %v9541
        %v9605 = vmul.f32 %v9604, 0.6931472
        %v9606 = vlog2.pop %v9543
        %v9607 = vmul.f32 %v9606, 0.6931472
        %v9608 = vlog2.pop %v9545
        %v9609 = vmul.f32 %v9608, 0.6931472
        %v9610 = vlog2.pop %v9547
        %v9611 = vmul.f32 %v9610, 0.6931472
        %v9612 = vlog2.pop %v9549
        %v9613 = vmul.f32 %v9612, 0.6931472
        %v9614 = vlog2.pop %v9551
        %v9615 = vmul.f32 %v9614, 0.6931472
        %v9616 = vlog2.pop %v9553
        %v9617 = vmul.f32 %v9616, 0.6931472
        %v9618 = vlog2.pop %v9555
        %v9619 = vmul.f32 %v9618, 0.6931472
        %v9620 = vlog2.pop %v9557
        %v9621 = vmul.f32 %v9620, 0.6931472
        %v9622 = vlog2.pop %v9559
        %v9623 = vmul.f32 %v9622, 0.6931472
        %v9624 = vlog2.pop %v9561
        %v9625 = vmul.f32 %v9624, 0.6931472
        %v9626 = vlog2.pop %v9563
        %v9627 = vmul.f32 %v9626, 0.6931472
        %v9628 = vlog2.pop %v9565
        %v9629 = vmul.f32 %v9628, 0.6931472
        %v9630 = vlog2.pop %v9567
        %v9631 = vmul.f32 %v9630, 0.6931472
        %v9632 = vlog2.pop %v9569
        %v9633 = vmul.f32 %v9632, 0.6931472
        %v9634 = vlog2.pop %v9571
        %v9635 = vmul.f32 %v9634, 0.6931472
        %v9636 = vlog2.pop %v9573
        %v9637 = vmul.f32 %v9636, 0.6931472
        %v9638 = vlog2.pop %v9575
        %v9639 = vmul.f32 %v9638, 0.6931472
        %v9640 = vlog2.pop %v9577
        %v9641 = vmul.f32 %v9640, 0.6931472
        %v9642 = vlog2.pop %v9579
        %v9643 = vmul.f32 %v9642, 0.6931472
        %v9644 = vlog2.pop %v9581
        %v9645 = vmul.f32 %v9644, 0.6931472
        %v9646 = vlog2.pop %v9583
        %v9647 = vmul.f32 %v9646, 0.6931472
        %v9648 = vlog2.pop %v9585
        %v9649 = vmul.f32 %v9648, 0.6931472
        %v9650 = vadd.f32 %v9587, %v9363
        %v9651 = vadd.f32 %v9589, %v9365
        %v9652 = vadd.f32 %v9591, %v9367
        %v9653 = vadd.f32 %v9593, %v9369
        %v9654 = vadd.f32 %v9595, %v9371
        %v9655 = vadd.f32 %v9597, %v9373
        %v9656 = vadd.f32 %v9599, %v9375
        %v9657 = vadd.f32 %v9601, %v9377
        %v9658 = vadd.f32 %v9603, %v9379
        %v9659 = vadd.f32 %v9605, %v9381
        %v9660 = vadd.f32 %v9607, %v9383
        %v9661 = vadd.f32 %v9609, %v9385
        %v9662 = vadd.f32 %v9611, %v9387
        %v9663 = vadd.f32 %v9613, %v9389
        %v9664 = vadd.f32 %v9615, %v9391
        %v9665 = vadd.f32 %v9617, %v9393
        %v9666 = vadd.f32 %v9619, %v9395
        %v9667 = vadd.f32 %v9621, %v9397
        %v9668 = vadd.f32 %v9623, %v9399
        %v9669 = vadd.f32 %v9625, %v9401
        %v9670 = vadd.f32 %v9627, %v9403
        %v9671 = vadd.f32 %v9629, %v9405
        %v9672 = vadd.f32 %v9631, %v9407
        %v9673 = vadd.f32 %v9633, %v9409
        %v9674 = vadd.f32 %v9635, %v9411
        %v9675 = vadd.f32 %v9637, %v9413
        %v9676 = vadd.f32 %v9639, %v9415
        %v9677 = vadd.f32 %v9641, %v9417
        %v9678 = vadd.f32 %v9643, %v9419
        %v9679 = vadd.f32 %v9645, %v9421
        %v9680 = vadd.f32 %v9647, %v9423
        %v9681 = vadd.f32 %v9649, %v9425
        %v9682 = vsub.f32 %v9283, %v9650
        %v9683 = vsub.f32 %v9285, %v9651
        %v9684 = vsub.f32 %v9288, %v9652
        %v9685 = vsub.f32 %v9290, %v9653
        %v9686 = vsub.f32 %v9293, %v9654
        %v9687 = vsub.f32 %v9295, %v9655
        %v9688 = vsub.f32 %v9298, %v9656
        %v9689 = vsub.f32 %v9300, %v9657
        %v9690 = vsub.f32 %v9303, %v9658
        %v9691 = vsub.f32 %v9305, %v9659
        %v9692 = vsub.f32 %v9308, %v9660
        %v9693 = vsub.f32 %v9310, %v9661
        %v9694 = vsub.f32 %v9313, %v9662
        %v9695 = vsub.f32 %v9315, %v9663
        %v9696 = vsub.f32 %v9318, %v9664
        %v9697 = vsub.f32 %v9320, %v9665
        %v9698 = vsub.f32 %v9323, %v9666
        %v9699 = vsub.f32 %v9325, %v9667
        %v9700 = vsub.f32 %v9328, %v9668
        %v9701 = vsub.f32 %v9330, %v9669
        %v9702 = vsub.f32 %v9333, %v9670
        %v9703 = vsub.f32 %v9335, %v9671
        %v9704 = vsub.f32 %v9338, %v9672
        %v9705 = vsub.f32 %v9340, %v9673
        %v9706 = vsub.f32 %v9343, %v9674
        %v9707 = vsub.f32 %v9345, %v9675
        %v9708 = vsub.f32 %v9348, %v9676
        %v9709 = vsub.f32 %v9350, %v9677
        %v9710 = vsub.f32 %v9353, %v9678
        %v9711 = vsub.f32 %v9355, %v9679
        %v9712 = vsub.f32 %v9358, %v9680
        %v9713 = vsub.f32 %v9360, %v9681
        %9714 = vst [vmem:[%s531] sm:$0xff] %v9682
        %9715 = vst [vmem:[%s531 + $0x8] sm:$0xff] %v9683
        %9716 = vst [vmem:[%s531 + $0x10] sm:$0xff] %v9684
        %9717 = vst [vmem:[%s531 + $0x18] sm:$0xff] %v9685
        %9718 = vst [vmem:[%s531 + $0x20] sm:$0xff] %v9686
        %9719 = vst [vmem:[%s531 + $0x28] sm:$0xff] %v9687
        %9720 = vst [vmem:[%s531 + $0x30] sm:$0xff] %v9688
        %9721 = vst [vmem:[%s531 + $0x38] sm:$0xff] %v9689
        %9722 = vst [vmem:[%s531 + $0x40] sm:$0xff] %v9690
        %9723 = vst [vmem:[%s531 + $0x48] sm:$0xff] %v9691
        %9724 = vst [vmem:[%s531 + $0x50] sm:$0xff] %v9692
        %9725 = vst [vmem:[%s531 + $0x58] sm:$0xff] %v9693
        %9726 = vst [vmem:[%s531 + $0x60] sm:$0xff] %v9694
        %9727 = vst [vmem:[%s531 + $0x68] sm:$0xff] %v9695
        %9728 = vst [vmem:[%s531 + $0x70] sm:$0xff] %v9696
        %9729 = vst [vmem:[%s531 + $0x78] sm:$0xff] %v9697
        %9730 = vst [vmem:[%s531 + $0x80] sm:$0xff] %v9698
        %9731 = vst [vmem:[%s531 + $0x88] sm:$0xff] %v9699
        %9732 = vst [vmem:[%s531 + $0x90] sm:$0xff] %v9700
        %9733 = vst [vmem:[%s531 + $0x98] sm:$0xff] %v9701
        %9734 = vst [vmem:[%s531 + $0xa0] sm:$0xff] %v9702
        %9735 = vst [vmem:[%s531 + $0xa8] sm:$0xff] %v9703
        %9736 = vst [vmem:[%s531 + $0xb0] sm:$0xff] %v9704
        %9737 = vst [vmem:[%s531 + $0xb8] sm:$0xff] %v9705
        %9738 = vst [vmem:[%s531 + $0xc0] sm:$0xff] %v9706
        %9739 = vst [vmem:[%s531 + $0xc8] sm:$0xff] %v9707
        %9740 = vst [vmem:[%s531 + $0xd0] sm:$0xff] %v9708
        %9741 = vst [vmem:[%s531 + $0xd8] sm:$0xff] %v9709
        %9742 = vst [vmem:[%s531 + $0xe0] sm:$0xff] %v9710
        %9743 = vst [vmem:[%s531 + $0xe8] sm:$0xff] %v9711
        %9744 = vst [vmem:[%s531 + $0xf0] sm:$0xff] %v9712
        %9745 = vst [vmem:[%s531 + $0xf8] sm:$0xff] %v9713
      $region76: #{speech_generator_ctc_forward.1} parent=67 // pred_fallthru
        _
      %s9746 = smul.u32 2, %s27
      %p9747 = scmp.lt.s32.totalorder %s9746, 1
      %s9748 = scalar_select %p9747, %s9746, 1
      %s9749 = smul.addr %s9748, 16
      %s9750 = smul.addr %s9749, 8
      %s9751 = scalar_lea.vmem %s12, %s9750
      // Predicated region
      $region77: #{speech_generator_ctc_forward.1} parent=67 // pred_check
        %p9752 = pneg %p335
      $region78: #{speech_generator_ctc_forward.1} parent=67 // pred_check_branch
        %9754 = sbr.rel (%p9752) target = $region80
      $region79: #{speech_generator_ctc_forward.1} parent=67 // pred_region
        %s9755 = smul.u32 2, %s27
      $region80: #{speech_generator_ctc_forward.1} parent=67 // pred_fallthru
        _
      // Predicated region
      $region81: #{speech_generator_ctc_forward.1} parent=67 // pred_check
        %p9756 = pneg %p335
      $region82: #{speech_generator_ctc_forward.1} parent=67 // pred_check_branch
        %9758 = sbr.rel (%p9756) target = $region84
      $region83: #{speech_generator_ctc_forward.1} parent=67 // pred_region
        %s9759 = smul.u32 2, %s27
        %p9760 = scmp.lt.s32.totalorder %s9759, 1
        %s9761 = scalar_select %p9760, %s9759, 1
        %s9762 = smul.addr %s9761, 16
        %s9763 = smul.addr %s9762, 8
        %s9764 = scalar_lea.vmem %s12, %s9763
      $region84: #{speech_generator_ctc_forward.1} parent=67 // pred_fallthru
        _
    $region68: #{speech_generator_ctc_forward.1} parent=5 // pred_fallthru
      _
    %p9765 = scmp.le.s32.totalorder 2, %s18
    // Predicated region
    $region85: #{speech_generator_ctc_forward.1} parent=5 // pred_check
      %p9766 = pneg %p9765
    $region86: #{speech_generator_ctc_forward.1} parent=5 // pred_check_branch
      %9768 = sbr.rel (%p9766) target = $region88
    $region87: #{speech_generator_ctc_forward.1} parent=5 // pred_region
      %s9769 = ssub.s32 %s18, 2
    $region88: #{speech_generator_ctc_forward.1} parent=5 // pred_fallthru
      _
  $region6: #{speech_generator_ctc_forward.1} parent=0 // loop_footer
    %s22 = sadd.s32 1, %s18
  $region7: #{speech_generator_ctc_forward.1} parent=0 // loop_footer_branch
    %17 = sbr.rel target = $region3
  $region8: #{speech_generator_ctc_forward.1} parent=0 // loop_exit
    _

</llo_original>
